<compile_context>
chip_gen: v5e
topology: v5e:2x2
jax: 0.10.0
libtpu: 0.0.40
codegen_flags: <defaults>
</compile_context>

<pallas_src>
import functools

import jax
import jax.numpy as jnp
from jax.experimental import pallas as pl
from jax.experimental.pallas import tpu as pltpu

EPS = 1e-5


def _make_kernel(H, W, Cin, Cout, has_projection):
    HW = H * W

    def _zero_halo(ref, C):
        # Only the 1-pixel border needs zeroing; the interior is fully
        # rewritten every grid step.  Done per-step (not pl.when(pid==0)) so
        # a megacore-"parallel" batch axis stays correct (scratch is per-core).
        ref[0:1, :, :] = jnp.zeros((1, W + 2, C), jnp.bfloat16)
        ref[H + 1:H + 2, :, :] = jnp.zeros((1, W + 2, C), jnp.bfloat16)
        ref[:, 0:1, :] = jnp.zeros((H + 2, 1, C), jnp.bfloat16)
        ref[:, W + 1:W + 2, :] = jnp.zeros((H + 2, 1, C), jnp.bfloat16)

    def _conv3x3(pad_ref, C, slab_ref, w_ref, b_ref):
        # im2col: stage the (HW, 9*C) bf16 patch slab with 9 static-slice
        # stores (leading-dim-merge reshapes only, lane dim untouched), then
        # ONE MXU matmul with K = 9*C.  BN scale is already folded into w_ref;
        # only the f32 per-channel bias is added here.
        for t in range(9):
            kh, kw = divmod(t, 3)
            slab_ref[:, t * C:(t + 1) * C] = (
                pad_ref[kh:kh + H, kw:kw + W, :].reshape(HW, C))
        return jnp.dot(slab_ref[:, :9 * C], w_ref[...],
                       preferred_element_type=jnp.float32) + b_ref[...]

    def kernel(x_ref, w1_ref, w2_ref, *rest):
        if has_projection:
            (wsc_ref, b1_ref, b2_ref, bsc_ref,
             out_ref, xpad_ref, mid_ref, slab_ref) = rest
        else:
            (b1_ref, b2_ref, out_ref, xpad_ref, mid_ref, slab_ref) = rest

        # ---- stage bf16 input into padded VMEM scratch ---------------------
        _zero_halo(xpad_ref, Cin)
        xpad_ref[1:1 + H, 1:1 + W, :] = x_ref[...]

        # ---- conv1 (+ folded bn1 scale) + bias + relu ----------------------
        h1 = jnp.maximum(_conv3x3(xpad_ref, Cin, slab_ref, w1_ref, b1_ref), 0.0)

        # ---- restage intermediate (bf16), padded, for conv2 ----------------
        _zero_halo(mid_ref, Cout)
        mid_ref[1:1 + H, 1:1 + W, :] = h1.reshape(H, W, Cout).astype(jnp.bfloat16)

        # ---- conv2 (+ folded bn2 scale) + bias -----------------------------
        h2 = _conv3x3(mid_ref, Cout, slab_ref, w2_ref, b2_ref)

        # ---- shortcut ------------------------------------------------------
        if has_projection:
            xc = x_ref[...].reshape(HW, Cin)            # already bf16
            sc = jnp.dot(xc, wsc_ref[...],
                         preferred_element_type=jnp.float32) + bsc_ref[...]
        else:
            # identity: no matmul, no BN -- just add the (upcast) input
            sc = x_ref[...].reshape(HW, Cin).astype(jnp.float32)

        # ---- residual add + relu (f32) --------------------------------------
        out_ref[...] = jnp.maximum(h2 + sc, 0.0).reshape(H, W, Cout)

    return kernel


def _fold_bn(gamma, beta, mean, var):
    scale = gamma / jnp.sqrt(var + EPS)
    bias = beta - mean * scale
    return scale.reshape(1, -1), bias.reshape(1, -1)


def residual_block_forward(x_nchw, params, stride=1):
    """Pallas forward of ResidualBlock. x_nchw: (B, Cin, H, W) float32."""
    if stride != 1:
        # TODO(synk): stride>1 (downsampling) tap gather not implemented.
        raise NotImplementedError("stride != 1 not supported by this kernel")
    B, Cin, H, W = x_nchw.shape
    Cout = params["w1"].shape[0]
    Cmax = max(Cin, Cout)
    HW = H * W

    # NCHW -> NHWC + bf16 cast (fused by XLA into one pass).
    x_nhwc = jnp.transpose(x_nchw, (0, 2, 3, 1)).astype(jnp.bfloat16)

    # OIHW -> flattened im2col weight matrix (9*Cin, Cout), row index
    # (kh*3+kw)*Cin + c, BN scale folded along Cout, bf16 (native MXU dtype).
    def im2col_weights(w, scale):
        t = jnp.transpose(w, (2, 3, 1, 0)).reshape(-1, w.shape[0])
        return (t * scale).astype(jnp.bfloat16)

    s1, b1 = _fold_bn(*params["bn1"])
    s2, b2 = _fold_bn(*params["bn2"])
    w1 = im2col_weights(params["w1"], s1)          # (9*Cin, Cout)
    w2 = im2col_weights(params["w2"], s2)          # (9*Cout, Cout)

    has_projection = "wsc" in params

    chan_spec = pl.BlockSpec((1, Cout), lambda b: (0, 0))
    in_specs = [
        pl.BlockSpec((None, H, W, Cin), lambda b: (b, 0, 0, 0)),   # x (bf16)
        pl.BlockSpec((9 * Cin, Cout), lambda b: (0, 0)),           # w1
        pl.BlockSpec((9 * Cout, Cout), lambda b: (0, 0)),          # w2
    ]
    args = [x_nhwc, w1, w2]
    if has_projection:
        ssc, bsc = _fold_bn(*params["bnsc"])
        wsc = jnp.transpose(params["wsc"], (2, 3, 1, 0)).reshape(Cin, Cout)
        wsc = (wsc * ssc).astype(jnp.bfloat16)
        in_specs.append(pl.BlockSpec((Cin, Cout), lambda b: (0, 0)))
        args.append(wsc)
    in_specs += [chan_spec, chan_spec]      # bn1 bias, bn2 bias (f32)
    args += [b1, b2]
    if has_projection:
        in_specs.append(chan_spec)          # shortcut bn bias
        args.append(bsc)

    kernel = _make_kernel(H, W, Cin, Cout, has_projection)

    out_nhwc = pl.pallas_call(
        kernel,
        out_shape=jax.ShapeDtypeStruct((B, H, W, Cout), jnp.float32),
        grid=(B,),
        in_specs=in_specs,
        out_specs=pl.BlockSpec((None, H, W, Cout), lambda b: (b, 0, 0, 0)),
        scratch_shapes=[
            pltpu.VMEM((H + 2, W + 2, Cin), jnp.bfloat16),   # padded input
            pltpu.VMEM((H + 2, W + 2, Cout), jnp.bfloat16),  # padded mid
            pltpu.VMEM((HW, 9 * Cmax), jnp.bfloat16),        # im2col slab
        ],
        compiler_params=pltpu.CompilerParams(
            dimension_semantics=("parallel",)),       # batch is independent
    )(*args)

    return jnp.transpose(out_nhwc, (0, 3, 1, 2))


# --------------------------- reference & params -----------------------------

def init_params(key, in_channels, out_channels, stride=1):
    ks = jax.random.split(key, 6)

    def bn_params(k, c):
        k1, k2, k3, k4 = jax.random.split(k, 4)
        gamma = 1.0 + 0.1 * jax.random.normal(k1, (c,), jnp.float32)
        beta = 0.1 * jax.random.normal(k2, (c,), jnp.float32)
        mean = 0.1 * jax.random.normal(k3, (c,), jnp.float32)
        var = jax.random.uniform(k4, (c,), jnp.float32, 0.5, 1.5)
        return (gamma, beta, mean, var)

    p = {
        "w1": 0.2 * jax.random.normal(ks[0], (out_channels, in_channels, 3, 3), jnp.float32),
        "bn1": bn_params(ks[1], out_channels),
        "w2": 0.2 * jax.random.normal(ks[2], (out_channels, out_channels, 3, 3), jnp.float32),
        "bn2": bn_params(ks[3], out_channels),
    }
    if stride != 1 or in_channels != out_channels:
        p["wsc"] = 0.2 * jax.random.normal(ks[4], (out_channels, in_channels, 1, 1), jnp.float32)
        p["bnsc"] = bn_params(ks[5], out_channels)
    return p


def ref_forward(x, p, stride=1):
    conv = functools.partial(
        jax.lax.conv_general_dilated,
        dimension_numbers=("NCHW", "OIHW", "NCHW"),
        precision=jax.lax.Precision.HIGHEST)

    def bn(y, prm):
        g, b, m, v = (t[None, :, None, None] for t in prm)
        return (y - m) / jnp.sqrt(v + EPS) * g + b

    out = jax.nn.relu(bn(conv(x, p["w1"], (stride, stride), ((1, 1), (1, 1))), p["bn1"]))
    out = bn(conv(out, p["w2"], (1, 1), ((1, 1), (1, 1))), p["bn2"])
    if "wsc" in p:
        sc = bn(conv(x, p["wsc"], (stride, stride), ((0, 0), (0, 0))), p["bnsc"])
    else:
        sc = x
    return jax.nn.relu(out + sc)


def _check(x, params, name):
    out = jax.block_until_ready(residual_block_forward(x, params, stride=1))
    ref = ref_forward(x, params, stride=1)
    assert out.shape == ref.shape
    max_err = float(jnp.max(jnp.abs(out - ref)))
    # bf16 input + bf16 MXU matmuls vs f32 HIGHEST reference -> ~2% budget
    tol = 2e-2 * max(1.0, float(jnp.max(jnp.abs(ref))))
    if max_err > tol:
        raise AssertionError(f"{name}: max abs err {max_err} > tol {tol}")


if __name__ == "__main__":
    key = jax.random.PRNGKey(0)
    kx, kp1, kp2 = jax.random.split(key, 3)

    # projection-shortcut block (Cin != Cout): 1x1 conv + BN on the shortcut
    B, Cin, Cout, H, W = 2, 4, 8, 16, 16
    x = jax.random.normal(kx, (B, Cin, H, W), jnp.float32)
    _check(x, init_params(kp1, Cin, Cout, stride=1), "projection")

    # identity-shortcut block (Cin == Cout): exercises the no-matmul fast path
    x2 = jax.random.normal(kx, (B, Cout, H, W), jnp.float32)
    _check(x2, init_params(kp2, Cout, Cout, stride=1), "identity")

    print("KERNEL_OK")
</pallas_src>

<mosaic_0001>
module attributes {stable_mosaic.version = 11 : i64} {
  func.func @kernel(%arg0: i32, %arg1: memref<1x16x16x4xbf16, #tpu.memory_space<vmem>>, %arg2: memref<36x8xbf16, #tpu.memory_space<vmem>>, %arg3: memref<72x8xbf16, #tpu.memory_space<vmem>>, %arg4: memref<4x8xbf16, #tpu.memory_space<vmem>>, %arg5: memref<1x8xf32, #tpu.memory_space<vmem>>, %arg6: memref<1x8xf32, #tpu.memory_space<vmem>>, %arg7: memref<1x8xf32, #tpu.memory_space<vmem>>, %arg8: memref<1x16x16x8xf32, #tpu.memory_space<vmem>>, %arg9: memref<18x18x4xbf16, #tpu.memory_space<vmem>>, %arg10: memref<18x18x8xbf16, #tpu.memory_space<vmem>>, %arg11: memref<256x72xbf16, #tpu.memory_space<vmem>>) attributes {dimension_semantics = [#tpu.dimension_semantics<parallel>], iteration_bounds = array<i64: 2>, scalar_prefetch = 0 : i64, scratch_operands = 3 : i64, tpu.core_type = #tpu.core_type<tc>, window_params = [{transform_indices = @transform_0, window_bounds = array<i64: 1, 16, 16, 4>}, {pipeline_mode = #tpu.pipeline_mode<synchronous>, transform_indices = @transform_1, window_bounds = array<i64: 36, 8>}, {pipeline_mode = #tpu.pipeline_mode<synchronous>, transform_indices = @transform_2, window_bounds = array<i64: 72, 8>}, {pipeline_mode = #tpu.pipeline_mode<synchronous>, transform_indices = @transform_3, window_bounds = array<i64: 4, 8>}, {pipeline_mode = #tpu.pipeline_mode<synchronous>, transform_indices = @transform_4, window_bounds = array<i64: 1, 8>}, {pipeline_mode = #tpu.pipeline_mode<synchronous>, transform_indices = @transform_5, window_bounds = array<i64: 1, 8>}, {pipeline_mode = #tpu.pipeline_mode<synchronous>, transform_indices = @transform_6, window_bounds = array<i64: 1, 8>}, {transform_indices = @transform_7, window_bounds = array<i64: 1, 16, 16, 8>}]} {
    %cst = arith.constant 0.000000e+00 : bf16
    %0 = vector.broadcast %cst : bf16 to vector<1x18x4xbf16>
    %c0 = arith.constant 0 : index
    %c0_0 = arith.constant 0 : index
    %c0_1 = arith.constant 0 : index
    %1 = vector.load %arg9[%c0, %c0_0, %c0_1] : memref<18x18x4xbf16, #tpu.memory_space<vmem>>, vector<1x18x4xbf16>
    tpu.vector_store %arg9[%c0, %c0_0, %c0_1], %0 {strides = array<i32>} : memref<18x18x4xbf16, #tpu.memory_space<vmem>>, vector<1x18x4xbf16>,
    %cst_2 = arith.constant 0.000000e+00 : bf16
    %2 = vector.broadcast %cst_2 : bf16 to vector<1x18x4xbf16>
    %c17 = arith.constant 17 : index
    %c0_3 = arith.constant 0 : index
    %c0_4 = arith.constant 0 : index
    %3 = vector.load %arg9[%c17, %c0_3, %c0_4] : memref<18x18x4xbf16, #tpu.memory_space<vmem>>, vector<1x18x4xbf16>
    tpu.vector_store %arg9[%c17, %c0_3, %c0_4], %2 {strides = array<i32>} : memref<18x18x4xbf16, #tpu.memory_space<vmem>>, vector<1x18x4xbf16>,
    %cst_5 = arith.constant 0.000000e+00 : bf16
    %4 = vector.broadcast %cst_5 : bf16 to vector<18x1x4xbf16>
    %c0_6 = arith.constant 0 : index
    %c0_7 = arith.constant 0 : index
    %c0_8 = arith.constant 0 : index
    %5 = vector.load %arg9[%c0_6, %c0_7, %c0_8] : memref<18x18x4xbf16, #tpu.memory_space<vmem>>, vector<18x1x4xbf16>
    tpu.vector_store %arg9[%c0_6, %c0_7, %c0_8], %4 {strides = array<i32>} : memref<18x18x4xbf16, #tpu.memory_space<vmem>>, vector<18x1x4xbf16>,
    %cst_9 = arith.constant 0.000000e+00 : bf16
    %6 = vector.broadcast %cst_9 : bf16 to vector<18x1x4xbf16>
    %c0_10 = arith.constant 0 : index
    %c17_11 = arith.constant 17 : index
    %c0_12 = arith.constant 0 : index
    %7 = vector.load %arg9[%c0_10, %c17_11, %c0_12] : memref<18x18x4xbf16, #tpu.memory_space<vmem>>, vector<18x1x4xbf16>
    tpu.vector_store %arg9[%c0_10, %c17_11, %c0_12], %6 {strides = array<i32>} : memref<18x18x4xbf16, #tpu.memory_space<vmem>>, vector<18x1x4xbf16>,
    %c0_13 = arith.constant 0 : index
    %c0_14 = arith.constant 0 : index
    %c0_15 = arith.constant 0 : index
    %c0_16 = arith.constant 0 : index
    %8 = vector.load %arg1[%c0_13, %c0_14, %c0_15, %c0_16] : memref<1x16x16x4xbf16, #tpu.memory_space<vmem>>, vector<1x16x16x4xbf16>
    %9 = vector.shape_cast %8 : vector<1x16x16x4xbf16> to vector<16x16x4xbf16>
    %c1 = arith.constant 1 : index
    %c1_17 = arith.constant 1 : index
    %c0_18 = arith.constant 0 : index
    %10 = vector.load %arg9[%c1, %c1_17, %c0_18] : memref<18x18x4xbf16, #tpu.memory_space<vmem>>, vector<16x16x4xbf16>
    tpu.vector_store %arg9[%c1, %c1_17, %c0_18], %9 {strides = array<i32>} : memref<18x18x4xbf16, #tpu.memory_space<vmem>>, vector<16x16x4xbf16>,
    %c0_19 = arith.constant 0 : index
    %c0_20 = arith.constant 0 : index
    %c0_21 = arith.constant 0 : index
    %11 = vector.load %arg9[%c0_19, %c0_20, %c0_21] : memref<18x18x4xbf16, #tpu.memory_space<vmem>>, vector<16x16x4xbf16>
    %12 = vector.shape_cast %11 : vector<16x16x4xbf16> to vector<256x4xbf16>
    %c0_22 = arith.constant 0 : index
    %c0_23 = arith.constant 0 : index
    %13 = vector.load %arg11[%c0_22, %c0_23] : memref<256x72xbf16, #tpu.memory_space<vmem>>, vector<256x4xbf16>
    tpu.vector_store %arg11[%c0_22, %c0_23], %12 {strides = array<i32>} : memref<256x72xbf16, #tpu.memory_space<vmem>>, vector<256x4xbf16>,
    %c0_24 = arith.constant 0 : index
    %c1_25 = arith.constant 1 : index
    %c0_26 = arith.constant 0 : index
    %14 = vector.load %arg9[%c0_24, %c1_25, %c0_26] : memref<18x18x4xbf16, #tpu.memory_space<vmem>>, vector<16x16x4xbf16>
    %15 = vector.shape_cast %14 : vector<16x16x4xbf16> to vector<256x4xbf16>
    %c0_27 = arith.constant 0 : index
    %c4 = arith.constant 4 : index
    %16 = vector.load %arg11[%c0_27, %c4] : memref<256x72xbf16, #tpu.memory_space<vmem>>, vector<256x4xbf16>
    tpu.vector_store %arg11[%c0_27, %c4], %15 {strides = array<i32>} : memref<256x72xbf16, #tpu.memory_space<vmem>>, vector<256x4xbf16>,
    %c0_28 = arith.constant 0 : index
    %c2 = arith.constant 2 : index
    %c0_29 = arith.constant 0 : index
    %17 = vector.load %arg9[%c0_28, %c2, %c0_29] : memref<18x18x4xbf16, #tpu.memory_space<vmem>>, vector<16x16x4xbf16>
    %18 = vector.shape_cast %17 : vector<16x16x4xbf16> to vector<256x4xbf16>
    %c0_30 = arith.constant 0 : index
    %c8 = arith.constant 8 : index
    %19 = vector.load %arg11[%c0_30, %c8] : memref<256x72xbf16, #tpu.memory_space<vmem>>, vector<256x4xbf16>
    tpu.vector_store %arg11[%c0_30, %c8], %18 {strides = array<i32>} : memref<256x72xbf16, #tpu.memory_space<vmem>>, vector<256x4xbf16>,
    %c1_31 = arith.constant 1 : index
    %c0_32 = arith.constant 0 : index
    %c0_33 = arith.constant 0 : index
    %20 = vector.load %arg9[%c1_31, %c0_32, %c0_33] : memref<18x18x4xbf16, #tpu.memory_space<vmem>>, vector<16x16x4xbf16>
    %21 = vector.shape_cast %20 : vector<16x16x4xbf16> to vector<256x4xbf16>
    %c0_34 = arith.constant 0 : index
    %c12 = arith.constant 12 : index
    %22 = vector.load %arg11[%c0_34, %c12] : memref<256x72xbf16, #tpu.memory_space<vmem>>, vector<256x4xbf16>
    tpu.vector_store %arg11[%c0_34, %c12], %21 {strides = array<i32>} : memref<256x72xbf16, #tpu.memory_space<vmem>>, vector<256x4xbf16>,
    %c1_35 = arith.constant 1 : index
    %c1_36 = arith.constant 1 : index
    %c0_37 = arith.constant 0 : index
    %23 = vector.load %arg9[%c1_35, %c1_36, %c0_37] : memref<18x18x4xbf16, #tpu.memory_space<vmem>>, vector<16x16x4xbf16>
    %24 = vector.shape_cast %23 : vector<16x16x4xbf16> to vector<256x4xbf16>
    %c0_38 = arith.constant 0 : index
    %c16 = arith.constant 16 : index
    %25 = vector.load %arg11[%c0_38, %c16] : memref<256x72xbf16, #tpu.memory_space<vmem>>, vector<256x4xbf16>
    tpu.vector_store %arg11[%c0_38, %c16], %24 {strides = array<i32>} : memref<256x72xbf16, #tpu.memory_space<vmem>>, vector<256x4xbf16>,
    %c1_39 = arith.constant 1 : index
    %c2_40 = arith.constant 2 : index
    %c0_41 = arith.constant 0 : index
    %26 = vector.load %arg9[%c1_39, %c2_40, %c0_41] : memref<18x18x4xbf16, #tpu.memory_space<vmem>>, vector<16x16x4xbf16>
    %27 = vector.shape_cast %26 : vector<16x16x4xbf16> to vector<256x4xbf16>
    %c0_42 = arith.constant 0 : index
    %c20 = arith.constant 20 : index
    %28 = vector.load %arg11[%c0_42, %c20] : memref<256x72xbf16, #tpu.memory_space<vmem>>, vector<256x4xbf16>
    tpu.vector_store %arg11[%c0_42, %c20], %27 {strides = array<i32>} : memref<256x72xbf16, #tpu.memory_space<vmem>>, vector<256x4xbf16>,
    %c2_43 = arith.constant 2 : index
    %c0_44 = arith.constant 0 : index
    %c0_45 = arith.constant 0 : index
    %29 = vector.load %arg9[%c2_43, %c0_44, %c0_45] : memref<18x18x4xbf16, #tpu.memory_space<vmem>>, vector<16x16x4xbf16>
    %30 = vector.shape_cast %29 : vector<16x16x4xbf16> to vector<256x4xbf16>
    %c0_46 = arith.constant 0 : index
    %c24 = arith.constant 24 : index
    %31 = vector.load %arg11[%c0_46, %c24] : memref<256x72xbf16, #tpu.memory_space<vmem>>, vector<256x4xbf16>
    tpu.vector_store %arg11[%c0_46, %c24], %30 {strides = array<i32>} : memref<256x72xbf16, #tpu.memory_space<vmem>>, vector<256x4xbf16>,
    %c2_47 = arith.constant 2 : index
    %c1_48 = arith.constant 1 : index
    %c0_49 = arith.constant 0 : index
    %32 = vector.load %arg9[%c2_47, %c1_48, %c0_49] : memref<18x18x4xbf16, #tpu.memory_space<vmem>>, vector<16x16x4xbf16>
    %33 = vector.shape_cast %32 : vector<16x16x4xbf16> to vector<256x4xbf16>
    %c0_50 = arith.constant 0 : index
    %c28 = arith.constant 28 : index
    %34 = vector.load %arg11[%c0_50, %c28] : memref<256x72xbf16, #tpu.memory_space<vmem>>, vector<256x4xbf16>
    tpu.vector_store %arg11[%c0_50, %c28], %33 {strides = array<i32>} : memref<256x72xbf16, #tpu.memory_space<vmem>>, vector<256x4xbf16>,
    %c2_51 = arith.constant 2 : index
    %c2_52 = arith.constant 2 : index
    %c0_53 = arith.constant 0 : index
    %35 = vector.load %arg9[%c2_51, %c2_52, %c0_53] : memref<18x18x4xbf16, #tpu.memory_space<vmem>>, vector<16x16x4xbf16>
    %36 = vector.shape_cast %35 : vector<16x16x4xbf16> to vector<256x4xbf16>
    %c0_54 = arith.constant 0 : index
    %c32 = arith.constant 32 : index
    %37 = vector.load %arg11[%c0_54, %c32] : memref<256x72xbf16, #tpu.memory_space<vmem>>, vector<256x4xbf16>
    tpu.vector_store %arg11[%c0_54, %c32], %36 {strides = array<i32>} : memref<256x72xbf16, #tpu.memory_space<vmem>>, vector<256x4xbf16>,
    %c0_55 = arith.constant 0 : index
    %c0_56 = arith.constant 0 : index
    %38 = vector.load %arg11[%c0_55, %c0_56] : memref<256x72xbf16, #tpu.memory_space<vmem>>, vector<256x36xbf16>
    %c0_57 = arith.constant 0 : index
    %c0_58 = arith.constant 0 : index
    %39 = vector.load %arg2[%c0_57, %c0_58] : memref<36x8xbf16, #tpu.memory_space<vmem>>, vector<36x8xbf16>
    %cst_59 = arith.constant dense<0.000000e+00> : vector<256x8xf32>
    %40 = tpu.matmul %38, %39, %cst_59 {dimension_numbers = #tpu.dot_dimension_numbers<[1], [0], [0], [1], [0, 0, 1, 1], [], []>} : vector<256x36xbf16>, vector<36x8xbf16>, vector<256x8xf32> -> vector<256x8xf32>
    %c0_60 = arith.constant 0 : index
    %c0_61 = arith.constant 0 : index
    %41 = vector.load %arg5[%c0_60, %c0_61] : memref<1x8xf32, #tpu.memory_space<vmem>>, vector<1x8xf32>
    %42 = vector.broadcast %41 : vector<1x8xf32> to vector<256x8xf32>
    %43 = arith.addf %40, %42 : vector<256x8xf32>
    %cst_62 = arith.constant 0.000000e+00 : f32
    %44 = vector.broadcast %cst_62 : f32 to vector<256x8xf32>
    %45 = arith.maximumf %43, %44 : vector<256x8xf32>
    %cst_63 = arith.constant 0.000000e+00 : bf16
    %46 = vector.broadcast %cst_63 : bf16 to vector<1x18x8xbf16>
    %c0_64 = arith.constant 0 : index
    %c0_65 = arith.constant 0 : index
    %c0_66 = arith.constant 0 : index
    %47 = vector.load %arg10[%c0_64, %c0_65, %c0_66] : memref<18x18x8xbf16, #tpu.memory_space<vmem>>, vector<1x18x8xbf16>
    tpu.vector_store %arg10[%c0_64, %c0_65, %c0_66], %46 {strides = array<i32>} : memref<18x18x8xbf16, #tpu.memory_space<vmem>>, vector<1x18x8xbf16>,
    %cst_67 = arith.constant 0.000000e+00 : bf16
    %48 = vector.broadcast %cst_67 : bf16 to vector<1x18x8xbf16>
    %c17_68 = arith.constant 17 : index
    %c0_69 = arith.constant 0 : index
    %c0_70 = arith.constant 0 : index
    %49 = vector.load %arg10[%c17_68, %c0_69, %c0_70] : memref<18x18x8xbf16, #tpu.memory_space<vmem>>, vector<1x18x8xbf16>
    tpu.vector_store %arg10[%c17_68, %c0_69, %c0_70], %48 {strides = array<i32>} : memref<18x18x8xbf16, #tpu.memory_space<vmem>>, vector<1x18x8xbf16>,
    %cst_71 = arith.constant 0.000000e+00 : bf16
    %50 = vector.broadcast %cst_71 : bf16 to vector<18x1x8xbf16>
    %c0_72 = arith.constant 0 : index
    %c0_73 = arith.constant 0 : index
    %c0_74 = arith.constant 0 : index
    %51 = vector.load %arg10[%c0_72, %c0_73, %c0_74] : memref<18x18x8xbf16, #tpu.memory_space<vmem>>, vector<18x1x8xbf16>
    tpu.vector_store %arg10[%c0_72, %c0_73, %c0_74], %50 {strides = array<i32>} : memref<18x18x8xbf16, #tpu.memory_space<vmem>>, vector<18x1x8xbf16>,
    %cst_75 = arith.constant 0.000000e+00 : bf16
    %52 = vector.broadcast %cst_75 : bf16 to vector<18x1x8xbf16>
    %c0_76 = arith.constant 0 : index
    %c17_77 = arith.constant 17 : index
    %c0_78 = arith.constant 0 : index
    %53 = vector.load %arg10[%c0_76, %c17_77, %c0_78] : memref<18x18x8xbf16, #tpu.memory_space<vmem>>, vector<18x1x8xbf16>
    tpu.vector_store %arg10[%c0_76, %c17_77, %c0_78], %52 {strides = array<i32>} : memref<18x18x8xbf16, #tpu.memory_space<vmem>>, vector<18x1x8xbf16>,
    %54 = vector.shape_cast %45 : vector<256x8xf32> to vector<16x16x8xf32>
    %55 = arith.truncf %54 : vector<16x16x8xf32> to vector<16x16x8xbf16>
    %c1_79 = arith.constant 1 : index
    %c1_80 = arith.constant 1 : index
    %c0_81 = arith.constant 0 : index
    %56 = vector.load %arg10[%c1_79, %c1_80, %c0_81] : memref<18x18x8xbf16, #tpu.memory_space<vmem>>, vector<16x16x8xbf16>
    tpu.vector_store %arg10[%c1_79, %c1_80, %c0_81], %55 {strides = array<i32>} : memref<18x18x8xbf16, #tpu.memory_space<vmem>>, vector<16x16x8xbf16>,
    %c0_82 = arith.constant 0 : index
    %c0_83 = arith.constant 0 : index
    %c0_84 = arith.constant 0 : index
    %57 = vector.load %arg10[%c0_82, %c0_83, %c0_84] : memref<18x18x8xbf16, #tpu.memory_space<vmem>>, vector<16x16x8xbf16>
    %58 = vector.shape_cast %57 : vector<16x16x8xbf16> to vector<256x8xbf16>
    %c0_85 = arith.constant 0 : index
    %c0_86 = arith.constant 0 : index
    %59 = vector.load %arg11[%c0_85, %c0_86] : memref<256x72xbf16, #tpu.memory_space<vmem>>, vector<256x8xbf16>
    tpu.vector_store %arg11[%c0_85, %c0_86], %58 {strides = array<i32>} : memref<256x72xbf16, #tpu.memory_space<vmem>>, vector<256x8xbf16>,
    %c0_87 = arith.constant 0 : index
    %c1_88 = arith.constant 1 : index
    %c0_89 = arith.constant 0 : index
    %60 = vector.load %arg10[%c0_87, %c1_88, %c0_89] : memref<18x18x8xbf16, #tpu.memory_space<vmem>>, vector<16x16x8xbf16>
    %61 = vector.shape_cast %60 : vector<16x16x8xbf16> to vector<256x8xbf16>
    %c0_90 = arith.constant 0 : index
    %c8_91 = arith.constant 8 : index
    %62 = vector.load %arg11[%c0_90, %c8_91] : memref<256x72xbf16, #tpu.memory_space<vmem>>, vector<256x8xbf16>
    tpu.vector_store %arg11[%c0_90, %c8_91], %61 {strides = array<i32>} : memref<256x72xbf16, #tpu.memory_space<vmem>>, vector<256x8xbf16>,
    %c0_92 = arith.constant 0 : index
    %c2_93 = arith.constant 2 : index
    %c0_94 = arith.constant 0 : index
    %63 = vector.load %arg10[%c0_92, %c2_93, %c0_94] : memref<18x18x8xbf16, #tpu.memory_space<vmem>>, vector<16x16x8xbf16>
    %64 = vector.shape_cast %63 : vector<16x16x8xbf16> to vector<256x8xbf16>
    %c0_95 = arith.constant 0 : index
    %c16_96 = arith.constant 16 : index
    %65 = vector.load %arg11[%c0_95, %c16_96] : memref<256x72xbf16, #tpu.memory_space<vmem>>, vector<256x8xbf16>
    tpu.vector_store %arg11[%c0_95, %c16_96], %64 {strides = array<i32>} : memref<256x72xbf16, #tpu.memory_space<vmem>>, vector<256x8xbf16>,
    %c1_97 = arith.constant 1 : index
    %c0_98 = arith.constant 0 : index
    %c0_99 = arith.constant 0 : index
    %66 = vector.load %arg10[%c1_97, %c0_98, %c0_99] : memref<18x18x8xbf16, #tpu.memory_space<vmem>>, vector<16x16x8xbf16>
    %67 = vector.shape_cast %66 : vector<16x16x8xbf16> to vector<256x8xbf16>
    %c0_100 = arith.constant 0 : index
    %c24_101 = arith.constant 24 : index
    %68 = vector.load %arg11[%c0_100, %c24_101] : memref<256x72xbf16, #tpu.memory_space<vmem>>, vector<256x8xbf16>
    tpu.vector_store %arg11[%c0_100, %c24_101], %67 {strides = array<i32>} : memref<256x72xbf16, #tpu.memory_space<vmem>>, vector<256x8xbf16>,
    %c1_102 = arith.constant 1 : index
    %c1_103 = arith.constant 1 : index
    %c0_104 = arith.constant 0 : index
    %69 = vector.load %arg10[%c1_102, %c1_103, %c0_104] : memref<18x18x8xbf16, #tpu.memory_space<vmem>>, vector<16x16x8xbf16>
    %70 = vector.shape_cast %69 : vector<16x16x8xbf16> to vector<256x8xbf16>
    %c0_105 = arith.constant 0 : index
    %c32_106 = arith.constant 32 : index
    %71 = vector.load %arg11[%c0_105, %c32_106] : memref<256x72xbf16, #tpu.memory_space<vmem>>, vector<256x8xbf16>
    tpu.vector_store %arg11[%c0_105, %c32_106], %70 {strides = array<i32>} : memref<256x72xbf16, #tpu.memory_space<vmem>>, vector<256x8xbf16>,
    %c1_107 = arith.constant 1 : index
    %c2_108 = arith.constant 2 : index
    %c0_109 = arith.constant 0 : index
    %72 = vector.load %arg10[%c1_107, %c2_108, %c0_109] : memref<18x18x8xbf16, #tpu.memory_space<vmem>>, vector<16x16x8xbf16>
    %73 = vector.shape_cast %72 : vector<16x16x8xbf16> to vector<256x8xbf16>
    %c0_110 = arith.constant 0 : index
    %c40 = arith.constant 40 : index
    %74 = vector.load %arg11[%c0_110, %c40] : memref<256x72xbf16, #tpu.memory_space<vmem>>, vector<256x8xbf16>
    tpu.vector_store %arg11[%c0_110, %c40], %73 {strides = array<i32>} : memref<256x72xbf16, #tpu.memory_space<vmem>>, vector<256x8xbf16>,
    %c2_111 = arith.constant 2 : index
    %c0_112 = arith.constant 0 : index
    %c0_113 = arith.constant 0 : index
    %75 = vector.load %arg10[%c2_111, %c0_112, %c0_113] : memref<18x18x8xbf16, #tpu.memory_space<vmem>>, vector<16x16x8xbf16>
    %76 = vector.shape_cast %75 : vector<16x16x8xbf16> to vector<256x8xbf16>
    %c0_114 = arith.constant 0 : index
    %c48 = arith.constant 48 : index
    %77 = vector.load %arg11[%c0_114, %c48] : memref<256x72xbf16, #tpu.memory_space<vmem>>, vector<256x8xbf16>
    tpu.vector_store %arg11[%c0_114, %c48], %76 {strides = array<i32>} : memref<256x72xbf16, #tpu.memory_space<vmem>>, vector<256x8xbf16>,
    %c2_115 = arith.constant 2 : index
    %c1_116 = arith.constant 1 : index
    %c0_117 = arith.constant 0 : index
    %78 = vector.load %arg10[%c2_115, %c1_116, %c0_117] : memref<18x18x8xbf16, #tpu.memory_space<vmem>>, vector<16x16x8xbf16>
    %79 = vector.shape_cast %78 : vector<16x16x8xbf16> to vector<256x8xbf16>
    %c0_118 = arith.constant 0 : index
    %c56 = arith.constant 56 : index
    %80 = vector.load %arg11[%c0_118, %c56] : memref<256x72xbf16, #tpu.memory_space<vmem>>, vector<256x8xbf16>
    tpu.vector_store %arg11[%c0_118, %c56], %79 {strides = array<i32>} : memref<256x72xbf16, #tpu.memory_space<vmem>>, vector<256x8xbf16>,
    %c2_119 = arith.constant 2 : index
    %c2_120 = arith.constant 2 : index
    %c0_121 = arith.constant 0 : index
    %81 = vector.load %arg10[%c2_119, %c2_120, %c0_121] : memref<18x18x8xbf16, #tpu.memory_space<vmem>>, vector<16x16x8xbf16>
    %82 = vector.shape_cast %81 : vector<16x16x8xbf16> to vector<256x8xbf16>
    %c0_122 = arith.constant 0 : index
    %c64 = arith.constant 64 : index
    %83 = vector.load %arg11[%c0_122, %c64] : memref<256x72xbf16, #tpu.memory_space<vmem>>, vector<256x8xbf16>
    tpu.vector_store %arg11[%c0_122, %c64], %82 {strides = array<i32>} : memref<256x72xbf16, #tpu.memory_space<vmem>>, vector<256x8xbf16>,
    %c0_123 = arith.constant 0 : index
    %c0_124 = arith.constant 0 : index
    %84 = vector.load %arg11[%c0_123, %c0_124] : memref<256x72xbf16, #tpu.memory_space<vmem>>, vector<256x72xbf16>
    %c0_125 = arith.constant 0 : index
    %c0_126 = arith.constant 0 : index
    %85 = vector.load %arg3[%c0_125, %c0_126] : memref<72x8xbf16, #tpu.memory_space<vmem>>, vector<72x8xbf16>
    %cst_127 = arith.constant dense<0.000000e+00> : vector<256x8xf32>
    %86 = tpu.matmul %84, %85, %cst_127 {dimension_numbers = #tpu.dot_dimension_numbers<[1], [0], [0], [1], [0, 0, 1, 1], [], []>} : vector<256x72xbf16>, vector<72x8xbf16>, vector<256x8xf32> -> vector<256x8xf32>
    %c0_128 = arith.constant 0 : index
    %c0_129 = arith.constant 0 : index
    %87 = vector.load %arg6[%c0_128, %c0_129] : memref<1x8xf32, #tpu.memory_space<vmem>>, vector<1x8xf32>
    %88 = vector.broadcast %87 : vector<1x8xf32> to vector<256x8xf32>
    %89 = arith.addf %86, %88 : vector<256x8xf32>
    %c0_130 = arith.constant 0 : index
    %c0_131 = arith.constant 0 : index
    %c0_132 = arith.constant 0 : index
    %c0_133 = arith.constant 0 : index
    %90 = vector.load %arg1[%c0_130, %c0_131, %c0_132, %c0_133] : memref<1x16x16x4xbf16, #tpu.memory_space<vmem>>, vector<1x16x16x4xbf16>
    %91 = vector.shape_cast %90 : vector<1x16x16x4xbf16> to vector<16x16x4xbf16>
    %92 = vector.shape_cast %91 : vector<16x16x4xbf16> to vector<256x4xbf16>
    %c0_134 = arith.constant 0 : index
    %c0_135 = arith.constant 0 : index
    %93 = vector.load %arg4[%c0_134, %c0_135] : memref<4x8xbf16, #tpu.memory_space<vmem>>, vector<4x8xbf16>
    %cst_136 = arith.constant dense<0.000000e+00> : vector<256x8xf32>
    %94 = tpu.matmul %92, %93, %cst_136 {dimension_numbers = #tpu.dot_dimension_numbers<[1], [0], [0], [1], [0, 0, 1, 1], [], []>} : vector<256x4xbf16>, vector<4x8xbf16>, vector<256x8xf32> -> vector<256x8xf32>
    %c0_137 = arith.constant 0 : index
    %c0_138 = arith.constant 0 : index
    %95 = vector.load %arg7[%c0_137, %c0_138] : memref<1x8xf32, #tpu.memory_space<vmem>>, vector<1x8xf32>
    %96 = vector.broadcast %95 : vector<1x8xf32> to vector<256x8xf32>
    %97 = arith.addf %94, %96 : vector<256x8xf32>
    %98 = arith.addf %89, %97 : vector<256x8xf32>
    %cst_139 = arith.constant 0.000000e+00 : f32
    %99 = vector.broadcast %cst_139 : f32 to vector<256x8xf32>
    %100 = arith.maximumf %98, %99 : vector<256x8xf32>
    %101 = vector.shape_cast %100 : vector<256x8xf32> to vector<16x16x8xf32>
    %c0_140 = arith.constant 0 : index
    %c0_141 = arith.constant 0 : index
    %c0_142 = arith.constant 0 : index
    %c0_143 = arith.constant 0 : index
    %102 = vector.load %arg8[%c0_140, %c0_141, %c0_142, %c0_143] : memref<1x16x16x8xf32, #tpu.memory_space<vmem>>, vector<1x16x16x8xf32>
    %103 = vector.shape_cast %102 : vector<1x16x16x8xf32> to vector<16x16x8xf32>
    %104 = vector.shape_cast %101 : vector<16x16x8xf32> to vector<1x16x16x8xf32>
    tpu.vector_store %arg8[%c0_140, %c0_141, %c0_142, %c0_143], %104 {strides = array<i32>} : memref<1x16x16x8xf32, #tpu.memory_space<vmem>>, vector<1x16x16x8xf32>,
    return
  }
  func.func @transform_0(%arg0: i32) -> (i32, i32, i32, i32) {
    %c0_i32 = arith.constant 0 : i32
    %c0_i32_0 = arith.constant 0 : i32
    %c0_i32_1 = arith.constant 0 : i32
    %c0_i32_2 = arith.constant 0 : i32
    return %arg0, %c0_i32, %c0_i32_0, %c0_i32_1 : i32, i32, i32, i32
  }
  func.func @transform_1(%arg0: i32) -> (i32, i32) {
    %c0_i32 = arith.constant 0 : i32
    %c0_i32_0 = arith.constant 0 : i32
    %c0_i32_1 = arith.constant 0 : i32
    return %c0_i32, %c0_i32_0 : i32, i32
  }
  func.func @transform_2(%arg0: i32) -> (i32, i32) {
    %c0_i32 = arith.constant 0 : i32
    %c0_i32_0 = arith.constant 0 : i32
    %c0_i32_1 = arith.constant 0 : i32
    return %c0_i32, %c0_i32_0 : i32, i32
  }
  func.func @transform_3(%arg0: i32) -> (i32, i32) {
    %c0_i32 = arith.constant 0 : i32
    %c0_i32_0 = arith.constant 0 : i32
    %c0_i32_1 = arith.constant 0 : i32
    return %c0_i32, %c0_i32_0 : i32, i32
  }
  func.func @transform_4(%arg0: i32) -> (i32, i32) {
    %c0_i32 = arith.constant 0 : i32
    %c0_i32_0 = arith.constant 0 : i32
    %c0_i32_1 = arith.constant 0 : i32
    return %c0_i32, %c0_i32_0 : i32, i32
  }
  func.func @transform_5(%arg0: i32) -> (i32, i32) {
    %c0_i32 = arith.constant 0 : i32
    %c0_i32_0 = arith.constant 0 : i32
    %c0_i32_1 = arith.constant 0 : i32
    return %c0_i32, %c0_i32_0 : i32, i32
  }
  func.func @transform_6(%arg0: i32) -> (i32, i32) {
    %c0_i32 = arith.constant 0 : i32
    %c0_i32_0 = arith.constant 0 : i32
    %c0_i32_1 = arith.constant 0 : i32
    return %c0_i32, %c0_i32_0 : i32, i32
  }
  func.func @transform_7(%arg0: i32) -> (i32, i32, i32, i32) {
    %c0_i32 = arith.constant 0 : i32
    %c0_i32_0 = arith.constant 0 : i32
    %c0_i32_1 = arith.constant 0 : i32
    %c0_i32_2 = arith.constant 0 : i32
    return %arg0, %c0_i32, %c0_i32_0, %c0_i32_1 : i32, i32, i32, i32
  }
}

</mosaic_0001>

<llo_original>
// kernel: tpu_custom_call.1
$region0: #{tpu_custom_call.1}
  #allocation0 [shape = 'u32[]', space=smem, size = 0x4, offset = 0x4, fixed_abs, tag = 'smem constant byte address 0x4 - core index']
  #allocation1 [shape = 'u32[72,128]{1,0:T(1,128)}', space=vmem, size = 0x9000, scoped, tag = 'internal scratch']
  #allocation2 [shape = 'bf16[18,18,4]{2,1,0:T(8,128)(2,1)}', space=vmem, size = 0x1b000, scoped, tag = 'scratch operand']
  #allocation3 [shape = 'bf16[18,18,8]{2,1,0:T(8,128)(2,1)}', space=vmem, size = 0x1b000, scoped, tag = 'scratch operand']
  #allocation4 [shape = 'bf16[256,72]{1,0:T(8,128)(2,1)}', space=vmem, size = 0x10000, scoped, tag = 'scratch operand']
  %s0 = inlined_call_operand.vmem [shape: bf16[2,16,16,4], index: 0, kind: input, shape index: {}]
  %s1 = inlined_call_operand.vmem [shape: bf16[36,8], index: 1, kind: input, shape index: {}]
  %s2 = inlined_call_operand.vmem [shape: bf16[72,8], index: 2, kind: input, shape index: {}]
  %s3 = inlined_call_operand.vmem [shape: bf16[4,8], index: 3, kind: input, shape index: {}]
  %s4 = inlined_call_operand.vmem [shape: f32[1,8], index: 4, kind: input, shape index: {}]
  %s5 = inlined_call_operand.vmem [shape: f32[1,8], index: 5, kind: input, shape index: {}]
  %s6 = inlined_call_operand.vmem [shape: f32[1,8], index: 6, kind: input, shape index: {}]
  %s7 = inlined_call_operand.vmem [shape: f32[2,16,16,8], index: 7, kind: output, shape index: {}]
  %s8 = sld [smem:[#allocation0]]
  $region61: #{tpu_custom_call.1} parent=0
    _
  %s10 = ssub.s32 1, %s8
  %s11 = scalar_select 0, %s10, %s8
  loop: start=0, step=1, limit=4
  $region2: #{tpu_custom_call.1} parent=0 // loop_pre_header
    _
  $region3: #{tpu_custom_call.1} parent=0 // loop_header
    %s13 = sphi 0, %s17
    %p14 = scmp.ge.s32.totalorder %s13, 4
    %s23 = sphi 0, %s25
    %s26 = sphi 0, %s23
    %s27 = sphi 0, %s26
    %s43 = sphi 0, %s27
    %s47 = sphi 0, %s47
    %s49 = sphi 0, %s47
    %s50 = sphi 0, %s49
    %s64 = sphi 0, %s50
    %s68 = sphi 0, %s68
    %s70 = sphi 0, %s68
    %s71 = sphi 0, %s70
    %s85 = sphi 0, %s71
    %s89 = sphi 0, %s89
    %s91 = sphi 0, %s89
    %s92 = sphi 0, %s91
    %s106 = sphi 0, %s92
    %s110 = sphi 0, %s110
    %s112 = sphi 0, %s110
    %s113 = sphi 0, %s112
    %s127 = sphi 0, %s113
    %s131 = sphi 0, %s131
    %s133 = sphi 0, %s131
    %s134 = sphi 0, %s133
    %s148 = sphi 0, %s134
    %s152 = sphi 0, %s152
    %s154 = sphi 0, %s152
    %s155 = sphi 0, %s154
    %s169 = sphi 0, %s155
    %s175 = sphi 0, %s177
    %s178 = sphi 0, %s175
    %s179 = sphi 0, %s178
    %s195 = sphi 0, %s179
  $region4: #{tpu_custom_call.1} parent=0 // loop_header_branch
    %16 = sbr.rel (%p14) target = $region8
  $region5: #{tpu_custom_call.1} parent=0 // loop_body
    %s18 = ssub.s32 %s13, 1
    %s19 = ssub.s32 %s13, 2
    %s20 = sadd.s32 %s13, 1
    %s21 = ssub.s32 %s13, %s20
    %p22 = scmp.eq.s32.totalorder %s21, 0
    %s24 = sadd.s32 %s23, 1
    %s25 = scalar_select %p22, %s23, %s24
    %p28 = pneg %p22
    %p29 = scmp.eq.s32.totalorder %s13, 1
    %p30 = por %p28, %p29
    %p31 = scmp.ne.s32.totalorder %s23, %s26
    %p32 = scmp.eq.s32.totalorder %s13, 0
    %p33 = por %p31, %p32
    %p34 = scmp.ne.s32.totalorder %s23, %s26
    %p35 = scmp.eq.s32.totalorder %s18, 1
    %p36 = por %p34, %p35
    %p37 = scmp.ne.s32.totalorder %s26, %s27
    %p38 = scmp.eq.s32.totalorder %s18, 0
    %p39 = por %p37, %p38
    %p40 = scmp.ne.s32.totalorder %s26, %s27
    %p41 = scmp.eq.s32.totalorder %s19, 1
    %p42 = por %p40, %p41
    %p44 = scmp.ne.s32.totalorder %s27, %s43
    %p45 = scmp.eq.s32.totalorder %s19, 0
    %p46 = por %p44, %p45
    %s48 = sadd.s32 %s47, 1
    %p51 = scmp.eq.s32.totalorder %s13, 1
    %p52 = scmp.ne.s32.totalorder %s47, %s49
    %p53 = scmp.eq.s32.totalorder %s13, 0
    %p54 = por %p52, %p53
    %p55 = scmp.ne.s32.totalorder %s47, %s49
    %p56 = scmp.eq.s32.totalorder %s18, 1
    %p57 = por %p55, %p56
    %p58 = scmp.ne.s32.totalorder %s49, %s50
    %p59 = scmp.eq.s32.totalorder %s18, 0
    %p60 = por %p58, %p59
    %p61 = scmp.ne.s32.totalorder %s49, %s50
    %p62 = scmp.eq.s32.totalorder %s19, 1
    %p63 = por %p61, %p62
    %p65 = scmp.ne.s32.totalorder %s50, %s64
    %p66 = scmp.eq.s32.totalorder %s19, 0
    %p67 = por %p65, %p66
    %s69 = sadd.s32 %s68, 1
    %p72 = scmp.eq.s32.totalorder %s13, 1
    %p73 = scmp.ne.s32.totalorder %s68, %s70
    %p74 = scmp.eq.s32.totalorder %s13, 0
    %p75 = por %p73, %p74
    %p76 = scmp.ne.s32.totalorder %s68, %s70
    %p77 = scmp.eq.s32.totalorder %s18, 1
    %p78 = por %p76, %p77
    %p79 = scmp.ne.s32.totalorder %s70, %s71
    %p80 = scmp.eq.s32.totalorder %s18, 0
    %p81 = por %p79, %p80
    %p82 = scmp.ne.s32.totalorder %s70, %s71
    %p83 = scmp.eq.s32.totalorder %s19, 1
    %p84 = por %p82, %p83
    %p86 = scmp.ne.s32.totalorder %s71, %s85
    %p87 = scmp.eq.s32.totalorder %s19, 0
    %p88 = por %p86, %p87
    %s90 = sadd.s32 %s89, 1
    %p93 = scmp.eq.s32.totalorder %s13, 1
    %p94 = scmp.ne.s32.totalorder %s89, %s91
    %p95 = scmp.eq.s32.totalorder %s13, 0
    %p96 = por %p94, %p95
    %p97 = scmp.ne.s32.totalorder %s89, %s91
    %p98 = scmp.eq.s32.totalorder %s18, 1
    %p99 = por %p97, %p98
    %p100 = scmp.ne.s32.totalorder %s91, %s92
    %p101 = scmp.eq.s32.totalorder %s18, 0
    %p102 = por %p100, %p101
    %p103 = scmp.ne.s32.totalorder %s91, %s92
    %p104 = scmp.eq.s32.totalorder %s19, 1
    %p105 = por %p103, %p104
    %p107 = scmp.ne.s32.totalorder %s92, %s106
    %p108 = scmp.eq.s32.totalorder %s19, 0
    %p109 = por %p107, %p108
    %s111 = sadd.s32 %s110, 1
    %p114 = scmp.eq.s32.totalorder %s13, 1
    %p115 = scmp.ne.s32.totalorder %s110, %s112
    %p116 = scmp.eq.s32.totalorder %s13, 0
    %p117 = por %p115, %p116
    %p118 = scmp.ne.s32.totalorder %s110, %s112
    %p119 = scmp.eq.s32.totalorder %s18, 1
    %p120 = por %p118, %p119
    %p121 = scmp.ne.s32.totalorder %s112, %s113
    %p122 = scmp.eq.s32.totalorder %s18, 0
    %p123 = por %p121, %p122
    %p124 = scmp.ne.s32.totalorder %s112, %s113
    %p125 = scmp.eq.s32.totalorder %s19, 1
    %p126 = por %p124, %p125
    %p128 = scmp.ne.s32.totalorder %s113, %s127
    %p129 = scmp.eq.s32.totalorder %s19, 0
    %p130 = por %p128, %p129
    %s132 = sadd.s32 %s131, 1
    %p135 = scmp.eq.s32.totalorder %s13, 1
    %p136 = scmp.ne.s32.totalorder %s131, %s133
    %p137 = scmp.eq.s32.totalorder %s13, 0
    %p138 = por %p136, %p137
    %p139 = scmp.ne.s32.totalorder %s131, %s133
    %p140 = scmp.eq.s32.totalorder %s18, 1
    %p141 = por %p139, %p140
    %p142 = scmp.ne.s32.totalorder %s133, %s134
    %p143 = scmp.eq.s32.totalorder %s18, 0
    %p144 = por %p142, %p143
    %p145 = scmp.ne.s32.totalorder %s133, %s134
    %p146 = scmp.eq.s32.totalorder %s19, 1
    %p147 = por %p145, %p146
    %p149 = scmp.ne.s32.totalorder %s134, %s148
    %p150 = scmp.eq.s32.totalorder %s19, 0
    %p151 = por %p149, %p150
    %s153 = sadd.s32 %s152, 1
    %p156 = scmp.eq.s32.totalorder %s13, 1
    %p157 = scmp.ne.s32.totalorder %s152, %s154
    %p158 = scmp.eq.s32.totalorder %s13, 0
    %p159 = por %p157, %p158
    %p160 = scmp.ne.s32.totalorder %s152, %s154
    %p161 = scmp.eq.s32.totalorder %s18, 1
    %p162 = por %p160, %p161
    %p163 = scmp.ne.s32.totalorder %s154, %s155
    %p164 = scmp.eq.s32.totalorder %s18, 0
    %p165 = por %p163, %p164
    %p166 = scmp.ne.s32.totalorder %s154, %s155
    %p167 = scmp.eq.s32.totalorder %s19, 1
    %p168 = por %p166, %p167
    %p170 = scmp.ne.s32.totalorder %s155, %s169
    %p171 = scmp.eq.s32.totalorder %s19, 0
    %p172 = por %p170, %p171
    %s173 = ssub.s32 %s13, %s20
    %p174 = scmp.eq.s32.totalorder %s173, 0
    %s176 = sadd.s32 %s175, 1
    %s177 = scalar_select %p174, %s175, %s176
    %p180 = pneg %p174
    %p181 = scmp.eq.s32.totalorder %s13, 1
    %p182 = por %p180, %p181
    %p183 = scmp.ne.s32.totalorder %s175, %s178
    %p184 = scmp.eq.s32.totalorder %s13, 0
    %p185 = por %p183, %p184
    %p186 = scmp.ne.s32.totalorder %s175, %s178
    %p187 = scmp.eq.s32.totalorder %s18, 1
    %p188 = por %p186, %p187
    %p189 = scmp.ne.s32.totalorder %s178, %s179
    %p190 = scmp.eq.s32.totalorder %s18, 0
    %p191 = por %p189, %p190
    %p192 = scmp.ne.s32.totalorder %s178, %s179
    %p193 = scmp.eq.s32.totalorder %s19, 1
    %p194 = por %p192, %p193
    %p196 = scmp.ne.s32.totalorder %s179, %s195
    %p197 = scmp.eq.s32.totalorder %s19, 0
    %p198 = por %p196, %p197
    %p199 = scmp.le.s32.totalorder 1, %s13
    %p200 = scmp.lt.s32.totalorder %s13, 3
    %p201 = pnand %p199, %p200
    %p202 = pneg %p201
    // Predicated region
    $region9: #{tpu_custom_call.1} parent=5 // pred_check
      _
    $region10: #{tpu_custom_call.1} parent=5 // pred_check_branch
      %204 = sbr.rel (%p201) target = $region12
    $region11: #{tpu_custom_call.1} parent=5 // pred_region
      %s205 = ssub.s32 %s13, 1
      // Predicated region
      $region13: #{tpu_custom_call.1} parent=11 // pred_check
        %p206 = pneg %p60
      $region14: #{tpu_custom_call.1} parent=11 // pred_check_branch
        %208 = sbr.rel (%p206) target = $region16
      $region15: #{tpu_custom_call.1} parent=11 // pred_region
        _
      $region16: #{tpu_custom_call.1} parent=11 // pred_fallthru
        _
      // Predicated region
      $region17: #{tpu_custom_call.1} parent=11 // pred_check
        %p209 = pneg %p81
      $region18: #{tpu_custom_call.1} parent=11 // pred_check_branch
        %211 = sbr.rel (%p209) target = $region20
      $region19: #{tpu_custom_call.1} parent=11 // pred_region
        _
      $region20: #{tpu_custom_call.1} parent=11 // pred_fallthru
        _
      // Predicated region
      $region21: #{tpu_custom_call.1} parent=11 // pred_check
        %p212 = pneg %p102
      $region22: #{tpu_custom_call.1} parent=11 // pred_check_branch
        %214 = sbr.rel (%p212) target = $region24
      $region23: #{tpu_custom_call.1} parent=11 // pred_region
        _
      $region24: #{tpu_custom_call.1} parent=11 // pred_fallthru
        _
      // Predicated region
      $region25: #{tpu_custom_call.1} parent=11 // pred_check
        %p215 = pneg %p123
      $region26: #{tpu_custom_call.1} parent=11 // pred_check_branch
        %217 = sbr.rel (%p215) target = $region28
      $region27: #{tpu_custom_call.1} parent=11 // pred_region
        _
      $region28: #{tpu_custom_call.1} parent=11 // pred_fallthru
        _
      // Predicated region
      $region29: #{tpu_custom_call.1} parent=11 // pred_check
        %p218 = pneg %p144
      $region30: #{tpu_custom_call.1} parent=11 // pred_check_branch
        %220 = sbr.rel (%p218) target = $region32
      $region31: #{tpu_custom_call.1} parent=11 // pred_region
        _
      $region32: #{tpu_custom_call.1} parent=11 // pred_fallthru
        _
      // Predicated region
      $region33: #{tpu_custom_call.1} parent=11 // pred_check
        %p221 = pneg %p165
      $region34: #{tpu_custom_call.1} parent=11 // pred_check_branch
        %223 = sbr.rel (%p221) target = $region36
      $region35: #{tpu_custom_call.1} parent=11 // pred_region
        _
      $region36: #{tpu_custom_call.1} parent=11 // pred_fallthru
        _
    $region12: #{tpu_custom_call.1} parent=5 // pred_fallthru
      _
    %p224 = scmp.lt.s32.totalorder %s13, 2
    // Predicated region
    $region37: #{tpu_custom_call.1} parent=5 // pred_check
      %p225 = pneg %p224
    $region38: #{tpu_custom_call.1} parent=5 // pred_check_branch
      %227 = sbr.rel (%p225) target = $region40
    $region39: #{tpu_custom_call.1} parent=5 // pred_region
      // Predicated region
      $region41: #{tpu_custom_call.1} parent=39 // pred_check
        %p228 = pneg %p33
      $region42: #{tpu_custom_call.1} parent=39 // pred_check_branch
        %230 = sbr.rel (%p228) target = $region44
      $region43: #{tpu_custom_call.1} parent=39 // pred_region
        %p231 = scmp.lt.s32.totalorder %s13, 1
        %s232 = scalar_select %p231, %s13, 1
        %s233 = smul.addr %s232, 32
        %s234 = smul.addr %s233, 4
        %s235 = scalar_lea.vmem %s0, %s234
      $region44: #{tpu_custom_call.1} parent=39 // pred_fallthru
        _
    $region40: #{tpu_custom_call.1} parent=5 // pred_fallthru
      _
    %p236 = scmp.le.s32.totalorder 1, %s13
    %p237 = scmp.lt.s32.totalorder %s13, 3
    %p238 = pnand %p236, %p237
    %p239 = pneg %p238
    // Predicated region
    $region45: #{tpu_custom_call.1} parent=5 // pred_check
      _
    $region46: #{tpu_custom_call.1} parent=5 // pred_check_branch
      %241 = sbr.rel (%p238) target = $region48
    $region47: #{tpu_custom_call.1} parent=5 // pred_region
      %s242 = ssub.s32 %s13, 1
      %p243 = scmp.lt.s32.totalorder %s18, 1
      %s244 = scalar_select %p243, %s18, 1
      %s245 = smul.addr %s244, 32
      %s246 = smul.addr %s245, 4
      %s247 = scalar_lea.vmem %s0, %s246
      %p248 = pneg %p39
      %p249 = pneg %p36
      %p250 = pneg %p60
      %p251 = pneg %p57
      %p252 = pneg %p81
      %p253 = pneg %p78
      %p254 = pneg %p102
      %p255 = pneg %p99
      %p256 = pneg %p123
      %p257 = pneg %p120
      %p258 = pneg %p144
      %p259 = pneg %p141
      %p260 = pneg %p165
      %p261 = pneg %p162
      %p262 = pneg %p191
      %p263 = pneg %p188
      %p264 = scmp.lt.s32.totalorder %s18, 1
      %s265 = scalar_select %p264, %s18, 1
      %s266 = smul.addr %s265, 32
      %s267 = smul.addr %s266, 8
      %s268 = scalar_lea.vmem %s7, %s267
      %p269 = scmp.lt.s32.totalorder %s18, 1
      %s270 = scalar_select %p269, %s18, 1
      %s271 = smul.addr %s270, 32
      %s272 = smul.addr %s271, 4
      %s273 = scalar_lea.vmem %s0, %s272
      %p274 = scmp.lt.s32.totalorder %s18, 1
      %s275 = scalar_select %p274, %s18, 1
      %s276 = smul.addr %s275, 32
      %s277 = smul.addr %s276, 8
      %s278 = scalar_lea.vmem %s7, %s277
      %vm280 = vcmask 27648
      %281 = vst.msk [vmem:[#allocation2] sm:$0xf] %vm280, 0
      %282 = vst.msk [vmem:[#allocation2 + $0x4] sm:$0xf] %vm280, 0
      %vm283 = vcmask 24576
      %284 = vst.msk [vmem:[#allocation2 + $0x8] sm:$0x1] %vm283, 0
      %s285 = scalar_lea.vmem [#allocation2], 204
      %286 = vst.msk [vmem:[%s285] sm:$0xf] %vm280, 0
      %287 = vst.msk [vmem:[%s285 + $0x4] sm:$0xf] %vm280, 0
      %288 = vst.msk [vmem:[%s285 + $0x8] sm:$0x1] %vm283, 0
      %vm289 = vcmask 24576
      %vm290 = vsmask.f32 256
      %vm291 = vmand %vm289, %vm290
      %v292 = vld [vmem:[#allocation2] sm:$0x1]
      %v293 = vsel %vm291, 0, %v292
      %294 = vst [vmem:[#allocation2] sm:$0x1] %v293
      %v295 = vld [vmem:[#allocation2 + $0xc] sm:$0x1]
      %v296 = vsel %vm291, 0, %v295
      %297 = vst [vmem:[#allocation2 + $0xc] sm:$0x1] %v296
      %v298 = vld [vmem:[#allocation2 + $0x18] sm:$0x1]
      %v299 = vsel %vm291, 0, %v298
      %300 = vst [vmem:[#allocation2 + $0x18] sm:$0x1] %v299
      %v301 = vld [vmem:[#allocation2 + $0x24] sm:$0x1]
      %v302 = vsel %vm291, 0, %v301
      %303 = vst [vmem:[#allocation2 + $0x24] sm:$0x1] %v302
      %v304 = vld [vmem:[#allocation2 + $0x30] sm:$0x1]
      %v305 = vsel %vm291, 0, %v304
      %306 = vst [vmem:[#allocation2 + $0x30] sm:$0x1] %v305
      %v307 = vld [vmem:[#allocation2 + $0x3c] sm:$0x1]
      %v308 = vsel %vm291, 0, %v307
      %309 = vst [vmem:[#allocation2 + $0x3c] sm:$0x1] %v308
      %v310 = vld [vmem:[#allocation2 + $0x48] sm:$0x1]
      %v311 = vsel %vm291, 0, %v310
      %312 = vst [vmem:[#allocation2 + $0x48] sm:$0x1] %v311
      %v313 = vld [vmem:[#allocation2 + $0x54] sm:$0x1]
      %v314 = vsel %vm291, 0, %v313
      %315 = vst [vmem:[#allocation2 + $0x54] sm:$0x1] %v314
      %v316 = vld [vmem:[#allocation2 + $0x60] sm:$0x1]
      %v317 = vsel %vm291, 0, %v316
      %318 = vst [vmem:[#allocation2 + $0x60] sm:$0x1] %v317
      %v319 = vld [vmem:[#allocation2 + $0x6c] sm:$0x1]
      %v320 = vsel %vm291, 0, %v319
      %321 = vst [vmem:[#allocation2 + $0x6c] sm:$0x1] %v320
      %v322 = vld [vmem:[#allocation2 + $0x78] sm:$0x1]
      %v323 = vsel %vm291, 0, %v322
      %324 = vst [vmem:[#allocation2 + $0x78] sm:$0x1] %v323
      %v325 = vld [vmem:[#allocation2 + $0x84] sm:$0x1]
      %v326 = vsel %vm291, 0, %v325
      %327 = vst [vmem:[#allocation2 + $0x84] sm:$0x1] %v326
      %v328 = vld [vmem:[#allocation2 + $0x90] sm:$0x1]
      %v329 = vsel %vm291, 0, %v328
      %330 = vst [vmem:[#allocation2 + $0x90] sm:$0x1] %v329
      %v331 = vld [vmem:[#allocation2 + $0x9c] sm:$0x1]
      %v332 = vsel %vm291, 0, %v331
      %333 = vst [vmem:[#allocation2 + $0x9c] sm:$0x1] %v332
      %v334 = vld [vmem:[#allocation2 + $0xa8] sm:$0x1]
      %v335 = vsel %vm291, 0, %v334
      %336 = vst [vmem:[#allocation2 + $0xa8] sm:$0x1] %v335
      %v337 = vld [vmem:[#allocation2 + $0xb4] sm:$0x1]
      %v338 = vsel %vm291, 0, %v337
      %339 = vst [vmem:[#allocation2 + $0xb4] sm:$0x1] %v338
      %v340 = vld [vmem:[#allocation2 + $0xc0] sm:$0x1]
      %v341 = vsel %vm291, 0, %v340
      %342 = vst [vmem:[#allocation2 + $0xc0] sm:$0x1] %v341
      %v343 = vld [vmem:[#allocation2 + $0xcc] sm:$0x1]
      %v344 = vsel %vm291, 0, %v343
      %345 = vst [vmem:[#allocation2 + $0xcc] sm:$0x1] %v344
      %vm346 = vsmask.f32 7938
      %vm347 = vmand %vm289, %vm346
      %v348 = vld [vmem:[#allocation2 + $0x8] sm:$0x1]
      %v349 = vsel %vm347, 0, %v348
      %350 = vst [vmem:[#allocation2 + $0x8] sm:$0x1] %v349
      %v351 = vld [vmem:[#allocation2 + $0x14] sm:$0x1]
      %v352 = vsel %vm347, 0, %v351
      %353 = vst [vmem:[#allocation2 + $0x14] sm:$0x1] %v352
      %v354 = vld [vmem:[#allocation2 + $0x20] sm:$0x1]
      %v355 = vsel %vm347, 0, %v354
      %356 = vst [vmem:[#allocation2 + $0x20] sm:$0x1] %v355
      %v357 = vld [vmem:[#allocation2 + $0x2c] sm:$0x1]
      %v358 = vsel %vm347, 0, %v357
      %359 = vst [vmem:[#allocation2 + $0x2c] sm:$0x1] %v358
      %v360 = vld [vmem:[#allocation2 + $0x38] sm:$0x1]
      %v361 = vsel %vm347, 0, %v360
      %362 = vst [vmem:[#allocation2 + $0x38] sm:$0x1] %v361
      %v363 = vld [vmem:[#allocation2 + $0x44] sm:$0x1]
      %v364 = vsel %vm347, 0, %v363
      %365 = vst [vmem:[#allocation2 + $0x44] sm:$0x1] %v364
      %v366 = vld [vmem:[#allocation2 + $0x50] sm:$0x1]
      %v367 = vsel %vm347, 0, %v366
      %368 = vst [vmem:[#allocation2 + $0x50] sm:$0x1] %v367
      %v369 = vld [vmem:[#allocation2 + $0x5c] sm:$0x1]
      %v370 = vsel %vm347, 0, %v369
      %371 = vst [vmem:[#allocation2 + $0x5c] sm:$0x1] %v370
      %v372 = vld [vmem:[#allocation2 + $0x68] sm:$0x1]
      %v373 = vsel %vm347, 0, %v372
      %374 = vst [vmem:[#allocation2 + $0x68] sm:$0x1] %v373
      %v375 = vld [vmem:[#allocation2 + $0x74] sm:$0x1]
      %v376 = vsel %vm347, 0, %v375
      %377 = vst [vmem:[#allocation2 + $0x74] sm:$0x1] %v376
      %v378 = vld [vmem:[#allocation2 + $0x80] sm:$0x1]
      %v379 = vsel %vm347, 0, %v378
      %380 = vst [vmem:[#allocation2 + $0x80] sm:$0x1] %v379
      %v381 = vld [vmem:[#allocation2 + $0x8c] sm:$0x1]
      %v382 = vsel %vm347, 0, %v381
      %383 = vst [vmem:[#allocation2 + $0x8c] sm:$0x1] %v382
      %v384 = vld [vmem:[#allocation2 + $0x98] sm:$0x1]
      %v385 = vsel %vm347, 0, %v384
      %386 = vst [vmem:[#allocation2 + $0x98] sm:$0x1] %v385
      %v387 = vld [vmem:[#allocation2 + $0xa4] sm:$0x1]
      %v388 = vsel %vm347, 0, %v387
      %389 = vst [vmem:[#allocation2 + $0xa4] sm:$0x1] %v388
      %v390 = vld [vmem:[#allocation2 + $0xb0] sm:$0x1]
      %v391 = vsel %vm347, 0, %v390
      %392 = vst [vmem:[#allocation2 + $0xb0] sm:$0x1] %v391
      %v393 = vld [vmem:[#allocation2 + $0xbc] sm:$0x1]
      %v394 = vsel %vm347, 0, %v393
      %395 = vst [vmem:[#allocation2 + $0xbc] sm:$0x1] %v394
      %v396 = vld [vmem:[#allocation2 + $0xc8] sm:$0x1]
      %v397 = vsel %vm347, 0, %v396
      %398 = vst [vmem:[#allocation2 + $0xc8] sm:$0x1] %v397
      %v399 = vld [vmem:[#allocation2 + $0xd4] sm:$0x1]
      %v400 = vsel %vm347, 0, %v399
      %401 = vst [vmem:[#allocation2 + $0xd4] sm:$0x1] %v400
      %v402 = vld [vmem:[%s273] sm:$0xf]
      %v403 = vld [vmem:[%s273 + $0x4] sm:$0xf]
      %v404 = vld [vmem:[%s273 + $0x8] sm:$0xf]
      %v405 = vld [vmem:[%s273 + $0xc] sm:$0xf]
      %v406 = vld [vmem:[%s273 + $0x10] sm:$0xf]
      %v407 = vld [vmem:[%s273 + $0x14] sm:$0xf]
      %v408 = vld [vmem:[%s273 + $0x18] sm:$0xf]
      %v409 = vld [vmem:[%s273 + $0x1c] sm:$0xf]
      %v410 = vld [vmem:[%s273 + $0x20] sm:$0xf]
      %v411 = vld [vmem:[%s273 + $0x24] sm:$0xf]
      %v412 = vld [vmem:[%s273 + $0x28] sm:$0xf]
      %v413 = vld [vmem:[%s273 + $0x2c] sm:$0xf]
      %v414 = vld [vmem:[%s273 + $0x30] sm:$0xf]
      %v415 = vld [vmem:[%s273 + $0x34] sm:$0xf]
      %v416 = vld [vmem:[%s273 + $0x38] sm:$0xf]
      %v417 = vld [vmem:[%s273 + $0x3c] sm:$0xf]
      %v418 = vld [vmem:[%s273 + $0x40] sm:$0xf]
      %v419 = vld [vmem:[%s273 + $0x44] sm:$0xf]
      %v420 = vld [vmem:[%s273 + $0x48] sm:$0xf]
      %v421 = vld [vmem:[%s273 + $0x4c] sm:$0xf]
      %v422 = vld [vmem:[%s273 + $0x50] sm:$0xf]
      %v423 = vld [vmem:[%s273 + $0x54] sm:$0xf]
      %v424 = vld [vmem:[%s273 + $0x58] sm:$0xf]
      %v425 = vld [vmem:[%s273 + $0x5c] sm:$0xf]
      %v426 = vld [vmem:[%s273 + $0x60] sm:$0xf]
      %v427 = vld [vmem:[%s273 + $0x64] sm:$0xf]
      %v428 = vld [vmem:[%s273 + $0x68] sm:$0xf]
      %v429 = vld [vmem:[%s273 + $0x6c] sm:$0xf]
      %v430 = vld [vmem:[%s273 + $0x70] sm:$0xf]
      %v431 = vld [vmem:[%s273 + $0x74] sm:$0xf]
      %v432 = vld [vmem:[%s273 + $0x78] sm:$0xf]
      %v433 = vld [vmem:[%s273 + $0x7c] sm:$0xf]
      %vm434 = vsmask.f32 4368
      %vm435 = vmor %vm290, %vm434
      %v437 = vshrl.u32 %v402, 16
      %v439 = vrot.slane %v437, 7
      %v440 = vshll.u32 %v402, 16
      %v442 = vor.u32 %v439, %v440
      %v443 = vrot.slane %v439, 4
      %v445 = vshrl.u32 %v403, 16
      %v447 = vrot.slane %v445, 7
      %v448 = vshll.u32 %v403, 16
      %v450 = vor.u32 %v447, %v448
      %v451 = vsel %vm435, %v443, %v450
      %v452 = vrot.slane %v447, 4
      %v454 = vshrl.u32 %v404, 16
      %v456 = vrot.slane %v454, 7
      %v457 = vshll.u32 %v404, 16
      %v459 = vor.u32 %v456, %v457
      %v460 = vrot.slane %v456, 4
      %v462 = vshrl.u32 %v405, 16
      %v464 = vrot.slane %v462, 7
      %v465 = vshll.u32 %v405, 16
      %v467 = vor.u32 %v464, %v465
      %v468 = vsel %vm435, %v460, %v467
      %v469 = vrot.slane %v464, 4
      %v471 = vshrl.u32 %v406, 16
      %v473 = vrot.slane %v471, 7
      %v474 = vshll.u32 %v406, 16
      %v476 = vor.u32 %v473, %v474
      %v477 = vrot.slane %v473, 4
      %v479 = vshrl.u32 %v407, 16
      %v481 = vrot.slane %v479, 7
      %v482 = vshll.u32 %v407, 16
      %v484 = vor.u32 %v481, %v482
      %v485 = vsel %vm435, %v477, %v484
      %v486 = vrot.slane %v481, 4
      %v488 = vshrl.u32 %v408, 16
      %v490 = vrot.slane %v488, 7
      %v491 = vshll.u32 %v408, 16
      %v493 = vor.u32 %v490, %v491
      %v494 = vrot.slane %v490, 4
      %v496 = vshrl.u32 %v409, 16
      %v498 = vrot.slane %v496, 7
      %v499 = vshll.u32 %v409, 16
      %v501 = vor.u32 %v498, %v499
      %v502 = vsel %vm435, %v494, %v501
      %v503 = vrot.slane %v498, 4
      %v505 = vshrl.u32 %v410, 16
      %v507 = vrot.slane %v505, 7
      %v508 = vshll.u32 %v410, 16
      %v510 = vor.u32 %v507, %v508
      %v511 = vrot.slane %v507, 4
      %v513 = vshrl.u32 %v411, 16
      %v515 = vrot.slane %v513, 7
      %v516 = vshll.u32 %v411, 16
      %v518 = vor.u32 %v515, %v516
      %v519 = vsel %vm435, %v511, %v518
      %v520 = vrot.slane %v515, 4
      %v522 = vshrl.u32 %v412, 16
      %v524 = vrot.slane %v522, 7
      %v525 = vshll.u32 %v412, 16
      %v527 = vor.u32 %v524, %v525
      %v528 = vrot.slane %v524, 4
      %v530 = vshrl.u32 %v413, 16
      %v532 = vrot.slane %v530, 7
      %v533 = vshll.u32 %v413, 16
      %v535 = vor.u32 %v532, %v533
      %v536 = vsel %vm435, %v528, %v535
      %v537 = vrot.slane %v532, 4
      %v539 = vshrl.u32 %v414, 16
      %v541 = vrot.slane %v539, 7
      %v542 = vshll.u32 %v414, 16
      %v544 = vor.u32 %v541, %v542
      %v545 = vrot.slane %v541, 4
      %v547 = vshrl.u32 %v415, 16
      %v549 = vrot.slane %v547, 7
      %v550 = vshll.u32 %v415, 16
      %v552 = vor.u32 %v549, %v550
      %v553 = vsel %vm435, %v545, %v552
      %v554 = vrot.slane %v549, 4
      %v556 = vshrl.u32 %v416, 16
      %v558 = vrot.slane %v556, 7
      %v559 = vshll.u32 %v416, 16
      %v561 = vor.u32 %v558, %v559
      %v562 = vrot.slane %v558, 4
      %v564 = vshrl.u32 %v417, 16
      %v566 = vrot.slane %v564, 7
      %v567 = vshll.u32 %v417, 16
      %v569 = vor.u32 %v566, %v567
      %v570 = vsel %vm435, %v562, %v569
      %v571 = vrot.slane %v566, 4
      %v573 = vshrl.u32 %v418, 16
      %v575 = vrot.slane %v573, 7
      %v576 = vshll.u32 %v418, 16
      %v578 = vor.u32 %v575, %v576
      %v579 = vrot.slane %v575, 4
      %v581 = vshrl.u32 %v419, 16
      %v583 = vrot.slane %v581, 7
      %v584 = vshll.u32 %v419, 16
      %v586 = vor.u32 %v583, %v584
      %v587 = vsel %vm435, %v579, %v586
      %v588 = vrot.slane %v583, 4
      %v590 = vshrl.u32 %v420, 16
      %v592 = vrot.slane %v590, 7
      %v593 = vshll.u32 %v420, 16
      %v595 = vor.u32 %v592, %v593
      %v596 = vrot.slane %v592, 4
      %v598 = vshrl.u32 %v421, 16
      %v600 = vrot.slane %v598, 7
      %v601 = vshll.u32 %v421, 16
      %v603 = vor.u32 %v600, %v601
      %v604 = vsel %vm435, %v596, %v603
      %v605 = vrot.slane %v600, 4
      %v607 = vshrl.u32 %v422, 16
      %v609 = vrot.slane %v607, 7
      %v610 = vshll.u32 %v422, 16
      %v612 = vor.u32 %v609, %v610
      %v613 = vrot.slane %v609, 4
      %v615 = vshrl.u32 %v423, 16
      %v617 = vrot.slane %v615, 7
      %v618 = vshll.u32 %v423, 16
      %v620 = vor.u32 %v617, %v618
      %v621 = vsel %vm435, %v613, %v620
      %v622 = vrot.slane %v617, 4
      %v624 = vshrl.u32 %v424, 16
      %v626 = vrot.slane %v624, 7
      %v627 = vshll.u32 %v424, 16
      %v629 = vor.u32 %v626, %v627
      %v630 = vrot.slane %v626, 4
      %v632 = vshrl.u32 %v425, 16
      %v634 = vrot.slane %v632, 7
      %v635 = vshll.u32 %v425, 16
      %v637 = vor.u32 %v634, %v635
      %v638 = vsel %vm435, %v630, %v637
      %v639 = vrot.slane %v634, 4
      %v641 = vshrl.u32 %v426, 16
      %v643 = vrot.slane %v641, 7
      %v644 = vshll.u32 %v426, 16
      %v646 = vor.u32 %v643, %v644
      %v647 = vrot.slane %v643, 4
      %v649 = vshrl.u32 %v427, 16
      %v651 = vrot.slane %v649, 7
      %v652 = vshll.u32 %v427, 16
      %v654 = vor.u32 %v651, %v652
      %v655 = vsel %vm435, %v647, %v654
      %v656 = vrot.slane %v651, 4
      %v658 = vshrl.u32 %v428, 16
      %v660 = vrot.slane %v658, 7
      %v661 = vshll.u32 %v428, 16
      %v663 = vor.u32 %v660, %v661
      %v664 = vrot.slane %v660, 4
      %v666 = vshrl.u32 %v429, 16
      %v668 = vrot.slane %v666, 7
      %v669 = vshll.u32 %v429, 16
      %v671 = vor.u32 %v668, %v669
      %v672 = vsel %vm435, %v664, %v671
      %v673 = vrot.slane %v668, 4
      %v675 = vshrl.u32 %v430, 16
      %v677 = vrot.slane %v675, 7
      %v678 = vshll.u32 %v430, 16
      %v680 = vor.u32 %v677, %v678
      %v681 = vrot.slane %v677, 4
      %v683 = vshrl.u32 %v431, 16
      %v685 = vrot.slane %v683, 7
      %v686 = vshll.u32 %v431, 16
      %v688 = vor.u32 %v685, %v686
      %v689 = vsel %vm435, %v681, %v688
      %v690 = vrot.slane %v685, 4
      %v692 = vshrl.u32 %v432, 16
      %v694 = vrot.slane %v692, 7
      %v695 = vshll.u32 %v432, 16
      %v697 = vor.u32 %v694, %v695
      %v698 = vrot.slane %v694, 4
      %v700 = vshrl.u32 %v433, 16
      %v702 = vrot.slane %v700, 7
      %v703 = vshll.u32 %v433, 16
      %v705 = vor.u32 %v702, %v703
      %v706 = vsel %vm435, %v698, %v705
      %v707 = vrot.slane %v702, 4
      %s756 = scalar_lea.vmem [#allocation2], 12
      %vm757 = vcmask 27648
      %vm758 = vmand %vm757, %vm346
      %v759 = vld [vmem:[%s756] sm:$0xf]
      %v760 = vsel %vm758, %v442, %v759
      %761 = vst [vmem:[%s756] sm:$0xf] %v760
      %762 = vst.msk [vmem:[%s756 + $0x4] sm:$0xf] %vm280, %v451
      %v763 = vld [vmem:[%s756 + $0x8] sm:$0x1]
      %v764 = vsel %vm291, %v452, %v763
      %765 = vst [vmem:[%s756 + $0x8] sm:$0x1] %v764
      %v766 = vld [vmem:[%s756 + $0xc] sm:$0xf]
      %v767 = vsel %vm758, %v459, %v766
      %768 = vst [vmem:[%s756 + $0xc] sm:$0xf] %v767
      %769 = vst.msk [vmem:[%s756 + $0x10] sm:$0xf] %vm280, %v468
      %v770 = vld [vmem:[%s756 + $0x14] sm:$0x1]
      %v771 = vsel %vm291, %v469, %v770
      %772 = vst [vmem:[%s756 + $0x14] sm:$0x1] %v771
      %v773 = vld [vmem:[%s756 + $0x18] sm:$0xf]
      %v774 = vsel %vm758, %v476, %v773
      %775 = vst [vmem:[%s756 + $0x18] sm:$0xf] %v774
      %776 = vst.msk [vmem:[%s756 + $0x1c] sm:$0xf] %vm280, %v485
      %v777 = vld [vmem:[%s756 + $0x20] sm:$0x1]
      %v778 = vsel %vm291, %v486, %v777
      %779 = vst [vmem:[%s756 + $0x20] sm:$0x1] %v778
      %v780 = vld [vmem:[%s756 + $0x24] sm:$0xf]
      %v781 = vsel %vm758, %v493, %v780
      %782 = vst [vmem:[%s756 + $0x24] sm:$0xf] %v781
      %783 = vst.msk [vmem:[%s756 + $0x28] sm:$0xf] %vm280, %v502
      %v784 = vld [vmem:[%s756 + $0x2c] sm:$0x1]
      %v785 = vsel %vm291, %v503, %v784
      %786 = vst [vmem:[%s756 + $0x2c] sm:$0x1] %v785
      %v787 = vld [vmem:[%s756 + $0x30] sm:$0xf]
      %v788 = vsel %vm758, %v510, %v787
      %789 = vst [vmem:[%s756 + $0x30] sm:$0xf] %v788
      %790 = vst.msk [vmem:[%s756 + $0x34] sm:$0xf] %vm280, %v519
      %v791 = vld [vmem:[%s756 + $0x38] sm:$0x1]
      %v792 = vsel %vm291, %v520, %v791
      %793 = vst [vmem:[%s756 + $0x38] sm:$0x1] %v792
      %v794 = vld [vmem:[%s756 + $0x3c] sm:$0xf]
      %v795 = vsel %vm758, %v527, %v794
      %796 = vst [vmem:[%s756 + $0x3c] sm:$0xf] %v795
      %797 = vst.msk [vmem:[%s756 + $0x40] sm:$0xf] %vm280, %v536
      %v798 = vld [vmem:[%s756 + $0x44] sm:$0x1]
      %v799 = vsel %vm291, %v537, %v798
      %800 = vst [vmem:[%s756 + $0x44] sm:$0x1] %v799
      %v801 = vld [vmem:[%s756 + $0x48] sm:$0xf]
      %v802 = vsel %vm758, %v544, %v801
      %803 = vst [vmem:[%s756 + $0x48] sm:$0xf] %v802
      %804 = vst.msk [vmem:[%s756 + $0x4c] sm:$0xf] %vm280, %v553
      %v805 = vld [vmem:[%s756 + $0x50] sm:$0x1]
      %v806 = vsel %vm291, %v554, %v805
      %807 = vst [vmem:[%s756 + $0x50] sm:$0x1] %v806
      %v808 = vld [vmem:[%s756 + $0x54] sm:$0xf]
      %v809 = vsel %vm758, %v561, %v808
      %810 = vst [vmem:[%s756 + $0x54] sm:$0xf] %v809
      %811 = vst.msk [vmem:[%s756 + $0x58] sm:$0xf] %vm280, %v570
      %v812 = vld [vmem:[%s756 + $0x5c] sm:$0x1]
      %v813 = vsel %vm291, %v571, %v812
      %814 = vst [vmem:[%s756 + $0x5c] sm:$0x1] %v813
      %v815 = vld [vmem:[%s756 + $0x60] sm:$0xf]
      %v816 = vsel %vm758, %v578, %v815
      %817 = vst [vmem:[%s756 + $0x60] sm:$0xf] %v816
      %818 = vst.msk [vmem:[%s756 + $0x64] sm:$0xf] %vm280, %v587
      %v819 = vld [vmem:[%s756 + $0x68] sm:$0x1]
      %v820 = vsel %vm291, %v588, %v819
      %821 = vst [vmem:[%s756 + $0x68] sm:$0x1] %v820
      %v822 = vld [vmem:[%s756 + $0x6c] sm:$0xf]
      %v823 = vsel %vm758, %v595, %v822
      %824 = vst [vmem:[%s756 + $0x6c] sm:$0xf] %v823
      %825 = vst.msk [vmem:[%s756 + $0x70] sm:$0xf] %vm280, %v604
      %v826 = vld [vmem:[%s756 + $0x74] sm:$0x1]
      %v827 = vsel %vm291, %v605, %v826
      %828 = vst [vmem:[%s756 + $0x74] sm:$0x1] %v827
      %v829 = vld [vmem:[%s756 + $0x78] sm:$0xf]
      %v830 = vsel %vm758, %v612, %v829
      %831 = vst [vmem:[%s756 + $0x78] sm:$0xf] %v830
      %832 = vst.msk [vmem:[%s756 + $0x7c] sm:$0xf] %vm280, %v621
      %v833 = vld [vmem:[%s756 + $0x80] sm:$0x1]
      %v834 = vsel %vm291, %v622, %v833
      %835 = vst [vmem:[%s756 + $0x80] sm:$0x1] %v834
      %v836 = vld [vmem:[%s756 + $0x84] sm:$0xf]
      %v837 = vsel %vm758, %v629, %v836
      %838 = vst [vmem:[%s756 + $0x84] sm:$0xf] %v837
      %839 = vst.msk [vmem:[%s756 + $0x88] sm:$0xf] %vm280, %v638
      %v840 = vld [vmem:[%s756 + $0x8c] sm:$0x1]
      %v841 = vsel %vm291, %v639, %v840
      %842 = vst [vmem:[%s756 + $0x8c] sm:$0x1] %v841
      %v843 = vld [vmem:[%s756 + $0x90] sm:$0xf]
      %v844 = vsel %vm758, %v646, %v843
      %845 = vst [vmem:[%s756 + $0x90] sm:$0xf] %v844
      %846 = vst.msk [vmem:[%s756 + $0x94] sm:$0xf] %vm280, %v655
      %v847 = vld [vmem:[%s756 + $0x98] sm:$0x1]
      %v848 = vsel %vm291, %v656, %v847
      %849 = vst [vmem:[%s756 + $0x98] sm:$0x1] %v848
      %v850 = vld [vmem:[%s756 + $0x9c] sm:$0xf]
      %v851 = vsel %vm758, %v663, %v850
      %852 = vst [vmem:[%s756 + $0x9c] sm:$0xf] %v851
      %853 = vst.msk [vmem:[%s756 + $0xa0] sm:$0xf] %vm280, %v672
      %v854 = vld [vmem:[%s756 + $0xa4] sm:$0x1]
      %v855 = vsel %vm291, %v673, %v854
      %856 = vst [vmem:[%s756 + $0xa4] sm:$0x1] %v855
      %v857 = vld [vmem:[%s756 + $0xa8] sm:$0xf]
      %v858 = vsel %vm758, %v680, %v857
      %859 = vst [vmem:[%s756 + $0xa8] sm:$0xf] %v858
      %860 = vst.msk [vmem:[%s756 + $0xac] sm:$0xf] %vm280, %v689
      %v861 = vld [vmem:[%s756 + $0xb0] sm:$0x1]
      %v862 = vsel %vm291, %v690, %v861
      %863 = vst [vmem:[%s756 + $0xb0] sm:$0x1] %v862
      %v864 = vld [vmem:[%s756 + $0xb4] sm:$0xf]
      %v865 = vsel %vm758, %v697, %v864
      %866 = vst [vmem:[%s756 + $0xb4] sm:$0xf] %v865
      %867 = vst.msk [vmem:[%s756 + $0xb8] sm:$0xf] %vm280, %v706
      %v868 = vld [vmem:[%s756 + $0xbc] sm:$0x1]
      %v869 = vsel %vm291, %v707, %v868
      %870 = vst [vmem:[%s756 + $0xbc] sm:$0x1] %v869
      %v871 = vld [vmem:[#allocation2] sm:$0xf]
      %v872 = vld [vmem:[#allocation2 + $0x4] sm:$0xf]
      %v873 = vld [vmem:[#allocation2 + $0xc] sm:$0xf]
      %v874 = vld [vmem:[#allocation2 + $0x10] sm:$0xf]
      %v875 = vld [vmem:[#allocation2 + $0x18] sm:$0xf]
      %v876 = vld [vmem:[#allocation2 + $0x1c] sm:$0xf]
      %v877 = vld [vmem:[#allocation2 + $0x24] sm:$0xf]
      %v878 = vld [vmem:[#allocation2 + $0x28] sm:$0xf]
      %v879 = vld [vmem:[#allocation2 + $0x30] sm:$0xf]
      %v880 = vld [vmem:[#allocation2 + $0x34] sm:$0xf]
      %v881 = vld [vmem:[#allocation2 + $0x3c] sm:$0xf]
      %v882 = vld [vmem:[#allocation2 + $0x40] sm:$0xf]
      %v883 = vld [vmem:[#allocation2 + $0x48] sm:$0xf]
      %v884 = vld [vmem:[#allocation2 + $0x4c] sm:$0xf]
      %v885 = vld [vmem:[#allocation2 + $0x54] sm:$0xf]
      %v886 = vld [vmem:[#allocation2 + $0x58] sm:$0xf]
      %v887 = vld [vmem:[#allocation2 + $0x60] sm:$0xf]
      %v888 = vld [vmem:[#allocation2 + $0x64] sm:$0xf]
      %v889 = vld [vmem:[#allocation2 + $0x6c] sm:$0xf]
      %v890 = vld [vmem:[#allocation2 + $0x70] sm:$0xf]
      %v891 = vld [vmem:[#allocation2 + $0x78] sm:$0xf]
      %v892 = vld [vmem:[#allocation2 + $0x7c] sm:$0xf]
      %v893 = vld [vmem:[#allocation2 + $0x84] sm:$0xf]
      %v894 = vld [vmem:[#allocation2 + $0x88] sm:$0xf]
      %v895 = vld [vmem:[#allocation2 + $0x90] sm:$0xf]
      %v896 = vld [vmem:[#allocation2 + $0x94] sm:$0xf]
      %v897 = vld [vmem:[#allocation2 + $0x9c] sm:$0xf]
      %v898 = vld [vmem:[#allocation2 + $0xa0] sm:$0xf]
      %v899 = vld [vmem:[#allocation2 + $0xa8] sm:$0xf]
      %v900 = vld [vmem:[#allocation2 + $0xac] sm:$0xf]
      %v901 = vld [vmem:[#allocation2 + $0xb4] sm:$0xf]
      %v902 = vld [vmem:[#allocation2 + $0xb8] sm:$0xf]
      %903 = vst.msk [vmem:[#allocation4] sm:$0xf] %vm280, %v871
      %904 = vst.msk [vmem:[#allocation4 + $0x4] sm:$0xf] %vm280, %v872
      %905 = vst.msk [vmem:[#allocation4 + $0x8] sm:$0xf] %vm280, %v873
      %906 = vst.msk [vmem:[#allocation4 + $0xc] sm:$0xf] %vm280, %v874
      %907 = vst.msk [vmem:[#allocation4 + $0x10] sm:$0xf] %vm280, %v875
      %908 = vst.msk [vmem:[#allocation4 + $0x14] sm:$0xf] %vm280, %v876
      %909 = vst.msk [vmem:[#allocation4 + $0x18] sm:$0xf] %vm280, %v877
      %910 = vst.msk [vmem:[#allocation4 + $0x1c] sm:$0xf] %vm280, %v878
      %911 = vst.msk [vmem:[#allocation4 + $0x20] sm:$0xf] %vm280, %v879
      %912 = vst.msk [vmem:[#allocation4 + $0x24] sm:$0xf] %vm280, %v880
      %913 = vst.msk [vmem:[#allocation4 + $0x28] sm:$0xf] %vm280, %v881
      %914 = vst.msk [vmem:[#allocation4 + $0x2c] sm:$0xf] %vm280, %v882
      %915 = vst.msk [vmem:[#allocation4 + $0x30] sm:$0xf] %vm280, %v883
      %916 = vst.msk [vmem:[#allocation4 + $0x34] sm:$0xf] %vm280, %v884
      %917 = vst.msk [vmem:[#allocation4 + $0x38] sm:$0xf] %vm280, %v885
      %918 = vst.msk [vmem:[#allocation4 + $0x3c] sm:$0xf] %vm280, %v886
      %919 = vst.msk [vmem:[#allocation4 + $0x40] sm:$0xf] %vm280, %v887
      %920 = vst.msk [vmem:[#allocation4 + $0x44] sm:$0xf] %vm280, %v888
      %921 = vst.msk [vmem:[#allocation4 + $0x48] sm:$0xf] %vm280, %v889
      %922 = vst.msk [vmem:[#allocation4 + $0x4c] sm:$0xf] %vm280, %v890
      %923 = vst.msk [vmem:[#allocation4 + $0x50] sm:$0xf] %vm280, %v891
      %924 = vst.msk [vmem:[#allocation4 + $0x54] sm:$0xf] %vm280, %v892
      %925 = vst.msk [vmem:[#allocation4 + $0x58] sm:$0xf] %vm280, %v893
      %926 = vst.msk [vmem:[#allocation4 + $0x5c] sm:$0xf] %vm280, %v894
      %927 = vst.msk [vmem:[#allocation4 + $0x60] sm:$0xf] %vm280, %v895
      %928 = vst.msk [vmem:[#allocation4 + $0x64] sm:$0xf] %vm280, %v896
      %929 = vst.msk [vmem:[#allocation4 + $0x68] sm:$0xf] %vm280, %v897
      %930 = vst.msk [vmem:[#allocation4 + $0x6c] sm:$0xf] %vm280, %v898
      %931 = vst.msk [vmem:[#allocation4 + $0x70] sm:$0xf] %vm280, %v899
      %932 = vst.msk [vmem:[#allocation4 + $0x74] sm:$0xf] %vm280, %v900
      %933 = vst.msk [vmem:[#allocation4 + $0x78] sm:$0xf] %vm280, %v901
      %934 = vst.msk [vmem:[#allocation4 + $0x7c] sm:$0xf] %vm280, %v902
      %v935 = vld [vmem:[#allocation2] sm:$0xf]
      %v936 = vld [vmem:[#allocation2 + $0x4] sm:$0xf]
      %v937 = vld [vmem:[#allocation2 + $0x8] sm:$0x1]
      %v938 = vld [vmem:[#allocation2 + $0xc] sm:$0xf]
      %v939 = vld [vmem:[#allocation2 + $0x10] sm:$0xf]
      %v940 = vld [vmem:[#allocation2 + $0x14] sm:$0x1]
      %v941 = vld [vmem:[#allocation2 + $0x18] sm:$0xf]
      %v942 = vld [vmem:[#allocation2 + $0x1c] sm:$0xf]
      %v943 = vld [vmem:[#allocation2 + $0x20] sm:$0x1]
      %v944 = vld [vmem:[#allocation2 + $0x24] sm:$0xf]
      %v945 = vld [vmem:[#allocation2 + $0x28] sm:$0xf]
      %v946 = vld [vmem:[#allocation2 + $0x2c] sm:$0x1]
      %v947 = vld [vmem:[#allocation2 + $0x30] sm:$0xf]
      %v948 = vld [vmem:[#allocation2 + $0x34] sm:$0xf]
      %v949 = vld [vmem:[#allocation2 + $0x38] sm:$0x1]
      %v950 = vld [vmem:[#allocation2 + $0x3c] sm:$0xf]
      %v951 = vld [vmem:[#allocation2 + $0x40] sm:$0xf]
      %v952 = vld [vmem:[#allocation2 + $0x44] sm:$0x1]
      %v953 = vld [vmem:[#allocation2 + $0x48] sm:$0xf]
      %v954 = vld [vmem:[#allocation2 + $0x4c] sm:$0xf]
      %v955 = vld [vmem:[#allocation2 + $0x50] sm:$0x1]
      %v956 = vld [vmem:[#allocation2 + $0x54] sm:$0xf]
      %v957 = vld [vmem:[#allocation2 + $0x58] sm:$0xf]
      %v958 = vld [vmem:[#allocation2 + $0x5c] sm:$0x1]
      %v959 = vld [vmem:[#allocation2 + $0x60] sm:$0xf]
      %v960 = vld [vmem:[#allocation2 + $0x64] sm:$0xf]
      %v961 = vld [vmem:[#allocation2 + $0x68] sm:$0x1]
      %v962 = vld [vmem:[#allocation2 + $0x6c] sm:$0xf]
      %v963 = vld [vmem:[#allocation2 + $0x70] sm:$0xf]
      %v964 = vld [vmem:[#allocation2 + $0x74] sm:$0x1]
      %v965 = vld [vmem:[#allocation2 + $0x78] sm:$0xf]
      %v966 = vld [vmem:[#allocation2 + $0x7c] sm:$0xf]
      %v967 = vld [vmem:[#allocation2 + $0x80] sm:$0x1]
      %v968 = vld [vmem:[#allocation2 + $0x84] sm:$0xf]
      %v969 = vld [vmem:[#allocation2 + $0x88] sm:$0xf]
      %v970 = vld [vmem:[#allocation2 + $0x8c] sm:$0x1]
      %v971 = vld [vmem:[#allocation2 + $0x90] sm:$0xf]
      %v972 = vld [vmem:[#allocation2 + $0x94] sm:$0xf]
      %v973 = vld [vmem:[#allocation2 + $0x98] sm:$0x1]
      %v974 = vld [vmem:[#allocation2 + $0x9c] sm:$0xf]
      %v975 = vld [vmem:[#allocation2 + $0xa0] sm:$0xf]
      %v976 = vld [vmem:[#allocation2 + $0xa4] sm:$0x1]
      %v977 = vld [vmem:[#allocation2 + $0xa8] sm:$0xf]
      %v978 = vld [vmem:[#allocation2 + $0xac] sm:$0xf]
      %v979 = vld [vmem:[#allocation2 + $0xb0] sm:$0x1]
      %v980 = vld [vmem:[#allocation2 + $0xb4] sm:$0xf]
      %v981 = vld [vmem:[#allocation2 + $0xb8] sm:$0xf]
      %v982 = vld [vmem:[#allocation2 + $0xbc] sm:$0x1]
      %vm983 = vsmask.f32 3328
      %vm984 = vsmask.f32 7440
      %vm985 = vmor %vm983, %vm984
      %v987 = vshrl.u32 %v935, 16
      %v989 = vrot.slane %v987, 4
      %v990 = vshll.u32 %v935, 16
      %v992 = vrot.slane %v990, 5
      %v993 = vor.u32 %v989, %v992
      %v994 = vrot.slane %v993, 4
      %v996 = vshll.u32 %v936, 16
      %v998 = vrot.slane %v996, 5
      %v999 = vsel %vm985, %v994, %v998
      %v1000 = vshrl.u32 %v936, 16
      %v1002 = vrot.slane %v1000, 4
      %v1003 = vor.u32 %v1002, %v998
      %v1004 = vrot.slane %v1003, 4
      %v1006 = vshll.u32 %v937, 16
      %v1008 = vrot.slane %v1006, 5
      %v1009 = vsel %vm985, %v1004, %v1008
      %v1011 = vshrl.u32 %v938, 16
      %v1013 = vrot.slane %v1011, 4
      %v1014 = vshll.u32 %v938, 16
      %v1016 = vrot.slane %v1014, 5
      %v1017 = vor.u32 %v1013, %v1016
      %v1018 = vrot.slane %v1017, 4
      %v1020 = vshll.u32 %v939, 16
      %v1022 = vrot.slane %v1020, 5
      %v1023 = vsel %vm985, %v1018, %v1022
      %v1024 = vshrl.u32 %v939, 16
      %v1026 = vrot.slane %v1024, 4
      %v1027 = vor.u32 %v1026, %v1022
      %v1028 = vrot.slane %v1027, 4
      %v1030 = vshll.u32 %v940, 16
      %v1032 = vrot.slane %v1030, 5
      %v1033 = vsel %vm985, %v1028, %v1032
      %v1035 = vshrl.u32 %v941, 16
      %v1037 = vrot.slane %v1035, 4
      %v1038 = vshll.u32 %v941, 16
      %v1040 = vrot.slane %v1038, 5
      %v1041 = vor.u32 %v1037, %v1040
      %v1042 = vrot.slane %v1041, 4
      %v1044 = vshll.u32 %v942, 16
      %v1046 = vrot.slane %v1044, 5
      %v1047 = vsel %vm985, %v1042, %v1046
      %v1048 = vshrl.u32 %v942, 16
      %v1050 = vrot.slane %v1048, 4
      %v1051 = vor.u32 %v1050, %v1046
      %v1052 = vrot.slane %v1051, 4
      %v1054 = vshll.u32 %v943, 16
      %v1056 = vrot.slane %v1054, 5
      %v1057 = vsel %vm985, %v1052, %v1056
      %v1059 = vshrl.u32 %v944, 16
      %v1061 = vrot.slane %v1059, 4
      %v1062 = vshll.u32 %v944, 16
      %v1064 = vrot.slane %v1062, 5
      %v1065 = vor.u32 %v1061, %v1064
      %v1066 = vrot.slane %v1065, 4
      %v1068 = vshll.u32 %v945, 16
      %v1070 = vrot.slane %v1068, 5
      %v1071 = vsel %vm985, %v1066, %v1070
      %v1072 = vshrl.u32 %v945, 16
      %v1074 = vrot.slane %v1072, 4
      %v1075 = vor.u32 %v1074, %v1070
      %v1076 = vrot.slane %v1075, 4
      %v1078 = vshll.u32 %v946, 16
      %v1080 = vrot.slane %v1078, 5
      %v1081 = vsel %vm985, %v1076, %v1080
      %v1083 = vshrl.u32 %v947, 16
      %v1085 = vrot.slane %v1083, 4
      %v1086 = vshll.u32 %v947, 16
      %v1088 = vrot.slane %v1086, 5
      %v1089 = vor.u32 %v1085, %v1088
      %v1090 = vrot.slane %v1089, 4
      %v1092 = vshll.u32 %v948, 16
      %v1094 = vrot.slane %v1092, 5
      %v1095 = vsel %vm985, %v1090, %v1094
      %v1096 = vshrl.u32 %v948, 16
      %v1098 = vrot.slane %v1096, 4
      %v1099 = vor.u32 %v1098, %v1094
      %v1100 = vrot.slane %v1099, 4
      %v1102 = vshll.u32 %v949, 16
      %v1104 = vrot.slane %v1102, 5
      %v1105 = vsel %vm985, %v1100, %v1104
      %v1107 = vshrl.u32 %v950, 16
      %v1109 = vrot.slane %v1107, 4
      %v1110 = vshll.u32 %v950, 16
      %v1112 = vrot.slane %v1110, 5
      %v1113 = vor.u32 %v1109, %v1112
      %v1114 = vrot.slane %v1113, 4
      %v1116 = vshll.u32 %v951, 16
      %v1118 = vrot.slane %v1116, 5
      %v1119 = vsel %vm985, %v1114, %v1118
      %v1120 = vshrl.u32 %v951, 16
      %v1122 = vrot.slane %v1120, 4
      %v1123 = vor.u32 %v1122, %v1118
      %v1124 = vrot.slane %v1123, 4
      %v1126 = vshll.u32 %v952, 16
      %v1128 = vrot.slane %v1126, 5
      %v1129 = vsel %vm985, %v1124, %v1128
      %v1131 = vshrl.u32 %v953, 16
      %v1133 = vrot.slane %v1131, 4
      %v1134 = vshll.u32 %v953, 16
      %v1136 = vrot.slane %v1134, 5
      %v1137 = vor.u32 %v1133, %v1136
      %v1138 = vrot.slane %v1137, 4
      %v1140 = vshll.u32 %v954, 16
      %v1142 = vrot.slane %v1140, 5
      %v1143 = vsel %vm985, %v1138, %v1142
      %v1144 = vshrl.u32 %v954, 16
      %v1146 = vrot.slane %v1144, 4
      %v1147 = vor.u32 %v1146, %v1142
      %v1148 = vrot.slane %v1147, 4
      %v1150 = vshll.u32 %v955, 16
      %v1152 = vrot.slane %v1150, 5
      %v1153 = vsel %vm985, %v1148, %v1152
      %v1155 = vshrl.u32 %v956, 16
      %v1157 = vrot.slane %v1155, 4
      %v1158 = vshll.u32 %v956, 16
      %v1160 = vrot.slane %v1158, 5
      %v1161 = vor.u32 %v1157, %v1160
      %v1162 = vrot.slane %v1161, 4
      %v1164 = vshll.u32 %v957, 16
      %v1166 = vrot.slane %v1164, 5
      %v1167 = vsel %vm985, %v1162, %v1166
      %v1168 = vshrl.u32 %v957, 16
      %v1170 = vrot.slane %v1168, 4
      %v1171 = vor.u32 %v1170, %v1166
      %v1172 = vrot.slane %v1171, 4
      %v1174 = vshll.u32 %v958, 16
      %v1176 = vrot.slane %v1174, 5
      %v1177 = vsel %vm985, %v1172, %v1176
      %v1179 = vshrl.u32 %v959, 16
      %v1181 = vrot.slane %v1179, 4
      %v1182 = vshll.u32 %v959, 16
      %v1184 = vrot.slane %v1182, 5
      %v1185 = vor.u32 %v1181, %v1184
      %v1186 = vrot.slane %v1185, 4
      %v1188 = vshll.u32 %v960, 16
      %v1190 = vrot.slane %v1188, 5
      %v1191 = vsel %vm985, %v1186, %v1190
      %v1192 = vshrl.u32 %v960, 16
      %v1194 = vrot.slane %v1192, 4
      %v1195 = vor.u32 %v1194, %v1190
      %v1196 = vrot.slane %v1195, 4
      %v1198 = vshll.u32 %v961, 16
      %v1200 = vrot.slane %v1198, 5
      %v1201 = vsel %vm985, %v1196, %v1200
      %v1203 = vshrl.u32 %v962, 16
      %v1205 = vrot.slane %v1203, 4
      %v1206 = vshll.u32 %v962, 16
      %v1208 = vrot.slane %v1206, 5
      %v1209 = vor.u32 %v1205, %v1208
      %v1210 = vrot.slane %v1209, 4
      %v1212 = vshll.u32 %v963, 16
      %v1214 = vrot.slane %v1212, 5
      %v1215 = vsel %vm985, %v1210, %v1214
      %v1216 = vshrl.u32 %v963, 16
      %v1218 = vrot.slane %v1216, 4
      %v1219 = vor.u32 %v1218, %v1214
      %v1220 = vrot.slane %v1219, 4
      %v1222 = vshll.u32 %v964, 16
      %v1224 = vrot.slane %v1222, 5
      %v1225 = vsel %vm985, %v1220, %v1224
      %v1227 = vshrl.u32 %v965, 16
      %v1229 = vrot.slane %v1227, 4
      %v1230 = vshll.u32 %v965, 16
      %v1232 = vrot.slane %v1230, 5
      %v1233 = vor.u32 %v1229, %v1232
      %v1234 = vrot.slane %v1233, 4
      %v1236 = vshll.u32 %v966, 16
      %v1238 = vrot.slane %v1236, 5
      %v1239 = vsel %vm985, %v1234, %v1238
      %v1240 = vshrl.u32 %v966, 16
      %v1242 = vrot.slane %v1240, 4
      %v1243 = vor.u32 %v1242, %v1238
      %v1244 = vrot.slane %v1243, 4
      %v1246 = vshll.u32 %v967, 16
      %v1248 = vrot.slane %v1246, 5
      %v1249 = vsel %vm985, %v1244, %v1248
      %v1251 = vshrl.u32 %v968, 16
      %v1253 = vrot.slane %v1251, 4
      %v1254 = vshll.u32 %v968, 16
      %v1256 = vrot.slane %v1254, 5
      %v1257 = vor.u32 %v1253, %v1256
      %v1258 = vrot.slane %v1257, 4
      %v1260 = vshll.u32 %v969, 16
      %v1262 = vrot.slane %v1260, 5
      %v1263 = vsel %vm985, %v1258, %v1262
      %v1264 = vshrl.u32 %v969, 16
      %v1266 = vrot.slane %v1264, 4
      %v1267 = vor.u32 %v1266, %v1262
      %v1268 = vrot.slane %v1267, 4
      %v1270 = vshll.u32 %v970, 16
      %v1272 = vrot.slane %v1270, 5
      %v1273 = vsel %vm985, %v1268, %v1272
      %v1275 = vshrl.u32 %v971, 16
      %v1277 = vrot.slane %v1275, 4
      %v1278 = vshll.u32 %v971, 16
      %v1280 = vrot.slane %v1278, 5
      %v1281 = vor.u32 %v1277, %v1280
      %v1282 = vrot.slane %v1281, 4
      %v1284 = vshll.u32 %v972, 16
      %v1286 = vrot.slane %v1284, 5
      %v1287 = vsel %vm985, %v1282, %v1286
      %v1288 = vshrl.u32 %v972, 16
      %v1290 = vrot.slane %v1288, 4
      %v1291 = vor.u32 %v1290, %v1286
      %v1292 = vrot.slane %v1291, 4
      %v1294 = vshll.u32 %v973, 16
      %v1296 = vrot.slane %v1294, 5
      %v1297 = vsel %vm985, %v1292, %v1296
      %v1299 = vshrl.u32 %v974, 16
      %v1301 = vrot.slane %v1299, 4
      %v1302 = vshll.u32 %v974, 16
      %v1304 = vrot.slane %v1302, 5
      %v1305 = vor.u32 %v1301, %v1304
      %v1306 = vrot.slane %v1305, 4
      %v1308 = vshll.u32 %v975, 16
      %v1310 = vrot.slane %v1308, 5
      %v1311 = vsel %vm985, %v1306, %v1310
      %v1312 = vshrl.u32 %v975, 16
      %v1314 = vrot.slane %v1312, 4
      %v1315 = vor.u32 %v1314, %v1310
      %v1316 = vrot.slane %v1315, 4
      %v1318 = vshll.u32 %v976, 16
      %v1320 = vrot.slane %v1318, 5
      %v1321 = vsel %vm985, %v1316, %v1320
      %v1323 = vshrl.u32 %v977, 16
      %v1325 = vrot.slane %v1323, 4
      %v1326 = vshll.u32 %v977, 16
      %v1328 = vrot.slane %v1326, 5
      %v1329 = vor.u32 %v1325, %v1328
      %v1330 = vrot.slane %v1329, 4
      %v1332 = vshll.u32 %v978, 16
      %v1334 = vrot.slane %v1332, 5
      %v1335 = vsel %vm985, %v1330, %v1334
      %v1336 = vshrl.u32 %v978, 16
      %v1338 = vrot.slane %v1336, 4
      %v1339 = vor.u32 %v1338, %v1334
      %v1340 = vrot.slane %v1339, 4
      %v1342 = vshll.u32 %v979, 16
      %v1344 = vrot.slane %v1342, 5
      %v1345 = vsel %vm985, %v1340, %v1344
      %v1347 = vshrl.u32 %v980, 16
      %v1349 = vrot.slane %v1347, 4
      %v1350 = vshll.u32 %v980, 16
      %v1352 = vrot.slane %v1350, 5
      %v1353 = vor.u32 %v1349, %v1352
      %v1354 = vrot.slane %v1353, 4
      %v1356 = vshll.u32 %v981, 16
      %v1358 = vrot.slane %v1356, 5
      %v1359 = vsel %vm985, %v1354, %v1358
      %v1360 = vshrl.u32 %v981, 16
      %v1362 = vrot.slane %v1360, 4
      %v1363 = vor.u32 %v1362, %v1358
      %v1364 = vrot.slane %v1363, 4
      %v1366 = vshll.u32 %v982, 16
      %v1368 = vrot.slane %v1366, 5
      %v1369 = vsel %vm985, %v1364, %v1368
      %1370 = vrot.lane.b32.xlu0 %v999, 4
      %v1371 = vpop.permute.xlu0 %1370
      %1372 = vrot.lane.b32.xlu0 %v1009, 4
      %v1373 = vpop.permute.xlu0 %1372
      %1374 = vrot.lane.b32.xlu0 %v1023, 4
      %v1375 = vpop.permute.xlu0 %1374
      %1376 = vrot.lane.b32.xlu0 %v1033, 4
      %v1377 = vpop.permute.xlu0 %1376
      %1378 = vrot.lane.b32.xlu0 %v1047, 4
      %v1379 = vpop.permute.xlu0 %1378
      %1380 = vrot.lane.b32.xlu0 %v1057, 4
      %v1381 = vpop.permute.xlu0 %1380
      %1382 = vrot.lane.b32.xlu0 %v1071, 4
      %v1383 = vpop.permute.xlu0 %1382
      %1384 = vrot.lane.b32.xlu0 %v1081, 4
      %v1385 = vpop.permute.xlu0 %1384
      %1386 = vrot.lane.b32.xlu0 %v1095, 4
      %v1387 = vpop.permute.xlu0 %1386
      %1388 = vrot.lane.b32.xlu0 %v1105, 4
      %v1389 = vpop.permute.xlu0 %1388
      %1390 = vrot.lane.b32.xlu0 %v1119, 4
      %v1391 = vpop.permute.xlu0 %1390
      %1392 = vrot.lane.b32.xlu0 %v1129, 4
      %v1393 = vpop.permute.xlu0 %1392
      %1394 = vrot.lane.b32.xlu0 %v1143, 4
      %v1395 = vpop.permute.xlu0 %1394
      %1396 = vrot.lane.b32.xlu0 %v1153, 4
      %v1397 = vpop.permute.xlu0 %1396
      %1398 = vrot.lane.b32.xlu0 %v1167, 4
      %v1399 = vpop.permute.xlu0 %1398
      %1400 = vrot.lane.b32.xlu0 %v1177, 4
      %v1401 = vpop.permute.xlu0 %1400
      %1402 = vrot.lane.b32.xlu0 %v1191, 4
      %v1403 = vpop.permute.xlu0 %1402
      %1404 = vrot.lane.b32.xlu0 %v1201, 4
      %v1405 = vpop.permute.xlu0 %1404
      %1406 = vrot.lane.b32.xlu0 %v1215, 4
      %v1407 = vpop.permute.xlu0 %1406
      %1408 = vrot.lane.b32.xlu0 %v1225, 4
      %v1409 = vpop.permute.xlu0 %1408
      %1410 = vrot.lane.b32.xlu0 %v1239, 4
      %v1411 = vpop.permute.xlu0 %1410
      %1412 = vrot.lane.b32.xlu0 %v1249, 4
      %v1413 = vpop.permute.xlu0 %1412
      %1414 = vrot.lane.b32.xlu0 %v1263, 4
      %v1415 = vpop.permute.xlu0 %1414
      %1416 = vrot.lane.b32.xlu0 %v1273, 4
      %v1417 = vpop.permute.xlu0 %1416
      %1418 = vrot.lane.b32.xlu0 %v1287, 4
      %v1419 = vpop.permute.xlu0 %1418
      %1420 = vrot.lane.b32.xlu0 %v1297, 4
      %v1421 = vpop.permute.xlu0 %1420
      %1422 = vrot.lane.b32.xlu0 %v1311, 4
      %v1423 = vpop.permute.xlu0 %1422
      %1424 = vrot.lane.b32.xlu0 %v1321, 4
      %v1425 = vpop.permute.xlu0 %1424
      %1426 = vrot.lane.b32.xlu0 %v1335, 4
      %v1427 = vpop.permute.xlu0 %1426
      %1428 = vrot.lane.b32.xlu0 %v1345, 4
      %v1429 = vpop.permute.xlu0 %1428
      %1430 = vrot.lane.b32.xlu0 %v1359, 4
      %v1431 = vpop.permute.xlu0 %1430
      %1432 = vrot.lane.b32.xlu0 %v1369, 4
      %v1433 = vpop.permute.xlu0 %1432
      %vm1466 = vcmask 60448
      %1467 = vst.msk [vmem:[#allocation4] sm:$0xf] %vm1466, %v1371
      %1468 = vst.msk [vmem:[#allocation4 + $0x4] sm:$0xf] %vm1466, %v1373
      %1469 = vst.msk [vmem:[#allocation4 + $0x8] sm:$0xf] %vm1466, %v1375
      %1470 = vst.msk [vmem:[#allocation4 + $0xc] sm:$0xf] %vm1466, %v1377
      %1471 = vst.msk [vmem:[#allocation4 + $0x10] sm:$0xf] %vm1466, %v1379
      %1472 = vst.msk [vmem:[#allocation4 + $0x14] sm:$0xf] %vm1466, %v1381
      %1473 = vst.msk [vmem:[#allocation4 + $0x18] sm:$0xf] %vm1466, %v1383
      %1474 = vst.msk [vmem:[#allocation4 + $0x1c] sm:$0xf] %vm1466, %v1385
      %1475 = vst.msk [vmem:[#allocation4 + $0x20] sm:$0xf] %vm1466, %v1387
      %1476 = vst.msk [vmem:[#allocation4 + $0x24] sm:$0xf] %vm1466, %v1389
      %1477 = vst.msk [vmem:[#allocation4 + $0x28] sm:$0xf] %vm1466, %v1391
      %1478 = vst.msk [vmem:[#allocation4 + $0x2c] sm:$0xf] %vm1466, %v1393
      %1479 = vst.msk [vmem:[#allocation4 + $0x30] sm:$0xf] %vm1466, %v1395
      %1480 = vst.msk [vmem:[#allocation4 + $0x34] sm:$0xf] %vm1466, %v1397
      %1481 = vst.msk [vmem:[#allocation4 + $0x38] sm:$0xf] %vm1466, %v1399
      %1482 = vst.msk [vmem:[#allocation4 + $0x3c] sm:$0xf] %vm1466, %v1401
      %1483 = vst.msk [vmem:[#allocation4 + $0x40] sm:$0xf] %vm1466, %v1403
      %1484 = vst.msk [vmem:[#allocation4 + $0x44] sm:$0xf] %vm1466, %v1405
      %1485 = vst.msk [vmem:[#allocation4 + $0x48] sm:$0xf] %vm1466, %v1407
      %1486 = vst.msk [vmem:[#allocation4 + $0x4c] sm:$0xf] %vm1466, %v1409
      %1487 = vst.msk [vmem:[#allocation4 + $0x50] sm:$0xf] %vm1466, %v1411
      %1488 = vst.msk [vmem:[#allocation4 + $0x54] sm:$0xf] %vm1466, %v1413
      %1489 = vst.msk [vmem:[#allocation4 + $0x58] sm:$0xf] %vm1466, %v1415
      %1490 = vst.msk [vmem:[#allocation4 + $0x5c] sm:$0xf] %vm1466, %v1417
      %1491 = vst.msk [vmem:[#allocation4 + $0x60] sm:$0xf] %vm1466, %v1419
      %1492 = vst.msk [vmem:[#allocation4 + $0x64] sm:$0xf] %vm1466, %v1421
      %1493 = vst.msk [vmem:[#allocation4 + $0x68] sm:$0xf] %vm1466, %v1423
      %1494 = vst.msk [vmem:[#allocation4 + $0x6c] sm:$0xf] %vm1466, %v1425
      %1495 = vst.msk [vmem:[#allocation4 + $0x70] sm:$0xf] %vm1466, %v1427
      %1496 = vst.msk [vmem:[#allocation4 + $0x74] sm:$0xf] %vm1466, %v1429
      %1497 = vst.msk [vmem:[#allocation4 + $0x78] sm:$0xf] %vm1466, %v1431
      %1498 = vst.msk [vmem:[#allocation4 + $0x7c] sm:$0xf] %vm1466, %v1433
      %v1499 = vld [vmem:[#allocation2] sm:$0xe]
      %v1500 = vld [vmem:[#allocation2 + $0x4] sm:$0xf]
      %v1501 = vld [vmem:[#allocation2 + $0x8] sm:$0x1]
      %v1502 = vld [vmem:[#allocation2 + $0xc] sm:$0xe]
      %v1503 = vld [vmem:[#allocation2 + $0x10] sm:$0xf]
      %v1504 = vld [vmem:[#allocation2 + $0x14] sm:$0x1]
      %v1505 = vld [vmem:[#allocation2 + $0x18] sm:$0xe]
      %v1506 = vld [vmem:[#allocation2 + $0x1c] sm:$0xf]
      %v1507 = vld [vmem:[#allocation2 + $0x20] sm:$0x1]
      %v1508 = vld [vmem:[#allocation2 + $0x24] sm:$0xe]
      %v1509 = vld [vmem:[#allocation2 + $0x28] sm:$0xf]
      %v1510 = vld [vmem:[#allocation2 + $0x2c] sm:$0x1]
      %v1511 = vld [vmem:[#allocation2 + $0x30] sm:$0xe]
      %v1512 = vld [vmem:[#allocation2 + $0x34] sm:$0xf]
      %v1513 = vld [vmem:[#allocation2 + $0x38] sm:$0x1]
      %v1514 = vld [vmem:[#allocation2 + $0x3c] sm:$0xe]
      %v1515 = vld [vmem:[#allocation2 + $0x40] sm:$0xf]
      %v1516 = vld [vmem:[#allocation2 + $0x44] sm:$0x1]
      %v1517 = vld [vmem:[#allocation2 + $0x48] sm:$0xe]
      %v1518 = vld [vmem:[#allocation2 + $0x4c] sm:$0xf]
      %v1519 = vld [vmem:[#allocation2 + $0x50] sm:$0x1]
      %v1520 = vld [vmem:[#allocation2 + $0x54] sm:$0xe]
      %v1521 = vld [vmem:[#allocation2 + $0x58] sm:$0xf]
      %v1522 = vld [vmem:[#allocation2 + $0x5c] sm:$0x1]
      %v1523 = vld [vmem:[#allocation2 + $0x60] sm:$0xe]
      %v1524 = vld [vmem:[#allocation2 + $0x64] sm:$0xf]
      %v1525 = vld [vmem:[#allocation2 + $0x68] sm:$0x1]
      %v1526 = vld [vmem:[#allocation2 + $0x6c] sm:$0xe]
      %v1527 = vld [vmem:[#allocation2 + $0x70] sm:$0xf]
      %v1528 = vld [vmem:[#allocation2 + $0x74] sm:$0x1]
      %v1529 = vld [vmem:[#allocation2 + $0x78] sm:$0xe]
      %v1530 = vld [vmem:[#allocation2 + $0x7c] sm:$0xf]
      %v1531 = vld [vmem:[#allocation2 + $0x80] sm:$0x1]
      %v1532 = vld [vmem:[#allocation2 + $0x84] sm:$0xe]
      %v1533 = vld [vmem:[#allocation2 + $0x88] sm:$0xf]
      %v1534 = vld [vmem:[#allocation2 + $0x8c] sm:$0x1]
      %v1535 = vld [vmem:[#allocation2 + $0x90] sm:$0xe]
      %v1536 = vld [vmem:[#allocation2 + $0x94] sm:$0xf]
      %v1537 = vld [vmem:[#allocation2 + $0x98] sm:$0x1]
      %v1538 = vld [vmem:[#allocation2 + $0x9c] sm:$0xe]
      %v1539 = vld [vmem:[#allocation2 + $0xa0] sm:$0xf]
      %v1540 = vld [vmem:[#allocation2 + $0xa4] sm:$0x1]
      %v1541 = vld [vmem:[#allocation2 + $0xa8] sm:$0xe]
      %v1542 = vld [vmem:[#allocation2 + $0xac] sm:$0xf]
      %v1543 = vld [vmem:[#allocation2 + $0xb0] sm:$0x1]
      %v1544 = vld [vmem:[#allocation2 + $0xb4] sm:$0xe]
      %v1545 = vld [vmem:[#allocation2 + $0xb8] sm:$0xf]
      %v1546 = vld [vmem:[#allocation2 + $0xbc] sm:$0x1]
      %vm1595 = vcmask 1042432
      %vm1596 = vcmask 1046532
      %vm1597 = vmor %vm1595, %vm1596
      %v1598 = vrot.slane %v1499, 5
      %v1599 = vrot.slane %v1598, 4
      %v1600 = vrot.slane %v1500, 5
      %v1601 = vsel %vm1597, %v1599, %v1600
      %v1602 = vrot.slane %v1600, 4
      %v1603 = vrot.slane %v1501, 5
      %v1604 = vsel %vm1597, %v1602, %v1603
      %v1605 = vrot.slane %v1502, 5
      %v1606 = vrot.slane %v1605, 4
      %v1607 = vrot.slane %v1503, 5
      %v1608 = vsel %vm1597, %v1606, %v1607
      %v1609 = vrot.slane %v1607, 4
      %v1610 = vrot.slane %v1504, 5
      %v1611 = vsel %vm1597, %v1609, %v1610
      %v1612 = vrot.slane %v1505, 5
      %v1613 = vrot.slane %v1612, 4
      %v1614 = vrot.slane %v1506, 5
      %v1615 = vsel %vm1597, %v1613, %v1614
      %v1616 = vrot.slane %v1614, 4
      %v1617 = vrot.slane %v1507, 5
      %v1618 = vsel %vm1597, %v1616, %v1617
      %v1619 = vrot.slane %v1508, 5
      %v1620 = vrot.slane %v1619, 4
      %v1621 = vrot.slane %v1509, 5
      %v1622 = vsel %vm1597, %v1620, %v1621
      %v1623 = vrot.slane %v1621, 4
      %v1624 = vrot.slane %v1510, 5
      %v1625 = vsel %vm1597, %v1623, %v1624
      %v1626 = vrot.slane %v1511, 5
      %v1627 = vrot.slane %v1626, 4
      %v1628 = vrot.slane %v1512, 5
      %v1629 = vsel %vm1597, %v1627, %v1628
      %v1630 = vrot.slane %v1628, 4
      %v1631 = vrot.slane %v1513, 5
      %v1632 = vsel %vm1597, %v1630, %v1631
      %v1633 = vrot.slane %v1514, 5
      %v1634 = vrot.slane %v1633, 4
      %v1635 = vrot.slane %v1515, 5
      %v1636 = vsel %vm1597, %v1634, %v1635
      %v1637 = vrot.slane %v1635, 4
      %v1638 = vrot.slane %v1516, 5
      %v1639 = vsel %vm1597, %v1637, %v1638
      %v1640 = vrot.slane %v1517, 5
      %v1641 = vrot.slane %v1640, 4
      %v1642 = vrot.slane %v1518, 5
      %v1643 = vsel %vm1597, %v1641, %v1642
      %v1644 = vrot.slane %v1642, 4
      %v1645 = vrot.slane %v1519, 5
      %v1646 = vsel %vm1597, %v1644, %v1645
      %v1647 = vrot.slane %v1520, 5
      %v1648 = vrot.slane %v1647, 4
      %v1649 = vrot.slane %v1521, 5
      %v1650 = vsel %vm1597, %v1648, %v1649
      %v1651 = vrot.slane %v1649, 4
      %v1652 = vrot.slane %v1522, 5
      %v1653 = vsel %vm1597, %v1651, %v1652
      %v1654 = vrot.slane %v1523, 5
      %v1655 = vrot.slane %v1654, 4
      %v1656 = vrot.slane %v1524, 5
      %v1657 = vsel %vm1597, %v1655, %v1656
      %v1658 = vrot.slane %v1656, 4
      %v1659 = vrot.slane %v1525, 5
      %v1660 = vsel %vm1597, %v1658, %v1659
      %v1661 = vrot.slane %v1526, 5
      %v1662 = vrot.slane %v1661, 4
      %v1663 = vrot.slane %v1527, 5
      %v1664 = vsel %vm1597, %v1662, %v1663
      %v1665 = vrot.slane %v1663, 4
      %v1666 = vrot.slane %v1528, 5
      %v1667 = vsel %vm1597, %v1665, %v1666
      %v1668 = vrot.slane %v1529, 5
      %v1669 = vrot.slane %v1668, 4
      %v1670 = vrot.slane %v1530, 5
      %v1671 = vsel %vm1597, %v1669, %v1670
      %v1672 = vrot.slane %v1670, 4
      %v1673 = vrot.slane %v1531, 5
      %v1674 = vsel %vm1597, %v1672, %v1673
      %v1675 = vrot.slane %v1532, 5
      %v1676 = vrot.slane %v1675, 4
      %v1677 = vrot.slane %v1533, 5
      %v1678 = vsel %vm1597, %v1676, %v1677
      %v1679 = vrot.slane %v1677, 4
      %v1680 = vrot.slane %v1534, 5
      %v1681 = vsel %vm1597, %v1679, %v1680
      %v1682 = vrot.slane %v1535, 5
      %v1683 = vrot.slane %v1682, 4
      %v1684 = vrot.slane %v1536, 5
      %v1685 = vsel %vm1597, %v1683, %v1684
      %v1686 = vrot.slane %v1684, 4
      %v1687 = vrot.slane %v1537, 5
      %v1688 = vsel %vm1597, %v1686, %v1687
      %v1689 = vrot.slane %v1538, 5
      %v1690 = vrot.slane %v1689, 4
      %v1691 = vrot.slane %v1539, 5
      %v1692 = vsel %vm1597, %v1690, %v1691
      %v1693 = vrot.slane %v1691, 4
      %v1694 = vrot.slane %v1540, 5
      %v1695 = vsel %vm1597, %v1693, %v1694
      %v1696 = vrot.slane %v1541, 5
      %v1697 = vrot.slane %v1696, 4
      %v1698 = vrot.slane %v1542, 5
      %v1699 = vsel %vm1597, %v1697, %v1698
      %v1700 = vrot.slane %v1698, 4
      %v1701 = vrot.slane %v1543, 5
      %v1702 = vsel %vm1597, %v1700, %v1701
      %v1703 = vrot.slane %v1544, 5
      %v1704 = vrot.slane %v1703, 4
      %v1705 = vrot.slane %v1545, 5
      %v1706 = vsel %vm1597, %v1704, %v1705
      %v1707 = vrot.slane %v1705, 4
      %v1708 = vrot.slane %v1546, 5
      %v1709 = vsel %vm1597, %v1707, %v1708
      %1710 = vrot.lane.b32.xlu0 %v1601, 8
      %v1711 = vpop.permute.xlu0 %1710
      %1712 = vrot.lane.b32.xlu0 %v1604, 8
      %v1713 = vpop.permute.xlu0 %1712
      %1714 = vrot.lane.b32.xlu0 %v1608, 8
      %v1715 = vpop.permute.xlu0 %1714
      %1716 = vrot.lane.b32.xlu0 %v1611, 8
      %v1717 = vpop.permute.xlu0 %1716
      %1718 = vrot.lane.b32.xlu0 %v1615, 8
      %v1719 = vpop.permute.xlu0 %1718
      %1720 = vrot.lane.b32.xlu0 %v1618, 8
      %v1721 = vpop.permute.xlu0 %1720
      %1722 = vrot.lane.b32.xlu0 %v1622, 8
      %v1723 = vpop.permute.xlu0 %1722
      %1724 = vrot.lane.b32.xlu0 %v1625, 8
      %v1725 = vpop.permute.xlu0 %1724
      %1726 = vrot.lane.b32.xlu0 %v1629, 8
      %v1727 = vpop.permute.xlu0 %1726
      %1728 = vrot.lane.b32.xlu0 %v1632, 8
      %v1729 = vpop.permute.xlu0 %1728
      %1730 = vrot.lane.b32.xlu0 %v1636, 8
      %v1731 = vpop.permute.xlu0 %1730
      %1732 = vrot.lane.b32.xlu0 %v1639, 8
      %v1733 = vpop.permute.xlu0 %1732
      %1734 = vrot.lane.b32.xlu0 %v1643, 8
      %v1735 = vpop.permute.xlu0 %1734
      %1736 = vrot.lane.b32.xlu0 %v1646, 8
      %v1737 = vpop.permute.xlu0 %1736
      %1738 = vrot.lane.b32.xlu0 %v1650, 8
      %v1739 = vpop.permute.xlu0 %1738
      %1740 = vrot.lane.b32.xlu0 %v1653, 8
      %v1741 = vpop.permute.xlu0 %1740
      %1742 = vrot.lane.b32.xlu0 %v1657, 8
      %v1743 = vpop.permute.xlu0 %1742
      %1744 = vrot.lane.b32.xlu0 %v1660, 8
      %v1745 = vpop.permute.xlu0 %1744
      %1746 = vrot.lane.b32.xlu0 %v1664, 8
      %v1747 = vpop.permute.xlu0 %1746
      %1748 = vrot.lane.b32.xlu0 %v1667, 8
      %v1749 = vpop.permute.xlu0 %1748
      %1750 = vrot.lane.b32.xlu0 %v1671, 8
      %v1751 = vpop.permute.xlu0 %1750
      %1752 = vrot.lane.b32.xlu0 %v1674, 8
      %v1753 = vpop.permute.xlu0 %1752
      %1754 = vrot.lane.b32.xlu0 %v1678, 8
      %v1755 = vpop.permute.xlu0 %1754
      %1756 = vrot.lane.b32.xlu0 %v1681, 8
      %v1757 = vpop.permute.xlu0 %1756
      %1758 = vrot.lane.b32.xlu0 %v1685, 8
      %v1759 = vpop.permute.xlu0 %1758
      %1760 = vrot.lane.b32.xlu0 %v1688, 8
      %v1761 = vpop.permute.xlu0 %1760
      %1762 = vrot.lane.b32.xlu0 %v1692, 8
      %v1763 = vpop.permute.xlu0 %1762
      %1764 = vrot.lane.b32.xlu0 %v1695, 8
      %v1765 = vpop.permute.xlu0 %1764
      %1766 = vrot.lane.b32.xlu0 %v1699, 8
      %v1767 = vpop.permute.xlu0 %1766
      %1768 = vrot.lane.b32.xlu0 %v1702, 8
      %v1769 = vpop.permute.xlu0 %1768
      %1770 = vrot.lane.b32.xlu0 %v1706, 8
      %v1771 = vpop.permute.xlu0 %1770
      %1772 = vrot.lane.b32.xlu0 %v1709, 8
      %v1773 = vpop.permute.xlu0 %1772
      %vm1806 = vcmask 93248
      %1807 = vst.msk [vmem:[#allocation4] sm:$0xf] %vm1806, %v1711
      %1808 = vst.msk [vmem:[#allocation4 + $0x4] sm:$0xf] %vm1806, %v1713
      %1809 = vst.msk [vmem:[#allocation4 + $0x8] sm:$0xf] %vm1806, %v1715
      %1810 = vst.msk [vmem:[#allocation4 + $0xc] sm:$0xf] %vm1806, %v1717
      %1811 = vst.msk [vmem:[#allocation4 + $0x10] sm:$0xf] %vm1806, %v1719
      %1812 = vst.msk [vmem:[#allocation4 + $0x14] sm:$0xf] %vm1806, %v1721
      %1813 = vst.msk [vmem:[#allocation4 + $0x18] sm:$0xf] %vm1806, %v1723
      %1814 = vst.msk [vmem:[#allocation4 + $0x1c] sm:$0xf] %vm1806, %v1725
      %1815 = vst.msk [vmem:[#allocation4 + $0x20] sm:$0xf] %vm1806, %v1727
      %1816 = vst.msk [vmem:[#allocation4 + $0x24] sm:$0xf] %vm1806, %v1729
      %1817 = vst.msk [vmem:[#allocation4 + $0x28] sm:$0xf] %vm1806, %v1731
      %1818 = vst.msk [vmem:[#allocation4 + $0x2c] sm:$0xf] %vm1806, %v1733
      %1819 = vst.msk [vmem:[#allocation4 + $0x30] sm:$0xf] %vm1806, %v1735
      %1820 = vst.msk [vmem:[#allocation4 + $0x34] sm:$0xf] %vm1806, %v1737
      %1821 = vst.msk [vmem:[#allocation4 + $0x38] sm:$0xf] %vm1806, %v1739
      %1822 = vst.msk [vmem:[#allocation4 + $0x3c] sm:$0xf] %vm1806, %v1741
      %1823 = vst.msk [vmem:[#allocation4 + $0x40] sm:$0xf] %vm1806, %v1743
      %1824 = vst.msk [vmem:[#allocation4 + $0x44] sm:$0xf] %vm1806, %v1745
      %1825 = vst.msk [vmem:[#allocation4 + $0x48] sm:$0xf] %vm1806, %v1747
      %1826 = vst.msk [vmem:[#allocation4 + $0x4c] sm:$0xf] %vm1806, %v1749
      %1827 = vst.msk [vmem:[#allocation4 + $0x50] sm:$0xf] %vm1806, %v1751
      %1828 = vst.msk [vmem:[#allocation4 + $0x54] sm:$0xf] %vm1806, %v1753
      %1829 = vst.msk [vmem:[#allocation4 + $0x58] sm:$0xf] %vm1806, %v1755
      %1830 = vst.msk [vmem:[#allocation4 + $0x5c] sm:$0xf] %vm1806, %v1757
      %1831 = vst.msk [vmem:[#allocation4 + $0x60] sm:$0xf] %vm1806, %v1759
      %1832 = vst.msk [vmem:[#allocation4 + $0x64] sm:$0xf] %vm1806, %v1761
      %1833 = vst.msk [vmem:[#allocation4 + $0x68] sm:$0xf] %vm1806, %v1763
      %1834 = vst.msk [vmem:[#allocation4 + $0x6c] sm:$0xf] %vm1806, %v1765
      %1835 = vst.msk [vmem:[#allocation4 + $0x70] sm:$0xf] %vm1806, %v1767
      %1836 = vst.msk [vmem:[#allocation4 + $0x74] sm:$0xf] %vm1806, %v1769
      %1837 = vst.msk [vmem:[#allocation4 + $0x78] sm:$0xf] %vm1806, %v1771
      %1838 = vst.msk [vmem:[#allocation4 + $0x7c] sm:$0xf] %vm1806, %v1773
      %v1839 = vld [vmem:[%s756] sm:$0xf]
      %v1840 = vld [vmem:[%s756 + $0x4] sm:$0xf]
      %v1841 = vld [vmem:[%s756 + $0xc] sm:$0xf]
      %v1842 = vld [vmem:[%s756 + $0x10] sm:$0xf]
      %v1843 = vld [vmem:[%s756 + $0x18] sm:$0xf]
      %v1844 = vld [vmem:[%s756 + $0x1c] sm:$0xf]
      %v1845 = vld [vmem:[%s756 + $0x24] sm:$0xf]
      %v1846 = vld [vmem:[%s756 + $0x28] sm:$0xf]
      %v1847 = vld [vmem:[%s756 + $0x30] sm:$0xf]
      %v1848 = vld [vmem:[%s756 + $0x34] sm:$0xf]
      %v1849 = vld [vmem:[%s756 + $0x3c] sm:$0xf]
      %v1850 = vld [vmem:[%s756 + $0x40] sm:$0xf]
      %v1851 = vld [vmem:[%s756 + $0x48] sm:$0xf]
      %v1852 = vld [vmem:[%s756 + $0x4c] sm:$0xf]
      %v1853 = vld [vmem:[%s756 + $0x54] sm:$0xf]
      %v1854 = vld [vmem:[%s756 + $0x58] sm:$0xf]
      %v1855 = vld [vmem:[%s756 + $0x60] sm:$0xf]
      %v1856 = vld [vmem:[%s756 + $0x64] sm:$0xf]
      %v1857 = vld [vmem:[%s756 + $0x6c] sm:$0xf]
      %v1858 = vld [vmem:[%s756 + $0x70] sm:$0xf]
      %v1859 = vld [vmem:[%s756 + $0x78] sm:$0xf]
      %v1860 = vld [vmem:[%s756 + $0x7c] sm:$0xf]
      %v1861 = vld [vmem:[%s756 + $0x84] sm:$0xf]
      %v1862 = vld [vmem:[%s756 + $0x88] sm:$0xf]
      %v1863 = vld [vmem:[%s756 + $0x90] sm:$0xf]
      %v1864 = vld [vmem:[%s756 + $0x94] sm:$0xf]
      %v1865 = vld [vmem:[%s756 + $0x9c] sm:$0xf]
      %v1866 = vld [vmem:[%s756 + $0xa0] sm:$0xf]
      %v1867 = vld [vmem:[%s756 + $0xa8] sm:$0xf]
      %v1868 = vld [vmem:[%s756 + $0xac] sm:$0xf]
      %v1869 = vld [vmem:[%s756 + $0xb4] sm:$0xf]
      %v1870 = vld [vmem:[%s756 + $0xb8] sm:$0xf]
      %1903 = vrot.lane.b32.xlu0 %v1839, 12
      %v1904 = vpop.permute.xlu0 %1903
      %1905 = vrot.lane.b32.xlu0 %v1840, 12
      %v1906 = vpop.permute.xlu0 %1905
      %1907 = vrot.lane.b32.xlu0 %v1841, 12
      %v1908 = vpop.permute.xlu0 %1907
      %1909 = vrot.lane.b32.xlu0 %v1842, 12
      %v1910 = vpop.permute.xlu0 %1909
      %1911 = vrot.lane.b32.xlu0 %v1843, 12
      %v1912 = vpop.permute.xlu0 %1911
      %1913 = vrot.lane.b32.xlu0 %v1844, 12
      %v1914 = vpop.permute.xlu0 %1913
      %1915 = vrot.lane.b32.xlu0 %v1845, 12
      %v1916 = vpop.permute.xlu0 %1915
      %1917 = vrot.lane.b32.xlu0 %v1846, 12
      %v1918 = vpop.permute.xlu0 %1917
      %1919 = vrot.lane.b32.xlu0 %v1847, 12
      %v1920 = vpop.permute.xlu0 %1919
      %1921 = vrot.lane.b32.xlu0 %v1848, 12
      %v1922 = vpop.permute.xlu0 %1921
      %1923 = vrot.lane.b32.xlu0 %v1849, 12
      %v1924 = vpop.permute.xlu0 %1923
      %1925 = vrot.lane.b32.xlu0 %v1850, 12
      %v1926 = vpop.permute.xlu0 %1925
      %1927 = vrot.lane.b32.xlu0 %v1851, 12
      %v1928 = vpop.permute.xlu0 %1927
      %1929 = vrot.lane.b32.xlu0 %v1852, 12
      %v1930 = vpop.permute.xlu0 %1929
      %1931 = vrot.lane.b32.xlu0 %v1853, 12
      %v1932 = vpop.permute.xlu0 %1931
      %1933 = vrot.lane.b32.xlu0 %v1854, 12
      %v1934 = vpop.permute.xlu0 %1933
      %1935 = vrot.lane.b32.xlu0 %v1855, 12
      %v1936 = vpop.permute.xlu0 %1935
      %1937 = vrot.lane.b32.xlu0 %v1856, 12
      %v1938 = vpop.permute.xlu0 %1937
      %1939 = vrot.lane.b32.xlu0 %v1857, 12
      %v1940 = vpop.permute.xlu0 %1939
      %1941 = vrot.lane.b32.xlu0 %v1858, 12
      %v1942 = vpop.permute.xlu0 %1941
      %1943 = vrot.lane.b32.xlu0 %v1859, 12
      %v1944 = vpop.permute.xlu0 %1943
      %1945 = vrot.lane.b32.xlu0 %v1860, 12
      %v1946 = vpop.permute.xlu0 %1945
      %1947 = vrot.lane.b32.xlu0 %v1861, 12
      %v1948 = vpop.permute.xlu0 %1947
      %1949 = vrot.lane.b32.xlu0 %v1862, 12
      %v1950 = vpop.permute.xlu0 %1949
      %1951 = vrot.lane.b32.xlu0 %v1863, 12
      %v1952 = vpop.permute.xlu0 %1951
      %1953 = vrot.lane.b32.xlu0 %v1864, 12
      %v1954 = vpop.permute.xlu0 %1953
      %1955 = vrot.lane.b32.xlu0 %v1865, 12
      %v1956 = vpop.permute.xlu0 %1955
      %1957 = vrot.lane.b32.xlu0 %v1866, 12
      %v1958 = vpop.permute.xlu0 %1957
      %1959 = vrot.lane.b32.xlu0 %v1867, 12
      %v1960 = vpop.permute.xlu0 %1959
      %1961 = vrot.lane.b32.xlu0 %v1868, 12
      %v1962 = vpop.permute.xlu0 %1961
      %1963 = vrot.lane.b32.xlu0 %v1869, 12
      %v1964 = vpop.permute.xlu0 %1963
      %1965 = vrot.lane.b32.xlu0 %v1870, 12
      %v1966 = vpop.permute.xlu0 %1965
      %vm1999 = vcmask 126048
      %2000 = vst.msk [vmem:[#allocation4] sm:$0xf] %vm1999, %v1904
      %2001 = vst.msk [vmem:[#allocation4 + $0x4] sm:$0xf] %vm1999, %v1906
      %2002 = vst.msk [vmem:[#allocation4 + $0x8] sm:$0xf] %vm1999, %v1908
      %2003 = vst.msk [vmem:[#allocation4 + $0xc] sm:$0xf] %vm1999, %v1910
      %2004 = vst.msk [vmem:[#allocation4 + $0x10] sm:$0xf] %vm1999, %v1912
      %2005 = vst.msk [vmem:[#allocation4 + $0x14] sm:$0xf] %vm1999, %v1914
      %2006 = vst.msk [vmem:[#allocation4 + $0x18] sm:$0xf] %vm1999, %v1916
      %2007 = vst.msk [vmem:[#allocation4 + $0x1c] sm:$0xf] %vm1999, %v1918
      %2008 = vst.msk [vmem:[#allocation4 + $0x20] sm:$0xf] %vm1999, %v1920
      %2009 = vst.msk [vmem:[#allocation4 + $0x24] sm:$0xf] %vm1999, %v1922
      %2010 = vst.msk [vmem:[#allocation4 + $0x28] sm:$0xf] %vm1999, %v1924
      %2011 = vst.msk [vmem:[#allocation4 + $0x2c] sm:$0xf] %vm1999, %v1926
      %2012 = vst.msk [vmem:[#allocation4 + $0x30] sm:$0xf] %vm1999, %v1928
      %2013 = vst.msk [vmem:[#allocation4 + $0x34] sm:$0xf] %vm1999, %v1930
      %2014 = vst.msk [vmem:[#allocation4 + $0x38] sm:$0xf] %vm1999, %v1932
      %2015 = vst.msk [vmem:[#allocation4 + $0x3c] sm:$0xf] %vm1999, %v1934
      %2016 = vst.msk [vmem:[#allocation4 + $0x40] sm:$0xf] %vm1999, %v1936
      %2017 = vst.msk [vmem:[#allocation4 + $0x44] sm:$0xf] %vm1999, %v1938
      %2018 = vst.msk [vmem:[#allocation4 + $0x48] sm:$0xf] %vm1999, %v1940
      %2019 = vst.msk [vmem:[#allocation4 + $0x4c] sm:$0xf] %vm1999, %v1942
      %2020 = vst.msk [vmem:[#allocation4 + $0x50] sm:$0xf] %vm1999, %v1944
      %2021 = vst.msk [vmem:[#allocation4 + $0x54] sm:$0xf] %vm1999, %v1946
      %2022 = vst.msk [vmem:[#allocation4 + $0x58] sm:$0xf] %vm1999, %v1948
      %2023 = vst.msk [vmem:[#allocation4 + $0x5c] sm:$0xf] %vm1999, %v1950
      %2024 = vst.msk [vmem:[#allocation4 + $0x60] sm:$0xf] %vm1999, %v1952
      %2025 = vst.msk [vmem:[#allocation4 + $0x64] sm:$0xf] %vm1999, %v1954
      %2026 = vst.msk [vmem:[#allocation4 + $0x68] sm:$0xf] %vm1999, %v1956
      %2027 = vst.msk [vmem:[#allocation4 + $0x6c] sm:$0xf] %vm1999, %v1958
      %2028 = vst.msk [vmem:[#allocation4 + $0x70] sm:$0xf] %vm1999, %v1960
      %2029 = vst.msk [vmem:[#allocation4 + $0x74] sm:$0xf] %vm1999, %v1962
      %2030 = vst.msk [vmem:[#allocation4 + $0x78] sm:$0xf] %vm1999, %v1964
      %2031 = vst.msk [vmem:[#allocation4 + $0x7c] sm:$0xf] %vm1999, %v1966
      %v2032 = vld [vmem:[%s756] sm:$0xf]
      %v2033 = vld [vmem:[%s756 + $0x4] sm:$0xf]
      %v2034 = vld [vmem:[%s756 + $0x8] sm:$0x1]
      %v2035 = vld [vmem:[%s756 + $0xc] sm:$0xf]
      %v2036 = vld [vmem:[%s756 + $0x10] sm:$0xf]
      %v2037 = vld [vmem:[%s756 + $0x14] sm:$0x1]
      %v2038 = vld [vmem:[%s756 + $0x18] sm:$0xf]
      %v2039 = vld [vmem:[%s756 + $0x1c] sm:$0xf]
      %v2040 = vld [vmem:[%s756 + $0x20] sm:$0x1]
      %v2041 = vld [vmem:[%s756 + $0x24] sm:$0xf]
      %v2042 = vld [vmem:[%s756 + $0x28] sm:$0xf]
      %v2043 = vld [vmem:[%s756 + $0x2c] sm:$0x1]
      %v2044 = vld [vmem:[%s756 + $0x30] sm:$0xf]
      %v2045 = vld [vmem:[%s756 + $0x34] sm:$0xf]
      %v2046 = vld [vmem:[%s756 + $0x38] sm:$0x1]
      %v2047 = vld [vmem:[%s756 + $0x3c] sm:$0xf]
      %v2048 = vld [vmem:[%s756 + $0x40] sm:$0xf]
      %v2049 = vld [vmem:[%s756 + $0x44] sm:$0x1]
      %v2050 = vld [vmem:[%s756 + $0x48] sm:$0xf]
      %v2051 = vld [vmem:[%s756 + $0x4c] sm:$0xf]
      %v2052 = vld [vmem:[%s756 + $0x50] sm:$0x1]
      %v2053 = vld [vmem:[%s756 + $0x54] sm:$0xf]
      %v2054 = vld [vmem:[%s756 + $0x58] sm:$0xf]
      %v2055 = vld [vmem:[%s756 + $0x5c] sm:$0x1]
      %v2056 = vld [vmem:[%s756 + $0x60] sm:$0xf]
      %v2057 = vld [vmem:[%s756 + $0x64] sm:$0xf]
      %v2058 = vld [vmem:[%s756 + $0x68] sm:$0x1]
      %v2059 = vld [vmem:[%s756 + $0x6c] sm:$0xf]
      %v2060 = vld [vmem:[%s756 + $0x70] sm:$0xf]
      %v2061 = vld [vmem:[%s756 + $0x74] sm:$0x1]
      %v2062 = vld [vmem:[%s756 + $0x78] sm:$0xf]
      %v2063 = vld [vmem:[%s756 + $0x7c] sm:$0xf]
      %v2064 = vld [vmem:[%s756 + $0x80] sm:$0x1]
      %v2065 = vld [vmem:[%s756 + $0x84] sm:$0xf]
      %v2066 = vld [vmem:[%s756 + $0x88] sm:$0xf]
      %v2067 = vld [vmem:[%s756 + $0x8c] sm:$0x1]
      %v2068 = vld [vmem:[%s756 + $0x90] sm:$0xf]
      %v2069 = vld [vmem:[%s756 + $0x94] sm:$0xf]
      %v2070 = vld [vmem:[%s756 + $0x98] sm:$0x1]
      %v2071 = vld [vmem:[%s756 + $0x9c] sm:$0xf]
      %v2072 = vld [vmem:[%s756 + $0xa0] sm:$0xf]
      %v2073 = vld [vmem:[%s756 + $0xa4] sm:$0x1]
      %v2074 = vld [vmem:[%s756 + $0xa8] sm:$0xf]
      %v2075 = vld [vmem:[%s756 + $0xac] sm:$0xf]
      %v2076 = vld [vmem:[%s756 + $0xb0] sm:$0x1]
      %v2077 = vld [vmem:[%s756 + $0xb4] sm:$0xf]
      %v2078 = vld [vmem:[%s756 + $0xb8] sm:$0xf]
      %v2079 = vld [vmem:[%s756 + $0xbc] sm:$0x1]
      %v2081 = vshrl.u32 %v2032, 16
      %v2083 = vrot.slane %v2081, 4
      %v2084 = vshll.u32 %v2032, 16
      %v2086 = vrot.slane %v2084, 5
      %v2087 = vor.u32 %v2083, %v2086
      %v2088 = vrot.slane %v2087, 4
      %v2090 = vshll.u32 %v2033, 16
      %v2092 = vrot.slane %v2090, 5
      %v2093 = vsel %vm985, %v2088, %v2092
      %v2094 = vshrl.u32 %v2033, 16
      %v2096 = vrot.slane %v2094, 4
      %v2097 = vor.u32 %v2096, %v2092
      %v2098 = vrot.slane %v2097, 4
      %v2100 = vshll.u32 %v2034, 16
      %v2102 = vrot.slane %v2100, 5
      %v2103 = vsel %vm985, %v2098, %v2102
      %v2105 = vshrl.u32 %v2035, 16
      %v2107 = vrot.slane %v2105, 4
      %v2108 = vshll.u32 %v2035, 16
      %v2110 = vrot.slane %v2108, 5
      %v2111 = vor.u32 %v2107, %v2110
      %v2112 = vrot.slane %v2111, 4
      %v2114 = vshll.u32 %v2036, 16
      %v2116 = vrot.slane %v2114, 5
      %v2117 = vsel %vm985, %v2112, %v2116
      %v2118 = vshrl.u32 %v2036, 16
      %v2120 = vrot.slane %v2118, 4
      %v2121 = vor.u32 %v2120, %v2116
      %v2122 = vrot.slane %v2121, 4
      %v2124 = vshll.u32 %v2037, 16
      %v2126 = vrot.slane %v2124, 5
      %v2127 = vsel %vm985, %v2122, %v2126
      %v2129 = vshrl.u32 %v2038, 16
      %v2131 = vrot.slane %v2129, 4
      %v2132 = vshll.u32 %v2038, 16
      %v2134 = vrot.slane %v2132, 5
      %v2135 = vor.u32 %v2131, %v2134
      %v2136 = vrot.slane %v2135, 4
      %v2138 = vshll.u32 %v2039, 16
      %v2140 = vrot.slane %v2138, 5
      %v2141 = vsel %vm985, %v2136, %v2140
      %v2142 = vshrl.u32 %v2039, 16
      %v2144 = vrot.slane %v2142, 4
      %v2145 = vor.u32 %v2144, %v2140
      %v2146 = vrot.slane %v2145, 4
      %v2148 = vshll.u32 %v2040, 16
      %v2150 = vrot.slane %v2148, 5
      %v2151 = vsel %vm985, %v2146, %v2150
      %v2153 = vshrl.u32 %v2041, 16
      %v2155 = vrot.slane %v2153, 4
      %v2156 = vshll.u32 %v2041, 16
      %v2158 = vrot.slane %v2156, 5
      %v2159 = vor.u32 %v2155, %v2158
      %v2160 = vrot.slane %v2159, 4
      %v2162 = vshll.u32 %v2042, 16
      %v2164 = vrot.slane %v2162, 5
      %v2165 = vsel %vm985, %v2160, %v2164
      %v2166 = vshrl.u32 %v2042, 16
      %v2168 = vrot.slane %v2166, 4
      %v2169 = vor.u32 %v2168, %v2164
      %v2170 = vrot.slane %v2169, 4
      %v2172 = vshll.u32 %v2043, 16
      %v2174 = vrot.slane %v2172, 5
      %v2175 = vsel %vm985, %v2170, %v2174
      %v2177 = vshrl.u32 %v2044, 16
      %v2179 = vrot.slane %v2177, 4
      %v2180 = vshll.u32 %v2044, 16
      %v2182 = vrot.slane %v2180, 5
      %v2183 = vor.u32 %v2179, %v2182
      %v2184 = vrot.slane %v2183, 4
      %v2186 = vshll.u32 %v2045, 16
      %v2188 = vrot.slane %v2186, 5
      %v2189 = vsel %vm985, %v2184, %v2188
      %v2190 = vshrl.u32 %v2045, 16
      %v2192 = vrot.slane %v2190, 4
      %v2193 = vor.u32 %v2192, %v2188
      %v2194 = vrot.slane %v2193, 4
      %v2196 = vshll.u32 %v2046, 16
      %v2198 = vrot.slane %v2196, 5
      %v2199 = vsel %vm985, %v2194, %v2198
      %v2201 = vshrl.u32 %v2047, 16
      %v2203 = vrot.slane %v2201, 4
      %v2204 = vshll.u32 %v2047, 16
      %v2206 = vrot.slane %v2204, 5
      %v2207 = vor.u32 %v2203, %v2206
      %v2208 = vrot.slane %v2207, 4
      %v2210 = vshll.u32 %v2048, 16
      %v2212 = vrot.slane %v2210, 5
      %v2213 = vsel %vm985, %v2208, %v2212
      %v2214 = vshrl.u32 %v2048, 16
      %v2216 = vrot.slane %v2214, 4
      %v2217 = vor.u32 %v2216, %v2212
      %v2218 = vrot.slane %v2217, 4
      %v2220 = vshll.u32 %v2049, 16
      %v2222 = vrot.slane %v2220, 5
      %v2223 = vsel %vm985, %v2218, %v2222
      %v2225 = vshrl.u32 %v2050, 16
      %v2227 = vrot.slane %v2225, 4
      %v2228 = vshll.u32 %v2050, 16
      %v2230 = vrot.slane %v2228, 5
      %v2231 = vor.u32 %v2227, %v2230
      %v2232 = vrot.slane %v2231, 4
      %v2234 = vshll.u32 %v2051, 16
      %v2236 = vrot.slane %v2234, 5
      %v2237 = vsel %vm985, %v2232, %v2236
      %v2238 = vshrl.u32 %v2051, 16
      %v2240 = vrot.slane %v2238, 4
      %v2241 = vor.u32 %v2240, %v2236
      %v2242 = vrot.slane %v2241, 4
      %v2244 = vshll.u32 %v2052, 16
      %v2246 = vrot.slane %v2244, 5
      %v2247 = vsel %vm985, %v2242, %v2246
      %v2249 = vshrl.u32 %v2053, 16
      %v2251 = vrot.slane %v2249, 4
      %v2252 = vshll.u32 %v2053, 16
      %v2254 = vrot.slane %v2252, 5
      %v2255 = vor.u32 %v2251, %v2254
      %v2256 = vrot.slane %v2255, 4
      %v2258 = vshll.u32 %v2054, 16
      %v2260 = vrot.slane %v2258, 5
      %v2261 = vsel %vm985, %v2256, %v2260
      %v2262 = vshrl.u32 %v2054, 16
      %v2264 = vrot.slane %v2262, 4
      %v2265 = vor.u32 %v2264, %v2260
      %v2266 = vrot.slane %v2265, 4
      %v2268 = vshll.u32 %v2055, 16
      %v2270 = vrot.slane %v2268, 5
      %v2271 = vsel %vm985, %v2266, %v2270
      %v2273 = vshrl.u32 %v2056, 16
      %v2275 = vrot.slane %v2273, 4
      %v2276 = vshll.u32 %v2056, 16
      %v2278 = vrot.slane %v2276, 5
      %v2279 = vor.u32 %v2275, %v2278
      %v2280 = vrot.slane %v2279, 4
      %v2282 = vshll.u32 %v2057, 16
      %v2284 = vrot.slane %v2282, 5
      %v2285 = vsel %vm985, %v2280, %v2284
      %v2286 = vshrl.u32 %v2057, 16
      %v2288 = vrot.slane %v2286, 4
      %v2289 = vor.u32 %v2288, %v2284
      %v2290 = vrot.slane %v2289, 4
      %v2292 = vshll.u32 %v2058, 16
      %v2294 = vrot.slane %v2292, 5
      %v2295 = vsel %vm985, %v2290, %v2294
      %v2297 = vshrl.u32 %v2059, 16
      %v2299 = vrot.slane %v2297, 4
      %v2300 = vshll.u32 %v2059, 16
      %v2302 = vrot.slane %v2300, 5
      %v2303 = vor.u32 %v2299, %v2302
      %v2304 = vrot.slane %v2303, 4
      %v2306 = vshll.u32 %v2060, 16
      %v2308 = vrot.slane %v2306, 5
      %v2309 = vsel %vm985, %v2304, %v2308
      %v2310 = vshrl.u32 %v2060, 16
      %v2312 = vrot.slane %v2310, 4
      %v2313 = vor.u32 %v2312, %v2308
      %v2314 = vrot.slane %v2313, 4
      %v2316 = vshll.u32 %v2061, 16
      %v2318 = vrot.slane %v2316, 5
      %v2319 = vsel %vm985, %v2314, %v2318
      %v2321 = vshrl.u32 %v2062, 16
      %v2323 = vrot.slane %v2321, 4
      %v2324 = vshll.u32 %v2062, 16
      %v2326 = vrot.slane %v2324, 5
      %v2327 = vor.u32 %v2323, %v2326
      %v2328 = vrot.slane %v2327, 4
      %v2330 = vshll.u32 %v2063, 16
      %v2332 = vrot.slane %v2330, 5
      %v2333 = vsel %vm985, %v2328, %v2332
      %v2334 = vshrl.u32 %v2063, 16
      %v2336 = vrot.slane %v2334, 4
      %v2337 = vor.u32 %v2336, %v2332
      %v2338 = vrot.slane %v2337, 4
      %v2340 = vshll.u32 %v2064, 16
      %v2342 = vrot.slane %v2340, 5
      %v2343 = vsel %vm985, %v2338, %v2342
      %v2345 = vshrl.u32 %v2065, 16
      %v2347 = vrot.slane %v2345, 4
      %v2348 = vshll.u32 %v2065, 16
      %v2350 = vrot.slane %v2348, 5
      %v2351 = vor.u32 %v2347, %v2350
      %v2352 = vrot.slane %v2351, 4
      %v2354 = vshll.u32 %v2066, 16
      %v2356 = vrot.slane %v2354, 5
      %v2357 = vsel %vm985, %v2352, %v2356
      %v2358 = vshrl.u32 %v2066, 16
      %v2360 = vrot.slane %v2358, 4
      %v2361 = vor.u32 %v2360, %v2356
      %v2362 = vrot.slane %v2361, 4
      %v2364 = vshll.u32 %v2067, 16
      %v2366 = vrot.slane %v2364, 5
      %v2367 = vsel %vm985, %v2362, %v2366
      %v2369 = vshrl.u32 %v2068, 16
      %v2371 = vrot.slane %v2369, 4
      %v2372 = vshll.u32 %v2068, 16
      %v2374 = vrot.slane %v2372, 5
      %v2375 = vor.u32 %v2371, %v2374
      %v2376 = vrot.slane %v2375, 4
      %v2378 = vshll.u32 %v2069, 16
      %v2380 = vrot.slane %v2378, 5
      %v2381 = vsel %vm985, %v2376, %v2380
      %v2382 = vshrl.u32 %v2069, 16
      %v2384 = vrot.slane %v2382, 4
      %v2385 = vor.u32 %v2384, %v2380
      %v2386 = vrot.slane %v2385, 4
      %v2388 = vshll.u32 %v2070, 16
      %v2390 = vrot.slane %v2388, 5
      %v2391 = vsel %vm985, %v2386, %v2390
      %v2393 = vshrl.u32 %v2071, 16
      %v2395 = vrot.slane %v2393, 4
      %v2396 = vshll.u32 %v2071, 16
      %v2398 = vrot.slane %v2396, 5
      %v2399 = vor.u32 %v2395, %v2398
      %v2400 = vrot.slane %v2399, 4
      %v2402 = vshll.u32 %v2072, 16
      %v2404 = vrot.slane %v2402, 5
      %v2405 = vsel %vm985, %v2400, %v2404
      %v2406 = vshrl.u32 %v2072, 16
      %v2408 = vrot.slane %v2406, 4
      %v2409 = vor.u32 %v2408, %v2404
      %v2410 = vrot.slane %v2409, 4
      %v2412 = vshll.u32 %v2073, 16
      %v2414 = vrot.slane %v2412, 5
      %v2415 = vsel %vm985, %v2410, %v2414
      %v2417 = vshrl.u32 %v2074, 16
      %v2419 = vrot.slane %v2417, 4
      %v2420 = vshll.u32 %v2074, 16
      %v2422 = vrot.slane %v2420, 5
      %v2423 = vor.u32 %v2419, %v2422
      %v2424 = vrot.slane %v2423, 4
      %v2426 = vshll.u32 %v2075, 16
      %v2428 = vrot.slane %v2426, 5
      %v2429 = vsel %vm985, %v2424, %v2428
      %v2430 = vshrl.u32 %v2075, 16
      %v2432 = vrot.slane %v2430, 4
      %v2433 = vor.u32 %v2432, %v2428
      %v2434 = vrot.slane %v2433, 4
      %v2436 = vshll.u32 %v2076, 16
      %v2438 = vrot.slane %v2436, 5
      %v2439 = vsel %vm985, %v2434, %v2438
      %v2441 = vshrl.u32 %v2077, 16
      %v2443 = vrot.slane %v2441, 4
      %v2444 = vshll.u32 %v2077, 16
      %v2446 = vrot.slane %v2444, 5
      %v2447 = vor.u32 %v2443, %v2446
      %v2448 = vrot.slane %v2447, 4
      %v2450 = vshll.u32 %v2078, 16
      %v2452 = vrot.slane %v2450, 5
      %v2453 = vsel %vm985, %v2448, %v2452
      %v2454 = vshrl.u32 %v2078, 16
      %v2456 = vrot.slane %v2454, 4
      %v2457 = vor.u32 %v2456, %v2452
      %v2458 = vrot.slane %v2457, 4
      %v2460 = vshll.u32 %v2079, 16
      %v2462 = vrot.slane %v2460, 5
      %v2463 = vsel %vm985, %v2458, %v2462
      %2464 = vrot.lane.b32.xlu0 %v2093, 16
      %v2465 = vpop.permute.xlu0 %2464
      %2466 = vrot.lane.b32.xlu0 %v2103, 16
      %v2467 = vpop.permute.xlu0 %2466
      %2468 = vrot.lane.b32.xlu0 %v2117, 16
      %v2469 = vpop.permute.xlu0 %2468
      %2470 = vrot.lane.b32.xlu0 %v2127, 16
      %v2471 = vpop.permute.xlu0 %2470
      %2472 = vrot.lane.b32.xlu0 %v2141, 16
      %v2473 = vpop.permute.xlu0 %2472
      %2474 = vrot.lane.b32.xlu0 %v2151, 16
      %v2475 = vpop.permute.xlu0 %2474
      %2476 = vrot.lane.b32.xlu0 %v2165, 16
      %v2477 = vpop.permute.xlu0 %2476
      %2478 = vrot.lane.b32.xlu0 %v2175, 16
      %v2479 = vpop.permute.xlu0 %2478
      %2480 = vrot.lane.b32.xlu0 %v2189, 16
      %v2481 = vpop.permute.xlu0 %2480
      %2482 = vrot.lane.b32.xlu0 %v2199, 16
      %v2483 = vpop.permute.xlu0 %2482
      %2484 = vrot.lane.b32.xlu0 %v2213, 16
      %v2485 = vpop.permute.xlu0 %2484
      %2486 = vrot.lane.b32.xlu0 %v2223, 16
      %v2487 = vpop.permute.xlu0 %2486
      %2488 = vrot.lane.b32.xlu0 %v2237, 16
      %v2489 = vpop.permute.xlu0 %2488
      %2490 = vrot.lane.b32.xlu0 %v2247, 16
      %v2491 = vpop.permute.xlu0 %2490
      %2492 = vrot.lane.b32.xlu0 %v2261, 16
      %v2493 = vpop.permute.xlu0 %2492
      %2494 = vrot.lane.b32.xlu0 %v2271, 16
      %v2495 = vpop.permute.xlu0 %2494
      %2496 = vrot.lane.b32.xlu0 %v2285, 16
      %v2497 = vpop.permute.xlu0 %2496
      %2498 = vrot.lane.b32.xlu0 %v2295, 16
      %v2499 = vpop.permute.xlu0 %2498
      %2500 = vrot.lane.b32.xlu0 %v2309, 16
      %v2501 = vpop.permute.xlu0 %2500
      %2502 = vrot.lane.b32.xlu0 %v2319, 16
      %v2503 = vpop.permute.xlu0 %2502
      %2504 = vrot.lane.b32.xlu0 %v2333, 16
      %v2505 = vpop.permute.xlu0 %2504
      %2506 = vrot.lane.b32.xlu0 %v2343, 16
      %v2507 = vpop.permute.xlu0 %2506
      %2508 = vrot.lane.b32.xlu0 %v2357, 16
      %v2509 = vpop.permute.xlu0 %2508
      %2510 = vrot.lane.b32.xlu0 %v2367, 16
      %v2511 = vpop.permute.xlu0 %2510
      %2512 = vrot.lane.b32.xlu0 %v2381, 16
      %v2513 = vpop.permute.xlu0 %2512
      %2514 = vrot.lane.b32.xlu0 %v2391, 16
      %v2515 = vpop.permute.xlu0 %2514
      %2516 = vrot.lane.b32.xlu0 %v2405, 16
      %v2517 = vpop.permute.xlu0 %2516
      %2518 = vrot.lane.b32.xlu0 %v2415, 16
      %v2519 = vpop.permute.xlu0 %2518
      %2520 = vrot.lane.b32.xlu0 %v2429, 16
      %v2521 = vpop.permute.xlu0 %2520
      %2522 = vrot.lane.b32.xlu0 %v2439, 16
      %v2523 = vpop.permute.xlu0 %2522
      %2524 = vrot.lane.b32.xlu0 %v2453, 16
      %v2525 = vpop.permute.xlu0 %2524
      %2526 = vrot.lane.b32.xlu0 %v2463, 16
      %v2527 = vpop.permute.xlu0 %2526
      %vm2560 = vcmask 158848
      %2561 = vst.msk [vmem:[#allocation4] sm:$0xf] %vm2560, %v2465
      %2562 = vst.msk [vmem:[#allocation4 + $0x4] sm:$0xf] %vm2560, %v2467
      %2563 = vst.msk [vmem:[#allocation4 + $0x8] sm:$0xf] %vm2560, %v2469
      %2564 = vst.msk [vmem:[#allocation4 + $0xc] sm:$0xf] %vm2560, %v2471
      %2565 = vst.msk [vmem:[#allocation4 + $0x10] sm:$0xf] %vm2560, %v2473
      %2566 = vst.msk [vmem:[#allocation4 + $0x14] sm:$0xf] %vm2560, %v2475
      %2567 = vst.msk [vmem:[#allocation4 + $0x18] sm:$0xf] %vm2560, %v2477
      %2568 = vst.msk [vmem:[#allocation4 + $0x1c] sm:$0xf] %vm2560, %v2479
      %2569 = vst.msk [vmem:[#allocation4 + $0x20] sm:$0xf] %vm2560, %v2481
      %2570 = vst.msk [vmem:[#allocation4 + $0x24] sm:$0xf] %vm2560, %v2483
      %2571 = vst.msk [vmem:[#allocation4 + $0x28] sm:$0xf] %vm2560, %v2485
      %2572 = vst.msk [vmem:[#allocation4 + $0x2c] sm:$0xf] %vm2560, %v2487
      %2573 = vst.msk [vmem:[#allocation4 + $0x30] sm:$0xf] %vm2560, %v2489
      %2574 = vst.msk [vmem:[#allocation4 + $0x34] sm:$0xf] %vm2560, %v2491
      %2575 = vst.msk [vmem:[#allocation4 + $0x38] sm:$0xf] %vm2560, %v2493
      %2576 = vst.msk [vmem:[#allocation4 + $0x3c] sm:$0xf] %vm2560, %v2495
      %2577 = vst.msk [vmem:[#allocation4 + $0x40] sm:$0xf] %vm2560, %v2497
      %2578 = vst.msk [vmem:[#allocation4 + $0x44] sm:$0xf] %vm2560, %v2499
      %2579 = vst.msk [vmem:[#allocation4 + $0x48] sm:$0xf] %vm2560, %v2501
      %2580 = vst.msk [vmem:[#allocation4 + $0x4c] sm:$0xf] %vm2560, %v2503
      %2581 = vst.msk [vmem:[#allocation4 + $0x50] sm:$0xf] %vm2560, %v2505
      %2582 = vst.msk [vmem:[#allocation4 + $0x54] sm:$0xf] %vm2560, %v2507
      %2583 = vst.msk [vmem:[#allocation4 + $0x58] sm:$0xf] %vm2560, %v2509
      %2584 = vst.msk [vmem:[#allocation4 + $0x5c] sm:$0xf] %vm2560, %v2511
      %2585 = vst.msk [vmem:[#allocation4 + $0x60] sm:$0xf] %vm2560, %v2513
      %2586 = vst.msk [vmem:[#allocation4 + $0x64] sm:$0xf] %vm2560, %v2515
      %2587 = vst.msk [vmem:[#allocation4 + $0x68] sm:$0xf] %vm2560, %v2517
      %2588 = vst.msk [vmem:[#allocation4 + $0x6c] sm:$0xf] %vm2560, %v2519
      %2589 = vst.msk [vmem:[#allocation4 + $0x70] sm:$0xf] %vm2560, %v2521
      %2590 = vst.msk [vmem:[#allocation4 + $0x74] sm:$0xf] %vm2560, %v2523
      %2591 = vst.msk [vmem:[#allocation4 + $0x78] sm:$0xf] %vm2560, %v2525
      %2592 = vst.msk [vmem:[#allocation4 + $0x7c] sm:$0xf] %vm2560, %v2527
      %v2593 = vld [vmem:[%s756] sm:$0xe]
      %v2594 = vld [vmem:[%s756 + $0x4] sm:$0xf]
      %v2595 = vld [vmem:[%s756 + $0x8] sm:$0x1]
      %v2596 = vld [vmem:[%s756 + $0xc] sm:$0xe]
      %v2597 = vld [vmem:[%s756 + $0x10] sm:$0xf]
      %v2598 = vld [vmem:[%s756 + $0x14] sm:$0x1]
      %v2599 = vld [vmem:[%s756 + $0x18] sm:$0xe]
      %v2600 = vld [vmem:[%s756 + $0x1c] sm:$0xf]
      %v2601 = vld [vmem:[%s756 + $0x20] sm:$0x1]
      %v2602 = vld [vmem:[%s756 + $0x24] sm:$0xe]
      %v2603 = vld [vmem:[%s756 + $0x28] sm:$0xf]
      %v2604 = vld [vmem:[%s756 + $0x2c] sm:$0x1]
      %v2605 = vld [vmem:[%s756 + $0x30] sm:$0xe]
      %v2606 = vld [vmem:[%s756 + $0x34] sm:$0xf]
      %v2607 = vld [vmem:[%s756 + $0x38] sm:$0x1]
      %v2608 = vld [vmem:[%s756 + $0x3c] sm:$0xe]
      %v2609 = vld [vmem:[%s756 + $0x40] sm:$0xf]
      %v2610 = vld [vmem:[%s756 + $0x44] sm:$0x1]
      %v2611 = vld [vmem:[%s756 + $0x48] sm:$0xe]
      %v2612 = vld [vmem:[%s756 + $0x4c] sm:$0xf]
      %v2613 = vld [vmem:[%s756 + $0x50] sm:$0x1]
      %v2614 = vld [vmem:[%s756 + $0x54] sm:$0xe]
      %v2615 = vld [vmem:[%s756 + $0x58] sm:$0xf]
      %v2616 = vld [vmem:[%s756 + $0x5c] sm:$0x1]
      %v2617 = vld [vmem:[%s756 + $0x60] sm:$0xe]
      %v2618 = vld [vmem:[%s756 + $0x64] sm:$0xf]
      %v2619 = vld [vmem:[%s756 + $0x68] sm:$0x1]
      %v2620 = vld [vmem:[%s756 + $0x6c] sm:$0xe]
      %v2621 = vld [vmem:[%s756 + $0x70] sm:$0xf]
      %v2622 = vld [vmem:[%s756 + $0x74] sm:$0x1]
      %v2623 = vld [vmem:[%s756 + $0x78] sm:$0xe]
      %v2624 = vld [vmem:[%s756 + $0x7c] sm:$0xf]
      %v2625 = vld [vmem:[%s756 + $0x80] sm:$0x1]
      %v2626 = vld [vmem:[%s756 + $0x84] sm:$0xe]
      %v2627 = vld [vmem:[%s756 + $0x88] sm:$0xf]
      %v2628 = vld [vmem:[%s756 + $0x8c] sm:$0x1]
      %v2629 = vld [vmem:[%s756 + $0x90] sm:$0xe]
      %v2630 = vld [vmem:[%s756 + $0x94] sm:$0xf]
      %v2631 = vld [vmem:[%s756 + $0x98] sm:$0x1]
      %v2632 = vld [vmem:[%s756 + $0x9c] sm:$0xe]
      %v2633 = vld [vmem:[%s756 + $0xa0] sm:$0xf]
      %v2634 = vld [vmem:[%s756 + $0xa4] sm:$0x1]
      %v2635 = vld [vmem:[%s756 + $0xa8] sm:$0xe]
      %v2636 = vld [vmem:[%s756 + $0xac] sm:$0xf]
      %v2637 = vld [vmem:[%s756 + $0xb0] sm:$0x1]
      %v2638 = vld [vmem:[%s756 + $0xb4] sm:$0xe]
      %v2639 = vld [vmem:[%s756 + $0xb8] sm:$0xf]
      %v2640 = vld [vmem:[%s756 + $0xbc] sm:$0x1]
      %v2689 = vrot.slane %v2593, 5
      %v2690 = vrot.slane %v2689, 4
      %v2691 = vrot.slane %v2594, 5
      %v2692 = vsel %vm1597, %v2690, %v2691
      %v2693 = vrot.slane %v2691, 4
      %v2694 = vrot.slane %v2595, 5
      %v2695 = vsel %vm1597, %v2693, %v2694
      %v2696 = vrot.slane %v2596, 5
      %v2697 = vrot.slane %v2696, 4
      %v2698 = vrot.slane %v2597, 5
      %v2699 = vsel %vm1597, %v2697, %v2698
      %v2700 = vrot.slane %v2698, 4
      %v2701 = vrot.slane %v2598, 5
      %v2702 = vsel %vm1597, %v2700, %v2701
      %v2703 = vrot.slane %v2599, 5
      %v2704 = vrot.slane %v2703, 4
      %v2705 = vrot.slane %v2600, 5
      %v2706 = vsel %vm1597, %v2704, %v2705
      %v2707 = vrot.slane %v2705, 4
      %v2708 = vrot.slane %v2601, 5
      %v2709 = vsel %vm1597, %v2707, %v2708
      %v2710 = vrot.slane %v2602, 5
      %v2711 = vrot.slane %v2710, 4
      %v2712 = vrot.slane %v2603, 5
      %v2713 = vsel %vm1597, %v2711, %v2712
      %v2714 = vrot.slane %v2712, 4
      %v2715 = vrot.slane %v2604, 5
      %v2716 = vsel %vm1597, %v2714, %v2715
      %v2717 = vrot.slane %v2605, 5
      %v2718 = vrot.slane %v2717, 4
      %v2719 = vrot.slane %v2606, 5
      %v2720 = vsel %vm1597, %v2718, %v2719
      %v2721 = vrot.slane %v2719, 4
      %v2722 = vrot.slane %v2607, 5
      %v2723 = vsel %vm1597, %v2721, %v2722
      %v2724 = vrot.slane %v2608, 5
      %v2725 = vrot.slane %v2724, 4
      %v2726 = vrot.slane %v2609, 5
      %v2727 = vsel %vm1597, %v2725, %v2726
      %v2728 = vrot.slane %v2726, 4
      %v2729 = vrot.slane %v2610, 5
      %v2730 = vsel %vm1597, %v2728, %v2729
      %v2731 = vrot.slane %v2611, 5
      %v2732 = vrot.slane %v2731, 4
      %v2733 = vrot.slane %v2612, 5
      %v2734 = vsel %vm1597, %v2732, %v2733
      %v2735 = vrot.slane %v2733, 4
      %v2736 = vrot.slane %v2613, 5
      %v2737 = vsel %vm1597, %v2735, %v2736
      %v2738 = vrot.slane %v2614, 5
      %v2739 = vrot.slane %v2738, 4
      %v2740 = vrot.slane %v2615, 5
      %v2741 = vsel %vm1597, %v2739, %v2740
      %v2742 = vrot.slane %v2740, 4
      %v2743 = vrot.slane %v2616, 5
      %v2744 = vsel %vm1597, %v2742, %v2743
      %v2745 = vrot.slane %v2617, 5
      %v2746 = vrot.slane %v2745, 4
      %v2747 = vrot.slane %v2618, 5
      %v2748 = vsel %vm1597, %v2746, %v2747
      %v2749 = vrot.slane %v2747, 4
      %v2750 = vrot.slane %v2619, 5
      %v2751 = vsel %vm1597, %v2749, %v2750
      %v2752 = vrot.slane %v2620, 5
      %v2753 = vrot.slane %v2752, 4
      %v2754 = vrot.slane %v2621, 5
      %v2755 = vsel %vm1597, %v2753, %v2754
      %v2756 = vrot.slane %v2754, 4
      %v2757 = vrot.slane %v2622, 5
      %v2758 = vsel %vm1597, %v2756, %v2757
      %v2759 = vrot.slane %v2623, 5
      %v2760 = vrot.slane %v2759, 4
      %v2761 = vrot.slane %v2624, 5
      %v2762 = vsel %vm1597, %v2760, %v2761
      %v2763 = vrot.slane %v2761, 4
      %v2764 = vrot.slane %v2625, 5
      %v2765 = vsel %vm1597, %v2763, %v2764
      %v2766 = vrot.slane %v2626, 5
      %v2767 = vrot.slane %v2766, 4
      %v2768 = vrot.slane %v2627, 5
      %v2769 = vsel %vm1597, %v2767, %v2768
      %v2770 = vrot.slane %v2768, 4
      %v2771 = vrot.slane %v2628, 5
      %v2772 = vsel %vm1597, %v2770, %v2771
      %v2773 = vrot.slane %v2629, 5
      %v2774 = vrot.slane %v2773, 4
      %v2775 = vrot.slane %v2630, 5
      %v2776 = vsel %vm1597, %v2774, %v2775
      %v2777 = vrot.slane %v2775, 4
      %v2778 = vrot.slane %v2631, 5
      %v2779 = vsel %vm1597, %v2777, %v2778
      %v2780 = vrot.slane %v2632, 5
      %v2781 = vrot.slane %v2780, 4
      %v2782 = vrot.slane %v2633, 5
      %v2783 = vsel %vm1597, %v2781, %v2782
      %v2784 = vrot.slane %v2782, 4
      %v2785 = vrot.slane %v2634, 5
      %v2786 = vsel %vm1597, %v2784, %v2785
      %v2787 = vrot.slane %v2635, 5
      %v2788 = vrot.slane %v2787, 4
      %v2789 = vrot.slane %v2636, 5
      %v2790 = vsel %vm1597, %v2788, %v2789
      %v2791 = vrot.slane %v2789, 4
      %v2792 = vrot.slane %v2637, 5
      %v2793 = vsel %vm1597, %v2791, %v2792
      %v2794 = vrot.slane %v2638, 5
      %v2795 = vrot.slane %v2794, 4
      %v2796 = vrot.slane %v2639, 5
      %v2797 = vsel %vm1597, %v2795, %v2796
      %v2798 = vrot.slane %v2796, 4
      %v2799 = vrot.slane %v2640, 5
      %v2800 = vsel %vm1597, %v2798, %v2799
      %2801 = vrot.lane.b32.xlu0 %v2692, 20
      %v2802 = vpop.permute.xlu0 %2801
      %2803 = vrot.lane.b32.xlu0 %v2695, 20
      %v2804 = vpop.permute.xlu0 %2803
      %2805 = vrot.lane.b32.xlu0 %v2699, 20
      %v2806 = vpop.permute.xlu0 %2805
      %2807 = vrot.lane.b32.xlu0 %v2702, 20
      %v2808 = vpop.permute.xlu0 %2807
      %2809 = vrot.lane.b32.xlu0 %v2706, 20
      %v2810 = vpop.permute.xlu0 %2809
      %2811 = vrot.lane.b32.xlu0 %v2709, 20
      %v2812 = vpop.permute.xlu0 %2811
      %2813 = vrot.lane.b32.xlu0 %v2713, 20
      %v2814 = vpop.permute.xlu0 %2813
      %2815 = vrot.lane.b32.xlu0 %v2716, 20
      %v2816 = vpop.permute.xlu0 %2815
      %2817 = vrot.lane.b32.xlu0 %v2720, 20
      %v2818 = vpop.permute.xlu0 %2817
      %2819 = vrot.lane.b32.xlu0 %v2723, 20
      %v2820 = vpop.permute.xlu0 %2819
      %2821 = vrot.lane.b32.xlu0 %v2727, 20
      %v2822 = vpop.permute.xlu0 %2821
      %2823 = vrot.lane.b32.xlu0 %v2730, 20
      %v2824 = vpop.permute.xlu0 %2823
      %2825 = vrot.lane.b32.xlu0 %v2734, 20
      %v2826 = vpop.permute.xlu0 %2825
      %2827 = vrot.lane.b32.xlu0 %v2737, 20
      %v2828 = vpop.permute.xlu0 %2827
      %2829 = vrot.lane.b32.xlu0 %v2741, 20
      %v2830 = vpop.permute.xlu0 %2829
      %2831 = vrot.lane.b32.xlu0 %v2744, 20
      %v2832 = vpop.permute.xlu0 %2831
      %2833 = vrot.lane.b32.xlu0 %v2748, 20
      %v2834 = vpop.permute.xlu0 %2833
      %2835 = vrot.lane.b32.xlu0 %v2751, 20
      %v2836 = vpop.permute.xlu0 %2835
      %2837 = vrot.lane.b32.xlu0 %v2755, 20
      %v2838 = vpop.permute.xlu0 %2837
      %2839 = vrot.lane.b32.xlu0 %v2758, 20
      %v2840 = vpop.permute.xlu0 %2839
      %2841 = vrot.lane.b32.xlu0 %v2762, 20
      %v2842 = vpop.permute.xlu0 %2841
      %2843 = vrot.lane.b32.xlu0 %v2765, 20
      %v2844 = vpop.permute.xlu0 %2843
      %2845 = vrot.lane.b32.xlu0 %v2769, 20
      %v2846 = vpop.permute.xlu0 %2845
      %2847 = vrot.lane.b32.xlu0 %v2772, 20
      %v2848 = vpop.permute.xlu0 %2847
      %2849 = vrot.lane.b32.xlu0 %v2776, 20
      %v2850 = vpop.permute.xlu0 %2849
      %2851 = vrot.lane.b32.xlu0 %v2779, 20
      %v2852 = vpop.permute.xlu0 %2851
      %2853 = vrot.lane.b32.xlu0 %v2783, 20
      %v2854 = vpop.permute.xlu0 %2853
      %2855 = vrot.lane.b32.xlu0 %v2786, 20
      %v2856 = vpop.permute.xlu0 %2855
      %2857 = vrot.lane.b32.xlu0 %v2790, 20
      %v2858 = vpop.permute.xlu0 %2857
      %2859 = vrot.lane.b32.xlu0 %v2793, 20
      %v2860 = vpop.permute.xlu0 %2859
      %2861 = vrot.lane.b32.xlu0 %v2797, 20
      %v2862 = vpop.permute.xlu0 %2861
      %2863 = vrot.lane.b32.xlu0 %v2800, 20
      %v2864 = vpop.permute.xlu0 %2863
      %vm2897 = vcmask 191648
      %2898 = vst.msk [vmem:[#allocation4] sm:$0xf] %vm2897, %v2802
      %2899 = vst.msk [vmem:[#allocation4 + $0x4] sm:$0xf] %vm2897, %v2804
      %2900 = vst.msk [vmem:[#allocation4 + $0x8] sm:$0xf] %vm2897, %v2806
      %2901 = vst.msk [vmem:[#allocation4 + $0xc] sm:$0xf] %vm2897, %v2808
      %2902 = vst.msk [vmem:[#allocation4 + $0x10] sm:$0xf] %vm2897, %v2810
      %2903 = vst.msk [vmem:[#allocation4 + $0x14] sm:$0xf] %vm2897, %v2812
      %2904 = vst.msk [vmem:[#allocation4 + $0x18] sm:$0xf] %vm2897, %v2814
      %2905 = vst.msk [vmem:[#allocation4 + $0x1c] sm:$0xf] %vm2897, %v2816
      %2906 = vst.msk [vmem:[#allocation4 + $0x20] sm:$0xf] %vm2897, %v2818
      %2907 = vst.msk [vmem:[#allocation4 + $0x24] sm:$0xf] %vm2897, %v2820
      %2908 = vst.msk [vmem:[#allocation4 + $0x28] sm:$0xf] %vm2897, %v2822
      %2909 = vst.msk [vmem:[#allocation4 + $0x2c] sm:$0xf] %vm2897, %v2824
      %2910 = vst.msk [vmem:[#allocation4 + $0x30] sm:$0xf] %vm2897, %v2826
      %2911 = vst.msk [vmem:[#allocation4 + $0x34] sm:$0xf] %vm2897, %v2828
      %2912 = vst.msk [vmem:[#allocation4 + $0x38] sm:$0xf] %vm2897, %v2830
      %2913 = vst.msk [vmem:[#allocation4 + $0x3c] sm:$0xf] %vm2897, %v2832
      %2914 = vst.msk [vmem:[#allocation4 + $0x40] sm:$0xf] %vm2897, %v2834
      %2915 = vst.msk [vmem:[#allocation4 + $0x44] sm:$0xf] %vm2897, %v2836
      %2916 = vst.msk [vmem:[#allocation4 + $0x48] sm:$0xf] %vm2897, %v2838
      %2917 = vst.msk [vmem:[#allocation4 + $0x4c] sm:$0xf] %vm2897, %v2840
      %2918 = vst.msk [vmem:[#allocation4 + $0x50] sm:$0xf] %vm2897, %v2842
      %2919 = vst.msk [vmem:[#allocation4 + $0x54] sm:$0xf] %vm2897, %v2844
      %2920 = vst.msk [vmem:[#allocation4 + $0x58] sm:$0xf] %vm2897, %v2846
      %2921 = vst.msk [vmem:[#allocation4 + $0x5c] sm:$0xf] %vm2897, %v2848
      %2922 = vst.msk [vmem:[#allocation4 + $0x60] sm:$0xf] %vm2897, %v2850
      %2923 = vst.msk [vmem:[#allocation4 + $0x64] sm:$0xf] %vm2897, %v2852
      %2924 = vst.msk [vmem:[#allocation4 + $0x68] sm:$0xf] %vm2897, %v2854
      %2925 = vst.msk [vmem:[#allocation4 + $0x6c] sm:$0xf] %vm2897, %v2856
      %2926 = vst.msk [vmem:[#allocation4 + $0x70] sm:$0xf] %vm2897, %v2858
      %2927 = vst.msk [vmem:[#allocation4 + $0x74] sm:$0xf] %vm2897, %v2860
      %2928 = vst.msk [vmem:[#allocation4 + $0x78] sm:$0xf] %vm2897, %v2862
      %2929 = vst.msk [vmem:[#allocation4 + $0x7c] sm:$0xf] %vm2897, %v2864
      %s2930 = scalar_lea.vmem [#allocation2], 24
      %v2931 = vld [vmem:[%s2930] sm:$0xf]
      %v2932 = vld [vmem:[%s2930 + $0x4] sm:$0xf]
      %v2933 = vld [vmem:[%s2930 + $0xc] sm:$0xf]
      %v2934 = vld [vmem:[%s2930 + $0x10] sm:$0xf]
      %v2935 = vld [vmem:[%s2930 + $0x18] sm:$0xf]
      %v2936 = vld [vmem:[%s2930 + $0x1c] sm:$0xf]
      %v2937 = vld [vmem:[%s2930 + $0x24] sm:$0xf]
      %v2938 = vld [vmem:[%s2930 + $0x28] sm:$0xf]
      %v2939 = vld [vmem:[%s2930 + $0x30] sm:$0xf]
      %v2940 = vld [vmem:[%s2930 + $0x34] sm:$0xf]
      %v2941 = vld [vmem:[%s2930 + $0x3c] sm:$0xf]
      %v2942 = vld [vmem:[%s2930 + $0x40] sm:$0xf]
      %v2943 = vld [vmem:[%s2930 + $0x48] sm:$0xf]
      %v2944 = vld [vmem:[%s2930 + $0x4c] sm:$0xf]
      %v2945 = vld [vmem:[%s2930 + $0x54] sm:$0xf]
      %v2946 = vld [vmem:[%s2930 + $0x58] sm:$0xf]
      %v2947 = vld [vmem:[%s2930 + $0x60] sm:$0xf]
      %v2948 = vld [vmem:[%s2930 + $0x64] sm:$0xf]
      %v2949 = vld [vmem:[%s2930 + $0x6c] sm:$0xf]
      %v2950 = vld [vmem:[%s2930 + $0x70] sm:$0xf]
      %v2951 = vld [vmem:[%s2930 + $0x78] sm:$0xf]
      %v2952 = vld [vmem:[%s2930 + $0x7c] sm:$0xf]
      %v2953 = vld [vmem:[%s2930 + $0x84] sm:$0xf]
      %v2954 = vld [vmem:[%s2930 + $0x88] sm:$0xf]
      %v2955 = vld [vmem:[%s2930 + $0x90] sm:$0xf]
      %v2956 = vld [vmem:[%s2930 + $0x94] sm:$0xf]
      %v2957 = vld [vmem:[%s2930 + $0x9c] sm:$0xf]
      %v2958 = vld [vmem:[%s2930 + $0xa0] sm:$0xf]
      %v2959 = vld [vmem:[%s2930 + $0xa8] sm:$0xf]
      %v2960 = vld [vmem:[%s2930 + $0xac] sm:$0xf]
      %v2961 = vld [vmem:[%s2930 + $0xb4] sm:$0xf]
      %v2962 = vld [vmem:[%s2930 + $0xb8] sm:$0xf]
      %2995 = vrot.lane.b32.xlu0 %v2931, 24
      %v2996 = vpop.permute.xlu0 %2995
      %2997 = vrot.lane.b32.xlu0 %v2932, 24
      %v2998 = vpop.permute.xlu0 %2997
      %2999 = vrot.lane.b32.xlu0 %v2933, 24
      %v3000 = vpop.permute.xlu0 %2999
      %3001 = vrot.lane.b32.xlu0 %v2934, 24
      %v3002 = vpop.permute.xlu0 %3001
      %3003 = vrot.lane.b32.xlu0 %v2935, 24
      %v3004 = vpop.permute.xlu0 %3003
      %3005 = vrot.lane.b32.xlu0 %v2936, 24
      %v3006 = vpop.permute.xlu0 %3005
      %3007 = vrot.lane.b32.xlu0 %v2937, 24
      %v3008 = vpop.permute.xlu0 %3007
      %3009 = vrot.lane.b32.xlu0 %v2938, 24
      %v3010 = vpop.permute.xlu0 %3009
      %3011 = vrot.lane.b32.xlu0 %v2939, 24
      %v3012 = vpop.permute.xlu0 %3011
      %3013 = vrot.lane.b32.xlu0 %v2940, 24
      %v3014 = vpop.permute.xlu0 %3013
      %3015 = vrot.lane.b32.xlu0 %v2941, 24
      %v3016 = vpop.permute.xlu0 %3015
      %3017 = vrot.lane.b32.xlu0 %v2942, 24
      %v3018 = vpop.permute.xlu0 %3017
      %3019 = vrot.lane.b32.xlu0 %v2943, 24
      %v3020 = vpop.permute.xlu0 %3019
      %3021 = vrot.lane.b32.xlu0 %v2944, 24
      %v3022 = vpop.permute.xlu0 %3021
      %3023 = vrot.lane.b32.xlu0 %v2945, 24
      %v3024 = vpop.permute.xlu0 %3023
      %3025 = vrot.lane.b32.xlu0 %v2946, 24
      %v3026 = vpop.permute.xlu0 %3025
      %3027 = vrot.lane.b32.xlu0 %v2947, 24
      %v3028 = vpop.permute.xlu0 %3027
      %3029 = vrot.lane.b32.xlu0 %v2948, 24
      %v3030 = vpop.permute.xlu0 %3029
      %3031 = vrot.lane.b32.xlu0 %v2949, 24
      %v3032 = vpop.permute.xlu0 %3031
      %3033 = vrot.lane.b32.xlu0 %v2950, 24
      %v3034 = vpop.permute.xlu0 %3033
      %3035 = vrot.lane.b32.xlu0 %v2951, 24
      %v3036 = vpop.permute.xlu0 %3035
      %3037 = vrot.lane.b32.xlu0 %v2952, 24
      %v3038 = vpop.permute.xlu0 %3037
      %3039 = vrot.lane.b32.xlu0 %v2953, 24
      %v3040 = vpop.permute.xlu0 %3039
      %3041 = vrot.lane.b32.xlu0 %v2954, 24
      %v3042 = vpop.permute.xlu0 %3041
      %3043 = vrot.lane.b32.xlu0 %v2955, 24
      %v3044 = vpop.permute.xlu0 %3043
      %3045 = vrot.lane.b32.xlu0 %v2956, 24
      %v3046 = vpop.permute.xlu0 %3045
      %3047 = vrot.lane.b32.xlu0 %v2957, 24
      %v3048 = vpop.permute.xlu0 %3047
      %3049 = vrot.lane.b32.xlu0 %v2958, 24
      %v3050 = vpop.permute.xlu0 %3049
      %3051 = vrot.lane.b32.xlu0 %v2959, 24
      %v3052 = vpop.permute.xlu0 %3051
      %3053 = vrot.lane.b32.xlu0 %v2960, 24
      %v3054 = vpop.permute.xlu0 %3053
      %3055 = vrot.lane.b32.xlu0 %v2961, 24
      %v3056 = vpop.permute.xlu0 %3055
      %3057 = vrot.lane.b32.xlu0 %v2962, 24
      %v3058 = vpop.permute.xlu0 %3057
      %vm3091 = vcmask 224448
      %3092 = vst.msk [vmem:[#allocation4] sm:$0xf] %vm3091, %v2996
      %3093 = vst.msk [vmem:[#allocation4 + $0x4] sm:$0xf] %vm3091, %v2998
      %3094 = vst.msk [vmem:[#allocation4 + $0x8] sm:$0xf] %vm3091, %v3000
      %3095 = vst.msk [vmem:[#allocation4 + $0xc] sm:$0xf] %vm3091, %v3002
      %3096 = vst.msk [vmem:[#allocation4 + $0x10] sm:$0xf] %vm3091, %v3004
      %3097 = vst.msk [vmem:[#allocation4 + $0x14] sm:$0xf] %vm3091, %v3006
      %3098 = vst.msk [vmem:[#allocation4 + $0x18] sm:$0xf] %vm3091, %v3008
      %3099 = vst.msk [vmem:[#allocation4 + $0x1c] sm:$0xf] %vm3091, %v3010
      %3100 = vst.msk [vmem:[#allocation4 + $0x20] sm:$0xf] %vm3091, %v3012
      %3101 = vst.msk [vmem:[#allocation4 + $0x24] sm:$0xf] %vm3091, %v3014
      %3102 = vst.msk [vmem:[#allocation4 + $0x28] sm:$0xf] %vm3091, %v3016
      %3103 = vst.msk [vmem:[#allocation4 + $0x2c] sm:$0xf] %vm3091, %v3018
      %3104 = vst.msk [vmem:[#allocation4 + $0x30] sm:$0xf] %vm3091, %v3020
      %3105 = vst.msk [vmem:[#allocation4 + $0x34] sm:$0xf] %vm3091, %v3022
      %3106 = vst.msk [vmem:[#allocation4 + $0x38] sm:$0xf] %vm3091, %v3024
      %3107 = vst.msk [vmem:[#allocation4 + $0x3c] sm:$0xf] %vm3091, %v3026
      %3108 = vst.msk [vmem:[#allocation4 + $0x40] sm:$0xf] %vm3091, %v3028
      %3109 = vst.msk [vmem:[#allocation4 + $0x44] sm:$0xf] %vm3091, %v3030
      %3110 = vst.msk [vmem:[#allocation4 + $0x48] sm:$0xf] %vm3091, %v3032
      %3111 = vst.msk [vmem:[#allocation4 + $0x4c] sm:$0xf] %vm3091, %v3034
      %3112 = vst.msk [vmem:[#allocation4 + $0x50] sm:$0xf] %vm3091, %v3036
      %3113 = vst.msk [vmem:[#allocation4 + $0x54] sm:$0xf] %vm3091, %v3038
      %3114 = vst.msk [vmem:[#allocation4 + $0x58] sm:$0xf] %vm3091, %v3040
      %3115 = vst.msk [vmem:[#allocation4 + $0x5c] sm:$0xf] %vm3091, %v3042
      %3116 = vst.msk [vmem:[#allocation4 + $0x60] sm:$0xf] %vm3091, %v3044
      %3117 = vst.msk [vmem:[#allocation4 + $0x64] sm:$0xf] %vm3091, %v3046
      %3118 = vst.msk [vmem:[#allocation4 + $0x68] sm:$0xf] %vm3091, %v3048
      %3119 = vst.msk [vmem:[#allocation4 + $0x6c] sm:$0xf] %vm3091, %v3050
      %3120 = vst.msk [vmem:[#allocation4 + $0x70] sm:$0xf] %vm3091, %v3052
      %3121 = vst.msk [vmem:[#allocation4 + $0x74] sm:$0xf] %vm3091, %v3054
      %3122 = vst.msk [vmem:[#allocation4 + $0x78] sm:$0xf] %vm3091, %v3056
      %3123 = vst.msk [vmem:[#allocation4 + $0x7c] sm:$0xf] %vm3091, %v3058
      %v3124 = vld [vmem:[%s2930] sm:$0xf]
      %v3125 = vld [vmem:[%s2930 + $0x4] sm:$0xf]
      %v3126 = vld [vmem:[%s2930 + $0x8] sm:$0x1]
      %v3127 = vld [vmem:[%s2930 + $0xc] sm:$0xf]
      %v3128 = vld [vmem:[%s2930 + $0x10] sm:$0xf]
      %v3129 = vld [vmem:[%s2930 + $0x14] sm:$0x1]
      %v3130 = vld [vmem:[%s2930 + $0x18] sm:$0xf]
      %v3131 = vld [vmem:[%s2930 + $0x1c] sm:$0xf]
      %v3132 = vld [vmem:[%s2930 + $0x20] sm:$0x1]
      %v3133 = vld [vmem:[%s2930 + $0x24] sm:$0xf]
      %v3134 = vld [vmem:[%s2930 + $0x28] sm:$0xf]
      %v3135 = vld [vmem:[%s2930 + $0x2c] sm:$0x1]
      %v3136 = vld [vmem:[%s2930 + $0x30] sm:$0xf]
      %v3137 = vld [vmem:[%s2930 + $0x34] sm:$0xf]
      %v3138 = vld [vmem:[%s2930 + $0x38] sm:$0x1]
      %v3139 = vld [vmem:[%s2930 + $0x3c] sm:$0xf]
      %v3140 = vld [vmem:[%s2930 + $0x40] sm:$0xf]
      %v3141 = vld [vmem:[%s2930 + $0x44] sm:$0x1]
      %v3142 = vld [vmem:[%s2930 + $0x48] sm:$0xf]
      %v3143 = vld [vmem:[%s2930 + $0x4c] sm:$0xf]
      %v3144 = vld [vmem:[%s2930 + $0x50] sm:$0x1]
      %v3145 = vld [vmem:[%s2930 + $0x54] sm:$0xf]
      %v3146 = vld [vmem:[%s2930 + $0x58] sm:$0xf]
      %v3147 = vld [vmem:[%s2930 + $0x5c] sm:$0x1]
      %v3148 = vld [vmem:[%s2930 + $0x60] sm:$0xf]
      %v3149 = vld [vmem:[%s2930 + $0x64] sm:$0xf]
      %v3150 = vld [vmem:[%s2930 + $0x68] sm:$0x1]
      %v3151 = vld [vmem:[%s2930 + $0x6c] sm:$0xf]
      %v3152 = vld [vmem:[%s2930 + $0x70] sm:$0xf]
      %v3153 = vld [vmem:[%s2930 + $0x74] sm:$0x1]
      %v3154 = vld [vmem:[%s2930 + $0x78] sm:$0xf]
      %v3155 = vld [vmem:[%s2930 + $0x7c] sm:$0xf]
      %v3156 = vld [vmem:[%s2930 + $0x80] sm:$0x1]
      %v3157 = vld [vmem:[%s2930 + $0x84] sm:$0xf]
      %v3158 = vld [vmem:[%s2930 + $0x88] sm:$0xf]
      %v3159 = vld [vmem:[%s2930 + $0x8c] sm:$0x1]
      %v3160 = vld [vmem:[%s2930 + $0x90] sm:$0xf]
      %v3161 = vld [vmem:[%s2930 + $0x94] sm:$0xf]
      %v3162 = vld [vmem:[%s2930 + $0x98] sm:$0x1]
      %v3163 = vld [vmem:[%s2930 + $0x9c] sm:$0xf]
      %v3164 = vld [vmem:[%s2930 + $0xa0] sm:$0xf]
      %v3165 = vld [vmem:[%s2930 + $0xa4] sm:$0x1]
      %v3166 = vld [vmem:[%s2930 + $0xa8] sm:$0xf]
      %v3167 = vld [vmem:[%s2930 + $0xac] sm:$0xf]
      %v3168 = vld [vmem:[%s2930 + $0xb0] sm:$0x1]
      %v3169 = vld [vmem:[%s2930 + $0xb4] sm:$0xf]
      %v3170 = vld [vmem:[%s2930 + $0xb8] sm:$0xf]
      %v3171 = vld [vmem:[%s2930 + $0xbc] sm:$0x1]
      %v3173 = vshrl.u32 %v3124, 16
      %v3175 = vrot.slane %v3173, 4
      %v3176 = vshll.u32 %v3124, 16
      %v3178 = vrot.slane %v3176, 5
      %v3179 = vor.u32 %v3175, %v3178
      %v3180 = vrot.slane %v3179, 4
      %v3182 = vshll.u32 %v3125, 16
      %v3184 = vrot.slane %v3182, 5
      %v3185 = vsel %vm985, %v3180, %v3184
      %v3186 = vshrl.u32 %v3125, 16
      %v3188 = vrot.slane %v3186, 4
      %v3189 = vor.u32 %v3188, %v3184
      %v3190 = vrot.slane %v3189, 4
      %v3192 = vshll.u32 %v3126, 16
      %v3194 = vrot.slane %v3192, 5
      %v3195 = vsel %vm985, %v3190, %v3194
      %v3197 = vshrl.u32 %v3127, 16
      %v3199 = vrot.slane %v3197, 4
      %v3200 = vshll.u32 %v3127, 16
      %v3202 = vrot.slane %v3200, 5
      %v3203 = vor.u32 %v3199, %v3202
      %v3204 = vrot.slane %v3203, 4
      %v3206 = vshll.u32 %v3128, 16
      %v3208 = vrot.slane %v3206, 5
      %v3209 = vsel %vm985, %v3204, %v3208
      %v3210 = vshrl.u32 %v3128, 16
      %v3212 = vrot.slane %v3210, 4
      %v3213 = vor.u32 %v3212, %v3208
      %v3214 = vrot.slane %v3213, 4
      %v3216 = vshll.u32 %v3129, 16
      %v3218 = vrot.slane %v3216, 5
      %v3219 = vsel %vm985, %v3214, %v3218
      %v3221 = vshrl.u32 %v3130, 16
      %v3223 = vrot.slane %v3221, 4
      %v3224 = vshll.u32 %v3130, 16
      %v3226 = vrot.slane %v3224, 5
      %v3227 = vor.u32 %v3223, %v3226
      %v3228 = vrot.slane %v3227, 4
      %v3230 = vshll.u32 %v3131, 16
      %v3232 = vrot.slane %v3230, 5
      %v3233 = vsel %vm985, %v3228, %v3232
      %v3234 = vshrl.u32 %v3131, 16
      %v3236 = vrot.slane %v3234, 4
      %v3237 = vor.u32 %v3236, %v3232
      %v3238 = vrot.slane %v3237, 4
      %v3240 = vshll.u32 %v3132, 16
      %v3242 = vrot.slane %v3240, 5
      %v3243 = vsel %vm985, %v3238, %v3242
      %v3245 = vshrl.u32 %v3133, 16
      %v3247 = vrot.slane %v3245, 4
      %v3248 = vshll.u32 %v3133, 16
      %v3250 = vrot.slane %v3248, 5
      %v3251 = vor.u32 %v3247, %v3250
      %v3252 = vrot.slane %v3251, 4
      %v3254 = vshll.u32 %v3134, 16
      %v3256 = vrot.slane %v3254, 5
      %v3257 = vsel %vm985, %v3252, %v3256
      %v3258 = vshrl.u32 %v3134, 16
      %v3260 = vrot.slane %v3258, 4
      %v3261 = vor.u32 %v3260, %v3256
      %v3262 = vrot.slane %v3261, 4
      %v3264 = vshll.u32 %v3135, 16
      %v3266 = vrot.slane %v3264, 5
      %v3267 = vsel %vm985, %v3262, %v3266
      %v3269 = vshrl.u32 %v3136, 16
      %v3271 = vrot.slane %v3269, 4
      %v3272 = vshll.u32 %v3136, 16
      %v3274 = vrot.slane %v3272, 5
      %v3275 = vor.u32 %v3271, %v3274
      %v3276 = vrot.slane %v3275, 4
      %v3278 = vshll.u32 %v3137, 16
      %v3280 = vrot.slane %v3278, 5
      %v3281 = vsel %vm985, %v3276, %v3280
      %v3282 = vshrl.u32 %v3137, 16
      %v3284 = vrot.slane %v3282, 4
      %v3285 = vor.u32 %v3284, %v3280
      %v3286 = vrot.slane %v3285, 4
      %v3288 = vshll.u32 %v3138, 16
      %v3290 = vrot.slane %v3288, 5
      %v3291 = vsel %vm985, %v3286, %v3290
      %v3293 = vshrl.u32 %v3139, 16
      %v3295 = vrot.slane %v3293, 4
      %v3296 = vshll.u32 %v3139, 16
      %v3298 = vrot.slane %v3296, 5
      %v3299 = vor.u32 %v3295, %v3298
      %v3300 = vrot.slane %v3299, 4
      %v3302 = vshll.u32 %v3140, 16
      %v3304 = vrot.slane %v3302, 5
      %v3305 = vsel %vm985, %v3300, %v3304
      %v3306 = vshrl.u32 %v3140, 16
      %v3308 = vrot.slane %v3306, 4
      %v3309 = vor.u32 %v3308, %v3304
      %v3310 = vrot.slane %v3309, 4
      %v3312 = vshll.u32 %v3141, 16
      %v3314 = vrot.slane %v3312, 5
      %v3315 = vsel %vm985, %v3310, %v3314
      %v3317 = vshrl.u32 %v3142, 16
      %v3319 = vrot.slane %v3317, 4
      %v3320 = vshll.u32 %v3142, 16
      %v3322 = vrot.slane %v3320, 5
      %v3323 = vor.u32 %v3319, %v3322
      %v3324 = vrot.slane %v3323, 4
      %v3326 = vshll.u32 %v3143, 16
      %v3328 = vrot.slane %v3326, 5
      %v3329 = vsel %vm985, %v3324, %v3328
      %v3330 = vshrl.u32 %v3143, 16
      %v3332 = vrot.slane %v3330, 4
      %v3333 = vor.u32 %v3332, %v3328
      %v3334 = vrot.slane %v3333, 4
      %v3336 = vshll.u32 %v3144, 16
      %v3338 = vrot.slane %v3336, 5
      %v3339 = vsel %vm985, %v3334, %v3338
      %v3341 = vshrl.u32 %v3145, 16
      %v3343 = vrot.slane %v3341, 4
      %v3344 = vshll.u32 %v3145, 16
      %v3346 = vrot.slane %v3344, 5
      %v3347 = vor.u32 %v3343, %v3346
      %v3348 = vrot.slane %v3347, 4
      %v3350 = vshll.u32 %v3146, 16
      %v3352 = vrot.slane %v3350, 5
      %v3353 = vsel %vm985, %v3348, %v3352
      %v3354 = vshrl.u32 %v3146, 16
      %v3356 = vrot.slane %v3354, 4
      %v3357 = vor.u32 %v3356, %v3352
      %v3358 = vrot.slane %v3357, 4
      %v3360 = vshll.u32 %v3147, 16
      %v3362 = vrot.slane %v3360, 5
      %v3363 = vsel %vm985, %v3358, %v3362
      %v3365 = vshrl.u32 %v3148, 16
      %v3367 = vrot.slane %v3365, 4
      %v3368 = vshll.u32 %v3148, 16
      %v3370 = vrot.slane %v3368, 5
      %v3371 = vor.u32 %v3367, %v3370
      %v3372 = vrot.slane %v3371, 4
      %v3374 = vshll.u32 %v3149, 16
      %v3376 = vrot.slane %v3374, 5
      %v3377 = vsel %vm985, %v3372, %v3376
      %v3378 = vshrl.u32 %v3149, 16
      %v3380 = vrot.slane %v3378, 4
      %v3381 = vor.u32 %v3380, %v3376
      %v3382 = vrot.slane %v3381, 4
      %v3384 = vshll.u32 %v3150, 16
      %v3386 = vrot.slane %v3384, 5
      %v3387 = vsel %vm985, %v3382, %v3386
      %v3389 = vshrl.u32 %v3151, 16
      %v3391 = vrot.slane %v3389, 4
      %v3392 = vshll.u32 %v3151, 16
      %v3394 = vrot.slane %v3392, 5
      %v3395 = vor.u32 %v3391, %v3394
      %v3396 = vrot.slane %v3395, 4
      %v3398 = vshll.u32 %v3152, 16
      %v3400 = vrot.slane %v3398, 5
      %v3401 = vsel %vm985, %v3396, %v3400
      %v3402 = vshrl.u32 %v3152, 16
      %v3404 = vrot.slane %v3402, 4
      %v3405 = vor.u32 %v3404, %v3400
      %v3406 = vrot.slane %v3405, 4
      %v3408 = vshll.u32 %v3153, 16
      %v3410 = vrot.slane %v3408, 5
      %v3411 = vsel %vm985, %v3406, %v3410
      %v3413 = vshrl.u32 %v3154, 16
      %v3415 = vrot.slane %v3413, 4
      %v3416 = vshll.u32 %v3154, 16
      %v3418 = vrot.slane %v3416, 5
      %v3419 = vor.u32 %v3415, %v3418
      %v3420 = vrot.slane %v3419, 4
      %v3422 = vshll.u32 %v3155, 16
      %v3424 = vrot.slane %v3422, 5
      %v3425 = vsel %vm985, %v3420, %v3424
      %v3426 = vshrl.u32 %v3155, 16
      %v3428 = vrot.slane %v3426, 4
      %v3429 = vor.u32 %v3428, %v3424
      %v3430 = vrot.slane %v3429, 4
      %v3432 = vshll.u32 %v3156, 16
      %v3434 = vrot.slane %v3432, 5
      %v3435 = vsel %vm985, %v3430, %v3434
      %v3437 = vshrl.u32 %v3157, 16
      %v3439 = vrot.slane %v3437, 4
      %v3440 = vshll.u32 %v3157, 16
      %v3442 = vrot.slane %v3440, 5
      %v3443 = vor.u32 %v3439, %v3442
      %v3444 = vrot.slane %v3443, 4
      %v3446 = vshll.u32 %v3158, 16
      %v3448 = vrot.slane %v3446, 5
      %v3449 = vsel %vm985, %v3444, %v3448
      %v3450 = vshrl.u32 %v3158, 16
      %v3452 = vrot.slane %v3450, 4
      %v3453 = vor.u32 %v3452, %v3448
      %v3454 = vrot.slane %v3453, 4
      %v3456 = vshll.u32 %v3159, 16
      %v3458 = vrot.slane %v3456, 5
      %v3459 = vsel %vm985, %v3454, %v3458
      %v3461 = vshrl.u32 %v3160, 16
      %v3463 = vrot.slane %v3461, 4
      %v3464 = vshll.u32 %v3160, 16
      %v3466 = vrot.slane %v3464, 5
      %v3467 = vor.u32 %v3463, %v3466
      %v3468 = vrot.slane %v3467, 4
      %v3470 = vshll.u32 %v3161, 16
      %v3472 = vrot.slane %v3470, 5
      %v3473 = vsel %vm985, %v3468, %v3472
      %v3474 = vshrl.u32 %v3161, 16
      %v3476 = vrot.slane %v3474, 4
      %v3477 = vor.u32 %v3476, %v3472
      %v3478 = vrot.slane %v3477, 4
      %v3480 = vshll.u32 %v3162, 16
      %v3482 = vrot.slane %v3480, 5
      %v3483 = vsel %vm985, %v3478, %v3482
      %v3485 = vshrl.u32 %v3163, 16
      %v3487 = vrot.slane %v3485, 4
      %v3488 = vshll.u32 %v3163, 16
      %v3490 = vrot.slane %v3488, 5
      %v3491 = vor.u32 %v3487, %v3490
      %v3492 = vrot.slane %v3491, 4
      %v3494 = vshll.u32 %v3164, 16
      %v3496 = vrot.slane %v3494, 5
      %v3497 = vsel %vm985, %v3492, %v3496
      %v3498 = vshrl.u32 %v3164, 16
      %v3500 = vrot.slane %v3498, 4
      %v3501 = vor.u32 %v3500, %v3496
      %v3502 = vrot.slane %v3501, 4
      %v3504 = vshll.u32 %v3165, 16
      %v3506 = vrot.slane %v3504, 5
      %v3507 = vsel %vm985, %v3502, %v3506
      %v3509 = vshrl.u32 %v3166, 16
      %v3511 = vrot.slane %v3509, 4
      %v3512 = vshll.u32 %v3166, 16
      %v3514 = vrot.slane %v3512, 5
      %v3515 = vor.u32 %v3511, %v3514
      %v3516 = vrot.slane %v3515, 4
      %v3518 = vshll.u32 %v3167, 16
      %v3520 = vrot.slane %v3518, 5
      %v3521 = vsel %vm985, %v3516, %v3520
      %v3522 = vshrl.u32 %v3167, 16
      %v3524 = vrot.slane %v3522, 4
      %v3525 = vor.u32 %v3524, %v3520
      %v3526 = vrot.slane %v3525, 4
      %v3528 = vshll.u32 %v3168, 16
      %v3530 = vrot.slane %v3528, 5
      %v3531 = vsel %vm985, %v3526, %v3530
      %v3533 = vshrl.u32 %v3169, 16
      %v3535 = vrot.slane %v3533, 4
      %v3536 = vshll.u32 %v3169, 16
      %v3538 = vrot.slane %v3536, 5
      %v3539 = vor.u32 %v3535, %v3538
      %v3540 = vrot.slane %v3539, 4
      %v3542 = vshll.u32 %v3170, 16
      %v3544 = vrot.slane %v3542, 5
      %v3545 = vsel %vm985, %v3540, %v3544
      %v3546 = vshrl.u32 %v3170, 16
      %v3548 = vrot.slane %v3546, 4
      %v3549 = vor.u32 %v3548, %v3544
      %v3550 = vrot.slane %v3549, 4
      %v3552 = vshll.u32 %v3171, 16
      %v3554 = vrot.slane %v3552, 5
      %v3555 = vsel %vm985, %v3550, %v3554
      %3556 = vrot.lane.b32.xlu0 %v3185, 28
      %v3557 = vpop.permute.xlu0 %3556
      %3558 = vrot.lane.b32.xlu0 %v3195, 28
      %v3559 = vpop.permute.xlu0 %3558
      %3560 = vrot.lane.b32.xlu0 %v3209, 28
      %v3561 = vpop.permute.xlu0 %3560
      %3562 = vrot.lane.b32.xlu0 %v3219, 28
      %v3563 = vpop.permute.xlu0 %3562
      %3564 = vrot.lane.b32.xlu0 %v3233, 28
      %v3565 = vpop.permute.xlu0 %3564
      %3566 = vrot.lane.b32.xlu0 %v3243, 28
      %v3567 = vpop.permute.xlu0 %3566
      %3568 = vrot.lane.b32.xlu0 %v3257, 28
      %v3569 = vpop.permute.xlu0 %3568
      %3570 = vrot.lane.b32.xlu0 %v3267, 28
      %v3571 = vpop.permute.xlu0 %3570
      %3572 = vrot.lane.b32.xlu0 %v3281, 28
      %v3573 = vpop.permute.xlu0 %3572
      %3574 = vrot.lane.b32.xlu0 %v3291, 28
      %v3575 = vpop.permute.xlu0 %3574
      %3576 = vrot.lane.b32.xlu0 %v3305, 28
      %v3577 = vpop.permute.xlu0 %3576
      %3578 = vrot.lane.b32.xlu0 %v3315, 28
      %v3579 = vpop.permute.xlu0 %3578
      %3580 = vrot.lane.b32.xlu0 %v3329, 28
      %v3581 = vpop.permute.xlu0 %3580
      %3582 = vrot.lane.b32.xlu0 %v3339, 28
      %v3583 = vpop.permute.xlu0 %3582
      %3584 = vrot.lane.b32.xlu0 %v3353, 28
      %v3585 = vpop.permute.xlu0 %3584
      %3586 = vrot.lane.b32.xlu0 %v3363, 28
      %v3587 = vpop.permute.xlu0 %3586
      %3588 = vrot.lane.b32.xlu0 %v3377, 28
      %v3589 = vpop.permute.xlu0 %3588
      %3590 = vrot.lane.b32.xlu0 %v3387, 28
      %v3591 = vpop.permute.xlu0 %3590
      %3592 = vrot.lane.b32.xlu0 %v3401, 28
      %v3593 = vpop.permute.xlu0 %3592
      %3594 = vrot.lane.b32.xlu0 %v3411, 28
      %v3595 = vpop.permute.xlu0 %3594
      %3596 = vrot.lane.b32.xlu0 %v3425, 28
      %v3597 = vpop.permute.xlu0 %3596
      %3598 = vrot.lane.b32.xlu0 %v3435, 28
      %v3599 = vpop.permute.xlu0 %3598
      %3600 = vrot.lane.b32.xlu0 %v3449, 28
      %v3601 = vpop.permute.xlu0 %3600
      %3602 = vrot.lane.b32.xlu0 %v3459, 28
      %v3603 = vpop.permute.xlu0 %3602
      %3604 = vrot.lane.b32.xlu0 %v3473, 28
      %v3605 = vpop.permute.xlu0 %3604
      %3606 = vrot.lane.b32.xlu0 %v3483, 28
      %v3607 = vpop.permute.xlu0 %3606
      %3608 = vrot.lane.b32.xlu0 %v3497, 28
      %v3609 = vpop.permute.xlu0 %3608
      %3610 = vrot.lane.b32.xlu0 %v3507, 28
      %v3611 = vpop.permute.xlu0 %3610
      %3612 = vrot.lane.b32.xlu0 %v3521, 28
      %v3613 = vpop.permute.xlu0 %3612
      %3614 = vrot.lane.b32.xlu0 %v3531, 28
      %v3615 = vpop.permute.xlu0 %3614
      %3616 = vrot.lane.b32.xlu0 %v3545, 28
      %v3617 = vpop.permute.xlu0 %3616
      %3618 = vrot.lane.b32.xlu0 %v3555, 28
      %v3619 = vpop.permute.xlu0 %3618
      %vm3652 = vcmask 257248
      %3653 = vst.msk [vmem:[#allocation4] sm:$0xf] %vm3652, %v3557
      %3654 = vst.msk [vmem:[#allocation4 + $0x4] sm:$0xf] %vm3652, %v3559
      %3655 = vst.msk [vmem:[#allocation4 + $0x8] sm:$0xf] %vm3652, %v3561
      %3656 = vst.msk [vmem:[#allocation4 + $0xc] sm:$0xf] %vm3652, %v3563
      %3657 = vst.msk [vmem:[#allocation4 + $0x10] sm:$0xf] %vm3652, %v3565
      %3658 = vst.msk [vmem:[#allocation4 + $0x14] sm:$0xf] %vm3652, %v3567
      %3659 = vst.msk [vmem:[#allocation4 + $0x18] sm:$0xf] %vm3652, %v3569
      %3660 = vst.msk [vmem:[#allocation4 + $0x1c] sm:$0xf] %vm3652, %v3571
      %3661 = vst.msk [vmem:[#allocation4 + $0x20] sm:$0xf] %vm3652, %v3573
      %3662 = vst.msk [vmem:[#allocation4 + $0x24] sm:$0xf] %vm3652, %v3575
      %3663 = vst.msk [vmem:[#allocation4 + $0x28] sm:$0xf] %vm3652, %v3577
      %3664 = vst.msk [vmem:[#allocation4 + $0x2c] sm:$0xf] %vm3652, %v3579
      %3665 = vst.msk [vmem:[#allocation4 + $0x30] sm:$0xf] %vm3652, %v3581
      %3666 = vst.msk [vmem:[#allocation4 + $0x34] sm:$0xf] %vm3652, %v3583
      %3667 = vst.msk [vmem:[#allocation4 + $0x38] sm:$0xf] %vm3652, %v3585
      %3668 = vst.msk [vmem:[#allocation4 + $0x3c] sm:$0xf] %vm3652, %v3587
      %3669 = vst.msk [vmem:[#allocation4 + $0x40] sm:$0xf] %vm3652, %v3589
      %3670 = vst.msk [vmem:[#allocation4 + $0x44] sm:$0xf] %vm3652, %v3591
      %3671 = vst.msk [vmem:[#allocation4 + $0x48] sm:$0xf] %vm3652, %v3593
      %3672 = vst.msk [vmem:[#allocation4 + $0x4c] sm:$0xf] %vm3652, %v3595
      %3673 = vst.msk [vmem:[#allocation4 + $0x50] sm:$0xf] %vm3652, %v3597
      %3674 = vst.msk [vmem:[#allocation4 + $0x54] sm:$0xf] %vm3652, %v3599
      %3675 = vst.msk [vmem:[#allocation4 + $0x58] sm:$0xf] %vm3652, %v3601
      %3676 = vst.msk [vmem:[#allocation4 + $0x5c] sm:$0xf] %vm3652, %v3603
      %3677 = vst.msk [vmem:[#allocation4 + $0x60] sm:$0xf] %vm3652, %v3605
      %3678 = vst.msk [vmem:[#allocation4 + $0x64] sm:$0xf] %vm3652, %v3607
      %3679 = vst.msk [vmem:[#allocation4 + $0x68] sm:$0xf] %vm3652, %v3609
      %3680 = vst.msk [vmem:[#allocation4 + $0x6c] sm:$0xf] %vm3652, %v3611
      %3681 = vst.msk [vmem:[#allocation4 + $0x70] sm:$0xf] %vm3652, %v3613
      %3682 = vst.msk [vmem:[#allocation4 + $0x74] sm:$0xf] %vm3652, %v3615
      %3683 = vst.msk [vmem:[#allocation4 + $0x78] sm:$0xf] %vm3652, %v3617
      %3684 = vst.msk [vmem:[#allocation4 + $0x7c] sm:$0xf] %vm3652, %v3619
      %v3685 = vld [vmem:[%s2930] sm:$0xe]
      %v3686 = vld [vmem:[%s2930 + $0x4] sm:$0xf]
      %v3687 = vld [vmem:[%s2930 + $0x8] sm:$0x1]
      %v3688 = vld [vmem:[%s2930 + $0xc] sm:$0xe]
      %v3689 = vld [vmem:[%s2930 + $0x10] sm:$0xf]
      %v3690 = vld [vmem:[%s2930 + $0x14] sm:$0x1]
      %v3691 = vld [vmem:[%s2930 + $0x18] sm:$0xe]
      %v3692 = vld [vmem:[%s2930 + $0x1c] sm:$0xf]
      %v3693 = vld [vmem:[%s2930 + $0x20] sm:$0x1]
      %v3694 = vld [vmem:[%s2930 + $0x24] sm:$0xe]
      %v3695 = vld [vmem:[%s2930 + $0x28] sm:$0xf]
      %v3696 = vld [vmem:[%s2930 + $0x2c] sm:$0x1]
      %v3697 = vld [vmem:[%s2930 + $0x30] sm:$0xe]
      %v3698 = vld [vmem:[%s2930 + $0x34] sm:$0xf]
      %v3699 = vld [vmem:[%s2930 + $0x38] sm:$0x1]
      %v3700 = vld [vmem:[%s2930 + $0x3c] sm:$0xe]
      %v3701 = vld [vmem:[%s2930 + $0x40] sm:$0xf]
      %v3702 = vld [vmem:[%s2930 + $0x44] sm:$0x1]
      %v3703 = vld [vmem:[%s2930 + $0x48] sm:$0xe]
      %v3704 = vld [vmem:[%s2930 + $0x4c] sm:$0xf]
      %v3705 = vld [vmem:[%s2930 + $0x50] sm:$0x1]
      %v3706 = vld [vmem:[%s2930 + $0x54] sm:$0xe]
      %v3707 = vld [vmem:[%s2930 + $0x58] sm:$0xf]
      %v3708 = vld [vmem:[%s2930 + $0x5c] sm:$0x1]
      %v3709 = vld [vmem:[%s2930 + $0x60] sm:$0xe]
      %v3710 = vld [vmem:[%s2930 + $0x64] sm:$0xf]
      %v3711 = vld [vmem:[%s2930 + $0x68] sm:$0x1]
      %v3712 = vld [vmem:[%s2930 + $0x6c] sm:$0xe]
      %v3713 = vld [vmem:[%s2930 + $0x70] sm:$0xf]
      %v3714 = vld [vmem:[%s2930 + $0x74] sm:$0x1]
      %v3715 = vld [vmem:[%s2930 + $0x78] sm:$0xe]
      %v3716 = vld [vmem:[%s2930 + $0x7c] sm:$0xf]
      %v3717 = vld [vmem:[%s2930 + $0x80] sm:$0x1]
      %v3718 = vld [vmem:[%s2930 + $0x84] sm:$0xe]
      %v3719 = vld [vmem:[%s2930 + $0x88] sm:$0xf]
      %v3720 = vld [vmem:[%s2930 + $0x8c] sm:$0x1]
      %v3721 = vld [vmem:[%s2930 + $0x90] sm:$0xe]
      %v3722 = vld [vmem:[%s2930 + $0x94] sm:$0xf]
      %v3723 = vld [vmem:[%s2930 + $0x98] sm:$0x1]
      %v3724 = vld [vmem:[%s2930 + $0x9c] sm:$0xe]
      %v3725 = vld [vmem:[%s2930 + $0xa0] sm:$0xf]
      %v3726 = vld [vmem:[%s2930 + $0xa4] sm:$0x1]
      %v3727 = vld [vmem:[%s2930 + $0xa8] sm:$0xe]
      %v3728 = vld [vmem:[%s2930 + $0xac] sm:$0xf]
      %v3729 = vld [vmem:[%s2930 + $0xb0] sm:$0x1]
      %v3730 = vld [vmem:[%s2930 + $0xb4] sm:$0xe]
      %v3731 = vld [vmem:[%s2930 + $0xb8] sm:$0xf]
      %v3732 = vld [vmem:[%s2930 + $0xbc] sm:$0x1]
      %v3781 = vrot.slane %v3685, 5
      %v3782 = vrot.slane %v3781, 4
      %v3783 = vrot.slane %v3686, 5
      %v3784 = vsel %vm1597, %v3782, %v3783
      %v3785 = vrot.slane %v3783, 4
      %v3786 = vrot.slane %v3687, 5
      %v3787 = vsel %vm1597, %v3785, %v3786
      %v3788 = vrot.slane %v3688, 5
      %v3789 = vrot.slane %v3788, 4
      %v3790 = vrot.slane %v3689, 5
      %v3791 = vsel %vm1597, %v3789, %v3790
      %v3792 = vrot.slane %v3790, 4
      %v3793 = vrot.slane %v3690, 5
      %v3794 = vsel %vm1597, %v3792, %v3793
      %v3795 = vrot.slane %v3691, 5
      %v3796 = vrot.slane %v3795, 4
      %v3797 = vrot.slane %v3692, 5
      %v3798 = vsel %vm1597, %v3796, %v3797
      %v3799 = vrot.slane %v3797, 4
      %v3800 = vrot.slane %v3693, 5
      %v3801 = vsel %vm1597, %v3799, %v3800
      %v3802 = vrot.slane %v3694, 5
      %v3803 = vrot.slane %v3802, 4
      %v3804 = vrot.slane %v3695, 5
      %v3805 = vsel %vm1597, %v3803, %v3804
      %v3806 = vrot.slane %v3804, 4
      %v3807 = vrot.slane %v3696, 5
      %v3808 = vsel %vm1597, %v3806, %v3807
      %v3809 = vrot.slane %v3697, 5
      %v3810 = vrot.slane %v3809, 4
      %v3811 = vrot.slane %v3698, 5
      %v3812 = vsel %vm1597, %v3810, %v3811
      %v3813 = vrot.slane %v3811, 4
      %v3814 = vrot.slane %v3699, 5
      %v3815 = vsel %vm1597, %v3813, %v3814
      %v3816 = vrot.slane %v3700, 5
      %v3817 = vrot.slane %v3816, 4
      %v3818 = vrot.slane %v3701, 5
      %v3819 = vsel %vm1597, %v3817, %v3818
      %v3820 = vrot.slane %v3818, 4
      %v3821 = vrot.slane %v3702, 5
      %v3822 = vsel %vm1597, %v3820, %v3821
      %v3823 = vrot.slane %v3703, 5
      %v3824 = vrot.slane %v3823, 4
      %v3825 = vrot.slane %v3704, 5
      %v3826 = vsel %vm1597, %v3824, %v3825
      %v3827 = vrot.slane %v3825, 4
      %v3828 = vrot.slane %v3705, 5
      %v3829 = vsel %vm1597, %v3827, %v3828
      %v3830 = vrot.slane %v3706, 5
      %v3831 = vrot.slane %v3830, 4
      %v3832 = vrot.slane %v3707, 5
      %v3833 = vsel %vm1597, %v3831, %v3832
      %v3834 = vrot.slane %v3832, 4
      %v3835 = vrot.slane %v3708, 5
      %v3836 = vsel %vm1597, %v3834, %v3835
      %v3837 = vrot.slane %v3709, 5
      %v3838 = vrot.slane %v3837, 4
      %v3839 = vrot.slane %v3710, 5
      %v3840 = vsel %vm1597, %v3838, %v3839
      %v3841 = vrot.slane %v3839, 4
      %v3842 = vrot.slane %v3711, 5
      %v3843 = vsel %vm1597, %v3841, %v3842
      %v3844 = vrot.slane %v3712, 5
      %v3845 = vrot.slane %v3844, 4
      %v3846 = vrot.slane %v3713, 5
      %v3847 = vsel %vm1597, %v3845, %v3846
      %v3848 = vrot.slane %v3846, 4
      %v3849 = vrot.slane %v3714, 5
      %v3850 = vsel %vm1597, %v3848, %v3849
      %v3851 = vrot.slane %v3715, 5
      %v3852 = vrot.slane %v3851, 4
      %v3853 = vrot.slane %v3716, 5
      %v3854 = vsel %vm1597, %v3852, %v3853
      %v3855 = vrot.slane %v3853, 4
      %v3856 = vrot.slane %v3717, 5
      %v3857 = vsel %vm1597, %v3855, %v3856
      %v3858 = vrot.slane %v3718, 5
      %v3859 = vrot.slane %v3858, 4
      %v3860 = vrot.slane %v3719, 5
      %v3861 = vsel %vm1597, %v3859, %v3860
      %v3862 = vrot.slane %v3860, 4
      %v3863 = vrot.slane %v3720, 5
      %v3864 = vsel %vm1597, %v3862, %v3863
      %v3865 = vrot.slane %v3721, 5
      %v3866 = vrot.slane %v3865, 4
      %v3867 = vrot.slane %v3722, 5
      %v3868 = vsel %vm1597, %v3866, %v3867
      %v3869 = vrot.slane %v3867, 4
      %v3870 = vrot.slane %v3723, 5
      %v3871 = vsel %vm1597, %v3869, %v3870
      %v3872 = vrot.slane %v3724, 5
      %v3873 = vrot.slane %v3872, 4
      %v3874 = vrot.slane %v3725, 5
      %v3875 = vsel %vm1597, %v3873, %v3874
      %v3876 = vrot.slane %v3874, 4
      %v3877 = vrot.slane %v3726, 5
      %v3878 = vsel %vm1597, %v3876, %v3877
      %v3879 = vrot.slane %v3727, 5
      %v3880 = vrot.slane %v3879, 4
      %v3881 = vrot.slane %v3728, 5
      %v3882 = vsel %vm1597, %v3880, %v3881
      %v3883 = vrot.slane %v3881, 4
      %v3884 = vrot.slane %v3729, 5
      %v3885 = vsel %vm1597, %v3883, %v3884
      %v3886 = vrot.slane %v3730, 5
      %v3887 = vrot.slane %v3886, 4
      %v3888 = vrot.slane %v3731, 5
      %v3889 = vsel %vm1597, %v3887, %v3888
      %v3890 = vrot.slane %v3888, 4
      %v3891 = vrot.slane %v3732, 5
      %v3892 = vsel %vm1597, %v3890, %v3891
      %3893 = vrot.lane.b32.xlu0 %v3784, 32
      %v3894 = vpop.permute.xlu0 %3893
      %3895 = vrot.lane.b32.xlu0 %v3787, 32
      %v3896 = vpop.permute.xlu0 %3895
      %3897 = vrot.lane.b32.xlu0 %v3791, 32
      %v3898 = vpop.permute.xlu0 %3897
      %3899 = vrot.lane.b32.xlu0 %v3794, 32
      %v3900 = vpop.permute.xlu0 %3899
      %3901 = vrot.lane.b32.xlu0 %v3798, 32
      %v3902 = vpop.permute.xlu0 %3901
      %3903 = vrot.lane.b32.xlu0 %v3801, 32
      %v3904 = vpop.permute.xlu0 %3903
      %3905 = vrot.lane.b32.xlu0 %v3805, 32
      %v3906 = vpop.permute.xlu0 %3905
      %3907 = vrot.lane.b32.xlu0 %v3808, 32
      %v3908 = vpop.permute.xlu0 %3907
      %3909 = vrot.lane.b32.xlu0 %v3812, 32
      %v3910 = vpop.permute.xlu0 %3909
      %3911 = vrot.lane.b32.xlu0 %v3815, 32
      %v3912 = vpop.permute.xlu0 %3911
      %3913 = vrot.lane.b32.xlu0 %v3819, 32
      %v3914 = vpop.permute.xlu0 %3913
      %3915 = vrot.lane.b32.xlu0 %v3822, 32
      %v3916 = vpop.permute.xlu0 %3915
      %3917 = vrot.lane.b32.xlu0 %v3826, 32
      %v3918 = vpop.permute.xlu0 %3917
      %3919 = vrot.lane.b32.xlu0 %v3829, 32
      %v3920 = vpop.permute.xlu0 %3919
      %3921 = vrot.lane.b32.xlu0 %v3833, 32
      %v3922 = vpop.permute.xlu0 %3921
      %3923 = vrot.lane.b32.xlu0 %v3836, 32
      %v3924 = vpop.permute.xlu0 %3923
      %3925 = vrot.lane.b32.xlu0 %v3840, 32
      %v3926 = vpop.permute.xlu0 %3925
      %3927 = vrot.lane.b32.xlu0 %v3843, 32
      %v3928 = vpop.permute.xlu0 %3927
      %3929 = vrot.lane.b32.xlu0 %v3847, 32
      %v3930 = vpop.permute.xlu0 %3929
      %3931 = vrot.lane.b32.xlu0 %v3850, 32
      %v3932 = vpop.permute.xlu0 %3931
      %3933 = vrot.lane.b32.xlu0 %v3854, 32
      %v3934 = vpop.permute.xlu0 %3933
      %3935 = vrot.lane.b32.xlu0 %v3857, 32
      %v3936 = vpop.permute.xlu0 %3935
      %3937 = vrot.lane.b32.xlu0 %v3861, 32
      %v3938 = vpop.permute.xlu0 %3937
      %3939 = vrot.lane.b32.xlu0 %v3864, 32
      %v3940 = vpop.permute.xlu0 %3939
      %3941 = vrot.lane.b32.xlu0 %v3868, 32
      %v3942 = vpop.permute.xlu0 %3941
      %3943 = vrot.lane.b32.xlu0 %v3871, 32
      %v3944 = vpop.permute.xlu0 %3943
      %3945 = vrot.lane.b32.xlu0 %v3875, 32
      %v3946 = vpop.permute.xlu0 %3945
      %3947 = vrot.lane.b32.xlu0 %v3878, 32
      %v3948 = vpop.permute.xlu0 %3947
      %3949 = vrot.lane.b32.xlu0 %v3882, 32
      %v3950 = vpop.permute.xlu0 %3949
      %3951 = vrot.lane.b32.xlu0 %v3885, 32
      %v3952 = vpop.permute.xlu0 %3951
      %3953 = vrot.lane.b32.xlu0 %v3889, 32
      %v3954 = vpop.permute.xlu0 %3953
      %3955 = vrot.lane.b32.xlu0 %v3892, 32
      %v3956 = vpop.permute.xlu0 %3955
      %vm3989 = vcmask 290048
      %3990 = vst.msk [vmem:[#allocation4] sm:$0xf] %vm3989, %v3894
      %3991 = vst.msk [vmem:[#allocation4 + $0x4] sm:$0xf] %vm3989, %v3896
      %3992 = vst.msk [vmem:[#allocation4 + $0x8] sm:$0xf] %vm3989, %v3898
      %3993 = vst.msk [vmem:[#allocation4 + $0xc] sm:$0xf] %vm3989, %v3900
      %3994 = vst.msk [vmem:[#allocation4 + $0x10] sm:$0xf] %vm3989, %v3902
      %3995 = vst.msk [vmem:[#allocation4 + $0x14] sm:$0xf] %vm3989, %v3904
      %3996 = vst.msk [vmem:[#allocation4 + $0x18] sm:$0xf] %vm3989, %v3906
      %3997 = vst.msk [vmem:[#allocation4 + $0x1c] sm:$0xf] %vm3989, %v3908
      %3998 = vst.msk [vmem:[#allocation4 + $0x20] sm:$0xf] %vm3989, %v3910
      %3999 = vst.msk [vmem:[#allocation4 + $0x24] sm:$0xf] %vm3989, %v3912
      %4000 = vst.msk [vmem:[#allocation4 + $0x28] sm:$0xf] %vm3989, %v3914
      %4001 = vst.msk [vmem:[#allocation4 + $0x2c] sm:$0xf] %vm3989, %v3916
      %4002 = vst.msk [vmem:[#allocation4 + $0x30] sm:$0xf] %vm3989, %v3918
      %4003 = vst.msk [vmem:[#allocation4 + $0x34] sm:$0xf] %vm3989, %v3920
      %4004 = vst.msk [vmem:[#allocation4 + $0x38] sm:$0xf] %vm3989, %v3922
      %4005 = vst.msk [vmem:[#allocation4 + $0x3c] sm:$0xf] %vm3989, %v3924
      %4006 = vst.msk [vmem:[#allocation4 + $0x40] sm:$0xf] %vm3989, %v3926
      %4007 = vst.msk [vmem:[#allocation4 + $0x44] sm:$0xf] %vm3989, %v3928
      %4008 = vst.msk [vmem:[#allocation4 + $0x48] sm:$0xf] %vm3989, %v3930
      %4009 = vst.msk [vmem:[#allocation4 + $0x4c] sm:$0xf] %vm3989, %v3932
      %4010 = vst.msk [vmem:[#allocation4 + $0x50] sm:$0xf] %vm3989, %v3934
      %4011 = vst.msk [vmem:[#allocation4 + $0x54] sm:$0xf] %vm3989, %v3936
      %4012 = vst.msk [vmem:[#allocation4 + $0x58] sm:$0xf] %vm3989, %v3938
      %4013 = vst.msk [vmem:[#allocation4 + $0x5c] sm:$0xf] %vm3989, %v3940
      %4014 = vst.msk [vmem:[#allocation4 + $0x60] sm:$0xf] %vm3989, %v3942
      %4015 = vst.msk [vmem:[#allocation4 + $0x64] sm:$0xf] %vm3989, %v3944
      %4016 = vst.msk [vmem:[#allocation4 + $0x68] sm:$0xf] %vm3989, %v3946
      %4017 = vst.msk [vmem:[#allocation4 + $0x6c] sm:$0xf] %vm3989, %v3948
      %4018 = vst.msk [vmem:[#allocation4 + $0x70] sm:$0xf] %vm3989, %v3950
      %4019 = vst.msk [vmem:[#allocation4 + $0x74] sm:$0xf] %vm3989, %v3952
      %4020 = vst.msk [vmem:[#allocation4 + $0x78] sm:$0xf] %vm3989, %v3954
      %4021 = vst.msk [vmem:[#allocation4 + $0x7c] sm:$0xf] %vm3989, %v3956
      %v4022 = vld [vmem:[#allocation4] sm:$0xf]
      %v4023 = vld [vmem:[#allocation4 + $0x4] sm:$0xf]
      %v4024 = vld [vmem:[#allocation4 + $0x8] sm:$0xf]
      %v4025 = vld [vmem:[#allocation4 + $0xc] sm:$0xf]
      %v4026 = vld [vmem:[#allocation4 + $0x10] sm:$0xf]
      %v4027 = vld [vmem:[#allocation4 + $0x14] sm:$0xf]
      %v4028 = vld [vmem:[#allocation4 + $0x18] sm:$0xf]
      %v4029 = vld [vmem:[#allocation4 + $0x1c] sm:$0xf]
      %v4030 = vld [vmem:[#allocation4 + $0x20] sm:$0xf]
      %v4031 = vld [vmem:[#allocation4 + $0x24] sm:$0xf]
      %v4032 = vld [vmem:[#allocation4 + $0x28] sm:$0xf]
      %v4033 = vld [vmem:[#allocation4 + $0x2c] sm:$0xf]
      %v4034 = vld [vmem:[#allocation4 + $0x30] sm:$0xf]
      %v4035 = vld [vmem:[#allocation4 + $0x34] sm:$0xf]
      %v4036 = vld [vmem:[#allocation4 + $0x38] sm:$0xf]
      %v4037 = vld [vmem:[#allocation4 + $0x3c] sm:$0xf]
      %v4038 = vld [vmem:[#allocation4 + $0x40] sm:$0xf]
      %v4039 = vld [vmem:[#allocation4 + $0x44] sm:$0xf]
      %v4040 = vld [vmem:[#allocation4 + $0x48] sm:$0xf]
      %v4041 = vld [vmem:[#allocation4 + $0x4c] sm:$0xf]
      %v4042 = vld [vmem:[#allocation4 + $0x50] sm:$0xf]
      %v4043 = vld [vmem:[#allocation4 + $0x54] sm:$0xf]
      %v4044 = vld [vmem:[#allocation4 + $0x58] sm:$0xf]
      %v4045 = vld [vmem:[#allocation4 + $0x5c] sm:$0xf]
      %v4046 = vld [vmem:[#allocation4 + $0x60] sm:$0xf]
      %v4047 = vld [vmem:[#allocation4 + $0x64] sm:$0xf]
      %v4048 = vld [vmem:[#allocation4 + $0x68] sm:$0xf]
      %v4049 = vld [vmem:[#allocation4 + $0x6c] sm:$0xf]
      %v4050 = vld [vmem:[#allocation4 + $0x70] sm:$0xf]
      %v4051 = vld [vmem:[#allocation4 + $0x74] sm:$0xf]
      %v4052 = vld [vmem:[#allocation4 + $0x78] sm:$0xf]
      %v4053 = vld [vmem:[#allocation4 + $0x7c] sm:$0xf]
      %v4054 = vld [vmem:[%s1] sm:$0xf]
      %v4055 = vld [vmem:[%s1 + $0x4] sm:$0xf]
      %v4056 = vld [vmem:[%s1 + $0x8] sm:$0xf]
      %v4057 = vld [vmem:[%s1 + $0xc] sm:$0xf]
      %v4058 = vld [vmem:[%s1 + $0x10] sm:$0x3]
      %v4059 = vld [vmem:[%s4] sm:$0x1]
      %v4061 = vperm.slane %v4059, 0
      %v4095 = vunpack.c.l.b16 %v4022
      %v4096 = vunpack.c.l.b16 %v4023
      %v4097 = vunpack.c.l.b16 %v4024
      %v4098 = vunpack.c.l.b16 %v4025
      %v4099 = vunpack.c.l.b16 %v4026
      %v4100 = vunpack.c.l.b16 %v4027
      %v4101 = vunpack.c.l.b16 %v4028
      %v4102 = vunpack.c.l.b16 %v4029
      %v4103 = vunpack.c.l.b16 %v4030
      %v4104 = vunpack.c.l.b16 %v4031
      %v4105 = vunpack.c.l.b16 %v4032
      %v4106 = vunpack.c.l.b16 %v4033
      %v4107 = vunpack.c.l.b16 %v4034
      %v4108 = vunpack.c.l.b16 %v4035
      %v4109 = vunpack.c.l.b16 %v4036
      %v4110 = vunpack.c.l.b16 %v4037
      %v4111 = vunpack.c.l.b16 %v4038
      %v4112 = vunpack.c.l.b16 %v4039
      %v4113 = vunpack.c.l.b16 %v4040
      %v4114 = vunpack.c.l.b16 %v4041
      %v4115 = vunpack.c.l.b16 %v4042
      %v4116 = vunpack.c.l.b16 %v4043
      %v4117 = vunpack.c.l.b16 %v4044
      %v4118 = vunpack.c.l.b16 %v4045
      %v4119 = vunpack.c.l.b16 %v4046
      %v4120 = vunpack.c.l.b16 %v4047
      %v4121 = vunpack.c.l.b16 %v4048
      %v4122 = vunpack.c.l.b16 %v4049
      %v4123 = vunpack.c.l.b16 %v4050
      %v4124 = vunpack.c.l.b16 %v4051
      %v4125 = vunpack.c.l.b16 %v4052
      %v4126 = vunpack.c.l.b16 %v4053
      %v4127 = vpack.c.b16 %v4096, %v4095
      %v4128 = vpack.c.b16 %v4098, %v4097
      %v4129 = vpack.c.b16 %v4100, %v4099
      %v4130 = vpack.c.b16 %v4102, %v4101
      %v4131 = vpack.c.b16 %v4104, %v4103
      %v4132 = vpack.c.b16 %v4106, %v4105
      %v4133 = vpack.c.b16 %v4108, %v4107
      %v4134 = vpack.c.b16 %v4110, %v4109
      %v4135 = vpack.c.b16 %v4112, %v4111
      %v4136 = vpack.c.b16 %v4114, %v4113
      %v4137 = vpack.c.b16 %v4116, %v4115
      %v4138 = vpack.c.b16 %v4118, %v4117
      %v4139 = vpack.c.b16 %v4120, %v4119
      %v4140 = vpack.c.b16 %v4122, %v4121
      %v4141 = vpack.c.b16 %v4124, %v4123
      %v4142 = vpack.c.b16 %v4126, %v4125
      %v4148 = vunpack.c.l.b16 %v4054
      %v4149 = vunpack.c.l.b16 %v4055
      %v4150 = vunpack.c.l.b16 %v4056
      %v4151 = vunpack.c.l.b16 %v4057
      %v4152 = vunpack.c.l.b16 %v4058
      %v4153 = vpack.c.b16 %v4149, %v4148
      %v4154 = vpack.c.b16 %v4151, %v4150
      %v4155 = vpack.c.b16 %v4152, %v4152
      %vm4158 = vcmask 293888
      %v4160 = vsel %vm4158, %v4127, 0
      %v4163 = vsel %vm4158, %v4128, 0
      %v4166 = vsel %vm4158, %v4129, 0
      %v4169 = vsel %vm4158, %v4130, 0
      %v4172 = vsel %vm4158, %v4131, 0
      %v4175 = vsel %vm4158, %v4132, 0
      %v4178 = vsel %vm4158, %v4133, 0
      %v4181 = vsel %vm4158, %v4134, 0
      %v4184 = vsel %vm4158, %v4135, 0
      %v4187 = vsel %vm4158, %v4136, 0
      %v4190 = vsel %vm4158, %v4137, 0
      %v4193 = vsel %vm4158, %v4138, 0
      %v4196 = vsel %vm4158, %v4139, 0
      %v4199 = vsel %vm4158, %v4140, 0
      %v4202 = vsel %vm4158, %v4141, 0
      %v4205 = vsel %vm4158, %v4142, 0
      %vm4207 = vcmask 1041408
      %v4209 = vsel %vm4207, %v4155, 0
      %4211 = vmatpush.bf16.msra.mxu0 0
      %4212 = vmatpush.bf16.msra.mxu0 0
      %4213 = vmatpush.bf16.msra.mxu0 0
      %4214 = vmatpush.bf16.msra.mxu0 0
      %4215 = vmatpush.bf16.msra.mxu0 0
      %4216 = vmatpush.bf16.msra.mxu0 %v4209
      %4217 = vmatpush.bf16.msra.mxu0 %v4154
      %4218 = vmatpush.bf16.msra.mxu0 %v4153
      %4219 = vmatmul.bf16.gmra.mxu0 %v4160
      %v4220 = vpop.f32.mrf.mxu0
      %v4221 = vadd.f32 %v4061, %v4220
      %v4222 = vpop.f32.mrf.mxu0
      %v4223 = vadd.f32 %v4061, %v4222
      %4224 = vmatmul.bf16.gmra.mxu0 %v4163
      %v4225 = vpop.f32.mrf.mxu0
      %v4226 = vadd.f32 %v4061, %v4225
      %v4227 = vpop.f32.mrf.mxu0
      %v4228 = vadd.f32 %v4061, %v4227
      %4229 = vmatmul.bf16.gmra.mxu0 %v4166
      %v4230 = vpop.f32.mrf.mxu0
      %v4231 = vadd.f32 %v4061, %v4230
      %v4232 = vpop.f32.mrf.mxu0
      %v4233 = vadd.f32 %v4061, %v4232
      %4234 = vmatmul.bf16.gmra.mxu0 %v4169
      %v4235 = vpop.f32.mrf.mxu0
      %v4236 = vadd.f32 %v4061, %v4235
      %v4237 = vpop.f32.mrf.mxu0
      %v4238 = vadd.f32 %v4061, %v4237
      %4239 = vmatmul.bf16.gmra.mxu0 %v4172
      %v4240 = vpop.f32.mrf.mxu0
      %v4241 = vadd.f32 %v4061, %v4240
      %v4242 = vpop.f32.mrf.mxu0
      %v4243 = vadd.f32 %v4061, %v4242
      %4244 = vmatmul.bf16.gmra.mxu0 %v4175
      %v4245 = vpop.f32.mrf.mxu0
      %v4246 = vadd.f32 %v4061, %v4245
      %v4247 = vpop.f32.mrf.mxu0
      %v4248 = vadd.f32 %v4061, %v4247
      %4249 = vmatmul.bf16.gmra.mxu0 %v4178
      %v4250 = vpop.f32.mrf.mxu0
      %v4251 = vadd.f32 %v4061, %v4250
      %v4252 = vpop.f32.mrf.mxu0
      %v4253 = vadd.f32 %v4061, %v4252
      %4254 = vmatmul.bf16.gmra.mxu0 %v4181
      %v4255 = vpop.f32.mrf.mxu0
      %v4256 = vadd.f32 %v4061, %v4255
      %v4257 = vpop.f32.mrf.mxu0
      %v4258 = vadd.f32 %v4061, %v4257
      %4259 = vmatmul.bf16.gmra.mxu0 %v4184
      %v4260 = vpop.f32.mrf.mxu0
      %v4261 = vadd.f32 %v4061, %v4260
      %v4262 = vpop.f32.mrf.mxu0
      %v4263 = vadd.f32 %v4061, %v4262
      %4264 = vmatmul.bf16.gmra.mxu0 %v4187
      %v4265 = vpop.f32.mrf.mxu0
      %v4266 = vadd.f32 %v4061, %v4265
      %v4267 = vpop.f32.mrf.mxu0
      %v4268 = vadd.f32 %v4061, %v4267
      %4269 = vmatmul.bf16.gmra.mxu0 %v4190
      %v4270 = vpop.f32.mrf.mxu0
      %v4271 = vadd.f32 %v4061, %v4270
      %v4272 = vpop.f32.mrf.mxu0
      %v4273 = vadd.f32 %v4061, %v4272
      %4274 = vmatmul.bf16.gmra.mxu0 %v4193
      %v4275 = vpop.f32.mrf.mxu0
      %v4276 = vadd.f32 %v4061, %v4275
      %v4277 = vpop.f32.mrf.mxu0
      %v4278 = vadd.f32 %v4061, %v4277
      %4279 = vmatmul.bf16.gmra.mxu0 %v4196
      %v4280 = vpop.f32.mrf.mxu0
      %v4281 = vadd.f32 %v4061, %v4280
      %v4282 = vpop.f32.mrf.mxu0
      %v4283 = vadd.f32 %v4061, %v4282
      %4284 = vmatmul.bf16.gmra.mxu0 %v4199
      %v4285 = vpop.f32.mrf.mxu0
      %v4286 = vadd.f32 %v4061, %v4285
      %v4287 = vpop.f32.mrf.mxu0
      %v4288 = vadd.f32 %v4061, %v4287
      %4289 = vmatmul.bf16.gmra.mxu0 %v4202
      %v4290 = vpop.f32.mrf.mxu0
      %v4291 = vadd.f32 %v4061, %v4290
      %v4292 = vpop.f32.mrf.mxu0
      %v4293 = vadd.f32 %v4061, %v4292
      %4294 = vmatmul.bf16.gmra.mxu0 %v4205
      %v4295 = vpop.f32.mrf.mxu0
      %v4296 = vadd.f32 %v4061, %v4295
      %v4297 = vpop.f32.mrf.mxu0
      %v4298 = vadd.f32 %v4061, %v4297
      %4299 = vdwg.mxu0
      %v4300 = vmax.f32 %v4221, 0.0
      %v4301 = vmax.f32 %v4223, 0.0
      %v4302 = vmax.f32 %v4226, 0.0
      %v4303 = vmax.f32 %v4228, 0.0
      %v4304 = vmax.f32 %v4231, 0.0
      %v4305 = vmax.f32 %v4233, 0.0
      %v4306 = vmax.f32 %v4236, 0.0
      %v4307 = vmax.f32 %v4238, 0.0
      %v4308 = vmax.f32 %v4241, 0.0
      %v4309 = vmax.f32 %v4243, 0.0
      %v4310 = vmax.f32 %v4246, 0.0
      %v4311 = vmax.f32 %v4248, 0.0
      %v4312 = vmax.f32 %v4251, 0.0
      %v4313 = vmax.f32 %v4253, 0.0
      %v4314 = vmax.f32 %v4256, 0.0
      %v4315 = vmax.f32 %v4258, 0.0
      %v4316 = vmax.f32 %v4261, 0.0
      %v4317 = vmax.f32 %v4263, 0.0
      %v4318 = vmax.f32 %v4266, 0.0
      %v4319 = vmax.f32 %v4268, 0.0
      %v4320 = vmax.f32 %v4271, 0.0
      %v4321 = vmax.f32 %v4273, 0.0
      %v4322 = vmax.f32 %v4276, 0.0
      %v4323 = vmax.f32 %v4278, 0.0
      %v4324 = vmax.f32 %v4281, 0.0
      %v4325 = vmax.f32 %v4283, 0.0
      %v4326 = vmax.f32 %v4286, 0.0
      %v4327 = vmax.f32 %v4288, 0.0
      %v4328 = vmax.f32 %v4291, 0.0
      %v4329 = vmax.f32 %v4293, 0.0
      %v4330 = vmax.f32 %v4296, 0.0
      %v4331 = vmax.f32 %v4298, 0.0
      %vm4332 = vcmask 60416
      %4333 = vst.msk [vmem:[#allocation3] sm:$0xf] %vm4332, 0
      %4334 = vst.msk [vmem:[#allocation3 + $0x4] sm:$0xf] %vm4332, 0
      %vm4335 = vcmask 57344
      %4336 = vst.msk [vmem:[#allocation3 + $0x8] sm:$0x1] %vm4335, 0
      %s4337 = scalar_lea.vmem [#allocation3], 204
      %4338 = vst.msk [vmem:[%s4337] sm:$0xf] %vm4332, 0
      %4339 = vst.msk [vmem:[%s4337 + $0x4] sm:$0xf] %vm4332, 0
      %4340 = vst.msk [vmem:[%s4337 + $0x8] sm:$0x1] %vm4335, 0
      %vm4341 = vcmask 57344
      %vm4342 = vmand %vm4341, %vm290
      %v4343 = vld [vmem:[#allocation3] sm:$0x1]
      %v4344 = vsel %vm4342, 0, %v4343
      %4345 = vst [vmem:[#allocation3] sm:$0x1] %v4344
      %v4346 = vld [vmem:[#allocation3 + $0xc] sm:$0x1]
      %v4347 = vsel %vm4342, 0, %v4346
      %4348 = vst [vmem:[#allocation3 + $0xc] sm:$0x1] %v4347
      %v4349 = vld [vmem:[#allocation3 + $0x18] sm:$0x1]
      %v4350 = vsel %vm4342, 0, %v4349
      %4351 = vst [vmem:[#allocation3 + $0x18] sm:$0x1] %v4350
      %v4352 = vld [vmem:[#allocation3 + $0x24] sm:$0x1]
      %v4353 = vsel %vm4342, 0, %v4352
      %4354 = vst [vmem:[#allocation3 + $0x24] sm:$0x1] %v4353
      %v4355 = vld [vmem:[#allocation3 + $0x30] sm:$0x1]
      %v4356 = vsel %vm4342, 0, %v4355
      %4357 = vst [vmem:[#allocation3 + $0x30] sm:$0x1] %v4356
      %v4358 = vld [vmem:[#allocation3 + $0x3c] sm:$0x1]
      %v4359 = vsel %vm4342, 0, %v4358
      %4360 = vst [vmem:[#allocation3 + $0x3c] sm:$0x1] %v4359
      %v4361 = vld [vmem:[#allocation3 + $0x48] sm:$0x1]
      %v4362 = vsel %vm4342, 0, %v4361
      %4363 = vst [vmem:[#allocation3 + $0x48] sm:$0x1] %v4362
      %v4364 = vld [vmem:[#allocation3 + $0x54] sm:$0x1]
      %v4365 = vsel %vm4342, 0, %v4364
      %4366 = vst [vmem:[#allocation3 + $0x54] sm:$0x1] %v4365
      %v4367 = vld [vmem:[#allocation3 + $0x60] sm:$0x1]
      %v4368 = vsel %vm4342, 0, %v4367
      %4369 = vst [vmem:[#allocation3 + $0x60] sm:$0x1] %v4368
      %v4370 = vld [vmem:[#allocation3 + $0x6c] sm:$0x1]
      %v4371 = vsel %vm4342, 0, %v4370
      %4372 = vst [vmem:[#allocation3 + $0x6c] sm:$0x1] %v4371
      %v4373 = vld [vmem:[#allocation3 + $0x78] sm:$0x1]
      %v4374 = vsel %vm4342, 0, %v4373
      %4375 = vst [vmem:[#allocation3 + $0x78] sm:$0x1] %v4374
      %v4376 = vld [vmem:[#allocation3 + $0x84] sm:$0x1]
      %v4377 = vsel %vm4342, 0, %v4376
      %4378 = vst [vmem:[#allocation3 + $0x84] sm:$0x1] %v4377
      %v4379 = vld [vmem:[#allocation3 + $0x90] sm:$0x1]
      %v4380 = vsel %vm4342, 0, %v4379
      %4381 = vst [vmem:[#allocation3 + $0x90] sm:$0x1] %v4380
      %v4382 = vld [vmem:[#allocation3 + $0x9c] sm:$0x1]
      %v4383 = vsel %vm4342, 0, %v4382
      %4384 = vst [vmem:[#allocation3 + $0x9c] sm:$0x1] %v4383
      %v4385 = vld [vmem:[#allocation3 + $0xa8] sm:$0x1]
      %v4386 = vsel %vm4342, 0, %v4385
      %4387 = vst [vmem:[#allocation3 + $0xa8] sm:$0x1] %v4386
      %v4388 = vld [vmem:[#allocation3 + $0xb4] sm:$0x1]
      %v4389 = vsel %vm4342, 0, %v4388
      %4390 = vst [vmem:[#allocation3 + $0xb4] sm:$0x1] %v4389
      %v4391 = vld [vmem:[#allocation3 + $0xc0] sm:$0x1]
      %v4392 = vsel %vm4342, 0, %v4391
      %4393 = vst [vmem:[#allocation3 + $0xc0] sm:$0x1] %v4392
      %v4394 = vld [vmem:[#allocation3 + $0xcc] sm:$0x1]
      %v4395 = vsel %vm4342, 0, %v4394
      %4396 = vst [vmem:[#allocation3 + $0xcc] sm:$0x1] %v4395
      %vm4397 = vmand %vm4341, %vm346
      %v4398 = vld [vmem:[#allocation3 + $0x8] sm:$0x1]
      %v4399 = vsel %vm4397, 0, %v4398
      %4400 = vst [vmem:[#allocation3 + $0x8] sm:$0x1] %v4399
      %v4401 = vld [vmem:[#allocation3 + $0x14] sm:$0x1]
      %v4402 = vsel %vm4397, 0, %v4401
      %4403 = vst [vmem:[#allocation3 + $0x14] sm:$0x1] %v4402
      %v4404 = vld [vmem:[#allocation3 + $0x20] sm:$0x1]
      %v4405 = vsel %vm4397, 0, %v4404
      %4406 = vst [vmem:[#allocation3 + $0x20] sm:$0x1] %v4405
      %v4407 = vld [vmem:[#allocation3 + $0x2c] sm:$0x1]
      %v4408 = vsel %vm4397, 0, %v4407
      %4409 = vst [vmem:[#allocation3 + $0x2c] sm:$0x1] %v4408
      %v4410 = vld [vmem:[#allocation3 + $0x38] sm:$0x1]
      %v4411 = vsel %vm4397, 0, %v4410
      %4412 = vst [vmem:[#allocation3 + $0x38] sm:$0x1] %v4411
      %v4413 = vld [vmem:[#allocation3 + $0x44] sm:$0x1]
      %v4414 = vsel %vm4397, 0, %v4413
      %4415 = vst [vmem:[#allocation3 + $0x44] sm:$0x1] %v4414
      %v4416 = vld [vmem:[#allocation3 + $0x50] sm:$0x1]
      %v4417 = vsel %vm4397, 0, %v4416
      %4418 = vst [vmem:[#allocation3 + $0x50] sm:$0x1] %v4417
      %v4419 = vld [vmem:[#allocation3 + $0x5c] sm:$0x1]
      %v4420 = vsel %vm4397, 0, %v4419
      %4421 = vst [vmem:[#allocation3 + $0x5c] sm:$0x1] %v4420
      %v4422 = vld [vmem:[#allocation3 + $0x68] sm:$0x1]
      %v4423 = vsel %vm4397, 0, %v4422
      %4424 = vst [vmem:[#allocation3 + $0x68] sm:$0x1] %v4423
      %v4425 = vld [vmem:[#allocation3 + $0x74] sm:$0x1]
      %v4426 = vsel %vm4397, 0, %v4425
      %4427 = vst [vmem:[#allocation3 + $0x74] sm:$0x1] %v4426
      %v4428 = vld [vmem:[#allocation3 + $0x80] sm:$0x1]
      %v4429 = vsel %vm4397, 0, %v4428
      %4430 = vst [vmem:[#allocation3 + $0x80] sm:$0x1] %v4429
      %v4431 = vld [vmem:[#allocation3 + $0x8c] sm:$0x1]
      %v4432 = vsel %vm4397, 0, %v4431
      %4433 = vst [vmem:[#allocation3 + $0x8c] sm:$0x1] %v4432
      %v4434 = vld [vmem:[#allocation3 + $0x98] sm:$0x1]
      %v4435 = vsel %vm4397, 0, %v4434
      %4436 = vst [vmem:[#allocation3 + $0x98] sm:$0x1] %v4435
      %v4437 = vld [vmem:[#allocation3 + $0xa4] sm:$0x1]
      %v4438 = vsel %vm4397, 0, %v4437
      %4439 = vst [vmem:[#allocation3 + $0xa4] sm:$0x1] %v4438
      %v4440 = vld [vmem:[#allocation3 + $0xb0] sm:$0x1]
      %v4441 = vsel %vm4397, 0, %v4440
      %4442 = vst [vmem:[#allocation3 + $0xb0] sm:$0x1] %v4441
      %v4443 = vld [vmem:[#allocation3 + $0xbc] sm:$0x1]
      %v4444 = vsel %vm4397, 0, %v4443
      %4445 = vst [vmem:[#allocation3 + $0xbc] sm:$0x1] %v4444
      %v4446 = vld [vmem:[#allocation3 + $0xc8] sm:$0x1]
      %v4447 = vsel %vm4397, 0, %v4446
      %4448 = vst [vmem:[#allocation3 + $0xc8] sm:$0x1] %v4447
      %v4449 = vld [vmem:[#allocation3 + $0xd4] sm:$0x1]
      %v4450 = vsel %vm4397, 0, %v4449
      %4451 = vst [vmem:[#allocation3 + $0xd4] sm:$0x1] %v4450
      %v4452 = vpack.c.bf16 %v4300, %v4300
      %v4453 = vpack.c.bf16 %v4301, %v4301
      %v4454 = vpack.c.bf16 %v4302, %v4302
      %v4455 = vpack.c.bf16 %v4303, %v4303
      %v4456 = vpack.c.bf16 %v4304, %v4304
      %v4457 = vpack.c.bf16 %v4305, %v4305
      %v4458 = vpack.c.bf16 %v4306, %v4306
      %v4459 = vpack.c.bf16 %v4307, %v4307
      %v4460 = vpack.c.bf16 %v4308, %v4308
      %v4461 = vpack.c.bf16 %v4309, %v4309
      %v4462 = vpack.c.bf16 %v4310, %v4310
      %v4463 = vpack.c.bf16 %v4311, %v4311
      %v4464 = vpack.c.bf16 %v4312, %v4312
      %v4465 = vpack.c.bf16 %v4313, %v4313
      %v4466 = vpack.c.bf16 %v4314, %v4314
      %v4467 = vpack.c.bf16 %v4315, %v4315
      %v4468 = vpack.c.bf16 %v4316, %v4316
      %v4469 = vpack.c.bf16 %v4317, %v4317
      %v4470 = vpack.c.bf16 %v4318, %v4318
      %v4471 = vpack.c.bf16 %v4319, %v4319
      %v4472 = vpack.c.bf16 %v4320, %v4320
      %v4473 = vpack.c.bf16 %v4321, %v4321
      %v4474 = vpack.c.bf16 %v4322, %v4322
      %v4475 = vpack.c.bf16 %v4323, %v4323
      %v4476 = vpack.c.bf16 %v4324, %v4324
      %v4477 = vpack.c.bf16 %v4325, %v4325
      %v4478 = vpack.c.bf16 %v4326, %v4326
      %v4479 = vpack.c.bf16 %v4327, %v4327
      %v4480 = vpack.c.bf16 %v4328, %v4328
      %v4481 = vpack.c.bf16 %v4329, %v4329
      %v4482 = vpack.c.bf16 %v4330, %v4330
      %v4483 = vpack.c.bf16 %v4331, %v4331
      %v4485 = vshrl.u32 %v4452, 16
      %v4487 = vrot.slane %v4485, 7
      %v4488 = vshll.u32 %v4452, 16
      %v4490 = vor.u32 %v4487, %v4488
      %v4491 = vrot.slane %v4487, 4
      %v4493 = vshrl.u32 %v4453, 16
      %v4495 = vrot.slane %v4493, 7
      %v4496 = vshll.u32 %v4453, 16
      %v4498 = vor.u32 %v4495, %v4496
      %v4499 = vsel %vm435, %v4491, %v4498
      %v4500 = vrot.slane %v4495, 4
      %v4502 = vshrl.u32 %v4454, 16
      %v4504 = vrot.slane %v4502, 7
      %v4505 = vshll.u32 %v4454, 16
      %v4507 = vor.u32 %v4504, %v4505
      %v4508 = vrot.slane %v4504, 4
      %v4510 = vshrl.u32 %v4455, 16
      %v4512 = vrot.slane %v4510, 7
      %v4513 = vshll.u32 %v4455, 16
      %v4515 = vor.u32 %v4512, %v4513
      %v4516 = vsel %vm435, %v4508, %v4515
      %v4517 = vrot.slane %v4512, 4
      %v4519 = vshrl.u32 %v4456, 16
      %v4521 = vrot.slane %v4519, 7
      %v4522 = vshll.u32 %v4456, 16
      %v4524 = vor.u32 %v4521, %v4522
      %v4525 = vrot.slane %v4521, 4
      %v4527 = vshrl.u32 %v4457, 16
      %v4529 = vrot.slane %v4527, 7
      %v4530 = vshll.u32 %v4457, 16
      %v4532 = vor.u32 %v4529, %v4530
      %v4533 = vsel %vm435, %v4525, %v4532
      %v4534 = vrot.slane %v4529, 4
      %v4536 = vshrl.u32 %v4458, 16
      %v4538 = vrot.slane %v4536, 7
      %v4539 = vshll.u32 %v4458, 16
      %v4541 = vor.u32 %v4538, %v4539
      %v4542 = vrot.slane %v4538, 4
      %v4544 = vshrl.u32 %v4459, 16
      %v4546 = vrot.slane %v4544, 7
      %v4547 = vshll.u32 %v4459, 16
      %v4549 = vor.u32 %v4546, %v4547
      %v4550 = vsel %vm435, %v4542, %v4549
      %v4551 = vrot.slane %v4546, 4
      %v4553 = vshrl.u32 %v4460, 16
      %v4555 = vrot.slane %v4553, 7
      %v4556 = vshll.u32 %v4460, 16
      %v4558 = vor.u32 %v4555, %v4556
      %v4559 = vrot.slane %v4555, 4
      %v4561 = vshrl.u32 %v4461, 16
      %v4563 = vrot.slane %v4561, 7
      %v4564 = vshll.u32 %v4461, 16
      %v4566 = vor.u32 %v4563, %v4564
      %v4567 = vsel %vm435, %v4559, %v4566
      %v4568 = vrot.slane %v4563, 4
      %v4570 = vshrl.u32 %v4462, 16
      %v4572 = vrot.slane %v4570, 7
      %v4573 = vshll.u32 %v4462, 16
      %v4575 = vor.u32 %v4572, %v4573
      %v4576 = vrot.slane %v4572, 4
      %v4578 = vshrl.u32 %v4463, 16
      %v4580 = vrot.slane %v4578, 7
      %v4581 = vshll.u32 %v4463, 16
      %v4583 = vor.u32 %v4580, %v4581
      %v4584 = vsel %vm435, %v4576, %v4583
      %v4585 = vrot.slane %v4580, 4
      %v4587 = vshrl.u32 %v4464, 16
      %v4589 = vrot.slane %v4587, 7
      %v4590 = vshll.u32 %v4464, 16
      %v4592 = vor.u32 %v4589, %v4590
      %v4593 = vrot.slane %v4589, 4
      %v4595 = vshrl.u32 %v4465, 16
      %v4597 = vrot.slane %v4595, 7
      %v4598 = vshll.u32 %v4465, 16
      %v4600 = vor.u32 %v4597, %v4598
      %v4601 = vsel %vm435, %v4593, %v4600
      %v4602 = vrot.slane %v4597, 4
      %v4604 = vshrl.u32 %v4466, 16
      %v4606 = vrot.slane %v4604, 7
      %v4607 = vshll.u32 %v4466, 16
      %v4609 = vor.u32 %v4606, %v4607
      %v4610 = vrot.slane %v4606, 4
      %v4612 = vshrl.u32 %v4467, 16
      %v4614 = vrot.slane %v4612, 7
      %v4615 = vshll.u32 %v4467, 16
      %v4617 = vor.u32 %v4614, %v4615
      %v4618 = vsel %vm435, %v4610, %v4617
      %v4619 = vrot.slane %v4614, 4
      %v4621 = vshrl.u32 %v4468, 16
      %v4623 = vrot.slane %v4621, 7
      %v4624 = vshll.u32 %v4468, 16
      %v4626 = vor.u32 %v4623, %v4624
      %v4627 = vrot.slane %v4623, 4
      %v4629 = vshrl.u32 %v4469, 16
      %v4631 = vrot.slane %v4629, 7
      %v4632 = vshll.u32 %v4469, 16
      %v4634 = vor.u32 %v4631, %v4632
      %v4635 = vsel %vm435, %v4627, %v4634
      %v4636 = vrot.slane %v4631, 4
      %v4638 = vshrl.u32 %v4470, 16
      %v4640 = vrot.slane %v4638, 7
      %v4641 = vshll.u32 %v4470, 16
      %v4643 = vor.u32 %v4640, %v4641
      %v4644 = vrot.slane %v4640, 4
      %v4646 = vshrl.u32 %v4471, 16
      %v4648 = vrot.slane %v4646, 7
      %v4649 = vshll.u32 %v4471, 16
      %v4651 = vor.u32 %v4648, %v4649
      %v4652 = vsel %vm435, %v4644, %v4651
      %v4653 = vrot.slane %v4648, 4
      %v4655 = vshrl.u32 %v4472, 16
      %v4657 = vrot.slane %v4655, 7
      %v4658 = vshll.u32 %v4472, 16
      %v4660 = vor.u32 %v4657, %v4658
      %v4661 = vrot.slane %v4657, 4
      %v4663 = vshrl.u32 %v4473, 16
      %v4665 = vrot.slane %v4663, 7
      %v4666 = vshll.u32 %v4473, 16
      %v4668 = vor.u32 %v4665, %v4666
      %v4669 = vsel %vm435, %v4661, %v4668
      %v4670 = vrot.slane %v4665, 4
      %v4672 = vshrl.u32 %v4474, 16
      %v4674 = vrot.slane %v4672, 7
      %v4675 = vshll.u32 %v4474, 16
      %v4677 = vor.u32 %v4674, %v4675
      %v4678 = vrot.slane %v4674, 4
      %v4680 = vshrl.u32 %v4475, 16
      %v4682 = vrot.slane %v4680, 7
      %v4683 = vshll.u32 %v4475, 16
      %v4685 = vor.u32 %v4682, %v4683
      %v4686 = vsel %vm435, %v4678, %v4685
      %v4687 = vrot.slane %v4682, 4
      %v4689 = vshrl.u32 %v4476, 16
      %v4691 = vrot.slane %v4689, 7
      %v4692 = vshll.u32 %v4476, 16
      %v4694 = vor.u32 %v4691, %v4692
      %v4695 = vrot.slane %v4691, 4
      %v4697 = vshrl.u32 %v4477, 16
      %v4699 = vrot.slane %v4697, 7
      %v4700 = vshll.u32 %v4477, 16
      %v4702 = vor.u32 %v4699, %v4700
      %v4703 = vsel %vm435, %v4695, %v4702
      %v4704 = vrot.slane %v4699, 4
      %v4706 = vshrl.u32 %v4478, 16
      %v4708 = vrot.slane %v4706, 7
      %v4709 = vshll.u32 %v4478, 16
      %v4711 = vor.u32 %v4708, %v4709
      %v4712 = vrot.slane %v4708, 4
      %v4714 = vshrl.u32 %v4479, 16
      %v4716 = vrot.slane %v4714, 7
      %v4717 = vshll.u32 %v4479, 16
      %v4719 = vor.u32 %v4716, %v4717
      %v4720 = vsel %vm435, %v4712, %v4719
      %v4721 = vrot.slane %v4716, 4
      %v4723 = vshrl.u32 %v4480, 16
      %v4725 = vrot.slane %v4723, 7
      %v4726 = vshll.u32 %v4480, 16
      %v4728 = vor.u32 %v4725, %v4726
      %v4729 = vrot.slane %v4725, 4
      %v4731 = vshrl.u32 %v4481, 16
      %v4733 = vrot.slane %v4731, 7
      %v4734 = vshll.u32 %v4481, 16
      %v4736 = vor.u32 %v4733, %v4734
      %v4737 = vsel %vm435, %v4729, %v4736
      %v4738 = vrot.slane %v4733, 4
      %v4740 = vshrl.u32 %v4482, 16
      %v4742 = vrot.slane %v4740, 7
      %v4743 = vshll.u32 %v4482, 16
      %v4745 = vor.u32 %v4742, %v4743
      %v4746 = vrot.slane %v4742, 4
      %v4748 = vshrl.u32 %v4483, 16
      %v4750 = vrot.slane %v4748, 7
      %v4751 = vshll.u32 %v4483, 16
      %v4753 = vor.u32 %v4750, %v4751
      %v4754 = vsel %vm435, %v4746, %v4753
      %v4755 = vrot.slane %v4750, 4
      %s4804 = scalar_lea.vmem [#allocation3], 12
      %vm4805 = vcmask 60416
      %vm4806 = vmand %vm4805, %vm346
      %v4807 = vld [vmem:[%s4804] sm:$0xf]
      %v4808 = vsel %vm4806, %v4490, %v4807
      %4809 = vst [vmem:[%s4804] sm:$0xf] %v4808
      %4810 = vst.msk [vmem:[%s4804 + $0x4] sm:$0xf] %vm4332, %v4499
      %v4811 = vld [vmem:[%s4804 + $0x8] sm:$0x1]
      %v4812 = vsel %vm4342, %v4500, %v4811
      %4813 = vst [vmem:[%s4804 + $0x8] sm:$0x1] %v4812
      %v4814 = vld [vmem:[%s4804 + $0xc] sm:$0xf]
      %v4815 = vsel %vm4806, %v4507, %v4814
      %4816 = vst [vmem:[%s4804 + $0xc] sm:$0xf] %v4815
      %4817 = vst.msk [vmem:[%s4804 + $0x10] sm:$0xf] %vm4332, %v4516
      %v4818 = vld [vmem:[%s4804 + $0x14] sm:$0x1]
      %v4819 = vsel %vm4342, %v4517, %v4818
      %4820 = vst [vmem:[%s4804 + $0x14] sm:$0x1] %v4819
      %v4821 = vld [vmem:[%s4804 + $0x18] sm:$0xf]
      %v4822 = vsel %vm4806, %v4524, %v4821
      %4823 = vst [vmem:[%s4804 + $0x18] sm:$0xf] %v4822
      %4824 = vst.msk [vmem:[%s4804 + $0x1c] sm:$0xf] %vm4332, %v4533
      %v4825 = vld [vmem:[%s4804 + $0x20] sm:$0x1]
      %v4826 = vsel %vm4342, %v4534, %v4825
      %4827 = vst [vmem:[%s4804 + $0x20] sm:$0x1] %v4826
      %v4828 = vld [vmem:[%s4804 + $0x24] sm:$0xf]
      %v4829 = vsel %vm4806, %v4541, %v4828
      %4830 = vst [vmem:[%s4804 + $0x24] sm:$0xf] %v4829
      %4831 = vst.msk [vmem:[%s4804 + $0x28] sm:$0xf] %vm4332, %v4550
      %v4832 = vld [vmem:[%s4804 + $0x2c] sm:$0x1]
      %v4833 = vsel %vm4342, %v4551, %v4832
      %4834 = vst [vmem:[%s4804 + $0x2c] sm:$0x1] %v4833
      %v4835 = vld [vmem:[%s4804 + $0x30] sm:$0xf]
      %v4836 = vsel %vm4806, %v4558, %v4835
      %4837 = vst [vmem:[%s4804 + $0x30] sm:$0xf] %v4836
      %4838 = vst.msk [vmem:[%s4804 + $0x34] sm:$0xf] %vm4332, %v4567
      %v4839 = vld [vmem:[%s4804 + $0x38] sm:$0x1]
      %v4840 = vsel %vm4342, %v4568, %v4839
      %4841 = vst [vmem:[%s4804 + $0x38] sm:$0x1] %v4840
      %v4842 = vld [vmem:[%s4804 + $0x3c] sm:$0xf]
      %v4843 = vsel %vm4806, %v4575, %v4842
      %4844 = vst [vmem:[%s4804 + $0x3c] sm:$0xf] %v4843
      %4845 = vst.msk [vmem:[%s4804 + $0x40] sm:$0xf] %vm4332, %v4584
      %v4846 = vld [vmem:[%s4804 + $0x44] sm:$0x1]
      %v4847 = vsel %vm4342, %v4585, %v4846
      %4848 = vst [vmem:[%s4804 + $0x44] sm:$0x1] %v4847
      %v4849 = vld [vmem:[%s4804 + $0x48] sm:$0xf]
      %v4850 = vsel %vm4806, %v4592, %v4849
      %4851 = vst [vmem:[%s4804 + $0x48] sm:$0xf] %v4850
      %4852 = vst.msk [vmem:[%s4804 + $0x4c] sm:$0xf] %vm4332, %v4601
      %v4853 = vld [vmem:[%s4804 + $0x50] sm:$0x1]
      %v4854 = vsel %vm4342, %v4602, %v4853
      %4855 = vst [vmem:[%s4804 + $0x50] sm:$0x1] %v4854
      %v4856 = vld [vmem:[%s4804 + $0x54] sm:$0xf]
      %v4857 = vsel %vm4806, %v4609, %v4856
      %4858 = vst [vmem:[%s4804 + $0x54] sm:$0xf] %v4857
      %4859 = vst.msk [vmem:[%s4804 + $0x58] sm:$0xf] %vm4332, %v4618
      %v4860 = vld [vmem:[%s4804 + $0x5c] sm:$0x1]
      %v4861 = vsel %vm4342, %v4619, %v4860
      %4862 = vst [vmem:[%s4804 + $0x5c] sm:$0x1] %v4861
      %v4863 = vld [vmem:[%s4804 + $0x60] sm:$0xf]
      %v4864 = vsel %vm4806, %v4626, %v4863
      %4865 = vst [vmem:[%s4804 + $0x60] sm:$0xf] %v4864
      %4866 = vst.msk [vmem:[%s4804 + $0x64] sm:$0xf] %vm4332, %v4635
      %v4867 = vld [vmem:[%s4804 + $0x68] sm:$0x1]
      %v4868 = vsel %vm4342, %v4636, %v4867
      %4869 = vst [vmem:[%s4804 + $0x68] sm:$0x1] %v4868
      %v4870 = vld [vmem:[%s4804 + $0x6c] sm:$0xf]
      %v4871 = vsel %vm4806, %v4643, %v4870
      %4872 = vst [vmem:[%s4804 + $0x6c] sm:$0xf] %v4871
      %4873 = vst.msk [vmem:[%s4804 + $0x70] sm:$0xf] %vm4332, %v4652
      %v4874 = vld [vmem:[%s4804 + $0x74] sm:$0x1]
      %v4875 = vsel %vm4342, %v4653, %v4874
      %4876 = vst [vmem:[%s4804 + $0x74] sm:$0x1] %v4875
      %v4877 = vld [vmem:[%s4804 + $0x78] sm:$0xf]
      %v4878 = vsel %vm4806, %v4660, %v4877
      %4879 = vst [vmem:[%s4804 + $0x78] sm:$0xf] %v4878
      %4880 = vst.msk [vmem:[%s4804 + $0x7c] sm:$0xf] %vm4332, %v4669
      %v4881 = vld [vmem:[%s4804 + $0x80] sm:$0x1]
      %v4882 = vsel %vm4342, %v4670, %v4881
      %4883 = vst [vmem:[%s4804 + $0x80] sm:$0x1] %v4882
      %v4884 = vld [vmem:[%s4804 + $0x84] sm:$0xf]
      %v4885 = vsel %vm4806, %v4677, %v4884
      %4886 = vst [vmem:[%s4804 + $0x84] sm:$0xf] %v4885
      %4887 = vst.msk [vmem:[%s4804 + $0x88] sm:$0xf] %vm4332, %v4686
      %v4888 = vld [vmem:[%s4804 + $0x8c] sm:$0x1]
      %v4889 = vsel %vm4342, %v4687, %v4888
      %4890 = vst [vmem:[%s4804 + $0x8c] sm:$0x1] %v4889
      %v4891 = vld [vmem:[%s4804 + $0x90] sm:$0xf]
      %v4892 = vsel %vm4806, %v4694, %v4891
      %4893 = vst [vmem:[%s4804 + $0x90] sm:$0xf] %v4892
      %4894 = vst.msk [vmem:[%s4804 + $0x94] sm:$0xf] %vm4332, %v4703
      %v4895 = vld [vmem:[%s4804 + $0x98] sm:$0x1]
      %v4896 = vsel %vm4342, %v4704, %v4895
      %4897 = vst [vmem:[%s4804 + $0x98] sm:$0x1] %v4896
      %v4898 = vld [vmem:[%s4804 + $0x9c] sm:$0xf]
      %v4899 = vsel %vm4806, %v4711, %v4898
      %4900 = vst [vmem:[%s4804 + $0x9c] sm:$0xf] %v4899
      %4901 = vst.msk [vmem:[%s4804 + $0xa0] sm:$0xf] %vm4332, %v4720
      %v4902 = vld [vmem:[%s4804 + $0xa4] sm:$0x1]
      %v4903 = vsel %vm4342, %v4721, %v4902
      %4904 = vst [vmem:[%s4804 + $0xa4] sm:$0x1] %v4903
      %v4905 = vld [vmem:[%s4804 + $0xa8] sm:$0xf]
      %v4906 = vsel %vm4806, %v4728, %v4905
      %4907 = vst [vmem:[%s4804 + $0xa8] sm:$0xf] %v4906
      %4908 = vst.msk [vmem:[%s4804 + $0xac] sm:$0xf] %vm4332, %v4737
      %v4909 = vld [vmem:[%s4804 + $0xb0] sm:$0x1]
      %v4910 = vsel %vm4342, %v4738, %v4909
      %4911 = vst [vmem:[%s4804 + $0xb0] sm:$0x1] %v4910
      %v4912 = vld [vmem:[%s4804 + $0xb4] sm:$0xf]
      %v4913 = vsel %vm4806, %v4745, %v4912
      %4914 = vst [vmem:[%s4804 + $0xb4] sm:$0xf] %v4913
      %4915 = vst.msk [vmem:[%s4804 + $0xb8] sm:$0xf] %vm4332, %v4754
      %v4916 = vld [vmem:[%s4804 + $0xbc] sm:$0x1]
      %v4917 = vsel %vm4342, %v4755, %v4916
      %4918 = vst [vmem:[%s4804 + $0xbc] sm:$0x1] %v4917
      %v4919 = vld [vmem:[#allocation3] sm:$0xf]
      %v4920 = vld [vmem:[#allocation3 + $0x4] sm:$0xf]
      %v4921 = vld [vmem:[#allocation3 + $0xc] sm:$0xf]
      %v4922 = vld [vmem:[#allocation3 + $0x10] sm:$0xf]
      %v4923 = vld [vmem:[#allocation3 + $0x18] sm:$0xf]
      %v4924 = vld [vmem:[#allocation3 + $0x1c] sm:$0xf]
      %v4925 = vld [vmem:[#allocation3 + $0x24] sm:$0xf]
      %v4926 = vld [vmem:[#allocation3 + $0x28] sm:$0xf]
      %v4927 = vld [vmem:[#allocation3 + $0x30] sm:$0xf]
      %v4928 = vld [vmem:[#allocation3 + $0x34] sm:$0xf]
      %v4929 = vld [vmem:[#allocation3 + $0x3c] sm:$0xf]
      %v4930 = vld [vmem:[#allocation3 + $0x40] sm:$0xf]
      %v4931 = vld [vmem:[#allocation3 + $0x48] sm:$0xf]
      %v4932 = vld [vmem:[#allocation3 + $0x4c] sm:$0xf]
      %v4933 = vld [vmem:[#allocation3 + $0x54] sm:$0xf]
      %v4934 = vld [vmem:[#allocation3 + $0x58] sm:$0xf]
      %v4935 = vld [vmem:[#allocation3 + $0x60] sm:$0xf]
      %v4936 = vld [vmem:[#allocation3 + $0x64] sm:$0xf]
      %v4937 = vld [vmem:[#allocation3 + $0x6c] sm:$0xf]
      %v4938 = vld [vmem:[#allocation3 + $0x70] sm:$0xf]
      %v4939 = vld [vmem:[#allocation3 + $0x78] sm:$0xf]
      %v4940 = vld [vmem:[#allocation3 + $0x7c] sm:$0xf]
      %v4941 = vld [vmem:[#allocation3 + $0x84] sm:$0xf]
      %v4942 = vld [vmem:[#allocation3 + $0x88] sm:$0xf]
      %v4943 = vld [vmem:[#allocation3 + $0x90] sm:$0xf]
      %v4944 = vld [vmem:[#allocation3 + $0x94] sm:$0xf]
      %v4945 = vld [vmem:[#allocation3 + $0x9c] sm:$0xf]
      %v4946 = vld [vmem:[#allocation3 + $0xa0] sm:$0xf]
      %v4947 = vld [vmem:[#allocation3 + $0xa8] sm:$0xf]
      %v4948 = vld [vmem:[#allocation3 + $0xac] sm:$0xf]
      %v4949 = vld [vmem:[#allocation3 + $0xb4] sm:$0xf]
      %v4950 = vld [vmem:[#allocation3 + $0xb8] sm:$0xf]
      %4951 = vst.msk [vmem:[#allocation4] sm:$0xf] %vm4332, %v4919
      %4952 = vst.msk [vmem:[#allocation4 + $0x4] sm:$0xf] %vm4332, %v4920
      %4953 = vst.msk [vmem:[#allocation4 + $0x8] sm:$0xf] %vm4332, %v4921
      %4954 = vst.msk [vmem:[#allocation4 + $0xc] sm:$0xf] %vm4332, %v4922
      %4955 = vst.msk [vmem:[#allocation4 + $0x10] sm:$0xf] %vm4332, %v4923
      %4956 = vst.msk [vmem:[#allocation4 + $0x14] sm:$0xf] %vm4332, %v4924
      %4957 = vst.msk [vmem:[#allocation4 + $0x18] sm:$0xf] %vm4332, %v4925
      %4958 = vst.msk [vmem:[#allocation4 + $0x1c] sm:$0xf] %vm4332, %v4926
      %4959 = vst.msk [vmem:[#allocation4 + $0x20] sm:$0xf] %vm4332, %v4927
      %4960 = vst.msk [vmem:[#allocation4 + $0x24] sm:$0xf] %vm4332, %v4928
      %4961 = vst.msk [vmem:[#allocation4 + $0x28] sm:$0xf] %vm4332, %v4929
      %4962 = vst.msk [vmem:[#allocation4 + $0x2c] sm:$0xf] %vm4332, %v4930
      %4963 = vst.msk [vmem:[#allocation4 + $0x30] sm:$0xf] %vm4332, %v4931
      %4964 = vst.msk [vmem:[#allocation4 + $0x34] sm:$0xf] %vm4332, %v4932
      %4965 = vst.msk [vmem:[#allocation4 + $0x38] sm:$0xf] %vm4332, %v4933
      %4966 = vst.msk [vmem:[#allocation4 + $0x3c] sm:$0xf] %vm4332, %v4934
      %4967 = vst.msk [vmem:[#allocation4 + $0x40] sm:$0xf] %vm4332, %v4935
      %4968 = vst.msk [vmem:[#allocation4 + $0x44] sm:$0xf] %vm4332, %v4936
      %4969 = vst.msk [vmem:[#allocation4 + $0x48] sm:$0xf] %vm4332, %v4937
      %4970 = vst.msk [vmem:[#allocation4 + $0x4c] sm:$0xf] %vm4332, %v4938
      %4971 = vst.msk [vmem:[#allocation4 + $0x50] sm:$0xf] %vm4332, %v4939
      %4972 = vst.msk [vmem:[#allocation4 + $0x54] sm:$0xf] %vm4332, %v4940
      %4973 = vst.msk [vmem:[#allocation4 + $0x58] sm:$0xf] %vm4332, %v4941
      %4974 = vst.msk [vmem:[#allocation4 + $0x5c] sm:$0xf] %vm4332, %v4942
      %4975 = vst.msk [vmem:[#allocation4 + $0x60] sm:$0xf] %vm4332, %v4943
      %4976 = vst.msk [vmem:[#allocation4 + $0x64] sm:$0xf] %vm4332, %v4944
      %4977 = vst.msk [vmem:[#allocation4 + $0x68] sm:$0xf] %vm4332, %v4945
      %4978 = vst.msk [vmem:[#allocation4 + $0x6c] sm:$0xf] %vm4332, %v4946
      %4979 = vst.msk [vmem:[#allocation4 + $0x70] sm:$0xf] %vm4332, %v4947
      %4980 = vst.msk [vmem:[#allocation4 + $0x74] sm:$0xf] %vm4332, %v4948
      %4981 = vst.msk [vmem:[#allocation4 + $0x78] sm:$0xf] %vm4332, %v4949
      %4982 = vst.msk [vmem:[#allocation4 + $0x7c] sm:$0xf] %vm4332, %v4950
      %v4983 = vld [vmem:[#allocation3] sm:$0xf]
      %v4984 = vld [vmem:[#allocation3 + $0x4] sm:$0xf]
      %v4985 = vld [vmem:[#allocation3 + $0x8] sm:$0x1]
      %v4986 = vld [vmem:[#allocation3 + $0xc] sm:$0xf]
      %v4987 = vld [vmem:[#allocation3 + $0x10] sm:$0xf]
      %v4988 = vld [vmem:[#allocation3 + $0x14] sm:$0x1]
      %v4989 = vld [vmem:[#allocation3 + $0x18] sm:$0xf]
      %v4990 = vld [vmem:[#allocation3 + $0x1c] sm:$0xf]
      %v4991 = vld [vmem:[#allocation3 + $0x20] sm:$0x1]
      %v4992 = vld [vmem:[#allocation3 + $0x24] sm:$0xf]
      %v4993 = vld [vmem:[#allocation3 + $0x28] sm:$0xf]
      %v4994 = vld [vmem:[#allocation3 + $0x2c] sm:$0x1]
      %v4995 = vld [vmem:[#allocation3 + $0x30] sm:$0xf]
      %v4996 = vld [vmem:[#allocation3 + $0x34] sm:$0xf]
      %v4997 = vld [vmem:[#allocation3 + $0x38] sm:$0x1]
      %v4998 = vld [vmem:[#allocation3 + $0x3c] sm:$0xf]
      %v4999 = vld [vmem:[#allocation3 + $0x40] sm:$0xf]
      %v5000 = vld [vmem:[#allocation3 + $0x44] sm:$0x1]
      %v5001 = vld [vmem:[#allocation3 + $0x48] sm:$0xf]
      %v5002 = vld [vmem:[#allocation3 + $0x4c] sm:$0xf]
      %v5003 = vld [vmem:[#allocation3 + $0x50] sm:$0x1]
      %v5004 = vld [vmem:[#allocation3 + $0x54] sm:$0xf]
      %v5005 = vld [vmem:[#allocation3 + $0x58] sm:$0xf]
      %v5006 = vld [vmem:[#allocation3 + $0x5c] sm:$0x1]
      %v5007 = vld [vmem:[#allocation3 + $0x60] sm:$0xf]
      %v5008 = vld [vmem:[#allocation3 + $0x64] sm:$0xf]
      %v5009 = vld [vmem:[#allocation3 + $0x68] sm:$0x1]
      %v5010 = vld [vmem:[#allocation3 + $0x6c] sm:$0xf]
      %v5011 = vld [vmem:[#allocation3 + $0x70] sm:$0xf]
      %v5012 = vld [vmem:[#allocation3 + $0x74] sm:$0x1]
      %v5013 = vld [vmem:[#allocation3 + $0x78] sm:$0xf]
      %v5014 = vld [vmem:[#allocation3 + $0x7c] sm:$0xf]
      %v5015 = vld [vmem:[#allocation3 + $0x80] sm:$0x1]
      %v5016 = vld [vmem:[#allocation3 + $0x84] sm:$0xf]
      %v5017 = vld [vmem:[#allocation3 + $0x88] sm:$0xf]
      %v5018 = vld [vmem:[#allocation3 + $0x8c] sm:$0x1]
      %v5019 = vld [vmem:[#allocation3 + $0x90] sm:$0xf]
      %v5020 = vld [vmem:[#allocation3 + $0x94] sm:$0xf]
      %v5021 = vld [vmem:[#allocation3 + $0x98] sm:$0x1]
      %v5022 = vld [vmem:[#allocation3 + $0x9c] sm:$0xf]
      %v5023 = vld [vmem:[#allocation3 + $0xa0] sm:$0xf]
      %v5024 = vld [vmem:[#allocation3 + $0xa4] sm:$0x1]
      %v5025 = vld [vmem:[#allocation3 + $0xa8] sm:$0xf]
      %v5026 = vld [vmem:[#allocation3 + $0xac] sm:$0xf]
      %v5027 = vld [vmem:[#allocation3 + $0xb0] sm:$0x1]
      %v5028 = vld [vmem:[#allocation3 + $0xb4] sm:$0xf]
      %v5029 = vld [vmem:[#allocation3 + $0xb8] sm:$0xf]
      %v5030 = vld [vmem:[#allocation3 + $0xbc] sm:$0x1]
      %v5032 = vshrl.u32 %v4983, 16
      %v5034 = vrot.slane %v5032, 4
      %v5035 = vshll.u32 %v4983, 16
      %v5037 = vrot.slane %v5035, 5
      %v5038 = vor.u32 %v5034, %v5037
      %v5039 = vrot.slane %v5038, 4
      %v5041 = vshll.u32 %v4984, 16
      %v5043 = vrot.slane %v5041, 5
      %v5044 = vsel %vm985, %v5039, %v5043
      %v5045 = vshrl.u32 %v4984, 16
      %v5047 = vrot.slane %v5045, 4
      %v5048 = vor.u32 %v5047, %v5043
      %v5049 = vrot.slane %v5048, 4
      %v5051 = vshll.u32 %v4985, 16
      %v5053 = vrot.slane %v5051, 5
      %v5054 = vsel %vm985, %v5049, %v5053
      %v5056 = vshrl.u32 %v4986, 16
      %v5058 = vrot.slane %v5056, 4
      %v5059 = vshll.u32 %v4986, 16
      %v5061 = vrot.slane %v5059, 5
      %v5062 = vor.u32 %v5058, %v5061
      %v5063 = vrot.slane %v5062, 4
      %v5065 = vshll.u32 %v4987, 16
      %v5067 = vrot.slane %v5065, 5
      %v5068 = vsel %vm985, %v5063, %v5067
      %v5069 = vshrl.u32 %v4987, 16
      %v5071 = vrot.slane %v5069, 4
      %v5072 = vor.u32 %v5071, %v5067
      %v5073 = vrot.slane %v5072, 4
      %v5075 = vshll.u32 %v4988, 16
      %v5077 = vrot.slane %v5075, 5
      %v5078 = vsel %vm985, %v5073, %v5077
      %v5080 = vshrl.u32 %v4989, 16
      %v5082 = vrot.slane %v5080, 4
      %v5083 = vshll.u32 %v4989, 16
      %v5085 = vrot.slane %v5083, 5
      %v5086 = vor.u32 %v5082, %v5085
      %v5087 = vrot.slane %v5086, 4
      %v5089 = vshll.u32 %v4990, 16
      %v5091 = vrot.slane %v5089, 5
      %v5092 = vsel %vm985, %v5087, %v5091
      %v5093 = vshrl.u32 %v4990, 16
      %v5095 = vrot.slane %v5093, 4
      %v5096 = vor.u32 %v5095, %v5091
      %v5097 = vrot.slane %v5096, 4
      %v5099 = vshll.u32 %v4991, 16
      %v5101 = vrot.slane %v5099, 5
      %v5102 = vsel %vm985, %v5097, %v5101
      %v5104 = vshrl.u32 %v4992, 16
      %v5106 = vrot.slane %v5104, 4
      %v5107 = vshll.u32 %v4992, 16
      %v5109 = vrot.slane %v5107, 5
      %v5110 = vor.u32 %v5106, %v5109
      %v5111 = vrot.slane %v5110, 4
      %v5113 = vshll.u32 %v4993, 16
      %v5115 = vrot.slane %v5113, 5
      %v5116 = vsel %vm985, %v5111, %v5115
      %v5117 = vshrl.u32 %v4993, 16
      %v5119 = vrot.slane %v5117, 4
      %v5120 = vor.u32 %v5119, %v5115
      %v5121 = vrot.slane %v5120, 4
      %v5123 = vshll.u32 %v4994, 16
      %v5125 = vrot.slane %v5123, 5
      %v5126 = vsel %vm985, %v5121, %v5125
      %v5128 = vshrl.u32 %v4995, 16
      %v5130 = vrot.slane %v5128, 4
      %v5131 = vshll.u32 %v4995, 16
      %v5133 = vrot.slane %v5131, 5
      %v5134 = vor.u32 %v5130, %v5133
      %v5135 = vrot.slane %v5134, 4
      %v5137 = vshll.u32 %v4996, 16
      %v5139 = vrot.slane %v5137, 5
      %v5140 = vsel %vm985, %v5135, %v5139
      %v5141 = vshrl.u32 %v4996, 16
      %v5143 = vrot.slane %v5141, 4
      %v5144 = vor.u32 %v5143, %v5139
      %v5145 = vrot.slane %v5144, 4
      %v5147 = vshll.u32 %v4997, 16
      %v5149 = vrot.slane %v5147, 5
      %v5150 = vsel %vm985, %v5145, %v5149
      %v5152 = vshrl.u32 %v4998, 16
      %v5154 = vrot.slane %v5152, 4
      %v5155 = vshll.u32 %v4998, 16
      %v5157 = vrot.slane %v5155, 5
      %v5158 = vor.u32 %v5154, %v5157
      %v5159 = vrot.slane %v5158, 4
      %v5161 = vshll.u32 %v4999, 16
      %v5163 = vrot.slane %v5161, 5
      %v5164 = vsel %vm985, %v5159, %v5163
      %v5165 = vshrl.u32 %v4999, 16
      %v5167 = vrot.slane %v5165, 4
      %v5168 = vor.u32 %v5167, %v5163
      %v5169 = vrot.slane %v5168, 4
      %v5171 = vshll.u32 %v5000, 16
      %v5173 = vrot.slane %v5171, 5
      %v5174 = vsel %vm985, %v5169, %v5173
      %v5176 = vshrl.u32 %v5001, 16
      %v5178 = vrot.slane %v5176, 4
      %v5179 = vshll.u32 %v5001, 16
      %v5181 = vrot.slane %v5179, 5
      %v5182 = vor.u32 %v5178, %v5181
      %v5183 = vrot.slane %v5182, 4
      %v5185 = vshll.u32 %v5002, 16
      %v5187 = vrot.slane %v5185, 5
      %v5188 = vsel %vm985, %v5183, %v5187
      %v5189 = vshrl.u32 %v5002, 16
      %v5191 = vrot.slane %v5189, 4
      %v5192 = vor.u32 %v5191, %v5187
      %v5193 = vrot.slane %v5192, 4
      %v5195 = vshll.u32 %v5003, 16
      %v5197 = vrot.slane %v5195, 5
      %v5198 = vsel %vm985, %v5193, %v5197
      %v5200 = vshrl.u32 %v5004, 16
      %v5202 = vrot.slane %v5200, 4
      %v5203 = vshll.u32 %v5004, 16
      %v5205 = vrot.slane %v5203, 5
      %v5206 = vor.u32 %v5202, %v5205
      %v5207 = vrot.slane %v5206, 4
      %v5209 = vshll.u32 %v5005, 16
      %v5211 = vrot.slane %v5209, 5
      %v5212 = vsel %vm985, %v5207, %v5211
      %v5213 = vshrl.u32 %v5005, 16
      %v5215 = vrot.slane %v5213, 4
      %v5216 = vor.u32 %v5215, %v5211
      %v5217 = vrot.slane %v5216, 4
      %v5219 = vshll.u32 %v5006, 16
      %v5221 = vrot.slane %v5219, 5
      %v5222 = vsel %vm985, %v5217, %v5221
      %v5224 = vshrl.u32 %v5007, 16
      %v5226 = vrot.slane %v5224, 4
      %v5227 = vshll.u32 %v5007, 16
      %v5229 = vrot.slane %v5227, 5
      %v5230 = vor.u32 %v5226, %v5229
      %v5231 = vrot.slane %v5230, 4
      %v5233 = vshll.u32 %v5008, 16
      %v5235 = vrot.slane %v5233, 5
      %v5236 = vsel %vm985, %v5231, %v5235
      %v5237 = vshrl.u32 %v5008, 16
      %v5239 = vrot.slane %v5237, 4
      %v5240 = vor.u32 %v5239, %v5235
      %v5241 = vrot.slane %v5240, 4
      %v5243 = vshll.u32 %v5009, 16
      %v5245 = vrot.slane %v5243, 5
      %v5246 = vsel %vm985, %v5241, %v5245
      %v5248 = vshrl.u32 %v5010, 16
      %v5250 = vrot.slane %v5248, 4
      %v5251 = vshll.u32 %v5010, 16
      %v5253 = vrot.slane %v5251, 5
      %v5254 = vor.u32 %v5250, %v5253
      %v5255 = vrot.slane %v5254, 4
      %v5257 = vshll.u32 %v5011, 16
      %v5259 = vrot.slane %v5257, 5
      %v5260 = vsel %vm985, %v5255, %v5259
      %v5261 = vshrl.u32 %v5011, 16
      %v5263 = vrot.slane %v5261, 4
      %v5264 = vor.u32 %v5263, %v5259
      %v5265 = vrot.slane %v5264, 4
      %v5267 = vshll.u32 %v5012, 16
      %v5269 = vrot.slane %v5267, 5
      %v5270 = vsel %vm985, %v5265, %v5269
      %v5272 = vshrl.u32 %v5013, 16
      %v5274 = vrot.slane %v5272, 4
      %v5275 = vshll.u32 %v5013, 16
      %v5277 = vrot.slane %v5275, 5
      %v5278 = vor.u32 %v5274, %v5277
      %v5279 = vrot.slane %v5278, 4
      %v5281 = vshll.u32 %v5014, 16
      %v5283 = vrot.slane %v5281, 5
      %v5284 = vsel %vm985, %v5279, %v5283
      %v5285 = vshrl.u32 %v5014, 16
      %v5287 = vrot.slane %v5285, 4
      %v5288 = vor.u32 %v5287, %v5283
      %v5289 = vrot.slane %v5288, 4
      %v5291 = vshll.u32 %v5015, 16
      %v5293 = vrot.slane %v5291, 5
      %v5294 = vsel %vm985, %v5289, %v5293
      %v5296 = vshrl.u32 %v5016, 16
      %v5298 = vrot.slane %v5296, 4
      %v5299 = vshll.u32 %v5016, 16
      %v5301 = vrot.slane %v5299, 5
      %v5302 = vor.u32 %v5298, %v5301
      %v5303 = vrot.slane %v5302, 4
      %v5305 = vshll.u32 %v5017, 16
      %v5307 = vrot.slane %v5305, 5
      %v5308 = vsel %vm985, %v5303, %v5307
      %v5309 = vshrl.u32 %v5017, 16
      %v5311 = vrot.slane %v5309, 4
      %v5312 = vor.u32 %v5311, %v5307
      %v5313 = vrot.slane %v5312, 4
      %v5315 = vshll.u32 %v5018, 16
      %v5317 = vrot.slane %v5315, 5
      %v5318 = vsel %vm985, %v5313, %v5317
      %v5320 = vshrl.u32 %v5019, 16
      %v5322 = vrot.slane %v5320, 4
      %v5323 = vshll.u32 %v5019, 16
      %v5325 = vrot.slane %v5323, 5
      %v5326 = vor.u32 %v5322, %v5325
      %v5327 = vrot.slane %v5326, 4
      %v5329 = vshll.u32 %v5020, 16
      %v5331 = vrot.slane %v5329, 5
      %v5332 = vsel %vm985, %v5327, %v5331
      %v5333 = vshrl.u32 %v5020, 16
      %v5335 = vrot.slane %v5333, 4
      %v5336 = vor.u32 %v5335, %v5331
      %v5337 = vrot.slane %v5336, 4
      %v5339 = vshll.u32 %v5021, 16
      %v5341 = vrot.slane %v5339, 5
      %v5342 = vsel %vm985, %v5337, %v5341
      %v5344 = vshrl.u32 %v5022, 16
      %v5346 = vrot.slane %v5344, 4
      %v5347 = vshll.u32 %v5022, 16
      %v5349 = vrot.slane %v5347, 5
      %v5350 = vor.u32 %v5346, %v5349
      %v5351 = vrot.slane %v5350, 4
      %v5353 = vshll.u32 %v5023, 16
      %v5355 = vrot.slane %v5353, 5
      %v5356 = vsel %vm985, %v5351, %v5355
      %v5357 = vshrl.u32 %v5023, 16
      %v5359 = vrot.slane %v5357, 4
      %v5360 = vor.u32 %v5359, %v5355
      %v5361 = vrot.slane %v5360, 4
      %v5363 = vshll.u32 %v5024, 16
      %v5365 = vrot.slane %v5363, 5
      %v5366 = vsel %vm985, %v5361, %v5365
      %v5368 = vshrl.u32 %v5025, 16
      %v5370 = vrot.slane %v5368, 4
      %v5371 = vshll.u32 %v5025, 16
      %v5373 = vrot.slane %v5371, 5
      %v5374 = vor.u32 %v5370, %v5373
      %v5375 = vrot.slane %v5374, 4
      %v5377 = vshll.u32 %v5026, 16
      %v5379 = vrot.slane %v5377, 5
      %v5380 = vsel %vm985, %v5375, %v5379
      %v5381 = vshrl.u32 %v5026, 16
      %v5383 = vrot.slane %v5381, 4
      %v5384 = vor.u32 %v5383, %v5379
      %v5385 = vrot.slane %v5384, 4
      %v5387 = vshll.u32 %v5027, 16
      %v5389 = vrot.slane %v5387, 5
      %v5390 = vsel %vm985, %v5385, %v5389
      %v5392 = vshrl.u32 %v5028, 16
      %v5394 = vrot.slane %v5392, 4
      %v5395 = vshll.u32 %v5028, 16
      %v5397 = vrot.slane %v5395, 5
      %v5398 = vor.u32 %v5394, %v5397
      %v5399 = vrot.slane %v5398, 4
      %v5401 = vshll.u32 %v5029, 16
      %v5403 = vrot.slane %v5401, 5
      %v5404 = vsel %vm985, %v5399, %v5403
      %v5405 = vshrl.u32 %v5029, 16
      %v5407 = vrot.slane %v5405, 4
      %v5408 = vor.u32 %v5407, %v5403
      %v5409 = vrot.slane %v5408, 4
      %v5411 = vshll.u32 %v5030, 16
      %v5413 = vrot.slane %v5411, 5
      %v5414 = vsel %vm985, %v5409, %v5413
      %5415 = vrot.lane.b32.xlu0 %v5044, 8
      %v5416 = vpop.permute.xlu0 %5415
      %5417 = vrot.lane.b32.xlu0 %v5054, 8
      %v5418 = vpop.permute.xlu0 %5417
      %5419 = vrot.lane.b32.xlu0 %v5068, 8
      %v5420 = vpop.permute.xlu0 %5419
      %5421 = vrot.lane.b32.xlu0 %v5078, 8
      %v5422 = vpop.permute.xlu0 %5421
      %5423 = vrot.lane.b32.xlu0 %v5092, 8
      %v5424 = vpop.permute.xlu0 %5423
      %5425 = vrot.lane.b32.xlu0 %v5102, 8
      %v5426 = vpop.permute.xlu0 %5425
      %5427 = vrot.lane.b32.xlu0 %v5116, 8
      %v5428 = vpop.permute.xlu0 %5427
      %5429 = vrot.lane.b32.xlu0 %v5126, 8
      %v5430 = vpop.permute.xlu0 %5429
      %5431 = vrot.lane.b32.xlu0 %v5140, 8
      %v5432 = vpop.permute.xlu0 %5431
      %5433 = vrot.lane.b32.xlu0 %v5150, 8
      %v5434 = vpop.permute.xlu0 %5433
      %5435 = vrot.lane.b32.xlu0 %v5164, 8
      %v5436 = vpop.permute.xlu0 %5435
      %5437 = vrot.lane.b32.xlu0 %v5174, 8
      %v5438 = vpop.permute.xlu0 %5437
      %5439 = vrot.lane.b32.xlu0 %v5188, 8
      %v5440 = vpop.permute.xlu0 %5439
      %5441 = vrot.lane.b32.xlu0 %v5198, 8
      %v5442 = vpop.permute.xlu0 %5441
      %5443 = vrot.lane.b32.xlu0 %v5212, 8
      %v5444 = vpop.permute.xlu0 %5443
      %5445 = vrot.lane.b32.xlu0 %v5222, 8
      %v5446 = vpop.permute.xlu0 %5445
      %5447 = vrot.lane.b32.xlu0 %v5236, 8
      %v5448 = vpop.permute.xlu0 %5447
      %5449 = vrot.lane.b32.xlu0 %v5246, 8
      %v5450 = vpop.permute.xlu0 %5449
      %5451 = vrot.lane.b32.xlu0 %v5260, 8
      %v5452 = vpop.permute.xlu0 %5451
      %5453 = vrot.lane.b32.xlu0 %v5270, 8
      %v5454 = vpop.permute.xlu0 %5453
      %5455 = vrot.lane.b32.xlu0 %v5284, 8
      %v5456 = vpop.permute.xlu0 %5455
      %5457 = vrot.lane.b32.xlu0 %v5294, 8
      %v5458 = vpop.permute.xlu0 %5457
      %5459 = vrot.lane.b32.xlu0 %v5308, 8
      %v5460 = vpop.permute.xlu0 %5459
      %5461 = vrot.lane.b32.xlu0 %v5318, 8
      %v5462 = vpop.permute.xlu0 %5461
      %5463 = vrot.lane.b32.xlu0 %v5332, 8
      %v5464 = vpop.permute.xlu0 %5463
      %5465 = vrot.lane.b32.xlu0 %v5342, 8
      %v5466 = vpop.permute.xlu0 %5465
      %5467 = vrot.lane.b32.xlu0 %v5356, 8
      %v5468 = vpop.permute.xlu0 %5467
      %5469 = vrot.lane.b32.xlu0 %v5366, 8
      %v5470 = vpop.permute.xlu0 %5469
      %5471 = vrot.lane.b32.xlu0 %v5380, 8
      %v5472 = vpop.permute.xlu0 %5471
      %5473 = vrot.lane.b32.xlu0 %v5390, 8
      %v5474 = vpop.permute.xlu0 %5473
      %5475 = vrot.lane.b32.xlu0 %v5404, 8
      %v5476 = vpop.permute.xlu0 %5475
      %5477 = vrot.lane.b32.xlu0 %v5414, 8
      %v5478 = vpop.permute.xlu0 %5477
      %vm5511 = vcmask 126016
      %5512 = vst.msk [vmem:[#allocation4] sm:$0xf] %vm5511, %v5416
      %5513 = vst.msk [vmem:[#allocation4 + $0x4] sm:$0xf] %vm5511, %v5418
      %5514 = vst.msk [vmem:[#allocation4 + $0x8] sm:$0xf] %vm5511, %v5420
      %5515 = vst.msk [vmem:[#allocation4 + $0xc] sm:$0xf] %vm5511, %v5422
      %5516 = vst.msk [vmem:[#allocation4 + $0x10] sm:$0xf] %vm5511, %v5424
      %5517 = vst.msk [vmem:[#allocation4 + $0x14] sm:$0xf] %vm5511, %v5426
      %5518 = vst.msk [vmem:[#allocation4 + $0x18] sm:$0xf] %vm5511, %v5428
      %5519 = vst.msk [vmem:[#allocation4 + $0x1c] sm:$0xf] %vm5511, %v5430
      %5520 = vst.msk [vmem:[#allocation4 + $0x20] sm:$0xf] %vm5511, %v5432
      %5521 = vst.msk [vmem:[#allocation4 + $0x24] sm:$0xf] %vm5511, %v5434
      %5522 = vst.msk [vmem:[#allocation4 + $0x28] sm:$0xf] %vm5511, %v5436
      %5523 = vst.msk [vmem:[#allocation4 + $0x2c] sm:$0xf] %vm5511, %v5438
      %5524 = vst.msk [vmem:[#allocation4 + $0x30] sm:$0xf] %vm5511, %v5440
      %5525 = vst.msk [vmem:[#allocation4 + $0x34] sm:$0xf] %vm5511, %v5442
      %5526 = vst.msk [vmem:[#allocation4 + $0x38] sm:$0xf] %vm5511, %v5444
      %5527 = vst.msk [vmem:[#allocation4 + $0x3c] sm:$0xf] %vm5511, %v5446
      %5528 = vst.msk [vmem:[#allocation4 + $0x40] sm:$0xf] %vm5511, %v5448
      %5529 = vst.msk [vmem:[#allocation4 + $0x44] sm:$0xf] %vm5511, %v5450
      %5530 = vst.msk [vmem:[#allocation4 + $0x48] sm:$0xf] %vm5511, %v5452
      %5531 = vst.msk [vmem:[#allocation4 + $0x4c] sm:$0xf] %vm5511, %v5454
      %5532 = vst.msk [vmem:[#allocation4 + $0x50] sm:$0xf] %vm5511, %v5456
      %5533 = vst.msk [vmem:[#allocation4 + $0x54] sm:$0xf] %vm5511, %v5458
      %5534 = vst.msk [vmem:[#allocation4 + $0x58] sm:$0xf] %vm5511, %v5460
      %5535 = vst.msk [vmem:[#allocation4 + $0x5c] sm:$0xf] %vm5511, %v5462
      %5536 = vst.msk [vmem:[#allocation4 + $0x60] sm:$0xf] %vm5511, %v5464
      %5537 = vst.msk [vmem:[#allocation4 + $0x64] sm:$0xf] %vm5511, %v5466
      %5538 = vst.msk [vmem:[#allocation4 + $0x68] sm:$0xf] %vm5511, %v5468
      %5539 = vst.msk [vmem:[#allocation4 + $0x6c] sm:$0xf] %vm5511, %v5470
      %5540 = vst.msk [vmem:[#allocation4 + $0x70] sm:$0xf] %vm5511, %v5472
      %5541 = vst.msk [vmem:[#allocation4 + $0x74] sm:$0xf] %vm5511, %v5474
      %5542 = vst.msk [vmem:[#allocation4 + $0x78] sm:$0xf] %vm5511, %v5476
      %5543 = vst.msk [vmem:[#allocation4 + $0x7c] sm:$0xf] %vm5511, %v5478
      %v5544 = vld [vmem:[#allocation3] sm:$0xe]
      %v5545 = vld [vmem:[#allocation3 + $0x4] sm:$0xf]
      %v5546 = vld [vmem:[#allocation3 + $0x8] sm:$0x1]
      %v5547 = vld [vmem:[#allocation3 + $0xc] sm:$0xe]
      %v5548 = vld [vmem:[#allocation3 + $0x10] sm:$0xf]
      %v5549 = vld [vmem:[#allocation3 + $0x14] sm:$0x1]
      %v5550 = vld [vmem:[#allocation3 + $0x18] sm:$0xe]
      %v5551 = vld [vmem:[#allocation3 + $0x1c] sm:$0xf]
      %v5552 = vld [vmem:[#allocation3 + $0x20] sm:$0x1]
      %v5553 = vld [vmem:[#allocation3 + $0x24] sm:$0xe]
      %v5554 = vld [vmem:[#allocation3 + $0x28] sm:$0xf]
      %v5555 = vld [vmem:[#allocation3 + $0x2c] sm:$0x1]
      %v5556 = vld [vmem:[#allocation3 + $0x30] sm:$0xe]
      %v5557 = vld [vmem:[#allocation3 + $0x34] sm:$0xf]
      %v5558 = vld [vmem:[#allocation3 + $0x38] sm:$0x1]
      %v5559 = vld [vmem:[#allocation3 + $0x3c] sm:$0xe]
      %v5560 = vld [vmem:[#allocation3 + $0x40] sm:$0xf]
      %v5561 = vld [vmem:[#allocation3 + $0x44] sm:$0x1]
      %v5562 = vld [vmem:[#allocation3 + $0x48] sm:$0xe]
      %v5563 = vld [vmem:[#allocation3 + $0x4c] sm:$0xf]
      %v5564 = vld [vmem:[#allocation3 + $0x50] sm:$0x1]
      %v5565 = vld [vmem:[#allocation3 + $0x54] sm:$0xe]
      %v5566 = vld [vmem:[#allocation3 + $0x58] sm:$0xf]
      %v5567 = vld [vmem:[#allocation3 + $0x5c] sm:$0x1]
      %v5568 = vld [vmem:[#allocation3 + $0x60] sm:$0xe]
      %v5569 = vld [vmem:[#allocation3 + $0x64] sm:$0xf]
      %v5570 = vld [vmem:[#allocation3 + $0x68] sm:$0x1]
      %v5571 = vld [vmem:[#allocation3 + $0x6c] sm:$0xe]
      %v5572 = vld [vmem:[#allocation3 + $0x70] sm:$0xf]
      %v5573 = vld [vmem:[#allocation3 + $0x74] sm:$0x1]
      %v5574 = vld [vmem:[#allocation3 + $0x78] sm:$0xe]
      %v5575 = vld [vmem:[#allocation3 + $0x7c] sm:$0xf]
      %v5576 = vld [vmem:[#allocation3 + $0x80] sm:$0x1]
      %v5577 = vld [vmem:[#allocation3 + $0x84] sm:$0xe]
      %v5578 = vld [vmem:[#allocation3 + $0x88] sm:$0xf]
      %v5579 = vld [vmem:[#allocation3 + $0x8c] sm:$0x1]
      %v5580 = vld [vmem:[#allocation3 + $0x90] sm:$0xe]
      %v5581 = vld [vmem:[#allocation3 + $0x94] sm:$0xf]
      %v5582 = vld [vmem:[#allocation3 + $0x98] sm:$0x1]
      %v5583 = vld [vmem:[#allocation3 + $0x9c] sm:$0xe]
      %v5584 = vld [vmem:[#allocation3 + $0xa0] sm:$0xf]
      %v5585 = vld [vmem:[#allocation3 + $0xa4] sm:$0x1]
      %v5586 = vld [vmem:[#allocation3 + $0xa8] sm:$0xe]
      %v5587 = vld [vmem:[#allocation3 + $0xac] sm:$0xf]
      %v5588 = vld [vmem:[#allocation3 + $0xb0] sm:$0x1]
      %v5589 = vld [vmem:[#allocation3 + $0xb4] sm:$0xe]
      %v5590 = vld [vmem:[#allocation3 + $0xb8] sm:$0xf]
      %v5591 = vld [vmem:[#allocation3 + $0xbc] sm:$0x1]
      %v5640 = vrot.slane %v5544, 5
      %v5641 = vrot.slane %v5640, 4
      %v5642 = vrot.slane %v5545, 5
      %v5643 = vsel %vm1597, %v5641, %v5642
      %v5644 = vrot.slane %v5642, 4
      %v5645 = vrot.slane %v5546, 5
      %v5646 = vsel %vm1597, %v5644, %v5645
      %v5647 = vrot.slane %v5547, 5
      %v5648 = vrot.slane %v5647, 4
      %v5649 = vrot.slane %v5548, 5
      %v5650 = vsel %vm1597, %v5648, %v5649
      %v5651 = vrot.slane %v5649, 4
      %v5652 = vrot.slane %v5549, 5
      %v5653 = vsel %vm1597, %v5651, %v5652
      %v5654 = vrot.slane %v5550, 5
      %v5655 = vrot.slane %v5654, 4
      %v5656 = vrot.slane %v5551, 5
      %v5657 = vsel %vm1597, %v5655, %v5656
      %v5658 = vrot.slane %v5656, 4
      %v5659 = vrot.slane %v5552, 5
      %v5660 = vsel %vm1597, %v5658, %v5659
      %v5661 = vrot.slane %v5553, 5
      %v5662 = vrot.slane %v5661, 4
      %v5663 = vrot.slane %v5554, 5
      %v5664 = vsel %vm1597, %v5662, %v5663
      %v5665 = vrot.slane %v5663, 4
      %v5666 = vrot.slane %v5555, 5
      %v5667 = vsel %vm1597, %v5665, %v5666
      %v5668 = vrot.slane %v5556, 5
      %v5669 = vrot.slane %v5668, 4
      %v5670 = vrot.slane %v5557, 5
      %v5671 = vsel %vm1597, %v5669, %v5670
      %v5672 = vrot.slane %v5670, 4
      %v5673 = vrot.slane %v5558, 5
      %v5674 = vsel %vm1597, %v5672, %v5673
      %v5675 = vrot.slane %v5559, 5
      %v5676 = vrot.slane %v5675, 4
      %v5677 = vrot.slane %v5560, 5
      %v5678 = vsel %vm1597, %v5676, %v5677
      %v5679 = vrot.slane %v5677, 4
      %v5680 = vrot.slane %v5561, 5
      %v5681 = vsel %vm1597, %v5679, %v5680
      %v5682 = vrot.slane %v5562, 5
      %v5683 = vrot.slane %v5682, 4
      %v5684 = vrot.slane %v5563, 5
      %v5685 = vsel %vm1597, %v5683, %v5684
      %v5686 = vrot.slane %v5684, 4
      %v5687 = vrot.slane %v5564, 5
      %v5688 = vsel %vm1597, %v5686, %v5687
      %v5689 = vrot.slane %v5565, 5
      %v5690 = vrot.slane %v5689, 4
      %v5691 = vrot.slane %v5566, 5
      %v5692 = vsel %vm1597, %v5690, %v5691
      %v5693 = vrot.slane %v5691, 4
      %v5694 = vrot.slane %v5567, 5
      %v5695 = vsel %vm1597, %v5693, %v5694
      %v5696 = vrot.slane %v5568, 5
      %v5697 = vrot.slane %v5696, 4
      %v5698 = vrot.slane %v5569, 5
      %v5699 = vsel %vm1597, %v5697, %v5698
      %v5700 = vrot.slane %v5698, 4
      %v5701 = vrot.slane %v5570, 5
      %v5702 = vsel %vm1597, %v5700, %v5701
      %v5703 = vrot.slane %v5571, 5
      %v5704 = vrot.slane %v5703, 4
      %v5705 = vrot.slane %v5572, 5
      %v5706 = vsel %vm1597, %v5704, %v5705
      %v5707 = vrot.slane %v5705, 4
      %v5708 = vrot.slane %v5573, 5
      %v5709 = vsel %vm1597, %v5707, %v5708
      %v5710 = vrot.slane %v5574, 5
      %v5711 = vrot.slane %v5710, 4
      %v5712 = vrot.slane %v5575, 5
      %v5713 = vsel %vm1597, %v5711, %v5712
      %v5714 = vrot.slane %v5712, 4
      %v5715 = vrot.slane %v5576, 5
      %v5716 = vsel %vm1597, %v5714, %v5715
      %v5717 = vrot.slane %v5577, 5
      %v5718 = vrot.slane %v5717, 4
      %v5719 = vrot.slane %v5578, 5
      %v5720 = vsel %vm1597, %v5718, %v5719
      %v5721 = vrot.slane %v5719, 4
      %v5722 = vrot.slane %v5579, 5
      %v5723 = vsel %vm1597, %v5721, %v5722
      %v5724 = vrot.slane %v5580, 5
      %v5725 = vrot.slane %v5724, 4
      %v5726 = vrot.slane %v5581, 5
      %v5727 = vsel %vm1597, %v5725, %v5726
      %v5728 = vrot.slane %v5726, 4
      %v5729 = vrot.slane %v5582, 5
      %v5730 = vsel %vm1597, %v5728, %v5729
      %v5731 = vrot.slane %v5583, 5
      %v5732 = vrot.slane %v5731, 4
      %v5733 = vrot.slane %v5584, 5
      %v5734 = vsel %vm1597, %v5732, %v5733
      %v5735 = vrot.slane %v5733, 4
      %v5736 = vrot.slane %v5585, 5
      %v5737 = vsel %vm1597, %v5735, %v5736
      %v5738 = vrot.slane %v5586, 5
      %v5739 = vrot.slane %v5738, 4
      %v5740 = vrot.slane %v5587, 5
      %v5741 = vsel %vm1597, %v5739, %v5740
      %v5742 = vrot.slane %v5740, 4
      %v5743 = vrot.slane %v5588, 5
      %v5744 = vsel %vm1597, %v5742, %v5743
      %v5745 = vrot.slane %v5589, 5
      %v5746 = vrot.slane %v5745, 4
      %v5747 = vrot.slane %v5590, 5
      %v5748 = vsel %vm1597, %v5746, %v5747
      %v5749 = vrot.slane %v5747, 4
      %v5750 = vrot.slane %v5591, 5
      %v5751 = vsel %vm1597, %v5749, %v5750
      %5752 = vrot.lane.b32.xlu0 %v5643, 16
      %v5753 = vpop.permute.xlu0 %5752
      %5754 = vrot.lane.b32.xlu0 %v5646, 16
      %v5755 = vpop.permute.xlu0 %5754
      %5756 = vrot.lane.b32.xlu0 %v5650, 16
      %v5757 = vpop.permute.xlu0 %5756
      %5758 = vrot.lane.b32.xlu0 %v5653, 16
      %v5759 = vpop.permute.xlu0 %5758
      %5760 = vrot.lane.b32.xlu0 %v5657, 16
      %v5761 = vpop.permute.xlu0 %5760
      %5762 = vrot.lane.b32.xlu0 %v5660, 16
      %v5763 = vpop.permute.xlu0 %5762
      %5764 = vrot.lane.b32.xlu0 %v5664, 16
      %v5765 = vpop.permute.xlu0 %5764
      %5766 = vrot.lane.b32.xlu0 %v5667, 16
      %v5767 = vpop.permute.xlu0 %5766
      %5768 = vrot.lane.b32.xlu0 %v5671, 16
      %v5769 = vpop.permute.xlu0 %5768
      %5770 = vrot.lane.b32.xlu0 %v5674, 16
      %v5771 = vpop.permute.xlu0 %5770
      %5772 = vrot.lane.b32.xlu0 %v5678, 16
      %v5773 = vpop.permute.xlu0 %5772
      %5774 = vrot.lane.b32.xlu0 %v5681, 16
      %v5775 = vpop.permute.xlu0 %5774
      %5776 = vrot.lane.b32.xlu0 %v5685, 16
      %v5777 = vpop.permute.xlu0 %5776
      %5778 = vrot.lane.b32.xlu0 %v5688, 16
      %v5779 = vpop.permute.xlu0 %5778
      %5780 = vrot.lane.b32.xlu0 %v5692, 16
      %v5781 = vpop.permute.xlu0 %5780
      %5782 = vrot.lane.b32.xlu0 %v5695, 16
      %v5783 = vpop.permute.xlu0 %5782
      %5784 = vrot.lane.b32.xlu0 %v5699, 16
      %v5785 = vpop.permute.xlu0 %5784
      %5786 = vrot.lane.b32.xlu0 %v5702, 16
      %v5787 = vpop.permute.xlu0 %5786
      %5788 = vrot.lane.b32.xlu0 %v5706, 16
      %v5789 = vpop.permute.xlu0 %5788
      %5790 = vrot.lane.b32.xlu0 %v5709, 16
      %v5791 = vpop.permute.xlu0 %5790
      %5792 = vrot.lane.b32.xlu0 %v5713, 16
      %v5793 = vpop.permute.xlu0 %5792
      %5794 = vrot.lane.b32.xlu0 %v5716, 16
      %v5795 = vpop.permute.xlu0 %5794
      %5796 = vrot.lane.b32.xlu0 %v5720, 16
      %v5797 = vpop.permute.xlu0 %5796
      %5798 = vrot.lane.b32.xlu0 %v5723, 16
      %v5799 = vpop.permute.xlu0 %5798
      %5800 = vrot.lane.b32.xlu0 %v5727, 16
      %v5801 = vpop.permute.xlu0 %5800
      %5802 = vrot.lane.b32.xlu0 %v5730, 16
      %v5803 = vpop.permute.xlu0 %5802
      %5804 = vrot.lane.b32.xlu0 %v5734, 16
      %v5805 = vpop.permute.xlu0 %5804
      %5806 = vrot.lane.b32.xlu0 %v5737, 16
      %v5807 = vpop.permute.xlu0 %5806
      %5808 = vrot.lane.b32.xlu0 %v5741, 16
      %v5809 = vpop.permute.xlu0 %5808
      %5810 = vrot.lane.b32.xlu0 %v5744, 16
      %v5811 = vpop.permute.xlu0 %5810
      %5812 = vrot.lane.b32.xlu0 %v5748, 16
      %v5813 = vpop.permute.xlu0 %5812
      %5814 = vrot.lane.b32.xlu0 %v5751, 16
      %v5815 = vpop.permute.xlu0 %5814
      %vm5848 = vcmask 191616
      %5849 = vst.msk [vmem:[#allocation4] sm:$0xf] %vm5848, %v5753
      %5850 = vst.msk [vmem:[#allocation4 + $0x4] sm:$0xf] %vm5848, %v5755
      %5851 = vst.msk [vmem:[#allocation4 + $0x8] sm:$0xf] %vm5848, %v5757
      %5852 = vst.msk [vmem:[#allocation4 + $0xc] sm:$0xf] %vm5848, %v5759
      %5853 = vst.msk [vmem:[#allocation4 + $0x10] sm:$0xf] %vm5848, %v5761
      %5854 = vst.msk [vmem:[#allocation4 + $0x14] sm:$0xf] %vm5848, %v5763
      %5855 = vst.msk [vmem:[#allocation4 + $0x18] sm:$0xf] %vm5848, %v5765
      %5856 = vst.msk [vmem:[#allocation4 + $0x1c] sm:$0xf] %vm5848, %v5767
      %5857 = vst.msk [vmem:[#allocation4 + $0x20] sm:$0xf] %vm5848, %v5769
      %5858 = vst.msk [vmem:[#allocation4 + $0x24] sm:$0xf] %vm5848, %v5771
      %5859 = vst.msk [vmem:[#allocation4 + $0x28] sm:$0xf] %vm5848, %v5773
      %5860 = vst.msk [vmem:[#allocation4 + $0x2c] sm:$0xf] %vm5848, %v5775
      %5861 = vst.msk [vmem:[#allocation4 + $0x30] sm:$0xf] %vm5848, %v5777
      %5862 = vst.msk [vmem:[#allocation4 + $0x34] sm:$0xf] %vm5848, %v5779
      %5863 = vst.msk [vmem:[#allocation4 + $0x38] sm:$0xf] %vm5848, %v5781
      %5864 = vst.msk [vmem:[#allocation4 + $0x3c] sm:$0xf] %vm5848, %v5783
      %5865 = vst.msk [vmem:[#allocation4 + $0x40] sm:$0xf] %vm5848, %v5785
      %5866 = vst.msk [vmem:[#allocation4 + $0x44] sm:$0xf] %vm5848, %v5787
      %5867 = vst.msk [vmem:[#allocation4 + $0x48] sm:$0xf] %vm5848, %v5789
      %5868 = vst.msk [vmem:[#allocation4 + $0x4c] sm:$0xf] %vm5848, %v5791
      %5869 = vst.msk [vmem:[#allocation4 + $0x50] sm:$0xf] %vm5848, %v5793
      %5870 = vst.msk [vmem:[#allocation4 + $0x54] sm:$0xf] %vm5848, %v5795
      %5871 = vst.msk [vmem:[#allocation4 + $0x58] sm:$0xf] %vm5848, %v5797
      %5872 = vst.msk [vmem:[#allocation4 + $0x5c] sm:$0xf] %vm5848, %v5799
      %5873 = vst.msk [vmem:[#allocation4 + $0x60] sm:$0xf] %vm5848, %v5801
      %5874 = vst.msk [vmem:[#allocation4 + $0x64] sm:$0xf] %vm5848, %v5803
      %5875 = vst.msk [vmem:[#allocation4 + $0x68] sm:$0xf] %vm5848, %v5805
      %5876 = vst.msk [vmem:[#allocation4 + $0x6c] sm:$0xf] %vm5848, %v5807
      %5877 = vst.msk [vmem:[#allocation4 + $0x70] sm:$0xf] %vm5848, %v5809
      %5878 = vst.msk [vmem:[#allocation4 + $0x74] sm:$0xf] %vm5848, %v5811
      %5879 = vst.msk [vmem:[#allocation4 + $0x78] sm:$0xf] %vm5848, %v5813
      %5880 = vst.msk [vmem:[#allocation4 + $0x7c] sm:$0xf] %vm5848, %v5815
      %v5881 = vld [vmem:[%s4804] sm:$0xf]
      %v5882 = vld [vmem:[%s4804 + $0x4] sm:$0xf]
      %v5883 = vld [vmem:[%s4804 + $0xc] sm:$0xf]
      %v5884 = vld [vmem:[%s4804 + $0x10] sm:$0xf]
      %v5885 = vld [vmem:[%s4804 + $0x18] sm:$0xf]
      %v5886 = vld [vmem:[%s4804 + $0x1c] sm:$0xf]
      %v5887 = vld [vmem:[%s4804 + $0x24] sm:$0xf]
      %v5888 = vld [vmem:[%s4804 + $0x28] sm:$0xf]
      %v5889 = vld [vmem:[%s4804 + $0x30] sm:$0xf]
      %v5890 = vld [vmem:[%s4804 + $0x34] sm:$0xf]
      %v5891 = vld [vmem:[%s4804 + $0x3c] sm:$0xf]
      %v5892 = vld [vmem:[%s4804 + $0x40] sm:$0xf]
      %v5893 = vld [vmem:[%s4804 + $0x48] sm:$0xf]
      %v5894 = vld [vmem:[%s4804 + $0x4c] sm:$0xf]
      %v5895 = vld [vmem:[%s4804 + $0x54] sm:$0xf]
      %v5896 = vld [vmem:[%s4804 + $0x58] sm:$0xf]
      %v5897 = vld [vmem:[%s4804 + $0x60] sm:$0xf]
      %v5898 = vld [vmem:[%s4804 + $0x64] sm:$0xf]
      %v5899 = vld [vmem:[%s4804 + $0x6c] sm:$0xf]
      %v5900 = vld [vmem:[%s4804 + $0x70] sm:$0xf]
      %v5901 = vld [vmem:[%s4804 + $0x78] sm:$0xf]
      %v5902 = vld [vmem:[%s4804 + $0x7c] sm:$0xf]
      %v5903 = vld [vmem:[%s4804 + $0x84] sm:$0xf]
      %v5904 = vld [vmem:[%s4804 + $0x88] sm:$0xf]
      %v5905 = vld [vmem:[%s4804 + $0x90] sm:$0xf]
      %v5906 = vld [vmem:[%s4804 + $0x94] sm:$0xf]
      %v5907 = vld [vmem:[%s4804 + $0x9c] sm:$0xf]
      %v5908 = vld [vmem:[%s4804 + $0xa0] sm:$0xf]
      %v5909 = vld [vmem:[%s4804 + $0xa8] sm:$0xf]
      %v5910 = vld [vmem:[%s4804 + $0xac] sm:$0xf]
      %v5911 = vld [vmem:[%s4804 + $0xb4] sm:$0xf]
      %v5912 = vld [vmem:[%s4804 + $0xb8] sm:$0xf]
      %5945 = vrot.lane.b32.xlu0 %v5881, 24
      %v5946 = vpop.permute.xlu0 %5945
      %5947 = vrot.lane.b32.xlu0 %v5882, 24
      %v5948 = vpop.permute.xlu0 %5947
      %5949 = vrot.lane.b32.xlu0 %v5883, 24
      %v5950 = vpop.permute.xlu0 %5949
      %5951 = vrot.lane.b32.xlu0 %v5884, 24
      %v5952 = vpop.permute.xlu0 %5951
      %5953 = vrot.lane.b32.xlu0 %v5885, 24
      %v5954 = vpop.permute.xlu0 %5953
      %5955 = vrot.lane.b32.xlu0 %v5886, 24
      %v5956 = vpop.permute.xlu0 %5955
      %5957 = vrot.lane.b32.xlu0 %v5887, 24
      %v5958 = vpop.permute.xlu0 %5957
      %5959 = vrot.lane.b32.xlu0 %v5888, 24
      %v5960 = vpop.permute.xlu0 %5959
      %5961 = vrot.lane.b32.xlu0 %v5889, 24
      %v5962 = vpop.permute.xlu0 %5961
      %5963 = vrot.lane.b32.xlu0 %v5890, 24
      %v5964 = vpop.permute.xlu0 %5963
      %5965 = vrot.lane.b32.xlu0 %v5891, 24
      %v5966 = vpop.permute.xlu0 %5965
      %5967 = vrot.lane.b32.xlu0 %v5892, 24
      %v5968 = vpop.permute.xlu0 %5967
      %5969 = vrot.lane.b32.xlu0 %v5893, 24
      %v5970 = vpop.permute.xlu0 %5969
      %5971 = vrot.lane.b32.xlu0 %v5894, 24
      %v5972 = vpop.permute.xlu0 %5971
      %5973 = vrot.lane.b32.xlu0 %v5895, 24
      %v5974 = vpop.permute.xlu0 %5973
      %5975 = vrot.lane.b32.xlu0 %v5896, 24
      %v5976 = vpop.permute.xlu0 %5975
      %5977 = vrot.lane.b32.xlu0 %v5897, 24
      %v5978 = vpop.permute.xlu0 %5977
      %5979 = vrot.lane.b32.xlu0 %v5898, 24
      %v5980 = vpop.permute.xlu0 %5979
      %5981 = vrot.lane.b32.xlu0 %v5899, 24
      %v5982 = vpop.permute.xlu0 %5981
      %5983 = vrot.lane.b32.xlu0 %v5900, 24
      %v5984 = vpop.permute.xlu0 %5983
      %5985 = vrot.lane.b32.xlu0 %v5901, 24
      %v5986 = vpop.permute.xlu0 %5985
      %5987 = vrot.lane.b32.xlu0 %v5902, 24
      %v5988 = vpop.permute.xlu0 %5987
      %5989 = vrot.lane.b32.xlu0 %v5903, 24
      %v5990 = vpop.permute.xlu0 %5989
      %5991 = vrot.lane.b32.xlu0 %v5904, 24
      %v5992 = vpop.permute.xlu0 %5991
      %5993 = vrot.lane.b32.xlu0 %v5905, 24
      %v5994 = vpop.permute.xlu0 %5993
      %5995 = vrot.lane.b32.xlu0 %v5906, 24
      %v5996 = vpop.permute.xlu0 %5995
      %5997 = vrot.lane.b32.xlu0 %v5907, 24
      %v5998 = vpop.permute.xlu0 %5997
      %5999 = vrot.lane.b32.xlu0 %v5908, 24
      %v6000 = vpop.permute.xlu0 %5999
      %6001 = vrot.lane.b32.xlu0 %v5909, 24
      %v6002 = vpop.permute.xlu0 %6001
      %6003 = vrot.lane.b32.xlu0 %v5910, 24
      %v6004 = vpop.permute.xlu0 %6003
      %6005 = vrot.lane.b32.xlu0 %v5911, 24
      %v6006 = vpop.permute.xlu0 %6005
      %6007 = vrot.lane.b32.xlu0 %v5912, 24
      %v6008 = vpop.permute.xlu0 %6007
      %vm6041 = vcmask 257216
      %6042 = vst.msk [vmem:[#allocation4] sm:$0xf] %vm6041, %v5946
      %6043 = vst.msk [vmem:[#allocation4 + $0x4] sm:$0xf] %vm6041, %v5948
      %6044 = vst.msk [vmem:[#allocation4 + $0x8] sm:$0xf] %vm6041, %v5950
      %6045 = vst.msk [vmem:[#allocation4 + $0xc] sm:$0xf] %vm6041, %v5952
      %6046 = vst.msk [vmem:[#allocation4 + $0x10] sm:$0xf] %vm6041, %v5954
      %6047 = vst.msk [vmem:[#allocation4 + $0x14] sm:$0xf] %vm6041, %v5956
      %6048 = vst.msk [vmem:[#allocation4 + $0x18] sm:$0xf] %vm6041, %v5958
      %6049 = vst.msk [vmem:[#allocation4 + $0x1c] sm:$0xf] %vm6041, %v5960
      %6050 = vst.msk [vmem:[#allocation4 + $0x20] sm:$0xf] %vm6041, %v5962
      %6051 = vst.msk [vmem:[#allocation4 + $0x24] sm:$0xf] %vm6041, %v5964
      %6052 = vst.msk [vmem:[#allocation4 + $0x28] sm:$0xf] %vm6041, %v5966
      %6053 = vst.msk [vmem:[#allocation4 + $0x2c] sm:$0xf] %vm6041, %v5968
      %6054 = vst.msk [vmem:[#allocation4 + $0x30] sm:$0xf] %vm6041, %v5970
      %6055 = vst.msk [vmem:[#allocation4 + $0x34] sm:$0xf] %vm6041, %v5972
      %6056 = vst.msk [vmem:[#allocation4 + $0x38] sm:$0xf] %vm6041, %v5974
      %6057 = vst.msk [vmem:[#allocation4 + $0x3c] sm:$0xf] %vm6041, %v5976
      %6058 = vst.msk [vmem:[#allocation4 + $0x40] sm:$0xf] %vm6041, %v5978
      %6059 = vst.msk [vmem:[#allocation4 + $0x44] sm:$0xf] %vm6041, %v5980
      %6060 = vst.msk [vmem:[#allocation4 + $0x48] sm:$0xf] %vm6041, %v5982
      %6061 = vst.msk [vmem:[#allocation4 + $0x4c] sm:$0xf] %vm6041, %v5984
      %6062 = vst.msk [vmem:[#allocation4 + $0x50] sm:$0xf] %vm6041, %v5986
      %6063 = vst.msk [vmem:[#allocation4 + $0x54] sm:$0xf] %vm6041, %v5988
      %6064 = vst.msk [vmem:[#allocation4 + $0x58] sm:$0xf] %vm6041, %v5990
      %6065 = vst.msk [vmem:[#allocation4 + $0x5c] sm:$0xf] %vm6041, %v5992
      %6066 = vst.msk [vmem:[#allocation4 + $0x60] sm:$0xf] %vm6041, %v5994
      %6067 = vst.msk [vmem:[#allocation4 + $0x64] sm:$0xf] %vm6041, %v5996
      %6068 = vst.msk [vmem:[#allocation4 + $0x68] sm:$0xf] %vm6041, %v5998
      %6069 = vst.msk [vmem:[#allocation4 + $0x6c] sm:$0xf] %vm6041, %v6000
      %6070 = vst.msk [vmem:[#allocation4 + $0x70] sm:$0xf] %vm6041, %v6002
      %6071 = vst.msk [vmem:[#allocation4 + $0x74] sm:$0xf] %vm6041, %v6004
      %6072 = vst.msk [vmem:[#allocation4 + $0x78] sm:$0xf] %vm6041, %v6006
      %6073 = vst.msk [vmem:[#allocation4 + $0x7c] sm:$0xf] %vm6041, %v6008
      %v6074 = vld [vmem:[%s4804] sm:$0xf]
      %v6075 = vld [vmem:[%s4804 + $0x4] sm:$0xf]
      %v6076 = vld [vmem:[%s4804 + $0x8] sm:$0x1]
      %v6077 = vld [vmem:[%s4804 + $0xc] sm:$0xf]
      %v6078 = vld [vmem:[%s4804 + $0x10] sm:$0xf]
      %v6079 = vld [vmem:[%s4804 + $0x14] sm:$0x1]
      %v6080 = vld [vmem:[%s4804 + $0x18] sm:$0xf]
      %v6081 = vld [vmem:[%s4804 + $0x1c] sm:$0xf]
      %v6082 = vld [vmem:[%s4804 + $0x20] sm:$0x1]
      %v6083 = vld [vmem:[%s4804 + $0x24] sm:$0xf]
      %v6084 = vld [vmem:[%s4804 + $0x28] sm:$0xf]
      %v6085 = vld [vmem:[%s4804 + $0x2c] sm:$0x1]
      %v6086 = vld [vmem:[%s4804 + $0x30] sm:$0xf]
      %v6087 = vld [vmem:[%s4804 + $0x34] sm:$0xf]
      %v6088 = vld [vmem:[%s4804 + $0x38] sm:$0x1]
      %v6089 = vld [vmem:[%s4804 + $0x3c] sm:$0xf]
      %v6090 = vld [vmem:[%s4804 + $0x40] sm:$0xf]
      %v6091 = vld [vmem:[%s4804 + $0x44] sm:$0x1]
      %v6092 = vld [vmem:[%s4804 + $0x48] sm:$0xf]
      %v6093 = vld [vmem:[%s4804 + $0x4c] sm:$0xf]
      %v6094 = vld [vmem:[%s4804 + $0x50] sm:$0x1]
      %v6095 = vld [vmem:[%s4804 + $0x54] sm:$0xf]
      %v6096 = vld [vmem:[%s4804 + $0x58] sm:$0xf]
      %v6097 = vld [vmem:[%s4804 + $0x5c] sm:$0x1]
      %v6098 = vld [vmem:[%s4804 + $0x60] sm:$0xf]
      %v6099 = vld [vmem:[%s4804 + $0x64] sm:$0xf]
      %v6100 = vld [vmem:[%s4804 + $0x68] sm:$0x1]
      %v6101 = vld [vmem:[%s4804 + $0x6c] sm:$0xf]
      %v6102 = vld [vmem:[%s4804 + $0x70] sm:$0xf]
      %v6103 = vld [vmem:[%s4804 + $0x74] sm:$0x1]
      %v6104 = vld [vmem:[%s4804 + $0x78] sm:$0xf]
      %v6105 = vld [vmem:[%s4804 + $0x7c] sm:$0xf]
      %v6106 = vld [vmem:[%s4804 + $0x80] sm:$0x1]
      %v6107 = vld [vmem:[%s4804 + $0x84] sm:$0xf]
      %v6108 = vld [vmem:[%s4804 + $0x88] sm:$0xf]
      %v6109 = vld [vmem:[%s4804 + $0x8c] sm:$0x1]
      %v6110 = vld [vmem:[%s4804 + $0x90] sm:$0xf]
      %v6111 = vld [vmem:[%s4804 + $0x94] sm:$0xf]
      %v6112 = vld [vmem:[%s4804 + $0x98] sm:$0x1]
      %v6113 = vld [vmem:[%s4804 + $0x9c] sm:$0xf]
      %v6114 = vld [vmem:[%s4804 + $0xa0] sm:$0xf]
      %v6115 = vld [vmem:[%s4804 + $0xa4] sm:$0x1]
      %v6116 = vld [vmem:[%s4804 + $0xa8] sm:$0xf]
      %v6117 = vld [vmem:[%s4804 + $0xac] sm:$0xf]
      %v6118 = vld [vmem:[%s4804 + $0xb0] sm:$0x1]
      %v6119 = vld [vmem:[%s4804 + $0xb4] sm:$0xf]
      %v6120 = vld [vmem:[%s4804 + $0xb8] sm:$0xf]
      %v6121 = vld [vmem:[%s4804 + $0xbc] sm:$0x1]
      %v6123 = vshrl.u32 %v6074, 16
      %v6125 = vrot.slane %v6123, 4
      %v6126 = vshll.u32 %v6074, 16
      %v6128 = vrot.slane %v6126, 5
      %v6129 = vor.u32 %v6125, %v6128
      %v6130 = vrot.slane %v6129, 4
      %v6132 = vshll.u32 %v6075, 16
      %v6134 = vrot.slane %v6132, 5
      %v6135 = vsel %vm985, %v6130, %v6134
      %v6136 = vshrl.u32 %v6075, 16
      %v6138 = vrot.slane %v6136, 4
      %v6139 = vor.u32 %v6138, %v6134
      %v6140 = vrot.slane %v6139, 4
      %v6142 = vshll.u32 %v6076, 16
      %v6144 = vrot.slane %v6142, 5
      %v6145 = vsel %vm985, %v6140, %v6144
      %v6147 = vshrl.u32 %v6077, 16
      %v6149 = vrot.slane %v6147, 4
      %v6150 = vshll.u32 %v6077, 16
      %v6152 = vrot.slane %v6150, 5
      %v6153 = vor.u32 %v6149, %v6152
      %v6154 = vrot.slane %v6153, 4
      %v6156 = vshll.u32 %v6078, 16
      %v6158 = vrot.slane %v6156, 5
      %v6159 = vsel %vm985, %v6154, %v6158
      %v6160 = vshrl.u32 %v6078, 16
      %v6162 = vrot.slane %v6160, 4
      %v6163 = vor.u32 %v6162, %v6158
      %v6164 = vrot.slane %v6163, 4
      %v6166 = vshll.u32 %v6079, 16
      %v6168 = vrot.slane %v6166, 5
      %v6169 = vsel %vm985, %v6164, %v6168
      %v6171 = vshrl.u32 %v6080, 16
      %v6173 = vrot.slane %v6171, 4
      %v6174 = vshll.u32 %v6080, 16
      %v6176 = vrot.slane %v6174, 5
      %v6177 = vor.u32 %v6173, %v6176
      %v6178 = vrot.slane %v6177, 4
      %v6180 = vshll.u32 %v6081, 16
      %v6182 = vrot.slane %v6180, 5
      %v6183 = vsel %vm985, %v6178, %v6182
      %v6184 = vshrl.u32 %v6081, 16
      %v6186 = vrot.slane %v6184, 4
      %v6187 = vor.u32 %v6186, %v6182
      %v6188 = vrot.slane %v6187, 4
      %v6190 = vshll.u32 %v6082, 16
      %v6192 = vrot.slane %v6190, 5
      %v6193 = vsel %vm985, %v6188, %v6192
      %v6195 = vshrl.u32 %v6083, 16
      %v6197 = vrot.slane %v6195, 4
      %v6198 = vshll.u32 %v6083, 16
      %v6200 = vrot.slane %v6198, 5
      %v6201 = vor.u32 %v6197, %v6200
      %v6202 = vrot.slane %v6201, 4
      %v6204 = vshll.u32 %v6084, 16
      %v6206 = vrot.slane %v6204, 5
      %v6207 = vsel %vm985, %v6202, %v6206
      %v6208 = vshrl.u32 %v6084, 16
      %v6210 = vrot.slane %v6208, 4
      %v6211 = vor.u32 %v6210, %v6206
      %v6212 = vrot.slane %v6211, 4
      %v6214 = vshll.u32 %v6085, 16
      %v6216 = vrot.slane %v6214, 5
      %v6217 = vsel %vm985, %v6212, %v6216
      %v6219 = vshrl.u32 %v6086, 16
      %v6221 = vrot.slane %v6219, 4
      %v6222 = vshll.u32 %v6086, 16
      %v6224 = vrot.slane %v6222, 5
      %v6225 = vor.u32 %v6221, %v6224
      %v6226 = vrot.slane %v6225, 4
      %v6228 = vshll.u32 %v6087, 16
      %v6230 = vrot.slane %v6228, 5
      %v6231 = vsel %vm985, %v6226, %v6230
      %v6232 = vshrl.u32 %v6087, 16
      %v6234 = vrot.slane %v6232, 4
      %v6235 = vor.u32 %v6234, %v6230
      %v6236 = vrot.slane %v6235, 4
      %v6238 = vshll.u32 %v6088, 16
      %v6240 = vrot.slane %v6238, 5
      %v6241 = vsel %vm985, %v6236, %v6240
      %v6243 = vshrl.u32 %v6089, 16
      %v6245 = vrot.slane %v6243, 4
      %v6246 = vshll.u32 %v6089, 16
      %v6248 = vrot.slane %v6246, 5
      %v6249 = vor.u32 %v6245, %v6248
      %v6250 = vrot.slane %v6249, 4
      %v6252 = vshll.u32 %v6090, 16
      %v6254 = vrot.slane %v6252, 5
      %v6255 = vsel %vm985, %v6250, %v6254
      %v6256 = vshrl.u32 %v6090, 16
      %v6258 = vrot.slane %v6256, 4
      %v6259 = vor.u32 %v6258, %v6254
      %v6260 = vrot.slane %v6259, 4
      %v6262 = vshll.u32 %v6091, 16
      %v6264 = vrot.slane %v6262, 5
      %v6265 = vsel %vm985, %v6260, %v6264
      %v6267 = vshrl.u32 %v6092, 16
      %v6269 = vrot.slane %v6267, 4
      %v6270 = vshll.u32 %v6092, 16
      %v6272 = vrot.slane %v6270, 5
      %v6273 = vor.u32 %v6269, %v6272
      %v6274 = vrot.slane %v6273, 4
      %v6276 = vshll.u32 %v6093, 16
      %v6278 = vrot.slane %v6276, 5
      %v6279 = vsel %vm985, %v6274, %v6278
      %v6280 = vshrl.u32 %v6093, 16
      %v6282 = vrot.slane %v6280, 4
      %v6283 = vor.u32 %v6282, %v6278
      %v6284 = vrot.slane %v6283, 4
      %v6286 = vshll.u32 %v6094, 16
      %v6288 = vrot.slane %v6286, 5
      %v6289 = vsel %vm985, %v6284, %v6288
      %v6291 = vshrl.u32 %v6095, 16
      %v6293 = vrot.slane %v6291, 4
      %v6294 = vshll.u32 %v6095, 16
      %v6296 = vrot.slane %v6294, 5
      %v6297 = vor.u32 %v6293, %v6296
      %v6298 = vrot.slane %v6297, 4
      %v6300 = vshll.u32 %v6096, 16
      %v6302 = vrot.slane %v6300, 5
      %v6303 = vsel %vm985, %v6298, %v6302
      %v6304 = vshrl.u32 %v6096, 16
      %v6306 = vrot.slane %v6304, 4
      %v6307 = vor.u32 %v6306, %v6302
      %v6308 = vrot.slane %v6307, 4
      %v6310 = vshll.u32 %v6097, 16
      %v6312 = vrot.slane %v6310, 5
      %v6313 = vsel %vm985, %v6308, %v6312
      %v6315 = vshrl.u32 %v6098, 16
      %v6317 = vrot.slane %v6315, 4
      %v6318 = vshll.u32 %v6098, 16
      %v6320 = vrot.slane %v6318, 5
      %v6321 = vor.u32 %v6317, %v6320
      %v6322 = vrot.slane %v6321, 4
      %v6324 = vshll.u32 %v6099, 16
      %v6326 = vrot.slane %v6324, 5
      %v6327 = vsel %vm985, %v6322, %v6326
      %v6328 = vshrl.u32 %v6099, 16
      %v6330 = vrot.slane %v6328, 4
      %v6331 = vor.u32 %v6330, %v6326
      %v6332 = vrot.slane %v6331, 4
      %v6334 = vshll.u32 %v6100, 16
      %v6336 = vrot.slane %v6334, 5
      %v6337 = vsel %vm985, %v6332, %v6336
      %v6339 = vshrl.u32 %v6101, 16
      %v6341 = vrot.slane %v6339, 4
      %v6342 = vshll.u32 %v6101, 16
      %v6344 = vrot.slane %v6342, 5
      %v6345 = vor.u32 %v6341, %v6344
      %v6346 = vrot.slane %v6345, 4
      %v6348 = vshll.u32 %v6102, 16
      %v6350 = vrot.slane %v6348, 5
      %v6351 = vsel %vm985, %v6346, %v6350
      %v6352 = vshrl.u32 %v6102, 16
      %v6354 = vrot.slane %v6352, 4
      %v6355 = vor.u32 %v6354, %v6350
      %v6356 = vrot.slane %v6355, 4
      %v6358 = vshll.u32 %v6103, 16
      %v6360 = vrot.slane %v6358, 5
      %v6361 = vsel %vm985, %v6356, %v6360
      %v6363 = vshrl.u32 %v6104, 16
      %v6365 = vrot.slane %v6363, 4
      %v6366 = vshll.u32 %v6104, 16
      %v6368 = vrot.slane %v6366, 5
      %v6369 = vor.u32 %v6365, %v6368
      %v6370 = vrot.slane %v6369, 4
      %v6372 = vshll.u32 %v6105, 16
      %v6374 = vrot.slane %v6372, 5
      %v6375 = vsel %vm985, %v6370, %v6374
      %v6376 = vshrl.u32 %v6105, 16
      %v6378 = vrot.slane %v6376, 4
      %v6379 = vor.u32 %v6378, %v6374
      %v6380 = vrot.slane %v6379, 4
      %v6382 = vshll.u32 %v6106, 16
      %v6384 = vrot.slane %v6382, 5
      %v6385 = vsel %vm985, %v6380, %v6384
      %v6387 = vshrl.u32 %v6107, 16
      %v6389 = vrot.slane %v6387, 4
      %v6390 = vshll.u32 %v6107, 16
      %v6392 = vrot.slane %v6390, 5
      %v6393 = vor.u32 %v6389, %v6392
      %v6394 = vrot.slane %v6393, 4
      %v6396 = vshll.u32 %v6108, 16
      %v6398 = vrot.slane %v6396, 5
      %v6399 = vsel %vm985, %v6394, %v6398
      %v6400 = vshrl.u32 %v6108, 16
      %v6402 = vrot.slane %v6400, 4
      %v6403 = vor.u32 %v6402, %v6398
      %v6404 = vrot.slane %v6403, 4
      %v6406 = vshll.u32 %v6109, 16
      %v6408 = vrot.slane %v6406, 5
      %v6409 = vsel %vm985, %v6404, %v6408
      %v6411 = vshrl.u32 %v6110, 16
      %v6413 = vrot.slane %v6411, 4
      %v6414 = vshll.u32 %v6110, 16
      %v6416 = vrot.slane %v6414, 5
      %v6417 = vor.u32 %v6413, %v6416
      %v6418 = vrot.slane %v6417, 4
      %v6420 = vshll.u32 %v6111, 16
      %v6422 = vrot.slane %v6420, 5
      %v6423 = vsel %vm985, %v6418, %v6422
      %v6424 = vshrl.u32 %v6111, 16
      %v6426 = vrot.slane %v6424, 4
      %v6427 = vor.u32 %v6426, %v6422
      %v6428 = vrot.slane %v6427, 4
      %v6430 = vshll.u32 %v6112, 16
      %v6432 = vrot.slane %v6430, 5
      %v6433 = vsel %vm985, %v6428, %v6432
      %v6435 = vshrl.u32 %v6113, 16
      %v6437 = vrot.slane %v6435, 4
      %v6438 = vshll.u32 %v6113, 16
      %v6440 = vrot.slane %v6438, 5
      %v6441 = vor.u32 %v6437, %v6440
      %v6442 = vrot.slane %v6441, 4
      %v6444 = vshll.u32 %v6114, 16
      %v6446 = vrot.slane %v6444, 5
      %v6447 = vsel %vm985, %v6442, %v6446
      %v6448 = vshrl.u32 %v6114, 16
      %v6450 = vrot.slane %v6448, 4
      %v6451 = vor.u32 %v6450, %v6446
      %v6452 = vrot.slane %v6451, 4
      %v6454 = vshll.u32 %v6115, 16
      %v6456 = vrot.slane %v6454, 5
      %v6457 = vsel %vm985, %v6452, %v6456
      %v6459 = vshrl.u32 %v6116, 16
      %v6461 = vrot.slane %v6459, 4
      %v6462 = vshll.u32 %v6116, 16
      %v6464 = vrot.slane %v6462, 5
      %v6465 = vor.u32 %v6461, %v6464
      %v6466 = vrot.slane %v6465, 4
      %v6468 = vshll.u32 %v6117, 16
      %v6470 = vrot.slane %v6468, 5
      %v6471 = vsel %vm985, %v6466, %v6470
      %v6472 = vshrl.u32 %v6117, 16
      %v6474 = vrot.slane %v6472, 4
      %v6475 = vor.u32 %v6474, %v6470
      %v6476 = vrot.slane %v6475, 4
      %v6478 = vshll.u32 %v6118, 16
      %v6480 = vrot.slane %v6478, 5
      %v6481 = vsel %vm985, %v6476, %v6480
      %v6483 = vshrl.u32 %v6119, 16
      %v6485 = vrot.slane %v6483, 4
      %v6486 = vshll.u32 %v6119, 16
      %v6488 = vrot.slane %v6486, 5
      %v6489 = vor.u32 %v6485, %v6488
      %v6490 = vrot.slane %v6489, 4
      %v6492 = vshll.u32 %v6120, 16
      %v6494 = vrot.slane %v6492, 5
      %v6495 = vsel %vm985, %v6490, %v6494
      %v6496 = vshrl.u32 %v6120, 16
      %v6498 = vrot.slane %v6496, 4
      %v6499 = vor.u32 %v6498, %v6494
      %v6500 = vrot.slane %v6499, 4
      %v6502 = vshll.u32 %v6121, 16
      %v6504 = vrot.slane %v6502, 5
      %v6505 = vsel %vm985, %v6500, %v6504
      %6506 = vrot.lane.b32.xlu0 %v6135, 32
      %v6507 = vpop.permute.xlu0 %6506
      %6508 = vrot.lane.b32.xlu0 %v6145, 32
      %v6509 = vpop.permute.xlu0 %6508
      %6510 = vrot.lane.b32.xlu0 %v6159, 32
      %v6511 = vpop.permute.xlu0 %6510
      %6512 = vrot.lane.b32.xlu0 %v6169, 32
      %v6513 = vpop.permute.xlu0 %6512
      %6514 = vrot.lane.b32.xlu0 %v6183, 32
      %v6515 = vpop.permute.xlu0 %6514
      %6516 = vrot.lane.b32.xlu0 %v6193, 32
      %v6517 = vpop.permute.xlu0 %6516
      %6518 = vrot.lane.b32.xlu0 %v6207, 32
      %v6519 = vpop.permute.xlu0 %6518
      %6520 = vrot.lane.b32.xlu0 %v6217, 32
      %v6521 = vpop.permute.xlu0 %6520
      %6522 = vrot.lane.b32.xlu0 %v6231, 32
      %v6523 = vpop.permute.xlu0 %6522
      %6524 = vrot.lane.b32.xlu0 %v6241, 32
      %v6525 = vpop.permute.xlu0 %6524
      %6526 = vrot.lane.b32.xlu0 %v6255, 32
      %v6527 = vpop.permute.xlu0 %6526
      %6528 = vrot.lane.b32.xlu0 %v6265, 32
      %v6529 = vpop.permute.xlu0 %6528
      %6530 = vrot.lane.b32.xlu0 %v6279, 32
      %v6531 = vpop.permute.xlu0 %6530
      %6532 = vrot.lane.b32.xlu0 %v6289, 32
      %v6533 = vpop.permute.xlu0 %6532
      %6534 = vrot.lane.b32.xlu0 %v6303, 32
      %v6535 = vpop.permute.xlu0 %6534
      %6536 = vrot.lane.b32.xlu0 %v6313, 32
      %v6537 = vpop.permute.xlu0 %6536
      %6538 = vrot.lane.b32.xlu0 %v6327, 32
      %v6539 = vpop.permute.xlu0 %6538
      %6540 = vrot.lane.b32.xlu0 %v6337, 32
      %v6541 = vpop.permute.xlu0 %6540
      %6542 = vrot.lane.b32.xlu0 %v6351, 32
      %v6543 = vpop.permute.xlu0 %6542
      %6544 = vrot.lane.b32.xlu0 %v6361, 32
      %v6545 = vpop.permute.xlu0 %6544
      %6546 = vrot.lane.b32.xlu0 %v6375, 32
      %v6547 = vpop.permute.xlu0 %6546
      %6548 = vrot.lane.b32.xlu0 %v6385, 32
      %v6549 = vpop.permute.xlu0 %6548
      %6550 = vrot.lane.b32.xlu0 %v6399, 32
      %v6551 = vpop.permute.xlu0 %6550
      %6552 = vrot.lane.b32.xlu0 %v6409, 32
      %v6553 = vpop.permute.xlu0 %6552
      %6554 = vrot.lane.b32.xlu0 %v6423, 32
      %v6555 = vpop.permute.xlu0 %6554
      %6556 = vrot.lane.b32.xlu0 %v6433, 32
      %v6557 = vpop.permute.xlu0 %6556
      %6558 = vrot.lane.b32.xlu0 %v6447, 32
      %v6559 = vpop.permute.xlu0 %6558
      %6560 = vrot.lane.b32.xlu0 %v6457, 32
      %v6561 = vpop.permute.xlu0 %6560
      %6562 = vrot.lane.b32.xlu0 %v6471, 32
      %v6563 = vpop.permute.xlu0 %6562
      %6564 = vrot.lane.b32.xlu0 %v6481, 32
      %v6565 = vpop.permute.xlu0 %6564
      %6566 = vrot.lane.b32.xlu0 %v6495, 32
      %v6567 = vpop.permute.xlu0 %6566
      %6568 = vrot.lane.b32.xlu0 %v6505, 32
      %v6569 = vpop.permute.xlu0 %6568
      %vm6602 = vcmask 322816
      %6603 = vst.msk [vmem:[#allocation4] sm:$0xf] %vm6602, %v6507
      %6604 = vst.msk [vmem:[#allocation4 + $0x4] sm:$0xf] %vm6602, %v6509
      %6605 = vst.msk [vmem:[#allocation4 + $0x8] sm:$0xf] %vm6602, %v6511
      %6606 = vst.msk [vmem:[#allocation4 + $0xc] sm:$0xf] %vm6602, %v6513
      %6607 = vst.msk [vmem:[#allocation4 + $0x10] sm:$0xf] %vm6602, %v6515
      %6608 = vst.msk [vmem:[#allocation4 + $0x14] sm:$0xf] %vm6602, %v6517
      %6609 = vst.msk [vmem:[#allocation4 + $0x18] sm:$0xf] %vm6602, %v6519
      %6610 = vst.msk [vmem:[#allocation4 + $0x1c] sm:$0xf] %vm6602, %v6521
      %6611 = vst.msk [vmem:[#allocation4 + $0x20] sm:$0xf] %vm6602, %v6523
      %6612 = vst.msk [vmem:[#allocation4 + $0x24] sm:$0xf] %vm6602, %v6525
      %6613 = vst.msk [vmem:[#allocation4 + $0x28] sm:$0xf] %vm6602, %v6527
      %6614 = vst.msk [vmem:[#allocation4 + $0x2c] sm:$0xf] %vm6602, %v6529
      %6615 = vst.msk [vmem:[#allocation4 + $0x30] sm:$0xf] %vm6602, %v6531
      %6616 = vst.msk [vmem:[#allocation4 + $0x34] sm:$0xf] %vm6602, %v6533
      %6617 = vst.msk [vmem:[#allocation4 + $0x38] sm:$0xf] %vm6602, %v6535
      %6618 = vst.msk [vmem:[#allocation4 + $0x3c] sm:$0xf] %vm6602, %v6537
      %6619 = vst.msk [vmem:[#allocation4 + $0x40] sm:$0xf] %vm6602, %v6539
      %6620 = vst.msk [vmem:[#allocation4 + $0x44] sm:$0xf] %vm6602, %v6541
      %6621 = vst.msk [vmem:[#allocation4 + $0x48] sm:$0xf] %vm6602, %v6543
      %6622 = vst.msk [vmem:[#allocation4 + $0x4c] sm:$0xf] %vm6602, %v6545
      %6623 = vst.msk [vmem:[#allocation4 + $0x50] sm:$0xf] %vm6602, %v6547
      %6624 = vst.msk [vmem:[#allocation4 + $0x54] sm:$0xf] %vm6602, %v6549
      %6625 = vst.msk [vmem:[#allocation4 + $0x58] sm:$0xf] %vm6602, %v6551
      %6626 = vst.msk [vmem:[#allocation4 + $0x5c] sm:$0xf] %vm6602, %v6553
      %6627 = vst.msk [vmem:[#allocation4 + $0x60] sm:$0xf] %vm6602, %v6555
      %6628 = vst.msk [vmem:[#allocation4 + $0x64] sm:$0xf] %vm6602, %v6557
      %6629 = vst.msk [vmem:[#allocation4 + $0x68] sm:$0xf] %vm6602, %v6559
      %6630 = vst.msk [vmem:[#allocation4 + $0x6c] sm:$0xf] %vm6602, %v6561
      %6631 = vst.msk [vmem:[#allocation4 + $0x70] sm:$0xf] %vm6602, %v6563
      %6632 = vst.msk [vmem:[#allocation4 + $0x74] sm:$0xf] %vm6602, %v6565
      %6633 = vst.msk [vmem:[#allocation4 + $0x78] sm:$0xf] %vm6602, %v6567
      %6634 = vst.msk [vmem:[#allocation4 + $0x7c] sm:$0xf] %vm6602, %v6569
      %v6635 = vld [vmem:[%s4804] sm:$0xe]
      %v6636 = vld [vmem:[%s4804 + $0x4] sm:$0xf]
      %v6637 = vld [vmem:[%s4804 + $0x8] sm:$0x1]
      %v6638 = vld [vmem:[%s4804 + $0xc] sm:$0xe]
      %v6639 = vld [vmem:[%s4804 + $0x10] sm:$0xf]
      %v6640 = vld [vmem:[%s4804 + $0x14] sm:$0x1]
      %v6641 = vld [vmem:[%s4804 + $0x18] sm:$0xe]
      %v6642 = vld [vmem:[%s4804 + $0x1c] sm:$0xf]
      %v6643 = vld [vmem:[%s4804 + $0x20] sm:$0x1]
      %v6644 = vld [vmem:[%s4804 + $0x24] sm:$0xe]
      %v6645 = vld [vmem:[%s4804 + $0x28] sm:$0xf]
      %v6646 = vld [vmem:[%s4804 + $0x2c] sm:$0x1]
      %v6647 = vld [vmem:[%s4804 + $0x30] sm:$0xe]
      %v6648 = vld [vmem:[%s4804 + $0x34] sm:$0xf]
      %v6649 = vld [vmem:[%s4804 + $0x38] sm:$0x1]
      %v6650 = vld [vmem:[%s4804 + $0x3c] sm:$0xe]
      %v6651 = vld [vmem:[%s4804 + $0x40] sm:$0xf]
      %v6652 = vld [vmem:[%s4804 + $0x44] sm:$0x1]
      %v6653 = vld [vmem:[%s4804 + $0x48] sm:$0xe]
      %v6654 = vld [vmem:[%s4804 + $0x4c] sm:$0xf]
      %v6655 = vld [vmem:[%s4804 + $0x50] sm:$0x1]
      %v6656 = vld [vmem:[%s4804 + $0x54] sm:$0xe]
      %v6657 = vld [vmem:[%s4804 + $0x58] sm:$0xf]
      %v6658 = vld [vmem:[%s4804 + $0x5c] sm:$0x1]
      %v6659 = vld [vmem:[%s4804 + $0x60] sm:$0xe]
      %v6660 = vld [vmem:[%s4804 + $0x64] sm:$0xf]
      %v6661 = vld [vmem:[%s4804 + $0x68] sm:$0x1]
      %v6662 = vld [vmem:[%s4804 + $0x6c] sm:$0xe]
      %v6663 = vld [vmem:[%s4804 + $0x70] sm:$0xf]
      %v6664 = vld [vmem:[%s4804 + $0x74] sm:$0x1]
      %v6665 = vld [vmem:[%s4804 + $0x78] sm:$0xe]
      %v6666 = vld [vmem:[%s4804 + $0x7c] sm:$0xf]
      %v6667 = vld [vmem:[%s4804 + $0x80] sm:$0x1]
      %v6668 = vld [vmem:[%s4804 + $0x84] sm:$0xe]
      %v6669 = vld [vmem:[%s4804 + $0x88] sm:$0xf]
      %v6670 = vld [vmem:[%s4804 + $0x8c] sm:$0x1]
      %v6671 = vld [vmem:[%s4804 + $0x90] sm:$0xe]
      %v6672 = vld [vmem:[%s4804 + $0x94] sm:$0xf]
      %v6673 = vld [vmem:[%s4804 + $0x98] sm:$0x1]
      %v6674 = vld [vmem:[%s4804 + $0x9c] sm:$0xe]
      %v6675 = vld [vmem:[%s4804 + $0xa0] sm:$0xf]
      %v6676 = vld [vmem:[%s4804 + $0xa4] sm:$0x1]
      %v6677 = vld [vmem:[%s4804 + $0xa8] sm:$0xe]
      %v6678 = vld [vmem:[%s4804 + $0xac] sm:$0xf]
      %v6679 = vld [vmem:[%s4804 + $0xb0] sm:$0x1]
      %v6680 = vld [vmem:[%s4804 + $0xb4] sm:$0xe]
      %v6681 = vld [vmem:[%s4804 + $0xb8] sm:$0xf]
      %v6682 = vld [vmem:[%s4804 + $0xbc] sm:$0x1]
      %v6731 = vrot.slane %v6635, 5
      %v6732 = vrot.slane %v6731, 4
      %v6733 = vrot.slane %v6636, 5
      %v6734 = vsel %vm1597, %v6732, %v6733
      %v6735 = vrot.slane %v6733, 4
      %v6736 = vrot.slane %v6637, 5
      %v6737 = vsel %vm1597, %v6735, %v6736
      %v6738 = vrot.slane %v6638, 5
      %v6739 = vrot.slane %v6738, 4
      %v6740 = vrot.slane %v6639, 5
      %v6741 = vsel %vm1597, %v6739, %v6740
      %v6742 = vrot.slane %v6740, 4
      %v6743 = vrot.slane %v6640, 5
      %v6744 = vsel %vm1597, %v6742, %v6743
      %v6745 = vrot.slane %v6641, 5
      %v6746 = vrot.slane %v6745, 4
      %v6747 = vrot.slane %v6642, 5
      %v6748 = vsel %vm1597, %v6746, %v6747
      %v6749 = vrot.slane %v6747, 4
      %v6750 = vrot.slane %v6643, 5
      %v6751 = vsel %vm1597, %v6749, %v6750
      %v6752 = vrot.slane %v6644, 5
      %v6753 = vrot.slane %v6752, 4
      %v6754 = vrot.slane %v6645, 5
      %v6755 = vsel %vm1597, %v6753, %v6754
      %v6756 = vrot.slane %v6754, 4
      %v6757 = vrot.slane %v6646, 5
      %v6758 = vsel %vm1597, %v6756, %v6757
      %v6759 = vrot.slane %v6647, 5
      %v6760 = vrot.slane %v6759, 4
      %v6761 = vrot.slane %v6648, 5
      %v6762 = vsel %vm1597, %v6760, %v6761
      %v6763 = vrot.slane %v6761, 4
      %v6764 = vrot.slane %v6649, 5
      %v6765 = vsel %vm1597, %v6763, %v6764
      %v6766 = vrot.slane %v6650, 5
      %v6767 = vrot.slane %v6766, 4
      %v6768 = vrot.slane %v6651, 5
      %v6769 = vsel %vm1597, %v6767, %v6768
      %v6770 = vrot.slane %v6768, 4
      %v6771 = vrot.slane %v6652, 5
      %v6772 = vsel %vm1597, %v6770, %v6771
      %v6773 = vrot.slane %v6653, 5
      %v6774 = vrot.slane %v6773, 4
      %v6775 = vrot.slane %v6654, 5
      %v6776 = vsel %vm1597, %v6774, %v6775
      %v6777 = vrot.slane %v6775, 4
      %v6778 = vrot.slane %v6655, 5
      %v6779 = vsel %vm1597, %v6777, %v6778
      %v6780 = vrot.slane %v6656, 5
      %v6781 = vrot.slane %v6780, 4
      %v6782 = vrot.slane %v6657, 5
      %v6783 = vsel %vm1597, %v6781, %v6782
      %v6784 = vrot.slane %v6782, 4
      %v6785 = vrot.slane %v6658, 5
      %v6786 = vsel %vm1597, %v6784, %v6785
      %v6787 = vrot.slane %v6659, 5
      %v6788 = vrot.slane %v6787, 4
      %v6789 = vrot.slane %v6660, 5
      %v6790 = vsel %vm1597, %v6788, %v6789
      %v6791 = vrot.slane %v6789, 4
      %v6792 = vrot.slane %v6661, 5
      %v6793 = vsel %vm1597, %v6791, %v6792
      %v6794 = vrot.slane %v6662, 5
      %v6795 = vrot.slane %v6794, 4
      %v6796 = vrot.slane %v6663, 5
      %v6797 = vsel %vm1597, %v6795, %v6796
      %v6798 = vrot.slane %v6796, 4
      %v6799 = vrot.slane %v6664, 5
      %v6800 = vsel %vm1597, %v6798, %v6799
      %v6801 = vrot.slane %v6665, 5
      %v6802 = vrot.slane %v6801, 4
      %v6803 = vrot.slane %v6666, 5
      %v6804 = vsel %vm1597, %v6802, %v6803
      %v6805 = vrot.slane %v6803, 4
      %v6806 = vrot.slane %v6667, 5
      %v6807 = vsel %vm1597, %v6805, %v6806
      %v6808 = vrot.slane %v6668, 5
      %v6809 = vrot.slane %v6808, 4
      %v6810 = vrot.slane %v6669, 5
      %v6811 = vsel %vm1597, %v6809, %v6810
      %v6812 = vrot.slane %v6810, 4
      %v6813 = vrot.slane %v6670, 5
      %v6814 = vsel %vm1597, %v6812, %v6813
      %v6815 = vrot.slane %v6671, 5
      %v6816 = vrot.slane %v6815, 4
      %v6817 = vrot.slane %v6672, 5
      %v6818 = vsel %vm1597, %v6816, %v6817
      %v6819 = vrot.slane %v6817, 4
      %v6820 = vrot.slane %v6673, 5
      %v6821 = vsel %vm1597, %v6819, %v6820
      %v6822 = vrot.slane %v6674, 5
      %v6823 = vrot.slane %v6822, 4
      %v6824 = vrot.slane %v6675, 5
      %v6825 = vsel %vm1597, %v6823, %v6824
      %v6826 = vrot.slane %v6824, 4
      %v6827 = vrot.slane %v6676, 5
      %v6828 = vsel %vm1597, %v6826, %v6827
      %v6829 = vrot.slane %v6677, 5
      %v6830 = vrot.slane %v6829, 4
      %v6831 = vrot.slane %v6678, 5
      %v6832 = vsel %vm1597, %v6830, %v6831
      %v6833 = vrot.slane %v6831, 4
      %v6834 = vrot.slane %v6679, 5
      %v6835 = vsel %vm1597, %v6833, %v6834
      %v6836 = vrot.slane %v6680, 5
      %v6837 = vrot.slane %v6836, 4
      %v6838 = vrot.slane %v6681, 5
      %v6839 = vsel %vm1597, %v6837, %v6838
      %v6840 = vrot.slane %v6838, 4
      %v6841 = vrot.slane %v6682, 5
      %v6842 = vsel %vm1597, %v6840, %v6841
      %6843 = vrot.lane.b32.xlu0 %v6734, 40
      %v6844 = vpop.permute.xlu0 %6843
      %6845 = vrot.lane.b32.xlu0 %v6737, 40
      %v6846 = vpop.permute.xlu0 %6845
      %6847 = vrot.lane.b32.xlu0 %v6741, 40
      %v6848 = vpop.permute.xlu0 %6847
      %6849 = vrot.lane.b32.xlu0 %v6744, 40
      %v6850 = vpop.permute.xlu0 %6849
      %6851 = vrot.lane.b32.xlu0 %v6748, 40
      %v6852 = vpop.permute.xlu0 %6851
      %6853 = vrot.lane.b32.xlu0 %v6751, 40
      %v6854 = vpop.permute.xlu0 %6853
      %6855 = vrot.lane.b32.xlu0 %v6755, 40
      %v6856 = vpop.permute.xlu0 %6855
      %6857 = vrot.lane.b32.xlu0 %v6758, 40
      %v6858 = vpop.permute.xlu0 %6857
      %6859 = vrot.lane.b32.xlu0 %v6762, 40
      %v6860 = vpop.permute.xlu0 %6859
      %6861 = vrot.lane.b32.xlu0 %v6765, 40
      %v6862 = vpop.permute.xlu0 %6861
      %6863 = vrot.lane.b32.xlu0 %v6769, 40
      %v6864 = vpop.permute.xlu0 %6863
      %6865 = vrot.lane.b32.xlu0 %v6772, 40
      %v6866 = vpop.permute.xlu0 %6865
      %6867 = vrot.lane.b32.xlu0 %v6776, 40
      %v6868 = vpop.permute.xlu0 %6867
      %6869 = vrot.lane.b32.xlu0 %v6779, 40
      %v6870 = vpop.permute.xlu0 %6869
      %6871 = vrot.lane.b32.xlu0 %v6783, 40
      %v6872 = vpop.permute.xlu0 %6871
      %6873 = vrot.lane.b32.xlu0 %v6786, 40
      %v6874 = vpop.permute.xlu0 %6873
      %6875 = vrot.lane.b32.xlu0 %v6790, 40
      %v6876 = vpop.permute.xlu0 %6875
      %6877 = vrot.lane.b32.xlu0 %v6793, 40
      %v6878 = vpop.permute.xlu0 %6877
      %6879 = vrot.lane.b32.xlu0 %v6797, 40
      %v6880 = vpop.permute.xlu0 %6879
      %6881 = vrot.lane.b32.xlu0 %v6800, 40
      %v6882 = vpop.permute.xlu0 %6881
      %6883 = vrot.lane.b32.xlu0 %v6804, 40
      %v6884 = vpop.permute.xlu0 %6883
      %6885 = vrot.lane.b32.xlu0 %v6807, 40
      %v6886 = vpop.permute.xlu0 %6885
      %6887 = vrot.lane.b32.xlu0 %v6811, 40
      %v6888 = vpop.permute.xlu0 %6887
      %6889 = vrot.lane.b32.xlu0 %v6814, 40
      %v6890 = vpop.permute.xlu0 %6889
      %6891 = vrot.lane.b32.xlu0 %v6818, 40
      %v6892 = vpop.permute.xlu0 %6891
      %6893 = vrot.lane.b32.xlu0 %v6821, 40
      %v6894 = vpop.permute.xlu0 %6893
      %6895 = vrot.lane.b32.xlu0 %v6825, 40
      %v6896 = vpop.permute.xlu0 %6895
      %6897 = vrot.lane.b32.xlu0 %v6828, 40
      %v6898 = vpop.permute.xlu0 %6897
      %6899 = vrot.lane.b32.xlu0 %v6832, 40
      %v6900 = vpop.permute.xlu0 %6899
      %6901 = vrot.lane.b32.xlu0 %v6835, 40
      %v6902 = vpop.permute.xlu0 %6901
      %6903 = vrot.lane.b32.xlu0 %v6839, 40
      %v6904 = vpop.permute.xlu0 %6903
      %6905 = vrot.lane.b32.xlu0 %v6842, 40
      %v6906 = vpop.permute.xlu0 %6905
      %vm6939 = vcmask 388416
      %6940 = vst.msk [vmem:[#allocation4] sm:$0xf] %vm6939, %v6844
      %6941 = vst.msk [vmem:[#allocation4 + $0x4] sm:$0xf] %vm6939, %v6846
      %6942 = vst.msk [vmem:[#allocation4 + $0x8] sm:$0xf] %vm6939, %v6848
      %6943 = vst.msk [vmem:[#allocation4 + $0xc] sm:$0xf] %vm6939, %v6850
      %6944 = vst.msk [vmem:[#allocation4 + $0x10] sm:$0xf] %vm6939, %v6852
      %6945 = vst.msk [vmem:[#allocation4 + $0x14] sm:$0xf] %vm6939, %v6854
      %6946 = vst.msk [vmem:[#allocation4 + $0x18] sm:$0xf] %vm6939, %v6856
      %6947 = vst.msk [vmem:[#allocation4 + $0x1c] sm:$0xf] %vm6939, %v6858
      %6948 = vst.msk [vmem:[#allocation4 + $0x20] sm:$0xf] %vm6939, %v6860
      %6949 = vst.msk [vmem:[#allocation4 + $0x24] sm:$0xf] %vm6939, %v6862
      %6950 = vst.msk [vmem:[#allocation4 + $0x28] sm:$0xf] %vm6939, %v6864
      %6951 = vst.msk [vmem:[#allocation4 + $0x2c] sm:$0xf] %vm6939, %v6866
      %6952 = vst.msk [vmem:[#allocation4 + $0x30] sm:$0xf] %vm6939, %v6868
      %6953 = vst.msk [vmem:[#allocation4 + $0x34] sm:$0xf] %vm6939, %v6870
      %6954 = vst.msk [vmem:[#allocation4 + $0x38] sm:$0xf] %vm6939, %v6872
      %6955 = vst.msk [vmem:[#allocation4 + $0x3c] sm:$0xf] %vm6939, %v6874
      %6956 = vst.msk [vmem:[#allocation4 + $0x40] sm:$0xf] %vm6939, %v6876
      %6957 = vst.msk [vmem:[#allocation4 + $0x44] sm:$0xf] %vm6939, %v6878
      %6958 = vst.msk [vmem:[#allocation4 + $0x48] sm:$0xf] %vm6939, %v6880
      %6959 = vst.msk [vmem:[#allocation4 + $0x4c] sm:$0xf] %vm6939, %v6882
      %6960 = vst.msk [vmem:[#allocation4 + $0x50] sm:$0xf] %vm6939, %v6884
      %6961 = vst.msk [vmem:[#allocation4 + $0x54] sm:$0xf] %vm6939, %v6886
      %6962 = vst.msk [vmem:[#allocation4 + $0x58] sm:$0xf] %vm6939, %v6888
      %6963 = vst.msk [vmem:[#allocation4 + $0x5c] sm:$0xf] %vm6939, %v6890
      %6964 = vst.msk [vmem:[#allocation4 + $0x60] sm:$0xf] %vm6939, %v6892
      %6965 = vst.msk [vmem:[#allocation4 + $0x64] sm:$0xf] %vm6939, %v6894
      %6966 = vst.msk [vmem:[#allocation4 + $0x68] sm:$0xf] %vm6939, %v6896
      %6967 = vst.msk [vmem:[#allocation4 + $0x6c] sm:$0xf] %vm6939, %v6898
      %6968 = vst.msk [vmem:[#allocation4 + $0x70] sm:$0xf] %vm6939, %v6900
      %6969 = vst.msk [vmem:[#allocation4 + $0x74] sm:$0xf] %vm6939, %v6902
      %6970 = vst.msk [vmem:[#allocation4 + $0x78] sm:$0xf] %vm6939, %v6904
      %6971 = vst.msk [vmem:[#allocation4 + $0x7c] sm:$0xf] %vm6939, %v6906
      %s6972 = scalar_lea.vmem [#allocation3], 24
      %v6973 = vld [vmem:[%s6972] sm:$0xf]
      %v6974 = vld [vmem:[%s6972 + $0x4] sm:$0xf]
      %v6975 = vld [vmem:[%s6972 + $0xc] sm:$0xf]
      %v6976 = vld [vmem:[%s6972 + $0x10] sm:$0xf]
      %v6977 = vld [vmem:[%s6972 + $0x18] sm:$0xf]
      %v6978 = vld [vmem:[%s6972 + $0x1c] sm:$0xf]
      %v6979 = vld [vmem:[%s6972 + $0x24] sm:$0xf]
      %v6980 = vld [vmem:[%s6972 + $0x28] sm:$0xf]
      %v6981 = vld [vmem:[%s6972 + $0x30] sm:$0xf]
      %v6982 = vld [vmem:[%s6972 + $0x34] sm:$0xf]
      %v6983 = vld [vmem:[%s6972 + $0x3c] sm:$0xf]
      %v6984 = vld [vmem:[%s6972 + $0x40] sm:$0xf]
      %v6985 = vld [vmem:[%s6972 + $0x48] sm:$0xf]
      %v6986 = vld [vmem:[%s6972 + $0x4c] sm:$0xf]
      %v6987 = vld [vmem:[%s6972 + $0x54] sm:$0xf]
      %v6988 = vld [vmem:[%s6972 + $0x58] sm:$0xf]
      %v6989 = vld [vmem:[%s6972 + $0x60] sm:$0xf]
      %v6990 = vld [vmem:[%s6972 + $0x64] sm:$0xf]
      %v6991 = vld [vmem:[%s6972 + $0x6c] sm:$0xf]
      %v6992 = vld [vmem:[%s6972 + $0x70] sm:$0xf]
      %v6993 = vld [vmem:[%s6972 + $0x78] sm:$0xf]
      %v6994 = vld [vmem:[%s6972 + $0x7c] sm:$0xf]
      %v6995 = vld [vmem:[%s6972 + $0x84] sm:$0xf]
      %v6996 = vld [vmem:[%s6972 + $0x88] sm:$0xf]
      %v6997 = vld [vmem:[%s6972 + $0x90] sm:$0xf]
      %v6998 = vld [vmem:[%s6972 + $0x94] sm:$0xf]
      %v6999 = vld [vmem:[%s6972 + $0x9c] sm:$0xf]
      %v7000 = vld [vmem:[%s6972 + $0xa0] sm:$0xf]
      %v7001 = vld [vmem:[%s6972 + $0xa8] sm:$0xf]
      %v7002 = vld [vmem:[%s6972 + $0xac] sm:$0xf]
      %v7003 = vld [vmem:[%s6972 + $0xb4] sm:$0xf]
      %v7004 = vld [vmem:[%s6972 + $0xb8] sm:$0xf]
      %7037 = vrot.lane.b32.xlu0 %v6973, 48
      %v7038 = vpop.permute.xlu0 %7037
      %7039 = vrot.lane.b32.xlu0 %v6974, 48
      %v7040 = vpop.permute.xlu0 %7039
      %7041 = vrot.lane.b32.xlu0 %v6975, 48
      %v7042 = vpop.permute.xlu0 %7041
      %7043 = vrot.lane.b32.xlu0 %v6976, 48
      %v7044 = vpop.permute.xlu0 %7043
      %7045 = vrot.lane.b32.xlu0 %v6977, 48
      %v7046 = vpop.permute.xlu0 %7045
      %7047 = vrot.lane.b32.xlu0 %v6978, 48
      %v7048 = vpop.permute.xlu0 %7047
      %7049 = vrot.lane.b32.xlu0 %v6979, 48
      %v7050 = vpop.permute.xlu0 %7049
      %7051 = vrot.lane.b32.xlu0 %v6980, 48
      %v7052 = vpop.permute.xlu0 %7051
      %7053 = vrot.lane.b32.xlu0 %v6981, 48
      %v7054 = vpop.permute.xlu0 %7053
      %7055 = vrot.lane.b32.xlu0 %v6982, 48
      %v7056 = vpop.permute.xlu0 %7055
      %7057 = vrot.lane.b32.xlu0 %v6983, 48
      %v7058 = vpop.permute.xlu0 %7057
      %7059 = vrot.lane.b32.xlu0 %v6984, 48
      %v7060 = vpop.permute.xlu0 %7059
      %7061 = vrot.lane.b32.xlu0 %v6985, 48
      %v7062 = vpop.permute.xlu0 %7061
      %7063 = vrot.lane.b32.xlu0 %v6986, 48
      %v7064 = vpop.permute.xlu0 %7063
      %7065 = vrot.lane.b32.xlu0 %v6987, 48
      %v7066 = vpop.permute.xlu0 %7065
      %7067 = vrot.lane.b32.xlu0 %v6988, 48
      %v7068 = vpop.permute.xlu0 %7067
      %7069 = vrot.lane.b32.xlu0 %v6989, 48
      %v7070 = vpop.permute.xlu0 %7069
      %7071 = vrot.lane.b32.xlu0 %v6990, 48
      %v7072 = vpop.permute.xlu0 %7071
      %7073 = vrot.lane.b32.xlu0 %v6991, 48
      %v7074 = vpop.permute.xlu0 %7073
      %7075 = vrot.lane.b32.xlu0 %v6992, 48
      %v7076 = vpop.permute.xlu0 %7075
      %7077 = vrot.lane.b32.xlu0 %v6993, 48
      %v7078 = vpop.permute.xlu0 %7077
      %7079 = vrot.lane.b32.xlu0 %v6994, 48
      %v7080 = vpop.permute.xlu0 %7079
      %7081 = vrot.lane.b32.xlu0 %v6995, 48
      %v7082 = vpop.permute.xlu0 %7081
      %7083 = vrot.lane.b32.xlu0 %v6996, 48
      %v7084 = vpop.permute.xlu0 %7083
      %7085 = vrot.lane.b32.xlu0 %v6997, 48
      %v7086 = vpop.permute.xlu0 %7085
      %7087 = vrot.lane.b32.xlu0 %v6998, 48
      %v7088 = vpop.permute.xlu0 %7087
      %7089 = vrot.lane.b32.xlu0 %v6999, 48
      %v7090 = vpop.permute.xlu0 %7089
      %7091 = vrot.lane.b32.xlu0 %v7000, 48
      %v7092 = vpop.permute.xlu0 %7091
      %7093 = vrot.lane.b32.xlu0 %v7001, 48
      %v7094 = vpop.permute.xlu0 %7093
      %7095 = vrot.lane.b32.xlu0 %v7002, 48
      %v7096 = vpop.permute.xlu0 %7095
      %7097 = vrot.lane.b32.xlu0 %v7003, 48
      %v7098 = vpop.permute.xlu0 %7097
      %7099 = vrot.lane.b32.xlu0 %v7004, 48
      %v7100 = vpop.permute.xlu0 %7099
      %vm7133 = vcmask 454016
      %7134 = vst.msk [vmem:[#allocation4] sm:$0xf] %vm7133, %v7038
      %7135 = vst.msk [vmem:[#allocation4 + $0x4] sm:$0xf] %vm7133, %v7040
      %7136 = vst.msk [vmem:[#allocation4 + $0x8] sm:$0xf] %vm7133, %v7042
      %7137 = vst.msk [vmem:[#allocation4 + $0xc] sm:$0xf] %vm7133, %v7044
      %7138 = vst.msk [vmem:[#allocation4 + $0x10] sm:$0xf] %vm7133, %v7046
      %7139 = vst.msk [vmem:[#allocation4 + $0x14] sm:$0xf] %vm7133, %v7048
      %7140 = vst.msk [vmem:[#allocation4 + $0x18] sm:$0xf] %vm7133, %v7050
      %7141 = vst.msk [vmem:[#allocation4 + $0x1c] sm:$0xf] %vm7133, %v7052
      %7142 = vst.msk [vmem:[#allocation4 + $0x20] sm:$0xf] %vm7133, %v7054
      %7143 = vst.msk [vmem:[#allocation4 + $0x24] sm:$0xf] %vm7133, %v7056
      %7144 = vst.msk [vmem:[#allocation4 + $0x28] sm:$0xf] %vm7133, %v7058
      %7145 = vst.msk [vmem:[#allocation4 + $0x2c] sm:$0xf] %vm7133, %v7060
      %7146 = vst.msk [vmem:[#allocation4 + $0x30] sm:$0xf] %vm7133, %v7062
      %7147 = vst.msk [vmem:[#allocation4 + $0x34] sm:$0xf] %vm7133, %v7064
      %7148 = vst.msk [vmem:[#allocation4 + $0x38] sm:$0xf] %vm7133, %v7066
      %7149 = vst.msk [vmem:[#allocation4 + $0x3c] sm:$0xf] %vm7133, %v7068
      %7150 = vst.msk [vmem:[#allocation4 + $0x40] sm:$0xf] %vm7133, %v7070
      %7151 = vst.msk [vmem:[#allocation4 + $0x44] sm:$0xf] %vm7133, %v7072
      %7152 = vst.msk [vmem:[#allocation4 + $0x48] sm:$0xf] %vm7133, %v7074
      %7153 = vst.msk [vmem:[#allocation4 + $0x4c] sm:$0xf] %vm7133, %v7076
      %7154 = vst.msk [vmem:[#allocation4 + $0x50] sm:$0xf] %vm7133, %v7078
      %7155 = vst.msk [vmem:[#allocation4 + $0x54] sm:$0xf] %vm7133, %v7080
      %7156 = vst.msk [vmem:[#allocation4 + $0x58] sm:$0xf] %vm7133, %v7082
      %7157 = vst.msk [vmem:[#allocation4 + $0x5c] sm:$0xf] %vm7133, %v7084
      %7158 = vst.msk [vmem:[#allocation4 + $0x60] sm:$0xf] %vm7133, %v7086
      %7159 = vst.msk [vmem:[#allocation4 + $0x64] sm:$0xf] %vm7133, %v7088
      %7160 = vst.msk [vmem:[#allocation4 + $0x68] sm:$0xf] %vm7133, %v7090
      %7161 = vst.msk [vmem:[#allocation4 + $0x6c] sm:$0xf] %vm7133, %v7092
      %7162 = vst.msk [vmem:[#allocation4 + $0x70] sm:$0xf] %vm7133, %v7094
      %7163 = vst.msk [vmem:[#allocation4 + $0x74] sm:$0xf] %vm7133, %v7096
      %7164 = vst.msk [vmem:[#allocation4 + $0x78] sm:$0xf] %vm7133, %v7098
      %7165 = vst.msk [vmem:[#allocation4 + $0x7c] sm:$0xf] %vm7133, %v7100
      %v7166 = vld [vmem:[%s6972] sm:$0xf]
      %v7167 = vld [vmem:[%s6972 + $0x4] sm:$0xf]
      %v7168 = vld [vmem:[%s6972 + $0x8] sm:$0x1]
      %v7169 = vld [vmem:[%s6972 + $0xc] sm:$0xf]
      %v7170 = vld [vmem:[%s6972 + $0x10] sm:$0xf]
      %v7171 = vld [vmem:[%s6972 + $0x14] sm:$0x1]
      %v7172 = vld [vmem:[%s6972 + $0x18] sm:$0xf]
      %v7173 = vld [vmem:[%s6972 + $0x1c] sm:$0xf]
      %v7174 = vld [vmem:[%s6972 + $0x20] sm:$0x1]
      %v7175 = vld [vmem:[%s6972 + $0x24] sm:$0xf]
      %v7176 = vld [vmem:[%s6972 + $0x28] sm:$0xf]
      %v7177 = vld [vmem:[%s6972 + $0x2c] sm:$0x1]
      %v7178 = vld [vmem:[%s6972 + $0x30] sm:$0xf]
      %v7179 = vld [vmem:[%s6972 + $0x34] sm:$0xf]
      %v7180 = vld [vmem:[%s6972 + $0x38] sm:$0x1]
      %v7181 = vld [vmem:[%s6972 + $0x3c] sm:$0xf]
      %v7182 = vld [vmem:[%s6972 + $0x40] sm:$0xf]
      %v7183 = vld [vmem:[%s6972 + $0x44] sm:$0x1]
      %v7184 = vld [vmem:[%s6972 + $0x48] sm:$0xf]
      %v7185 = vld [vmem:[%s6972 + $0x4c] sm:$0xf]
      %v7186 = vld [vmem:[%s6972 + $0x50] sm:$0x1]
      %v7187 = vld [vmem:[%s6972 + $0x54] sm:$0xf]
      %v7188 = vld [vmem:[%s6972 + $0x58] sm:$0xf]
      %v7189 = vld [vmem:[%s6972 + $0x5c] sm:$0x1]
      %v7190 = vld [vmem:[%s6972 + $0x60] sm:$0xf]
      %v7191 = vld [vmem:[%s6972 + $0x64] sm:$0xf]
      %v7192 = vld [vmem:[%s6972 + $0x68] sm:$0x1]
      %v7193 = vld [vmem:[%s6972 + $0x6c] sm:$0xf]
      %v7194 = vld [vmem:[%s6972 + $0x70] sm:$0xf]
      %v7195 = vld [vmem:[%s6972 + $0x74] sm:$0x1]
      %v7196 = vld [vmem:[%s6972 + $0x78] sm:$0xf]
      %v7197 = vld [vmem:[%s6972 + $0x7c] sm:$0xf]
      %v7198 = vld [vmem:[%s6972 + $0x80] sm:$0x1]
      %v7199 = vld [vmem:[%s6972 + $0x84] sm:$0xf]
      %v7200 = vld [vmem:[%s6972 + $0x88] sm:$0xf]
      %v7201 = vld [vmem:[%s6972 + $0x8c] sm:$0x1]
      %v7202 = vld [vmem:[%s6972 + $0x90] sm:$0xf]
      %v7203 = vld [vmem:[%s6972 + $0x94] sm:$0xf]
      %v7204 = vld [vmem:[%s6972 + $0x98] sm:$0x1]
      %v7205 = vld [vmem:[%s6972 + $0x9c] sm:$0xf]
      %v7206 = vld [vmem:[%s6972 + $0xa0] sm:$0xf]
      %v7207 = vld [vmem:[%s6972 + $0xa4] sm:$0x1]
      %v7208 = vld [vmem:[%s6972 + $0xa8] sm:$0xf]
      %v7209 = vld [vmem:[%s6972 + $0xac] sm:$0xf]
      %v7210 = vld [vmem:[%s6972 + $0xb0] sm:$0x1]
      %v7211 = vld [vmem:[%s6972 + $0xb4] sm:$0xf]
      %v7212 = vld [vmem:[%s6972 + $0xb8] sm:$0xf]
      %v7213 = vld [vmem:[%s6972 + $0xbc] sm:$0x1]
      %v7215 = vshrl.u32 %v7166, 16
      %v7217 = vrot.slane %v7215, 4
      %v7218 = vshll.u32 %v7166, 16
      %v7220 = vrot.slane %v7218, 5
      %v7221 = vor.u32 %v7217, %v7220
      %v7222 = vrot.slane %v7221, 4
      %v7224 = vshll.u32 %v7167, 16
      %v7226 = vrot.slane %v7224, 5
      %v7227 = vsel %vm985, %v7222, %v7226
      %v7228 = vshrl.u32 %v7167, 16
      %v7230 = vrot.slane %v7228, 4
      %v7231 = vor.u32 %v7230, %v7226
      %v7232 = vrot.slane %v7231, 4
      %v7234 = vshll.u32 %v7168, 16
      %v7236 = vrot.slane %v7234, 5
      %v7237 = vsel %vm985, %v7232, %v7236
      %v7239 = vshrl.u32 %v7169, 16
      %v7241 = vrot.slane %v7239, 4
      %v7242 = vshll.u32 %v7169, 16
      %v7244 = vrot.slane %v7242, 5
      %v7245 = vor.u32 %v7241, %v7244
      %v7246 = vrot.slane %v7245, 4
      %v7248 = vshll.u32 %v7170, 16
      %v7250 = vrot.slane %v7248, 5
      %v7251 = vsel %vm985, %v7246, %v7250
      %v7252 = vshrl.u32 %v7170, 16
      %v7254 = vrot.slane %v7252, 4
      %v7255 = vor.u32 %v7254, %v7250
      %v7256 = vrot.slane %v7255, 4
      %v7258 = vshll.u32 %v7171, 16
      %v7260 = vrot.slane %v7258, 5
      %v7261 = vsel %vm985, %v7256, %v7260
      %v7263 = vshrl.u32 %v7172, 16
      %v7265 = vrot.slane %v7263, 4
      %v7266 = vshll.u32 %v7172, 16
      %v7268 = vrot.slane %v7266, 5
      %v7269 = vor.u32 %v7265, %v7268
      %v7270 = vrot.slane %v7269, 4
      %v7272 = vshll.u32 %v7173, 16
      %v7274 = vrot.slane %v7272, 5
      %v7275 = vsel %vm985, %v7270, %v7274
      %v7276 = vshrl.u32 %v7173, 16
      %v7278 = vrot.slane %v7276, 4
      %v7279 = vor.u32 %v7278, %v7274
      %v7280 = vrot.slane %v7279, 4
      %v7282 = vshll.u32 %v7174, 16
      %v7284 = vrot.slane %v7282, 5
      %v7285 = vsel %vm985, %v7280, %v7284
      %v7287 = vshrl.u32 %v7175, 16
      %v7289 = vrot.slane %v7287, 4
      %v7290 = vshll.u32 %v7175, 16
      %v7292 = vrot.slane %v7290, 5
      %v7293 = vor.u32 %v7289, %v7292
      %v7294 = vrot.slane %v7293, 4
      %v7296 = vshll.u32 %v7176, 16
      %v7298 = vrot.slane %v7296, 5
      %v7299 = vsel %vm985, %v7294, %v7298
      %v7300 = vshrl.u32 %v7176, 16
      %v7302 = vrot.slane %v7300, 4
      %v7303 = vor.u32 %v7302, %v7298
      %v7304 = vrot.slane %v7303, 4
      %v7306 = vshll.u32 %v7177, 16
      %v7308 = vrot.slane %v7306, 5
      %v7309 = vsel %vm985, %v7304, %v7308
      %v7311 = vshrl.u32 %v7178, 16
      %v7313 = vrot.slane %v7311, 4
      %v7314 = vshll.u32 %v7178, 16
      %v7316 = vrot.slane %v7314, 5
      %v7317 = vor.u32 %v7313, %v7316
      %v7318 = vrot.slane %v7317, 4
      %v7320 = vshll.u32 %v7179, 16
      %v7322 = vrot.slane %v7320, 5
      %v7323 = vsel %vm985, %v7318, %v7322
      %v7324 = vshrl.u32 %v7179, 16
      %v7326 = vrot.slane %v7324, 4
      %v7327 = vor.u32 %v7326, %v7322
      %v7328 = vrot.slane %v7327, 4
      %v7330 = vshll.u32 %v7180, 16
      %v7332 = vrot.slane %v7330, 5
      %v7333 = vsel %vm985, %v7328, %v7332
      %v7335 = vshrl.u32 %v7181, 16
      %v7337 = vrot.slane %v7335, 4
      %v7338 = vshll.u32 %v7181, 16
      %v7340 = vrot.slane %v7338, 5
      %v7341 = vor.u32 %v7337, %v7340
      %v7342 = vrot.slane %v7341, 4
      %v7344 = vshll.u32 %v7182, 16
      %v7346 = vrot.slane %v7344, 5
      %v7347 = vsel %vm985, %v7342, %v7346
      %v7348 = vshrl.u32 %v7182, 16
      %v7350 = vrot.slane %v7348, 4
      %v7351 = vor.u32 %v7350, %v7346
      %v7352 = vrot.slane %v7351, 4
      %v7354 = vshll.u32 %v7183, 16
      %v7356 = vrot.slane %v7354, 5
      %v7357 = vsel %vm985, %v7352, %v7356
      %v7359 = vshrl.u32 %v7184, 16
      %v7361 = vrot.slane %v7359, 4
      %v7362 = vshll.u32 %v7184, 16
      %v7364 = vrot.slane %v7362, 5
      %v7365 = vor.u32 %v7361, %v7364
      %v7366 = vrot.slane %v7365, 4
      %v7368 = vshll.u32 %v7185, 16
      %v7370 = vrot.slane %v7368, 5
      %v7371 = vsel %vm985, %v7366, %v7370
      %v7372 = vshrl.u32 %v7185, 16
      %v7374 = vrot.slane %v7372, 4
      %v7375 = vor.u32 %v7374, %v7370
      %v7376 = vrot.slane %v7375, 4
      %v7378 = vshll.u32 %v7186, 16
      %v7380 = vrot.slane %v7378, 5
      %v7381 = vsel %vm985, %v7376, %v7380
      %v7383 = vshrl.u32 %v7187, 16
      %v7385 = vrot.slane %v7383, 4
      %v7386 = vshll.u32 %v7187, 16
      %v7388 = vrot.slane %v7386, 5
      %v7389 = vor.u32 %v7385, %v7388
      %v7390 = vrot.slane %v7389, 4
      %v7392 = vshll.u32 %v7188, 16
      %v7394 = vrot.slane %v7392, 5
      %v7395 = vsel %vm985, %v7390, %v7394
      %v7396 = vshrl.u32 %v7188, 16
      %v7398 = vrot.slane %v7396, 4
      %v7399 = vor.u32 %v7398, %v7394
      %v7400 = vrot.slane %v7399, 4
      %v7402 = vshll.u32 %v7189, 16
      %v7404 = vrot.slane %v7402, 5
      %v7405 = vsel %vm985, %v7400, %v7404
      %v7407 = vshrl.u32 %v7190, 16
      %v7409 = vrot.slane %v7407, 4
      %v7410 = vshll.u32 %v7190, 16
      %v7412 = vrot.slane %v7410, 5
      %v7413 = vor.u32 %v7409, %v7412
      %v7414 = vrot.slane %v7413, 4
      %v7416 = vshll.u32 %v7191, 16
      %v7418 = vrot.slane %v7416, 5
      %v7419 = vsel %vm985, %v7414, %v7418
      %v7420 = vshrl.u32 %v7191, 16
      %v7422 = vrot.slane %v7420, 4
      %v7423 = vor.u32 %v7422, %v7418
      %v7424 = vrot.slane %v7423, 4
      %v7426 = vshll.u32 %v7192, 16
      %v7428 = vrot.slane %v7426, 5
      %v7429 = vsel %vm985, %v7424, %v7428
      %v7431 = vshrl.u32 %v7193, 16
      %v7433 = vrot.slane %v7431, 4
      %v7434 = vshll.u32 %v7193, 16
      %v7436 = vrot.slane %v7434, 5
      %v7437 = vor.u32 %v7433, %v7436
      %v7438 = vrot.slane %v7437, 4
      %v7440 = vshll.u32 %v7194, 16
      %v7442 = vrot.slane %v7440, 5
      %v7443 = vsel %vm985, %v7438, %v7442
      %v7444 = vshrl.u32 %v7194, 16
      %v7446 = vrot.slane %v7444, 4
      %v7447 = vor.u32 %v7446, %v7442
      %v7448 = vrot.slane %v7447, 4
      %v7450 = vshll.u32 %v7195, 16
      %v7452 = vrot.slane %v7450, 5
      %v7453 = vsel %vm985, %v7448, %v7452
      %v7455 = vshrl.u32 %v7196, 16
      %v7457 = vrot.slane %v7455, 4
      %v7458 = vshll.u32 %v7196, 16
      %v7460 = vrot.slane %v7458, 5
      %v7461 = vor.u32 %v7457, %v7460
      %v7462 = vrot.slane %v7461, 4
      %v7464 = vshll.u32 %v7197, 16
      %v7466 = vrot.slane %v7464, 5
      %v7467 = vsel %vm985, %v7462, %v7466
      %v7468 = vshrl.u32 %v7197, 16
      %v7470 = vrot.slane %v7468, 4
      %v7471 = vor.u32 %v7470, %v7466
      %v7472 = vrot.slane %v7471, 4
      %v7474 = vshll.u32 %v7198, 16
      %v7476 = vrot.slane %v7474, 5
      %v7477 = vsel %vm985, %v7472, %v7476
      %v7479 = vshrl.u32 %v7199, 16
      %v7481 = vrot.slane %v7479, 4
      %v7482 = vshll.u32 %v7199, 16
      %v7484 = vrot.slane %v7482, 5
      %v7485 = vor.u32 %v7481, %v7484
      %v7486 = vrot.slane %v7485, 4
      %v7488 = vshll.u32 %v7200, 16
      %v7490 = vrot.slane %v7488, 5
      %v7491 = vsel %vm985, %v7486, %v7490
      %v7492 = vshrl.u32 %v7200, 16
      %v7494 = vrot.slane %v7492, 4
      %v7495 = vor.u32 %v7494, %v7490
      %v7496 = vrot.slane %v7495, 4
      %v7498 = vshll.u32 %v7201, 16
      %v7500 = vrot.slane %v7498, 5
      %v7501 = vsel %vm985, %v7496, %v7500
      %v7503 = vshrl.u32 %v7202, 16
      %v7505 = vrot.slane %v7503, 4
      %v7506 = vshll.u32 %v7202, 16
      %v7508 = vrot.slane %v7506, 5
      %v7509 = vor.u32 %v7505, %v7508
      %v7510 = vrot.slane %v7509, 4
      %v7512 = vshll.u32 %v7203, 16
      %v7514 = vrot.slane %v7512, 5
      %v7515 = vsel %vm985, %v7510, %v7514
      %v7516 = vshrl.u32 %v7203, 16
      %v7518 = vrot.slane %v7516, 4
      %v7519 = vor.u32 %v7518, %v7514
      %v7520 = vrot.slane %v7519, 4
      %v7522 = vshll.u32 %v7204, 16
      %v7524 = vrot.slane %v7522, 5
      %v7525 = vsel %vm985, %v7520, %v7524
      %v7527 = vshrl.u32 %v7205, 16
      %v7529 = vrot.slane %v7527, 4
      %v7530 = vshll.u32 %v7205, 16
      %v7532 = vrot.slane %v7530, 5
      %v7533 = vor.u32 %v7529, %v7532
      %v7534 = vrot.slane %v7533, 4
      %v7536 = vshll.u32 %v7206, 16
      %v7538 = vrot.slane %v7536, 5
      %v7539 = vsel %vm985, %v7534, %v7538
      %v7540 = vshrl.u32 %v7206, 16
      %v7542 = vrot.slane %v7540, 4
      %v7543 = vor.u32 %v7542, %v7538
      %v7544 = vrot.slane %v7543, 4
      %v7546 = vshll.u32 %v7207, 16
      %v7548 = vrot.slane %v7546, 5
      %v7549 = vsel %vm985, %v7544, %v7548
      %v7551 = vshrl.u32 %v7208, 16
      %v7553 = vrot.slane %v7551, 4
      %v7554 = vshll.u32 %v7208, 16
      %v7556 = vrot.slane %v7554, 5
      %v7557 = vor.u32 %v7553, %v7556
      %v7558 = vrot.slane %v7557, 4
      %v7560 = vshll.u32 %v7209, 16
      %v7562 = vrot.slane %v7560, 5
      %v7563 = vsel %vm985, %v7558, %v7562
      %v7564 = vshrl.u32 %v7209, 16
      %v7566 = vrot.slane %v7564, 4
      %v7567 = vor.u32 %v7566, %v7562
      %v7568 = vrot.slane %v7567, 4
      %v7570 = vshll.u32 %v7210, 16
      %v7572 = vrot.slane %v7570, 5
      %v7573 = vsel %vm985, %v7568, %v7572
      %v7575 = vshrl.u32 %v7211, 16
      %v7577 = vrot.slane %v7575, 4
      %v7578 = vshll.u32 %v7211, 16
      %v7580 = vrot.slane %v7578, 5
      %v7581 = vor.u32 %v7577, %v7580
      %v7582 = vrot.slane %v7581, 4
      %v7584 = vshll.u32 %v7212, 16
      %v7586 = vrot.slane %v7584, 5
      %v7587 = vsel %vm985, %v7582, %v7586
      %v7588 = vshrl.u32 %v7212, 16
      %v7590 = vrot.slane %v7588, 4
      %v7591 = vor.u32 %v7590, %v7586
      %v7592 = vrot.slane %v7591, 4
      %v7594 = vshll.u32 %v7213, 16
      %v7596 = vrot.slane %v7594, 5
      %v7597 = vsel %vm985, %v7592, %v7596
      %7598 = vrot.lane.b32.xlu0 %v7227, 56
      %v7599 = vpop.permute.xlu0 %7598
      %7600 = vrot.lane.b32.xlu0 %v7237, 56
      %v7601 = vpop.permute.xlu0 %7600
      %7602 = vrot.lane.b32.xlu0 %v7251, 56
      %v7603 = vpop.permute.xlu0 %7602
      %7604 = vrot.lane.b32.xlu0 %v7261, 56
      %v7605 = vpop.permute.xlu0 %7604
      %7606 = vrot.lane.b32.xlu0 %v7275, 56
      %v7607 = vpop.permute.xlu0 %7606
      %7608 = vrot.lane.b32.xlu0 %v7285, 56
      %v7609 = vpop.permute.xlu0 %7608
      %7610 = vrot.lane.b32.xlu0 %v7299, 56
      %v7611 = vpop.permute.xlu0 %7610
      %7612 = vrot.lane.b32.xlu0 %v7309, 56
      %v7613 = vpop.permute.xlu0 %7612
      %7614 = vrot.lane.b32.xlu0 %v7323, 56
      %v7615 = vpop.permute.xlu0 %7614
      %7616 = vrot.lane.b32.xlu0 %v7333, 56
      %v7617 = vpop.permute.xlu0 %7616
      %7618 = vrot.lane.b32.xlu0 %v7347, 56
      %v7619 = vpop.permute.xlu0 %7618
      %7620 = vrot.lane.b32.xlu0 %v7357, 56
      %v7621 = vpop.permute.xlu0 %7620
      %7622 = vrot.lane.b32.xlu0 %v7371, 56
      %v7623 = vpop.permute.xlu0 %7622
      %7624 = vrot.lane.b32.xlu0 %v7381, 56
      %v7625 = vpop.permute.xlu0 %7624
      %7626 = vrot.lane.b32.xlu0 %v7395, 56
      %v7627 = vpop.permute.xlu0 %7626
      %7628 = vrot.lane.b32.xlu0 %v7405, 56
      %v7629 = vpop.permute.xlu0 %7628
      %7630 = vrot.lane.b32.xlu0 %v7419, 56
      %v7631 = vpop.permute.xlu0 %7630
      %7632 = vrot.lane.b32.xlu0 %v7429, 56
      %v7633 = vpop.permute.xlu0 %7632
      %7634 = vrot.lane.b32.xlu0 %v7443, 56
      %v7635 = vpop.permute.xlu0 %7634
      %7636 = vrot.lane.b32.xlu0 %v7453, 56
      %v7637 = vpop.permute.xlu0 %7636
      %7638 = vrot.lane.b32.xlu0 %v7467, 56
      %v7639 = vpop.permute.xlu0 %7638
      %7640 = vrot.lane.b32.xlu0 %v7477, 56
      %v7641 = vpop.permute.xlu0 %7640
      %7642 = vrot.lane.b32.xlu0 %v7491, 56
      %v7643 = vpop.permute.xlu0 %7642
      %7644 = vrot.lane.b32.xlu0 %v7501, 56
      %v7645 = vpop.permute.xlu0 %7644
      %7646 = vrot.lane.b32.xlu0 %v7515, 56
      %v7647 = vpop.permute.xlu0 %7646
      %7648 = vrot.lane.b32.xlu0 %v7525, 56
      %v7649 = vpop.permute.xlu0 %7648
      %7650 = vrot.lane.b32.xlu0 %v7539, 56
      %v7651 = vpop.permute.xlu0 %7650
      %7652 = vrot.lane.b32.xlu0 %v7549, 56
      %v7653 = vpop.permute.xlu0 %7652
      %7654 = vrot.lane.b32.xlu0 %v7563, 56
      %v7655 = vpop.permute.xlu0 %7654
      %7656 = vrot.lane.b32.xlu0 %v7573, 56
      %v7657 = vpop.permute.xlu0 %7656
      %7658 = vrot.lane.b32.xlu0 %v7587, 56
      %v7659 = vpop.permute.xlu0 %7658
      %7660 = vrot.lane.b32.xlu0 %v7597, 56
      %v7661 = vpop.permute.xlu0 %7660
      %vm7694 = vcmask 519616
      %7695 = vst.msk [vmem:[#allocation4] sm:$0xf] %vm7694, %v7599
      %7696 = vst.msk [vmem:[#allocation4 + $0x4] sm:$0xf] %vm7694, %v7601
      %7697 = vst.msk [vmem:[#allocation4 + $0x8] sm:$0xf] %vm7694, %v7603
      %7698 = vst.msk [vmem:[#allocation4 + $0xc] sm:$0xf] %vm7694, %v7605
      %7699 = vst.msk [vmem:[#allocation4 + $0x10] sm:$0xf] %vm7694, %v7607
      %7700 = vst.msk [vmem:[#allocation4 + $0x14] sm:$0xf] %vm7694, %v7609
      %7701 = vst.msk [vmem:[#allocation4 + $0x18] sm:$0xf] %vm7694, %v7611
      %7702 = vst.msk [vmem:[#allocation4 + $0x1c] sm:$0xf] %vm7694, %v7613
      %7703 = vst.msk [vmem:[#allocation4 + $0x20] sm:$0xf] %vm7694, %v7615
      %7704 = vst.msk [vmem:[#allocation4 + $0x24] sm:$0xf] %vm7694, %v7617
      %7705 = vst.msk [vmem:[#allocation4 + $0x28] sm:$0xf] %vm7694, %v7619
      %7706 = vst.msk [vmem:[#allocation4 + $0x2c] sm:$0xf] %vm7694, %v7621
      %7707 = vst.msk [vmem:[#allocation4 + $0x30] sm:$0xf] %vm7694, %v7623
      %7708 = vst.msk [vmem:[#allocation4 + $0x34] sm:$0xf] %vm7694, %v7625
      %7709 = vst.msk [vmem:[#allocation4 + $0x38] sm:$0xf] %vm7694, %v7627
      %7710 = vst.msk [vmem:[#allocation4 + $0x3c] sm:$0xf] %vm7694, %v7629
      %7711 = vst.msk [vmem:[#allocation4 + $0x40] sm:$0xf] %vm7694, %v7631
      %7712 = vst.msk [vmem:[#allocation4 + $0x44] sm:$0xf] %vm7694, %v7633
      %7713 = vst.msk [vmem:[#allocation4 + $0x48] sm:$0xf] %vm7694, %v7635
      %7714 = vst.msk [vmem:[#allocation4 + $0x4c] sm:$0xf] %vm7694, %v7637
      %7715 = vst.msk [vmem:[#allocation4 + $0x50] sm:$0xf] %vm7694, %v7639
      %7716 = vst.msk [vmem:[#allocation4 + $0x54] sm:$0xf] %vm7694, %v7641
      %7717 = vst.msk [vmem:[#allocation4 + $0x58] sm:$0xf] %vm7694, %v7643
      %7718 = vst.msk [vmem:[#allocation4 + $0x5c] sm:$0xf] %vm7694, %v7645
      %7719 = vst.msk [vmem:[#allocation4 + $0x60] sm:$0xf] %vm7694, %v7647
      %7720 = vst.msk [vmem:[#allocation4 + $0x64] sm:$0xf] %vm7694, %v7649
      %7721 = vst.msk [vmem:[#allocation4 + $0x68] sm:$0xf] %vm7694, %v7651
      %7722 = vst.msk [vmem:[#allocation4 + $0x6c] sm:$0xf] %vm7694, %v7653
      %7723 = vst.msk [vmem:[#allocation4 + $0x70] sm:$0xf] %vm7694, %v7655
      %7724 = vst.msk [vmem:[#allocation4 + $0x74] sm:$0xf] %vm7694, %v7657
      %7725 = vst.msk [vmem:[#allocation4 + $0x78] sm:$0xf] %vm7694, %v7659
      %7726 = vst.msk [vmem:[#allocation4 + $0x7c] sm:$0xf] %vm7694, %v7661
      %v7727 = vld [vmem:[%s6972] sm:$0xe]
      %v7728 = vld [vmem:[%s6972 + $0x4] sm:$0xf]
      %v7729 = vld [vmem:[%s6972 + $0x8] sm:$0x1]
      %v7730 = vld [vmem:[%s6972 + $0xc] sm:$0xe]
      %v7731 = vld [vmem:[%s6972 + $0x10] sm:$0xf]
      %v7732 = vld [vmem:[%s6972 + $0x14] sm:$0x1]
      %v7733 = vld [vmem:[%s6972 + $0x18] sm:$0xe]
      %v7734 = vld [vmem:[%s6972 + $0x1c] sm:$0xf]
      %v7735 = vld [vmem:[%s6972 + $0x20] sm:$0x1]
      %v7736 = vld [vmem:[%s6972 + $0x24] sm:$0xe]
      %v7737 = vld [vmem:[%s6972 + $0x28] sm:$0xf]
      %v7738 = vld [vmem:[%s6972 + $0x2c] sm:$0x1]
      %v7739 = vld [vmem:[%s6972 + $0x30] sm:$0xe]
      %v7740 = vld [vmem:[%s6972 + $0x34] sm:$0xf]
      %v7741 = vld [vmem:[%s6972 + $0x38] sm:$0x1]
      %v7742 = vld [vmem:[%s6972 + $0x3c] sm:$0xe]
      %v7743 = vld [vmem:[%s6972 + $0x40] sm:$0xf]
      %v7744 = vld [vmem:[%s6972 + $0x44] sm:$0x1]
      %v7745 = vld [vmem:[%s6972 + $0x48] sm:$0xe]
      %v7746 = vld [vmem:[%s6972 + $0x4c] sm:$0xf]
      %v7747 = vld [vmem:[%s6972 + $0x50] sm:$0x1]
      %v7748 = vld [vmem:[%s6972 + $0x54] sm:$0xe]
      %v7749 = vld [vmem:[%s6972 + $0x58] sm:$0xf]
      %v7750 = vld [vmem:[%s6972 + $0x5c] sm:$0x1]
      %v7751 = vld [vmem:[%s6972 + $0x60] sm:$0xe]
      %v7752 = vld [vmem:[%s6972 + $0x64] sm:$0xf]
      %v7753 = vld [vmem:[%s6972 + $0x68] sm:$0x1]
      %v7754 = vld [vmem:[%s6972 + $0x6c] sm:$0xe]
      %v7755 = vld [vmem:[%s6972 + $0x70] sm:$0xf]
      %v7756 = vld [vmem:[%s6972 + $0x74] sm:$0x1]
      %v7757 = vld [vmem:[%s6972 + $0x78] sm:$0xe]
      %v7758 = vld [vmem:[%s6972 + $0x7c] sm:$0xf]
      %v7759 = vld [vmem:[%s6972 + $0x80] sm:$0x1]
      %v7760 = vld [vmem:[%s6972 + $0x84] sm:$0xe]
      %v7761 = vld [vmem:[%s6972 + $0x88] sm:$0xf]
      %v7762 = vld [vmem:[%s6972 + $0x8c] sm:$0x1]
      %v7763 = vld [vmem:[%s6972 + $0x90] sm:$0xe]
      %v7764 = vld [vmem:[%s6972 + $0x94] sm:$0xf]
      %v7765 = vld [vmem:[%s6972 + $0x98] sm:$0x1]
      %v7766 = vld [vmem:[%s6972 + $0x9c] sm:$0xe]
      %v7767 = vld [vmem:[%s6972 + $0xa0] sm:$0xf]
      %v7768 = vld [vmem:[%s6972 + $0xa4] sm:$0x1]
      %v7769 = vld [vmem:[%s6972 + $0xa8] sm:$0xe]
      %v7770 = vld [vmem:[%s6972 + $0xac] sm:$0xf]
      %v7771 = vld [vmem:[%s6972 + $0xb0] sm:$0x1]
      %v7772 = vld [vmem:[%s6972 + $0xb4] sm:$0xe]
      %v7773 = vld [vmem:[%s6972 + $0xb8] sm:$0xf]
      %v7774 = vld [vmem:[%s6972 + $0xbc] sm:$0x1]
      %v7823 = vrot.slane %v7727, 5
      %v7824 = vrot.slane %v7823, 4
      %v7825 = vrot.slane %v7728, 5
      %v7826 = vsel %vm1597, %v7824, %v7825
      %v7827 = vrot.slane %v7825, 4
      %v7828 = vrot.slane %v7729, 5
      %v7829 = vsel %vm1597, %v7827, %v7828
      %v7830 = vrot.slane %v7730, 5
      %v7831 = vrot.slane %v7830, 4
      %v7832 = vrot.slane %v7731, 5
      %v7833 = vsel %vm1597, %v7831, %v7832
      %v7834 = vrot.slane %v7832, 4
      %v7835 = vrot.slane %v7732, 5
      %v7836 = vsel %vm1597, %v7834, %v7835
      %v7837 = vrot.slane %v7733, 5
      %v7838 = vrot.slane %v7837, 4
      %v7839 = vrot.slane %v7734, 5
      %v7840 = vsel %vm1597, %v7838, %v7839
      %v7841 = vrot.slane %v7839, 4
      %v7842 = vrot.slane %v7735, 5
      %v7843 = vsel %vm1597, %v7841, %v7842
      %v7844 = vrot.slane %v7736, 5
      %v7845 = vrot.slane %v7844, 4
      %v7846 = vrot.slane %v7737, 5
      %v7847 = vsel %vm1597, %v7845, %v7846
      %v7848 = vrot.slane %v7846, 4
      %v7849 = vrot.slane %v7738, 5
      %v7850 = vsel %vm1597, %v7848, %v7849
      %v7851 = vrot.slane %v7739, 5
      %v7852 = vrot.slane %v7851, 4
      %v7853 = vrot.slane %v7740, 5
      %v7854 = vsel %vm1597, %v7852, %v7853
      %v7855 = vrot.slane %v7853, 4
      %v7856 = vrot.slane %v7741, 5
      %v7857 = vsel %vm1597, %v7855, %v7856
      %v7858 = vrot.slane %v7742, 5
      %v7859 = vrot.slane %v7858, 4
      %v7860 = vrot.slane %v7743, 5
      %v7861 = vsel %vm1597, %v7859, %v7860
      %v7862 = vrot.slane %v7860, 4
      %v7863 = vrot.slane %v7744, 5
      %v7864 = vsel %vm1597, %v7862, %v7863
      %v7865 = vrot.slane %v7745, 5
      %v7866 = vrot.slane %v7865, 4
      %v7867 = vrot.slane %v7746, 5
      %v7868 = vsel %vm1597, %v7866, %v7867
      %v7869 = vrot.slane %v7867, 4
      %v7870 = vrot.slane %v7747, 5
      %v7871 = vsel %vm1597, %v7869, %v7870
      %v7872 = vrot.slane %v7748, 5
      %v7873 = vrot.slane %v7872, 4
      %v7874 = vrot.slane %v7749, 5
      %v7875 = vsel %vm1597, %v7873, %v7874
      %v7876 = vrot.slane %v7874, 4
      %v7877 = vrot.slane %v7750, 5
      %v7878 = vsel %vm1597, %v7876, %v7877
      %v7879 = vrot.slane %v7751, 5
      %v7880 = vrot.slane %v7879, 4
      %v7881 = vrot.slane %v7752, 5
      %v7882 = vsel %vm1597, %v7880, %v7881
      %v7883 = vrot.slane %v7881, 4
      %v7884 = vrot.slane %v7753, 5
      %v7885 = vsel %vm1597, %v7883, %v7884
      %v7886 = vrot.slane %v7754, 5
      %v7887 = vrot.slane %v7886, 4
      %v7888 = vrot.slane %v7755, 5
      %v7889 = vsel %vm1597, %v7887, %v7888
      %v7890 = vrot.slane %v7888, 4
      %v7891 = vrot.slane %v7756, 5
      %v7892 = vsel %vm1597, %v7890, %v7891
      %v7893 = vrot.slane %v7757, 5
      %v7894 = vrot.slane %v7893, 4
      %v7895 = vrot.slane %v7758, 5
      %v7896 = vsel %vm1597, %v7894, %v7895
      %v7897 = vrot.slane %v7895, 4
      %v7898 = vrot.slane %v7759, 5
      %v7899 = vsel %vm1597, %v7897, %v7898
      %v7900 = vrot.slane %v7760, 5
      %v7901 = vrot.slane %v7900, 4
      %v7902 = vrot.slane %v7761, 5
      %v7903 = vsel %vm1597, %v7901, %v7902
      %v7904 = vrot.slane %v7902, 4
      %v7905 = vrot.slane %v7762, 5
      %v7906 = vsel %vm1597, %v7904, %v7905
      %v7907 = vrot.slane %v7763, 5
      %v7908 = vrot.slane %v7907, 4
      %v7909 = vrot.slane %v7764, 5
      %v7910 = vsel %vm1597, %v7908, %v7909
      %v7911 = vrot.slane %v7909, 4
      %v7912 = vrot.slane %v7765, 5
      %v7913 = vsel %vm1597, %v7911, %v7912
      %v7914 = vrot.slane %v7766, 5
      %v7915 = vrot.slane %v7914, 4
      %v7916 = vrot.slane %v7767, 5
      %v7917 = vsel %vm1597, %v7915, %v7916
      %v7918 = vrot.slane %v7916, 4
      %v7919 = vrot.slane %v7768, 5
      %v7920 = vsel %vm1597, %v7918, %v7919
      %v7921 = vrot.slane %v7769, 5
      %v7922 = vrot.slane %v7921, 4
      %v7923 = vrot.slane %v7770, 5
      %v7924 = vsel %vm1597, %v7922, %v7923
      %v7925 = vrot.slane %v7923, 4
      %v7926 = vrot.slane %v7771, 5
      %v7927 = vsel %vm1597, %v7925, %v7926
      %v7928 = vrot.slane %v7772, 5
      %v7929 = vrot.slane %v7928, 4
      %v7930 = vrot.slane %v7773, 5
      %v7931 = vsel %vm1597, %v7929, %v7930
      %v7932 = vrot.slane %v7930, 4
      %v7933 = vrot.slane %v7774, 5
      %v7934 = vsel %vm1597, %v7932, %v7933
      %7935 = vrot.lane.b32.xlu0 %v7826, 64
      %v7936 = vpop.permute.xlu0 %7935
      %7937 = vrot.lane.b32.xlu0 %v7829, 64
      %v7938 = vpop.permute.xlu0 %7937
      %7939 = vrot.lane.b32.xlu0 %v7833, 64
      %v7940 = vpop.permute.xlu0 %7939
      %7941 = vrot.lane.b32.xlu0 %v7836, 64
      %v7942 = vpop.permute.xlu0 %7941
      %7943 = vrot.lane.b32.xlu0 %v7840, 64
      %v7944 = vpop.permute.xlu0 %7943
      %7945 = vrot.lane.b32.xlu0 %v7843, 64
      %v7946 = vpop.permute.xlu0 %7945
      %7947 = vrot.lane.b32.xlu0 %v7847, 64
      %v7948 = vpop.permute.xlu0 %7947
      %7949 = vrot.lane.b32.xlu0 %v7850, 64
      %v7950 = vpop.permute.xlu0 %7949
      %7951 = vrot.lane.b32.xlu0 %v7854, 64
      %v7952 = vpop.permute.xlu0 %7951
      %7953 = vrot.lane.b32.xlu0 %v7857, 64
      %v7954 = vpop.permute.xlu0 %7953
      %7955 = vrot.lane.b32.xlu0 %v7861, 64
      %v7956 = vpop.permute.xlu0 %7955
      %7957 = vrot.lane.b32.xlu0 %v7864, 64
      %v7958 = vpop.permute.xlu0 %7957
      %7959 = vrot.lane.b32.xlu0 %v7868, 64
      %v7960 = vpop.permute.xlu0 %7959
      %7961 = vrot.lane.b32.xlu0 %v7871, 64
      %v7962 = vpop.permute.xlu0 %7961
      %7963 = vrot.lane.b32.xlu0 %v7875, 64
      %v7964 = vpop.permute.xlu0 %7963
      %7965 = vrot.lane.b32.xlu0 %v7878, 64
      %v7966 = vpop.permute.xlu0 %7965
      %7967 = vrot.lane.b32.xlu0 %v7882, 64
      %v7968 = vpop.permute.xlu0 %7967
      %7969 = vrot.lane.b32.xlu0 %v7885, 64
      %v7970 = vpop.permute.xlu0 %7969
      %7971 = vrot.lane.b32.xlu0 %v7889, 64
      %v7972 = vpop.permute.xlu0 %7971
      %7973 = vrot.lane.b32.xlu0 %v7892, 64
      %v7974 = vpop.permute.xlu0 %7973
      %7975 = vrot.lane.b32.xlu0 %v7896, 64
      %v7976 = vpop.permute.xlu0 %7975
      %7977 = vrot.lane.b32.xlu0 %v7899, 64
      %v7978 = vpop.permute.xlu0 %7977
      %7979 = vrot.lane.b32.xlu0 %v7903, 64
      %v7980 = vpop.permute.xlu0 %7979
      %7981 = vrot.lane.b32.xlu0 %v7906, 64
      %v7982 = vpop.permute.xlu0 %7981
      %7983 = vrot.lane.b32.xlu0 %v7910, 64
      %v7984 = vpop.permute.xlu0 %7983
      %7985 = vrot.lane.b32.xlu0 %v7913, 64
      %v7986 = vpop.permute.xlu0 %7985
      %7987 = vrot.lane.b32.xlu0 %v7917, 64
      %v7988 = vpop.permute.xlu0 %7987
      %7989 = vrot.lane.b32.xlu0 %v7920, 64
      %v7990 = vpop.permute.xlu0 %7989
      %7991 = vrot.lane.b32.xlu0 %v7924, 64
      %v7992 = vpop.permute.xlu0 %7991
      %7993 = vrot.lane.b32.xlu0 %v7927, 64
      %v7994 = vpop.permute.xlu0 %7993
      %7995 = vrot.lane.b32.xlu0 %v7931, 64
      %v7996 = vpop.permute.xlu0 %7995
      %7997 = vrot.lane.b32.xlu0 %v7934, 64
      %v7998 = vpop.permute.xlu0 %7997
      %vm8031 = vcmask 585216
      %8032 = vst.msk [vmem:[#allocation4] sm:$0xf] %vm8031, %v7936
      %8033 = vst.msk [vmem:[#allocation4 + $0x4] sm:$0xf] %vm8031, %v7938
      %8034 = vst.msk [vmem:[#allocation4 + $0x8] sm:$0xf] %vm8031, %v7940
      %8035 = vst.msk [vmem:[#allocation4 + $0xc] sm:$0xf] %vm8031, %v7942
      %8036 = vst.msk [vmem:[#allocation4 + $0x10] sm:$0xf] %vm8031, %v7944
      %8037 = vst.msk [vmem:[#allocation4 + $0x14] sm:$0xf] %vm8031, %v7946
      %8038 = vst.msk [vmem:[#allocation4 + $0x18] sm:$0xf] %vm8031, %v7948
      %8039 = vst.msk [vmem:[#allocation4 + $0x1c] sm:$0xf] %vm8031, %v7950
      %8040 = vst.msk [vmem:[#allocation4 + $0x20] sm:$0xf] %vm8031, %v7952
      %8041 = vst.msk [vmem:[#allocation4 + $0x24] sm:$0xf] %vm8031, %v7954
      %8042 = vst.msk [vmem:[#allocation4 + $0x28] sm:$0xf] %vm8031, %v7956
      %8043 = vst.msk [vmem:[#allocation4 + $0x2c] sm:$0xf] %vm8031, %v7958
      %8044 = vst.msk [vmem:[#allocation4 + $0x30] sm:$0xf] %vm8031, %v7960
      %8045 = vst.msk [vmem:[#allocation4 + $0x34] sm:$0xf] %vm8031, %v7962
      %8046 = vst.msk [vmem:[#allocation4 + $0x38] sm:$0xf] %vm8031, %v7964
      %8047 = vst.msk [vmem:[#allocation4 + $0x3c] sm:$0xf] %vm8031, %v7966
      %8048 = vst.msk [vmem:[#allocation4 + $0x40] sm:$0xf] %vm8031, %v7968
      %8049 = vst.msk [vmem:[#allocation4 + $0x44] sm:$0xf] %vm8031, %v7970
      %8050 = vst.msk [vmem:[#allocation4 + $0x48] sm:$0xf] %vm8031, %v7972
      %8051 = vst.msk [vmem:[#allocation4 + $0x4c] sm:$0xf] %vm8031, %v7974
      %8052 = vst.msk [vmem:[#allocation4 + $0x50] sm:$0xf] %vm8031, %v7976
      %8053 = vst.msk [vmem:[#allocation4 + $0x54] sm:$0xf] %vm8031, %v7978
      %8054 = vst.msk [vmem:[#allocation4 + $0x58] sm:$0xf] %vm8031, %v7980
      %8055 = vst.msk [vmem:[#allocation4 + $0x5c] sm:$0xf] %vm8031, %v7982
      %8056 = vst.msk [vmem:[#allocation4 + $0x60] sm:$0xf] %vm8031, %v7984
      %8057 = vst.msk [vmem:[#allocation4 + $0x64] sm:$0xf] %vm8031, %v7986
      %8058 = vst.msk [vmem:[#allocation4 + $0x68] sm:$0xf] %vm8031, %v7988
      %8059 = vst.msk [vmem:[#allocation4 + $0x6c] sm:$0xf] %vm8031, %v7990
      %8060 = vst.msk [vmem:[#allocation4 + $0x70] sm:$0xf] %vm8031, %v7992
      %8061 = vst.msk [vmem:[#allocation4 + $0x74] sm:$0xf] %vm8031, %v7994
      %8062 = vst.msk [vmem:[#allocation4 + $0x78] sm:$0xf] %vm8031, %v7996
      %8063 = vst.msk [vmem:[#allocation4 + $0x7c] sm:$0xf] %vm8031, %v7998
      %v8064 = vld [vmem:[#allocation4] sm:$0xf]
      %v8065 = vld [vmem:[#allocation4 + $0x4] sm:$0xf]
      %v8066 = vld [vmem:[#allocation4 + $0x8] sm:$0xf]
      %v8067 = vld [vmem:[#allocation4 + $0xc] sm:$0xf]
      %v8068 = vld [vmem:[#allocation4 + $0x10] sm:$0xf]
      %v8069 = vld [vmem:[#allocation4 + $0x14] sm:$0xf]
      %v8070 = vld [vmem:[#allocation4 + $0x18] sm:$0xf]
      %v8071 = vld [vmem:[#allocation4 + $0x1c] sm:$0xf]
      %v8072 = vld [vmem:[#allocation4 + $0x20] sm:$0xf]
      %v8073 = vld [vmem:[#allocation4 + $0x24] sm:$0xf]
      %v8074 = vld [vmem:[#allocation4 + $0x28] sm:$0xf]
      %v8075 = vld [vmem:[#allocation4 + $0x2c] sm:$0xf]
      %v8076 = vld [vmem:[#allocation4 + $0x30] sm:$0xf]
      %v8077 = vld [vmem:[#allocation4 + $0x34] sm:$0xf]
      %v8078 = vld [vmem:[#allocation4 + $0x38] sm:$0xf]
      %v8079 = vld [vmem:[#allocation4 + $0x3c] sm:$0xf]
      %v8080 = vld [vmem:[#allocation4 + $0x40] sm:$0xf]
      %v8081 = vld [vmem:[#allocation4 + $0x44] sm:$0xf]
      %v8082 = vld [vmem:[#allocation4 + $0x48] sm:$0xf]
      %v8083 = vld [vmem:[#allocation4 + $0x4c] sm:$0xf]
      %v8084 = vld [vmem:[#allocation4 + $0x50] sm:$0xf]
      %v8085 = vld [vmem:[#allocation4 + $0x54] sm:$0xf]
      %v8086 = vld [vmem:[#allocation4 + $0x58] sm:$0xf]
      %v8087 = vld [vmem:[#allocation4 + $0x5c] sm:$0xf]
      %v8088 = vld [vmem:[#allocation4 + $0x60] sm:$0xf]
      %v8089 = vld [vmem:[#allocation4 + $0x64] sm:$0xf]
      %v8090 = vld [vmem:[#allocation4 + $0x68] sm:$0xf]
      %v8091 = vld [vmem:[#allocation4 + $0x6c] sm:$0xf]
      %v8092 = vld [vmem:[#allocation4 + $0x70] sm:$0xf]
      %v8093 = vld [vmem:[#allocation4 + $0x74] sm:$0xf]
      %v8094 = vld [vmem:[#allocation4 + $0x78] sm:$0xf]
      %v8095 = vld [vmem:[#allocation4 + $0x7c] sm:$0xf]
      %v8096 = vld [vmem:[%s2] sm:$0xf]
      %v8097 = vld [vmem:[%s2 + $0x4] sm:$0xf]
      %v8098 = vld [vmem:[%s2 + $0x8] sm:$0xf]
      %v8099 = vld [vmem:[%s2 + $0xc] sm:$0xf]
      %v8100 = vld [vmem:[%s2 + $0x10] sm:$0xf]
      %v8101 = vld [vmem:[%s2 + $0x14] sm:$0xf]
      %v8102 = vld [vmem:[%s2 + $0x18] sm:$0xf]
      %v8103 = vld [vmem:[%s2 + $0x1c] sm:$0xf]
      %v8104 = vld [vmem:[%s2 + $0x20] sm:$0xf]
      %v8105 = vld [vmem:[%s5] sm:$0x1]
      %v8107 = vperm.slane %v8105, 0
      %v8141 = vunpack.c.l.b16 %v8064
      %v8142 = vunpack.c.l.b16 %v8065
      %v8143 = vunpack.c.l.b16 %v8066
      %v8144 = vunpack.c.l.b16 %v8067
      %v8145 = vunpack.c.l.b16 %v8068
      %v8146 = vunpack.c.l.b16 %v8069
      %v8147 = vunpack.c.l.b16 %v8070
      %v8148 = vunpack.c.l.b16 %v8071
      %v8149 = vunpack.c.l.b16 %v8072
      %v8150 = vunpack.c.l.b16 %v8073
      %v8151 = vunpack.c.l.b16 %v8074
      %v8152 = vunpack.c.l.b16 %v8075
      %v8153 = vunpack.c.l.b16 %v8076
      %v8154 = vunpack.c.l.b16 %v8077
      %v8155 = vunpack.c.l.b16 %v8078
      %v8156 = vunpack.c.l.b16 %v8079
      %v8157 = vunpack.c.l.b16 %v8080
      %v8158 = vunpack.c.l.b16 %v8081
      %v8159 = vunpack.c.l.b16 %v8082
      %v8160 = vunpack.c.l.b16 %v8083
      %v8161 = vunpack.c.l.b16 %v8084
      %v8162 = vunpack.c.l.b16 %v8085
      %v8163 = vunpack.c.l.b16 %v8086
      %v8164 = vunpack.c.l.b16 %v8087
      %v8165 = vunpack.c.l.b16 %v8088
      %v8166 = vunpack.c.l.b16 %v8089
      %v8167 = vunpack.c.l.b16 %v8090
      %v8168 = vunpack.c.l.b16 %v8091
      %v8169 = vunpack.c.l.b16 %v8092
      %v8170 = vunpack.c.l.b16 %v8093
      %v8171 = vunpack.c.l.b16 %v8094
      %v8172 = vunpack.c.l.b16 %v8095
      %v8173 = vpack.c.b16 %v8142, %v8141
      %v8174 = vpack.c.b16 %v8144, %v8143
      %v8175 = vpack.c.b16 %v8146, %v8145
      %v8176 = vpack.c.b16 %v8148, %v8147
      %v8177 = vpack.c.b16 %v8150, %v8149
      %v8178 = vpack.c.b16 %v8152, %v8151
      %v8179 = vpack.c.b16 %v8154, %v8153
      %v8180 = vpack.c.b16 %v8156, %v8155
      %v8181 = vpack.c.b16 %v8158, %v8157
      %v8182 = vpack.c.b16 %v8160, %v8159
      %v8183 = vpack.c.b16 %v8162, %v8161
      %v8184 = vpack.c.b16 %v8164, %v8163
      %v8185 = vpack.c.b16 %v8166, %v8165
      %v8186 = vpack.c.b16 %v8168, %v8167
      %v8187 = vpack.c.b16 %v8170, %v8169
      %v8188 = vpack.c.b16 %v8172, %v8171
      %v8198 = vunpack.c.l.b16 %v8096
      %v8199 = vunpack.c.l.b16 %v8097
      %v8200 = vunpack.c.l.b16 %v8098
      %v8201 = vunpack.c.l.b16 %v8099
      %v8202 = vunpack.c.l.b16 %v8100
      %v8203 = vunpack.c.l.b16 %v8101
      %v8204 = vunpack.c.l.b16 %v8102
      %v8205 = vunpack.c.l.b16 %v8103
      %v8206 = vunpack.c.l.b16 %v8104
      %v8207 = vpack.c.b16 %v8199, %v8198
      %v8208 = vpack.c.b16 %v8201, %v8200
      %v8209 = vpack.c.b16 %v8203, %v8202
      %v8210 = vpack.c.b16 %v8205, %v8204
      %v8211 = vpack.c.b16 %v8206, %v8206
      %vm8216 = vcmask 588800
      %v8218 = vsel %vm8216, %v8173, 0
      %v8221 = vsel %vm8216, %v8174, 0
      %v8224 = vsel %vm8216, %v8175, 0
      %v8227 = vsel %vm8216, %v8176, 0
      %v8230 = vsel %vm8216, %v8177, 0
      %v8233 = vsel %vm8216, %v8178, 0
      %v8236 = vsel %vm8216, %v8179, 0
      %v8239 = vsel %vm8216, %v8180, 0
      %v8242 = vsel %vm8216, %v8181, 0
      %v8245 = vsel %vm8216, %v8182, 0
      %v8248 = vsel %vm8216, %v8183, 0
      %v8251 = vsel %vm8216, %v8184, 0
      %v8254 = vsel %vm8216, %v8185, 0
      %v8257 = vsel %vm8216, %v8186, 0
      %v8260 = vsel %vm8216, %v8187, 0
      %v8263 = vsel %vm8216, %v8188, 0
      %vm8265 = vcmask 1043456
      %v8267 = vsel %vm8265, %v8211, 0
      %8269 = vmatpush.bf16.msra.mxu0 0
      %8270 = vmatpush.bf16.msra.mxu0 0
      %8271 = vmatpush.bf16.msra.mxu0 0
      %8272 = vmatpush.bf16.msra.mxu0 %v8267
      %8273 = vmatpush.bf16.msra.mxu0 %v8210
      %8274 = vmatpush.bf16.msra.mxu0 %v8209
      %8275 = vmatpush.bf16.msra.mxu0 %v8208
      %8276 = vmatpush.bf16.msra.mxu0 %v8207
      %8277 = vmatmul.bf16.gmra.mxu0 %v8218
      %v8278 = vpop.f32.mrf.mxu0
      %v8279 = vadd.f32 %v8107, %v8278
      %v8280 = vpop.f32.mrf.mxu0
      %v8281 = vadd.f32 %v8107, %v8280
      %8282 = vmatmul.bf16.gmra.mxu0 %v8221
      %v8283 = vpop.f32.mrf.mxu0
      %v8284 = vadd.f32 %v8107, %v8283
      %v8285 = vpop.f32.mrf.mxu0
      %v8286 = vadd.f32 %v8107, %v8285
      %8287 = vmatmul.bf16.gmra.mxu0 %v8224
      %v8288 = vpop.f32.mrf.mxu0
      %v8289 = vadd.f32 %v8107, %v8288
      %v8290 = vpop.f32.mrf.mxu0
      %v8291 = vadd.f32 %v8107, %v8290
      %8292 = vmatmul.bf16.gmra.mxu0 %v8227
      %v8293 = vpop.f32.mrf.mxu0
      %v8294 = vadd.f32 %v8107, %v8293
      %v8295 = vpop.f32.mrf.mxu0
      %v8296 = vadd.f32 %v8107, %v8295
      %8297 = vmatmul.bf16.gmra.mxu0 %v8230
      %v8298 = vpop.f32.mrf.mxu0
      %v8299 = vadd.f32 %v8107, %v8298
      %v8300 = vpop.f32.mrf.mxu0
      %v8301 = vadd.f32 %v8107, %v8300
      %8302 = vmatmul.bf16.gmra.mxu0 %v8233
      %v8303 = vpop.f32.mrf.mxu0
      %v8304 = vadd.f32 %v8107, %v8303
      %v8305 = vpop.f32.mrf.mxu0
      %v8306 = vadd.f32 %v8107, %v8305
      %8307 = vmatmul.bf16.gmra.mxu0 %v8236
      %v8308 = vpop.f32.mrf.mxu0
      %v8309 = vadd.f32 %v8107, %v8308
      %v8310 = vpop.f32.mrf.mxu0
      %v8311 = vadd.f32 %v8107, %v8310
      %8312 = vmatmul.bf16.gmra.mxu0 %v8239
      %v8313 = vpop.f32.mrf.mxu0
      %v8314 = vadd.f32 %v8107, %v8313
      %v8315 = vpop.f32.mrf.mxu0
      %v8316 = vadd.f32 %v8107, %v8315
      %8317 = vmatmul.bf16.gmra.mxu0 %v8242
      %v8318 = vpop.f32.mrf.mxu0
      %v8319 = vadd.f32 %v8107, %v8318
      %v8320 = vpop.f32.mrf.mxu0
      %v8321 = vadd.f32 %v8107, %v8320
      %8322 = vmatmul.bf16.gmra.mxu0 %v8245
      %v8323 = vpop.f32.mrf.mxu0
      %v8324 = vadd.f32 %v8107, %v8323
      %v8325 = vpop.f32.mrf.mxu0
      %v8326 = vadd.f32 %v8107, %v8325
      %8327 = vmatmul.bf16.gmra.mxu0 %v8248
      %v8328 = vpop.f32.mrf.mxu0
      %v8329 = vadd.f32 %v8107, %v8328
      %v8330 = vpop.f32.mrf.mxu0
      %v8331 = vadd.f32 %v8107, %v8330
      %8332 = vmatmul.bf16.gmra.mxu0 %v8251
      %v8333 = vpop.f32.mrf.mxu0
      %v8334 = vadd.f32 %v8107, %v8333
      %v8335 = vpop.f32.mrf.mxu0
      %v8336 = vadd.f32 %v8107, %v8335
      %8337 = vmatmul.bf16.gmra.mxu0 %v8254
      %v8338 = vpop.f32.mrf.mxu0
      %v8339 = vadd.f32 %v8107, %v8338
      %v8340 = vpop.f32.mrf.mxu0
      %v8341 = vadd.f32 %v8107, %v8340
      %8342 = vmatmul.bf16.gmra.mxu0 %v8257
      %v8343 = vpop.f32.mrf.mxu0
      %v8344 = vadd.f32 %v8107, %v8343
      %v8345 = vpop.f32.mrf.mxu0
      %v8346 = vadd.f32 %v8107, %v8345
      %8347 = vmatmul.bf16.gmra.mxu0 %v8260
      %v8348 = vpop.f32.mrf.mxu0
      %v8349 = vadd.f32 %v8107, %v8348
      %v8350 = vpop.f32.mrf.mxu0
      %v8351 = vadd.f32 %v8107, %v8350
      %8352 = vmatmul.bf16.gmra.mxu0 %v8263
      %v8353 = vpop.f32.mrf.mxu0
      %v8354 = vadd.f32 %v8107, %v8353
      %v8355 = vpop.f32.mrf.mxu0
      %v8356 = vadd.f32 %v8107, %v8355
      %8357 = vdwg.mxu0
      %v8358 = vld [vmem:[%s273] sm:$0xf]
      %v8359 = vld [vmem:[%s273 + $0x4] sm:$0xf]
      %v8360 = vld [vmem:[%s273 + $0x8] sm:$0xf]
      %v8361 = vld [vmem:[%s273 + $0xc] sm:$0xf]
      %v8362 = vld [vmem:[%s273 + $0x10] sm:$0xf]
      %v8363 = vld [vmem:[%s273 + $0x14] sm:$0xf]
      %v8364 = vld [vmem:[%s273 + $0x18] sm:$0xf]
      %v8365 = vld [vmem:[%s273 + $0x1c] sm:$0xf]
      %v8366 = vld [vmem:[%s273 + $0x20] sm:$0xf]
      %v8367 = vld [vmem:[%s273 + $0x24] sm:$0xf]
      %v8368 = vld [vmem:[%s273 + $0x28] sm:$0xf]
      %v8369 = vld [vmem:[%s273 + $0x2c] sm:$0xf]
      %v8370 = vld [vmem:[%s273 + $0x30] sm:$0xf]
      %v8371 = vld [vmem:[%s273 + $0x34] sm:$0xf]
      %v8372 = vld [vmem:[%s273 + $0x38] sm:$0xf]
      %v8373 = vld [vmem:[%s273 + $0x3c] sm:$0xf]
      %v8374 = vld [vmem:[%s273 + $0x40] sm:$0xf]
      %v8375 = vld [vmem:[%s273 + $0x44] sm:$0xf]
      %v8376 = vld [vmem:[%s273 + $0x48] sm:$0xf]
      %v8377 = vld [vmem:[%s273 + $0x4c] sm:$0xf]
      %v8378 = vld [vmem:[%s273 + $0x50] sm:$0xf]
      %v8379 = vld [vmem:[%s273 + $0x54] sm:$0xf]
      %v8380 = vld [vmem:[%s273 + $0x58] sm:$0xf]
      %v8381 = vld [vmem:[%s273 + $0x5c] sm:$0xf]
      %v8382 = vld [vmem:[%s273 + $0x60] sm:$0xf]
      %v8383 = vld [vmem:[%s273 + $0x64] sm:$0xf]
      %v8384 = vld [vmem:[%s273 + $0x68] sm:$0xf]
      %v8385 = vld [vmem:[%s273 + $0x6c] sm:$0xf]
      %v8386 = vld [vmem:[%s273 + $0x70] sm:$0xf]
      %v8387 = vld [vmem:[%s273 + $0x74] sm:$0xf]
      %v8388 = vld [vmem:[%s273 + $0x78] sm:$0xf]
      %v8389 = vld [vmem:[%s273 + $0x7c] sm:$0xf]
      %v8390 = vld [vmem:[%s3] sm:$0x3]
      %v8391 = vld [vmem:[%s6] sm:$0x1]
      %v8393 = vperm.slane %v8391, 0
      %v8427 = vunpack.c.l.b16 %v8358
      %v8428 = vunpack.c.l.b16 %v8359
      %v8429 = vunpack.c.l.b16 %v8360
      %v8430 = vunpack.c.l.b16 %v8361
      %v8431 = vunpack.c.l.b16 %v8362
      %v8432 = vunpack.c.l.b16 %v8363
      %v8433 = vunpack.c.l.b16 %v8364
      %v8434 = vunpack.c.l.b16 %v8365
      %v8435 = vunpack.c.l.b16 %v8366
      %v8436 = vunpack.c.l.b16 %v8367
      %v8437 = vunpack.c.l.b16 %v8368
      %v8438 = vunpack.c.l.b16 %v8369
      %v8439 = vunpack.c.l.b16 %v8370
      %v8440 = vunpack.c.l.b16 %v8371
      %v8441 = vunpack.c.l.b16 %v8372
      %v8442 = vunpack.c.l.b16 %v8373
      %v8443 = vunpack.c.l.b16 %v8374
      %v8444 = vunpack.c.l.b16 %v8375
      %v8445 = vunpack.c.l.b16 %v8376
      %v8446 = vunpack.c.l.b16 %v8377
      %v8447 = vunpack.c.l.b16 %v8378
      %v8448 = vunpack.c.l.b16 %v8379
      %v8449 = vunpack.c.l.b16 %v8380
      %v8450 = vunpack.c.l.b16 %v8381
      %v8451 = vunpack.c.l.b16 %v8382
      %v8452 = vunpack.c.l.b16 %v8383
      %v8453 = vunpack.c.l.b16 %v8384
      %v8454 = vunpack.c.l.b16 %v8385
      %v8455 = vunpack.c.l.b16 %v8386
      %v8456 = vunpack.c.l.b16 %v8387
      %v8457 = vunpack.c.l.b16 %v8388
      %v8458 = vunpack.c.l.b16 %v8389
      %v8459 = vpack.c.b16 %v8428, %v8427
      %v8460 = vpack.c.b16 %v8430, %v8429
      %v8461 = vpack.c.b16 %v8432, %v8431
      %v8462 = vpack.c.b16 %v8434, %v8433
      %v8463 = vpack.c.b16 %v8436, %v8435
      %v8464 = vpack.c.b16 %v8438, %v8437
      %v8465 = vpack.c.b16 %v8440, %v8439
      %v8466 = vpack.c.b16 %v8442, %v8441
      %v8467 = vpack.c.b16 %v8444, %v8443
      %v8468 = vpack.c.b16 %v8446, %v8445
      %v8469 = vpack.c.b16 %v8448, %v8447
      %v8470 = vpack.c.b16 %v8450, %v8449
      %v8471 = vpack.c.b16 %v8452, %v8451
      %v8472 = vpack.c.b16 %v8454, %v8453
      %v8473 = vpack.c.b16 %v8456, %v8455
      %v8474 = vpack.c.b16 %v8458, %v8457
      %vm8475 = vcmask 31744
      %v8477 = vsel %vm8475, %v8459, 0
      %v8480 = vsel %vm8475, %v8460, 0
      %v8483 = vsel %vm8475, %v8461, 0
      %v8486 = vsel %vm8475, %v8462, 0
      %v8489 = vsel %vm8475, %v8463, 0
      %v8492 = vsel %vm8475, %v8464, 0
      %v8495 = vsel %vm8475, %v8465, 0
      %v8498 = vsel %vm8475, %v8466, 0
      %v8501 = vsel %vm8475, %v8467, 0
      %v8504 = vsel %vm8475, %v8468, 0
      %v8507 = vsel %vm8475, %v8469, 0
      %v8510 = vsel %vm8475, %v8470, 0
      %v8513 = vsel %vm8475, %v8471, 0
      %v8516 = vsel %vm8475, %v8472, 0
      %v8519 = vsel %vm8475, %v8473, 0
      %v8522 = vsel %vm8475, %v8474, 0
      %v8525 = vsel %vm4207, %v8390, 0
      %8527 = vmatpush.bf16.msra.mxu0 0
      %8528 = vmatpush.bf16.msra.mxu0 0
      %8529 = vmatpush.bf16.msra.mxu0 0
      %8530 = vmatpush.bf16.msra.mxu0 0
      %8531 = vmatpush.bf16.msra.mxu0 0
      %8532 = vmatpush.bf16.msra.mxu0 0
      %8533 = vmatpush.bf16.msra.mxu0 0
      %8534 = vmatpush.bf16.msra.mxu0 %v8525
      %8535 = vmatmul.bf16.gmra.mxu0 %v8477
      %v8536 = vpop.f32.mrf.mxu0
      %v8537 = vadd.f32 %v8393, %v8536
      %v8538 = vpop.f32.mrf.mxu0
      %v8539 = vadd.f32 %v8393, %v8538
      %8540 = vmatmul.bf16.gmra.mxu0 %v8480
      %v8541 = vpop.f32.mrf.mxu0
      %v8542 = vadd.f32 %v8393, %v8541
      %v8543 = vpop.f32.mrf.mxu0
      %v8544 = vadd.f32 %v8393, %v8543
      %8545 = vmatmul.bf16.gmra.mxu0 %v8483
      %v8546 = vpop.f32.mrf.mxu0
      %v8547 = vadd.f32 %v8393, %v8546
      %v8548 = vpop.f32.mrf.mxu0
      %v8549 = vadd.f32 %v8393, %v8548
      %8550 = vmatmul.bf16.gmra.mxu0 %v8486
      %v8551 = vpop.f32.mrf.mxu0
      %v8552 = vadd.f32 %v8393, %v8551
      %v8553 = vpop.f32.mrf.mxu0
      %v8554 = vadd.f32 %v8393, %v8553
      %8555 = vmatmul.bf16.gmra.mxu0 %v8489
      %v8556 = vpop.f32.mrf.mxu0
      %v8557 = vadd.f32 %v8393, %v8556
      %v8558 = vpop.f32.mrf.mxu0
      %v8559 = vadd.f32 %v8393, %v8558
      %8560 = vmatmul.bf16.gmra.mxu0 %v8492
      %v8561 = vpop.f32.mrf.mxu0
      %v8562 = vadd.f32 %v8393, %v8561
      %v8563 = vpop.f32.mrf.mxu0
      %v8564 = vadd.f32 %v8393, %v8563
      %8565 = vmatmul.bf16.gmra.mxu0 %v8495
      %v8566 = vpop.f32.mrf.mxu0
      %v8567 = vadd.f32 %v8393, %v8566
      %v8568 = vpop.f32.mrf.mxu0
      %v8569 = vadd.f32 %v8393, %v8568
      %8570 = vmatmul.bf16.gmra.mxu0 %v8498
      %v8571 = vpop.f32.mrf.mxu0
      %v8572 = vadd.f32 %v8393, %v8571
      %v8573 = vpop.f32.mrf.mxu0
      %v8574 = vadd.f32 %v8393, %v8573
      %8575 = vmatmul.bf16.gmra.mxu0 %v8501
      %v8576 = vpop.f32.mrf.mxu0
      %v8577 = vadd.f32 %v8393, %v8576
      %v8578 = vpop.f32.mrf.mxu0
      %v8579 = vadd.f32 %v8393, %v8578
      %8580 = vmatmul.bf16.gmra.mxu0 %v8504
      %v8581 = vpop.f32.mrf.mxu0
      %v8582 = vadd.f32 %v8393, %v8581
      %v8583 = vpop.f32.mrf.mxu0
      %v8584 = vadd.f32 %v8393, %v8583
      %8585 = vmatmul.bf16.gmra.mxu0 %v8507
      %v8586 = vpop.f32.mrf.mxu0
      %v8587 = vadd.f32 %v8393, %v8586
      %v8588 = vpop.f32.mrf.mxu0
      %v8589 = vadd.f32 %v8393, %v8588
      %8590 = vmatmul.bf16.gmra.mxu0 %v8510
      %v8591 = vpop.f32.mrf.mxu0
      %v8592 = vadd.f32 %v8393, %v8591
      %v8593 = vpop.f32.mrf.mxu0
      %v8594 = vadd.f32 %v8393, %v8593
      %8595 = vmatmul.bf16.gmra.mxu0 %v8513
      %v8596 = vpop.f32.mrf.mxu0
      %v8597 = vadd.f32 %v8393, %v8596
      %v8598 = vpop.f32.mrf.mxu0
      %v8599 = vadd.f32 %v8393, %v8598
      %8600 = vmatmul.bf16.gmra.mxu0 %v8516
      %v8601 = vpop.f32.mrf.mxu0
      %v8602 = vadd.f32 %v8393, %v8601
      %v8603 = vpop.f32.mrf.mxu0
      %v8604 = vadd.f32 %v8393, %v8603
      %8605 = vmatmul.bf16.gmra.mxu0 %v8519
      %v8606 = vpop.f32.mrf.mxu0
      %v8607 = vadd.f32 %v8393, %v8606
      %v8608 = vpop.f32.mrf.mxu0
      %v8609 = vadd.f32 %v8393, %v8608
      %8610 = vmatmul.bf16.gmra.mxu0 %v8522
      %v8611 = vpop.f32.mrf.mxu0
      %v8612 = vadd.f32 %v8393, %v8611
      %v8613 = vpop.f32.mrf.mxu0
      %v8614 = vadd.f32 %v8393, %v8613
      %8615 = vdwg.mxu0
      %v8616 = vadd.f32 %v8279, %v8537
      %v8617 = vadd.f32 %v8281, %v8539
      %v8618 = vadd.f32 %v8284, %v8542
      %v8619 = vadd.f32 %v8286, %v8544
      %v8620 = vadd.f32 %v8289, %v8547
      %v8621 = vadd.f32 %v8291, %v8549
      %v8622 = vadd.f32 %v8294, %v8552
      %v8623 = vadd.f32 %v8296, %v8554
      %v8624 = vadd.f32 %v8299, %v8557
      %v8625 = vadd.f32 %v8301, %v8559
      %v8626 = vadd.f32 %v8304, %v8562
      %v8627 = vadd.f32 %v8306, %v8564
      %v8628 = vadd.f32 %v8309, %v8567
      %v8629 = vadd.f32 %v8311, %v8569
      %v8630 = vadd.f32 %v8314, %v8572
      %v8631 = vadd.f32 %v8316, %v8574
      %v8632 = vadd.f32 %v8319, %v8577
      %v8633 = vadd.f32 %v8321, %v8579
      %v8634 = vadd.f32 %v8324, %v8582
      %v8635 = vadd.f32 %v8326, %v8584
      %v8636 = vadd.f32 %v8329, %v8587
      %v8637 = vadd.f32 %v8331, %v8589
      %v8638 = vadd.f32 %v8334, %v8592
      %v8639 = vadd.f32 %v8336, %v8594
      %v8640 = vadd.f32 %v8339, %v8597
      %v8641 = vadd.f32 %v8341, %v8599
      %v8642 = vadd.f32 %v8344, %v8602
      %v8643 = vadd.f32 %v8346, %v8604
      %v8644 = vadd.f32 %v8349, %v8607
      %v8645 = vadd.f32 %v8351, %v8609
      %v8646 = vadd.f32 %v8354, %v8612
      %v8647 = vadd.f32 %v8356, %v8614
      %v8648 = vmax.f32 %v8616, 0.0
      %v8649 = vmax.f32 %v8617, 0.0
      %v8650 = vmax.f32 %v8618, 0.0
      %v8651 = vmax.f32 %v8619, 0.0
      %v8652 = vmax.f32 %v8620, 0.0
      %v8653 = vmax.f32 %v8621, 0.0
      %v8654 = vmax.f32 %v8622, 0.0
      %v8655 = vmax.f32 %v8623, 0.0
      %v8656 = vmax.f32 %v8624, 0.0
      %v8657 = vmax.f32 %v8625, 0.0
      %v8658 = vmax.f32 %v8626, 0.0
      %v8659 = vmax.f32 %v8627, 0.0
      %v8660 = vmax.f32 %v8628, 0.0
      %v8661 = vmax.f32 %v8629, 0.0
      %v8662 = vmax.f32 %v8630, 0.0
      %v8663 = vmax.f32 %v8631, 0.0
      %v8664 = vmax.f32 %v8632, 0.0
      %v8665 = vmax.f32 %v8633, 0.0
      %v8666 = vmax.f32 %v8634, 0.0
      %v8667 = vmax.f32 %v8635, 0.0
      %v8668 = vmax.f32 %v8636, 0.0
      %v8669 = vmax.f32 %v8637, 0.0
      %v8670 = vmax.f32 %v8638, 0.0
      %v8671 = vmax.f32 %v8639, 0.0
      %v8672 = vmax.f32 %v8640, 0.0
      %v8673 = vmax.f32 %v8641, 0.0
      %v8674 = vmax.f32 %v8642, 0.0
      %v8675 = vmax.f32 %v8643, 0.0
      %v8676 = vmax.f32 %v8644, 0.0
      %v8677 = vmax.f32 %v8645, 0.0
      %v8678 = vmax.f32 %v8646, 0.0
      %v8679 = vmax.f32 %v8647, 0.0
      %vm8680 = vcmask 64512
      %8681 = vst.msk [vmem:[%s278] sm:$0xff] %vm8680, %v8648
      %8682 = vst.msk [vmem:[%s278 + $0x8] sm:$0xff] %vm8680, %v8649
      %8683 = vst.msk [vmem:[%s278 + $0x10] sm:$0xff] %vm8680, %v8650
      %8684 = vst.msk [vmem:[%s278 + $0x18] sm:$0xff] %vm8680, %v8651
      %8685 = vst.msk [vmem:[%s278 + $0x20] sm:$0xff] %vm8680, %v8652
      %8686 = vst.msk [vmem:[%s278 + $0x28] sm:$0xff] %vm8680, %v8653
      %8687 = vst.msk [vmem:[%s278 + $0x30] sm:$0xff] %vm8680, %v8654
      %8688 = vst.msk [vmem:[%s278 + $0x38] sm:$0xff] %vm8680, %v8655
      %8689 = vst.msk [vmem:[%s278 + $0x40] sm:$0xff] %vm8680, %v8656
      %8690 = vst.msk [vmem:[%s278 + $0x48] sm:$0xff] %vm8680, %v8657
      %8691 = vst.msk [vmem:[%s278 + $0x50] sm:$0xff] %vm8680, %v8658
      %8692 = vst.msk [vmem:[%s278 + $0x58] sm:$0xff] %vm8680, %v8659
      %8693 = vst.msk [vmem:[%s278 + $0x60] sm:$0xff] %vm8680, %v8660
      %8694 = vst.msk [vmem:[%s278 + $0x68] sm:$0xff] %vm8680, %v8661
      %8695 = vst.msk [vmem:[%s278 + $0x70] sm:$0xff] %vm8680, %v8662
      %8696 = vst.msk [vmem:[%s278 + $0x78] sm:$0xff] %vm8680, %v8663
      %8697 = vst.msk [vmem:[%s278 + $0x80] sm:$0xff] %vm8680, %v8664
      %8698 = vst.msk [vmem:[%s278 + $0x88] sm:$0xff] %vm8680, %v8665
      %8699 = vst.msk [vmem:[%s278 + $0x90] sm:$0xff] %vm8680, %v8666
      %8700 = vst.msk [vmem:[%s278 + $0x98] sm:$0xff] %vm8680, %v8667
      %8701 = vst.msk [vmem:[%s278 + $0xa0] sm:$0xff] %vm8680, %v8668
      %8702 = vst.msk [vmem:[%s278 + $0xa8] sm:$0xff] %vm8680, %v8669
      %8703 = vst.msk [vmem:[%s278 + $0xb0] sm:$0xff] %vm8680, %v8670
      %8704 = vst.msk [vmem:[%s278 + $0xb8] sm:$0xff] %vm8680, %v8671
      %8705 = vst.msk [vmem:[%s278 + $0xc0] sm:$0xff] %vm8680, %v8672
      %8706 = vst.msk [vmem:[%s278 + $0xc8] sm:$0xff] %vm8680, %v8673
      %8707 = vst.msk [vmem:[%s278 + $0xd0] sm:$0xff] %vm8680, %v8674
      %8708 = vst.msk [vmem:[%s278 + $0xd8] sm:$0xff] %vm8680, %v8675
      %8709 = vst.msk [vmem:[%s278 + $0xe0] sm:$0xff] %vm8680, %v8676
      %8710 = vst.msk [vmem:[%s278 + $0xe8] sm:$0xff] %vm8680, %v8677
      %8711 = vst.msk [vmem:[%s278 + $0xf0] sm:$0xff] %vm8680, %v8678
      %8712 = vst.msk [vmem:[%s278 + $0xf8] sm:$0xff] %vm8680, %v8679
      %p8713 = scmp.lt.s32.totalorder %s18, 1
      %s8714 = scalar_select %p8713, %s18, 1
      %s8715 = smul.addr %s8714, 32
      %s8716 = smul.addr %s8715, 8
      %s8717 = scalar_lea.vmem %s7, %s8716
      // Predicated region
      $region49: #{tpu_custom_call.1} parent=47 // pred_check
        %p8718 = pneg %p188
      $region50: #{tpu_custom_call.1} parent=47 // pred_check_branch
        %8720 = sbr.rel (%p8718) target = $region52
      $region51: #{tpu_custom_call.1} parent=47 // pred_region
        _
      $region52: #{tpu_custom_call.1} parent=47 // pred_fallthru
        _
    $region48: #{tpu_custom_call.1} parent=5 // pred_fallthru
      _
    %p8721 = scmp.le.s32.totalorder 2, %s13
    // Predicated region
    $region53: #{tpu_custom_call.1} parent=5 // pred_check
      %p8722 = pneg %p8721
    $region54: #{tpu_custom_call.1} parent=5 // pred_check_branch
      %8724 = sbr.rel (%p8722) target = $region56
    $region55: #{tpu_custom_call.1} parent=5 // pred_region
      %s8725 = ssub.s32 %s13, 2
      // Predicated region
      $region57: #{tpu_custom_call.1} parent=55 // pred_check
        %p8726 = pneg %p194
      $region58: #{tpu_custom_call.1} parent=55 // pred_check_branch
        %8728 = sbr.rel (%p8726) target = $region60
      $region59: #{tpu_custom_call.1} parent=55 // pred_region
        %p8729 = scmp.lt.s32.totalorder %s19, 1
        %s8730 = scalar_select %p8729, %s19, 1
        %s8731 = smul.addr %s8730, 32
        %s8732 = smul.addr %s8731, 8
        %s8733 = scalar_lea.vmem %s7, %s8732
      $region60: #{tpu_custom_call.1} parent=55 // pred_fallthru
        _
    $region56: #{tpu_custom_call.1} parent=5 // pred_fallthru
      _
  $region6: #{tpu_custom_call.1} parent=0 // loop_footer
    %s17 = sadd.s32 1, %s13
  $region7: #{tpu_custom_call.1} parent=0 // loop_footer_branch
    %12 = sbr.rel target = $region3
  $region8: #{tpu_custom_call.1} parent=0 // loop_exit
    _

</llo_original>
